<compile_context>
chip_gen: v6e
topology: v6e:2x2x1
jax: 0.10.0
libtpu: 0.0.40
codegen_flags: <defaults>
</compile_context>

<pallas_src>
import numpy as np
import jax
import jax.numpy as jnp
from jax.experimental import pallas as pl
from jax.experimental.pallas import tpu as pltpu

EPS = 1e-5
K = 5
STRIDE = 2
PAD = 2


def conv_out_size(s):
    return (s + 2 * PAD - K) // STRIDE + 1


# ---------------------------------------------------------------------------
# Single fused Pallas kernel:
#   conv1(+BN+ReLU) -> conv2(+BN+ReLU) -> conv3(+BN+ReLU) -> conv4
# ---------------------------------------------------------------------------
def encoder_kernel(p1_ref, w1_ref, g1_ref, b1_ref,
                   s2_ref, g2_ref, b2_ref,
                   s3_ref, g3_ref, b3_ref,
                   s4_ref, w4_ref,
                   w2_hbm_ref, w3_hbm_ref,
                   o_ref,
                   w2_buf, w3_buf, dma_sem):
    # Kick off the two large weight DMAs immediately; they are not needed
    # until layers 2 and 3, so they overlap with earlier compute.
    w2_cp = pltpu.make_async_copy(w2_hbm_ref, w2_buf, dma_sem.at[0])
    w3_cp = pltpu.make_async_copy(w3_hbm_ref, w3_buf, dma_sem.at[1])
    w2_cp.start()
    w3_cp.start()

    def bn_relu(y, g_ref, b_ref):
        # Training-mode BatchNorm2d over rows (== N*H*W), one-pass stats.
        inv_n = 1.0 / y.shape[0]
        s1 = jnp.sum(y, axis=0, keepdims=True)
        s2 = jnp.sum(y * y, axis=0, keepdims=True)
        mean = s1 * inv_n
        var = s2 * inv_n - mean * mean
        scale = g_ref[...] * jax.lax.rsqrt(var + EPS)     # fold affine into FMA
        shift = b_ref[...] - mean * scale
        return jnp.maximum(y * scale + shift, 0.0)

    def conv_layer(a_bf16, wcat, s_ref, cout):
        # a_bf16: (rows_in, Cin) bf16, rows ordered (n, h, w).
        # wcat:   (Cin, T*Cout) bf16, column block t = per-tap weight W_t.
        # s_ref:  (T, rows_out, rows_in) bf16 0/1 row gathers (stride+pad).
        # One big-K/N matmul for ALL taps, then T lane-aligned selection
        # matmuls accumulated into a single identically-shaped f32 acc.
        aw = jnp.dot(a_bf16, wcat, preferred_element_type=jnp.float32)
        aw = aw.astype(jnp.bfloat16)
        n_taps = s_ref.shape[0]
        acc = jnp.dot(s_ref[0], aw[:, :cout],
                      preferred_element_type=jnp.float32)
        for t in range(1, n_taps):                        # unrolled, small T
            acc = acc + jnp.dot(s_ref[t], aw[:, t * cout:(t + 1) * cout],
                                preferred_element_type=jnp.float32)
        return acc

    # Layer 1: im2col patches built outside the kernel -> one matmul.
    a = jnp.dot(p1_ref[...], w1_ref[...], preferred_element_type=jnp.float32)
    a = bn_relu(a, g1_ref, b1_ref).astype(jnp.bfloat16)            # (128, 64)

    # Layer 2 (needs w2_cat).
    w2_cp.wait()
    a = bn_relu(conv_layer(a, w2_buf[...], s2_ref, 128), g2_ref, b2_ref)
    a = a.astype(jnp.bfloat16)                                      # (32, 128)

    # Layer 3 (needs w3_cat).
    w3_cp.wait()
    a = bn_relu(conv_layer(a, w3_buf[...], s3_ref, 256), g3_ref, b3_ref)
    a = a.astype(jnp.bfloat16)                                      # (8, 256)

    # Layer 4: conv only (no BN/ReLU), 4 surviving taps.
    o_ref[...] = conv_layer(a, w4_ref[...], s4_ref, o_ref.shape[1])  # (2, 8)


# ---------------------------------------------------------------------------
# Host-side (static) planning: 0/1 row-gather matrices for layers 2..4
# ---------------------------------------------------------------------------
def build_tap_plan(n, h, w):
    """Per-tap 0/1 row-gather matrices for conv(k=5, s=2, p=2) on (n, h, w)."""
    ho, wo = conv_out_size(h), conv_out_size(w)
    r_out, r_in = n * ho * wo, n * h * w
    taps, mats = [], []
    for kh in range(K):
        for kw in range(K):
            s = np.zeros((r_out, r_in), np.float32)
            hit = False
            for b in range(n):
                for oh in range(ho):
                    ih = STRIDE * oh + kh - PAD
                    if not (0 <= ih < h):
                        continue
                    for ow in range(wo):
                        iw = STRIDE * ow + kw - PAD
                        if not (0 <= iw < w):
                            continue
                        s[(b * ho + oh) * wo + ow, (b * h + ih) * w + iw] = 1.0
                        hit = True
            if hit:                       # drop taps that only see padding
                taps.append((kh, kw))
                mats.append(s)
    return ho, wo, taps, np.stack(mats)


# ---------------------------------------------------------------------------
# Parameters (PyTorch layout) and one-time kernel-input preparation
# ---------------------------------------------------------------------------
def init_params(key, in_channels, out_channels):
    channels = [in_channels, 64, 128, 256, out_channels]
    params = []
    for i in range(4):
        cin, cout = channels[i], channels[i + 1]
        key, kw_, kg, kb = jax.random.split(key, 4)
        scale = 1.0 / jnp.sqrt(jnp.float32(K * K * cin))
        layer = {"w": jax.random.normal(kw_, (cout, cin, K, K), jnp.float32) * scale}
        if i < 3:  # BN + ReLU follow the first three convs (all convs bias=False)
            layer["gamma"] = 1.0 + 0.1 * jax.random.normal(kg, (cout,), jnp.float32)
            layer["beta"] = 0.1 * jax.random.normal(kb, (cout,), jnp.float32)
        params.append(layer)
    return params


def prepare_inputs(params, x_shape):
    """Rearrange weights once (bf16) and build static gather matrices."""
    n, cin, h, w = x_shape
    prep = {}
    # Layer 1: flattened weight, columns ordered (kh, kw, cin) to match im2col.
    prep["w1"] = jnp.transpose(params[0]["w"], (2, 3, 1, 0)) \
        .reshape(K * K * cin, -1).astype(jnp.bfloat16)
    prep["g1"] = params[0]["gamma"].reshape(1, -1)
    prep["b1"] = params[0]["beta"].reshape(1, -1)
    hh, ww = conv_out_size(h), conv_out_size(w)
    for i in (1, 2, 3):
        ho, wo, taps, s = build_tap_plan(n, hh, ww)
        prep[f"s{i + 1}"] = jnp.asarray(s, jnp.bfloat16)      # 0/1: exact in bf16
        # W_cat: (Cin, T*Cout); column block t is weight[:, :, kh_t, kw_t].T
        wcat = jnp.concatenate(
            [params[i]["w"][:, :, kh, kw].T for (kh, kw) in taps], axis=1)
        prep[f"w{i + 1}"] = wcat.astype(jnp.bfloat16)
        if i < 3:
            prep[f"g{i + 1}"] = params[i]["gamma"].reshape(1, -1)
            prep[f"b{i + 1}"] = params[i]["beta"].reshape(1, -1)
        hh, ww = ho, wo
    return prep


# ---------------------------------------------------------------------------
# Layer-1 im2col on the raw NCHW input (single tiny XLA fusion)
# ---------------------------------------------------------------------------
def im2col_layer1(x_nchw):
    n, c, h, w = x_nchw.shape
    ho, wo = conv_out_size(h), conv_out_size(w)
    xp = jnp.pad(x_nchw, ((0, 0), (0, 0), (PAD, PAD), (PAD, PAD)))
    taps = []
    for kh in range(K):
        for kw in range(K):
            t = xp[:, :, kh:kh + STRIDE * (ho - 1) + 1:STRIDE,
                         kw:kw + STRIDE * (wo - 1) + 1:STRIDE]
            taps.append(jnp.transpose(t, (0, 2, 3, 1)))        # (N, Ho, Wo, C)
    p = jnp.stack(taps, axis=3)                                # (N, Ho, Wo, 25, C)
    return p.reshape(n * ho * wo, K * K * c)


# ---------------------------------------------------------------------------
# Forward pass: one pallas_call
# ---------------------------------------------------------------------------
def encoder_forward(x, prep):
    n = x.shape[0]
    patches = im2col_layer1(x).astype(jnp.bfloat16)
    rows_out = prep["s4"].shape[1]
    n_taps4 = prep["s4"].shape[0]
    cout = prep["w4"].shape[1] // n_taps4
    vmem = pl.BlockSpec(memory_space=pltpu.MemorySpace.VMEM)
    hbm = pl.BlockSpec(memory_space=pl.ANY)
    out2d = pl.pallas_call(
        encoder_kernel,
        out_shape=jax.ShapeDtypeStruct((rows_out, cout), jnp.float32),
        in_specs=[vmem] * 12 + [hbm, hbm],
        out_specs=vmem,
        scratch_shapes=[
            pltpu.VMEM(prep["w2"].shape, jnp.bfloat16),   # w2_cat landing buffer
            pltpu.VMEM(prep["w3"].shape, jnp.bfloat16),   # w3_cat landing buffer
            pltpu.SemaphoreType.DMA((2,)),
        ],
        compiler_params=pltpu.CompilerParams(vmem_limit_bytes=32 * 1024 * 1024),
    )(patches, prep["w1"], prep["g1"], prep["b1"],
      prep["s2"], prep["g2"], prep["b2"],
      prep["s3"], prep["g3"], prep["b3"],
      prep["s4"], prep["w4"],
      prep["w2"], prep["w3"])
    ho, wo = x.shape[2], x.shape[3]
    for _ in range(4):
        ho, wo = conv_out_size(ho), conv_out_size(wo)
    return jnp.transpose(out2d.reshape(n, ho, wo, cout), (0, 3, 1, 2))  # NCHW


# ---------------------------------------------------------------------------
# Pure-JAX f32 reference (correctness check only)
# ---------------------------------------------------------------------------
def reference_forward(x, params):
    y = x
    for i in range(4):
        y = jax.lax.conv_general_dilated(
            y, params[i]["w"], window_strides=(STRIDE, STRIDE),
            padding=((PAD, PAD), (PAD, PAD)),
            dimension_numbers=("NCHW", "OIHW", "NCHW"))
        if i < 3:
            g = params[i]["gamma"].reshape(1, -1, 1, 1)
            b = params[i]["beta"].reshape(1, -1, 1, 1)
            mean = y.mean(axis=(0, 2, 3), keepdims=True)
            var = jnp.mean(jnp.square(y - mean), axis=(0, 2, 3), keepdims=True)
            y = jnp.maximum((y - mean) * jax.lax.rsqrt(var + EPS) * g + b, 0.0)
    return y


if __name__ == "__main__":
    in_channels, out_channels = 3, 8
    key = jax.random.PRNGKey(0)
    key, kx = jax.random.split(key)
    x = jax.random.normal(kx, (2, in_channels, 16, 16), jnp.float32)  # NCHW

    params = init_params(key, in_channels, out_channels)
    prep = prepare_inputs(params, x.shape)

    fwd = jax.jit(encoder_forward)
    out = jax.block_until_ready(fwd(x, prep))

    ref = jax.block_until_ready(reference_forward(x, params))
    assert out.shape == (2, out_channels, 1, 1), out.shape
    # Tolerance widened from 2e-3: MXU operands are bf16 (f32 accumulation and
    # f32 BatchNorm statistics) per the performance review.
    assert jnp.allclose(out, ref, rtol=2e-2, atol=2e-2), \
        float(jnp.max(jnp.abs(out - ref)))

    print("KERNEL_OK")
</pallas_src>

<mosaic_0001>
module attributes {stable_mosaic.version = 11 : i64} {
  func.func @encoder_kernel(%arg0: memref<128x75xbf16, #tpu.memory_space<vmem>>, %arg1: memref<75x64xbf16, #tpu.memory_space<vmem>>, %arg2: memref<1x64xf32, #tpu.memory_space<vmem>>, %arg3: memref<1x64xf32, #tpu.memory_space<vmem>>, %arg4: memref<25x32x128xbf16, #tpu.memory_space<vmem>>, %arg5: memref<1x128xf32, #tpu.memory_space<vmem>>, %arg6: memref<1x128xf32, #tpu.memory_space<vmem>>, %arg7: memref<25x8x32xbf16, #tpu.memory_space<vmem>>, %arg8: memref<1x256xf32, #tpu.memory_space<vmem>>, %arg9: memref<1x256xf32, #tpu.memory_space<vmem>>, %arg10: memref<4x2x8xbf16, #tpu.memory_space<vmem>>, %arg11: memref<256x32xbf16, #tpu.memory_space<vmem>>, %arg12: memref<64x3200xbf16, #tpu.memory_space<any>>, %arg13: memref<128x6400xbf16, #tpu.memory_space<any>>, %arg14: memref<2x8xf32, #tpu.memory_space<vmem>>, %arg15: memref<64x3200xbf16, #tpu.memory_space<vmem>>, %arg16: memref<128x6400xbf16, #tpu.memory_space<vmem>>, %arg17: memref<2x!tpu.dma_semaphore, #tpu.memory_space<semaphore_mem>>) attributes {dimension_semantics = [], scalar_prefetch = 0 : i64, scratch_operands = 3 : i64, tpu.core_type = #tpu.core_type<tc>} {
    %c0_i32 = arith.constant 0 : i32
    %0 = tpu.memref_slice %arg17[%c0_i32] : memref<2x!tpu.dma_semaphore, #tpu.memory_space<semaphore_mem>> -> memref<1x!tpu.dma_semaphore, #tpu.memory_space<semaphore_mem>>
    %1 = tpu.memref_squeeze %0 : memref<1x!tpu.dma_semaphore, #tpu.memory_space<semaphore_mem>> -> memref<!tpu.dma_semaphore, #tpu.memory_space<semaphore_mem>>
    tpu.enqueue_dma source(%arg12 : memref<64x3200xbf16, #tpu.memory_space<any>>) target(%arg15 : memref<64x3200xbf16, #tpu.memory_space<vmem>>) target_semaphore(%1 : memref<!tpu.dma_semaphore, #tpu.memory_space<semaphore_mem>>)
    %c1_i32 = arith.constant 1 : i32
    %2 = tpu.memref_slice %arg17[%c1_i32] : memref<2x!tpu.dma_semaphore, #tpu.memory_space<semaphore_mem>> -> memref<1x!tpu.dma_semaphore, #tpu.memory_space<semaphore_mem>>
    %3 = tpu.memref_squeeze %2 : memref<1x!tpu.dma_semaphore, #tpu.memory_space<semaphore_mem>> -> memref<!tpu.dma_semaphore, #tpu.memory_space<semaphore_mem>>
    tpu.enqueue_dma source(%arg13 : memref<128x6400xbf16, #tpu.memory_space<any>>) target(%arg16 : memref<128x6400xbf16, #tpu.memory_space<vmem>>) target_semaphore(%3 : memref<!tpu.dma_semaphore, #tpu.memory_space<semaphore_mem>>)
    %c0 = arith.constant 0 : index
    %c0_0 = arith.constant 0 : index
    %4 = vector.load %arg0[%c0, %c0_0] : memref<128x75xbf16, #tpu.memory_space<vmem>>, vector<128x75xbf16>
    %c0_1 = arith.constant 0 : index
    %c0_2 = arith.constant 0 : index
    %5 = vector.load %arg1[%c0_1, %c0_2] : memref<75x64xbf16, #tpu.memory_space<vmem>>, vector<75x64xbf16>
    %cst = arith.constant dense<0.000000e+00> : vector<128x64xf32>
    %6 = tpu.matmul %4, %5, %cst {dimension_numbers = #tpu.dot_dimension_numbers<[1], [0], [0], [1], [0, 0, 1, 1], [], []>} : vector<128x75xbf16>, vector<75x64xbf16>, vector<128x64xf32> -> vector<128x64xf32>
    %cst_3 = arith.constant dense<0.000000e+00> : vector<64xf32>
    %7 = vector.multi_reduction <add>, %6, %cst_3 [0] : vector<128x64xf32> to vector<64xf32>
    %8 = vector.shape_cast %7 : vector<64xf32> to vector<1x64xf32>
    %9 = arith.mulf %6, %6 : vector<128x64xf32>
    %cst_4 = arith.constant dense<0.000000e+00> : vector<64xf32>
    %10 = vector.multi_reduction <add>, %9, %cst_4 [0] : vector<128x64xf32> to vector<64xf32>
    %11 = vector.shape_cast %10 : vector<64xf32> to vector<1x64xf32>
    %cst_5 = arith.constant 7.812500e-03 : f32
    %12 = vector.broadcast %cst_5 : f32 to vector<1x64xf32>
    %13 = arith.mulf %8, %12 : vector<1x64xf32>
    %cst_6 = arith.constant 7.812500e-03 : f32
    %14 = vector.broadcast %cst_6 : f32 to vector<1x64xf32>
    %15 = arith.mulf %11, %14 : vector<1x64xf32>
    %16 = arith.mulf %13, %13 : vector<1x64xf32>
    %17 = arith.subf %15, %16 : vector<1x64xf32>
    %c0_7 = arith.constant 0 : index
    %c0_8 = arith.constant 0 : index
    %18 = vector.load %arg2[%c0_7, %c0_8] : memref<1x64xf32, #tpu.memory_space<vmem>>, vector<1x64xf32>
    %cst_9 = arith.constant 9.99999974E-6 : f32
    %19 = vector.broadcast %cst_9 : f32 to vector<1x64xf32>
    %20 = arith.addf %17, %19 : vector<1x64xf32>
    %21 = math.rsqrt %20 : vector<1x64xf32>
    %22 = arith.mulf %18, %21 : vector<1x64xf32>
    %c0_10 = arith.constant 0 : index
    %c0_11 = arith.constant 0 : index
    %23 = vector.load %arg3[%c0_10, %c0_11] : memref<1x64xf32, #tpu.memory_space<vmem>>, vector<1x64xf32>
    %24 = arith.mulf %13, %22 : vector<1x64xf32>
    %25 = arith.subf %23, %24 : vector<1x64xf32>
    %26 = vector.broadcast %22 : vector<1x64xf32> to vector<128x64xf32>
    %27 = arith.mulf %6, %26 : vector<128x64xf32>
    %28 = vector.broadcast %25 : vector<1x64xf32> to vector<128x64xf32>
    %29 = arith.addf %27, %28 : vector<128x64xf32>
    %cst_12 = arith.constant 0.000000e+00 : f32
    %30 = vector.broadcast %cst_12 : f32 to vector<128x64xf32>
    %31 = arith.maximumf %29, %30 : vector<128x64xf32>
    %32 = arith.truncf %31 : vector<128x64xf32> to vector<128x64xbf16>
    %c0_i32_13 = arith.constant 0 : i32
    %33 = tpu.memref_slice %arg17[%c0_i32_13] : memref<2x!tpu.dma_semaphore, #tpu.memory_space<semaphore_mem>> -> memref<1x!tpu.dma_semaphore, #tpu.memory_space<semaphore_mem>>
    %34 = tpu.memref_squeeze %33 : memref<1x!tpu.dma_semaphore, #tpu.memory_space<semaphore_mem>> -> memref<!tpu.dma_semaphore, #tpu.memory_space<semaphore_mem>>
    tpu.wait_dma2 semaphore(%34 : memref<!tpu.dma_semaphore, #tpu.memory_space<semaphore_mem>>) src(%arg12 : memref<64x3200xbf16, #tpu.memory_space<any>>) dst(%arg15 : memref<64x3200xbf16, #tpu.memory_space<vmem>>)
    %c0_14 = arith.constant 0 : index
    %c0_15 = arith.constant 0 : index
    %35 = vector.load %arg15[%c0_14, %c0_15] : memref<64x3200xbf16, #tpu.memory_space<vmem>>, vector<64x3200xbf16>
    %cst_16 = arith.constant dense<0.000000e+00> : vector<128x3200xf32>
    %36 = tpu.matmul %32, %35, %cst_16 {dimension_numbers = #tpu.dot_dimension_numbers<[1], [0], [0], [1], [0, 0, 1, 1], [], []>} : vector<128x64xbf16>, vector<64x3200xbf16>, vector<128x3200xf32> -> vector<128x3200xf32>
    %37 = arith.truncf %36 : vector<128x3200xf32> to vector<128x3200xbf16>
    %c0_17 = arith.constant 0 : index
    %c0_18 = arith.constant 0 : index
    %c0_19 = arith.constant 0 : index
    %38 = vector.load %arg4[%c0_17, %c0_18, %c0_19] : memref<25x32x128xbf16, #tpu.memory_space<vmem>>, vector<1x32x128xbf16>
    %39 = vector.shape_cast %38 : vector<1x32x128xbf16> to vector<32x128xbf16>
    %40 = vector.extract_strided_slice %37 {offsets = [0, 0], sizes = [128, 128], strides = [1, 1]} : vector<128x3200xbf16> to vector<128x128xbf16>
    %cst_20 = arith.constant dense<0.000000e+00> : vector<32x128xf32>
    %41 = tpu.matmul %39, %40, %cst_20 {dimension_numbers = #tpu.dot_dimension_numbers<[1], [0], [0], [1], [0, 0, 1, 1], [], []>} : vector<32x128xbf16>, vector<128x128xbf16>, vector<32x128xf32> -> vector<32x128xf32>
    %c1 = arith.constant 1 : index
    %c0_21 = arith.constant 0 : index
    %c0_22 = arith.constant 0 : index
    %42 = vector.load %arg4[%c1, %c0_21, %c0_22] : memref<25x32x128xbf16, #tpu.memory_space<vmem>>, vector<1x32x128xbf16>
    %43 = vector.shape_cast %42 : vector<1x32x128xbf16> to vector<32x128xbf16>
    %44 = vector.extract_strided_slice %37 {offsets = [0, 128], sizes = [128, 128], strides = [1, 1]} : vector<128x3200xbf16> to vector<128x128xbf16>
    %cst_23 = arith.constant dense<0.000000e+00> : vector<32x128xf32>
    %45 = tpu.matmul %43, %44, %cst_23 {dimension_numbers = #tpu.dot_dimension_numbers<[1], [0], [0], [1], [0, 0, 1, 1], [], []>} : vector<32x128xbf16>, vector<128x128xbf16>, vector<32x128xf32> -> vector<32x128xf32>
    %46 = arith.addf %41, %45 : vector<32x128xf32>
    %c2 = arith.constant 2 : index
    %c0_24 = arith.constant 0 : index
    %c0_25 = arith.constant 0 : index
    %47 = vector.load %arg4[%c2, %c0_24, %c0_25] : memref<25x32x128xbf16, #tpu.memory_space<vmem>>, vector<1x32x128xbf16>
    %48 = vector.shape_cast %47 : vector<1x32x128xbf16> to vector<32x128xbf16>
    %49 = vector.extract_strided_slice %37 {offsets = [0, 256], sizes = [128, 128], strides = [1, 1]} : vector<128x3200xbf16> to vector<128x128xbf16>
    %cst_26 = arith.constant dense<0.000000e+00> : vector<32x128xf32>
    %50 = tpu.matmul %48, %49, %cst_26 {dimension_numbers = #tpu.dot_dimension_numbers<[1], [0], [0], [1], [0, 0, 1, 1], [], []>} : vector<32x128xbf16>, vector<128x128xbf16>, vector<32x128xf32> -> vector<32x128xf32>
    %51 = arith.addf %46, %50 : vector<32x128xf32>
    %c3 = arith.constant 3 : index
    %c0_27 = arith.constant 0 : index
    %c0_28 = arith.constant 0 : index
    %52 = vector.load %arg4[%c3, %c0_27, %c0_28] : memref<25x32x128xbf16, #tpu.memory_space<vmem>>, vector<1x32x128xbf16>
    %53 = vector.shape_cast %52 : vector<1x32x128xbf16> to vector<32x128xbf16>
    %54 = vector.extract_strided_slice %37 {offsets = [0, 384], sizes = [128, 128], strides = [1, 1]} : vector<128x3200xbf16> to vector<128x128xbf16>
    %cst_29 = arith.constant dense<0.000000e+00> : vector<32x128xf32>
    %55 = tpu.matmul %53, %54, %cst_29 {dimension_numbers = #tpu.dot_dimension_numbers<[1], [0], [0], [1], [0, 0, 1, 1], [], []>} : vector<32x128xbf16>, vector<128x128xbf16>, vector<32x128xf32> -> vector<32x128xf32>
    %56 = arith.addf %51, %55 : vector<32x128xf32>
    %c4 = arith.constant 4 : index
    %c0_30 = arith.constant 0 : index
    %c0_31 = arith.constant 0 : index
    %57 = vector.load %arg4[%c4, %c0_30, %c0_31] : memref<25x32x128xbf16, #tpu.memory_space<vmem>>, vector<1x32x128xbf16>
    %58 = vector.shape_cast %57 : vector<1x32x128xbf16> to vector<32x128xbf16>
    %59 = vector.extract_strided_slice %37 {offsets = [0, 512], sizes = [128, 128], strides = [1, 1]} : vector<128x3200xbf16> to vector<128x128xbf16>
    %cst_32 = arith.constant dense<0.000000e+00> : vector<32x128xf32>
    %60 = tpu.matmul %58, %59, %cst_32 {dimension_numbers = #tpu.dot_dimension_numbers<[1], [0], [0], [1], [0, 0, 1, 1], [], []>} : vector<32x128xbf16>, vector<128x128xbf16>, vector<32x128xf32> -> vector<32x128xf32>
    %61 = arith.addf %56, %60 : vector<32x128xf32>
    %c5 = arith.constant 5 : index
    %c0_33 = arith.constant 0 : index
    %c0_34 = arith.constant 0 : index
    %62 = vector.load %arg4[%c5, %c0_33, %c0_34] : memref<25x32x128xbf16, #tpu.memory_space<vmem>>, vector<1x32x128xbf16>
    %63 = vector.shape_cast %62 : vector<1x32x128xbf16> to vector<32x128xbf16>
    %64 = vector.extract_strided_slice %37 {offsets = [0, 640], sizes = [128, 128], strides = [1, 1]} : vector<128x3200xbf16> to vector<128x128xbf16>
    %cst_35 = arith.constant dense<0.000000e+00> : vector<32x128xf32>
    %65 = tpu.matmul %63, %64, %cst_35 {dimension_numbers = #tpu.dot_dimension_numbers<[1], [0], [0], [1], [0, 0, 1, 1], [], []>} : vector<32x128xbf16>, vector<128x128xbf16>, vector<32x128xf32> -> vector<32x128xf32>
    %66 = arith.addf %61, %65 : vector<32x128xf32>
    %c6 = arith.constant 6 : index
    %c0_36 = arith.constant 0 : index
    %c0_37 = arith.constant 0 : index
    %67 = vector.load %arg4[%c6, %c0_36, %c0_37] : memref<25x32x128xbf16, #tpu.memory_space<vmem>>, vector<1x32x128xbf16>
    %68 = vector.shape_cast %67 : vector<1x32x128xbf16> to vector<32x128xbf16>
    %69 = vector.extract_strided_slice %37 {offsets = [0, 768], sizes = [128, 128], strides = [1, 1]} : vector<128x3200xbf16> to vector<128x128xbf16>
    %cst_38 = arith.constant dense<0.000000e+00> : vector<32x128xf32>
    %70 = tpu.matmul %68, %69, %cst_38 {dimension_numbers = #tpu.dot_dimension_numbers<[1], [0], [0], [1], [0, 0, 1, 1], [], []>} : vector<32x128xbf16>, vector<128x128xbf16>, vector<32x128xf32> -> vector<32x128xf32>
    %71 = arith.addf %66, %70 : vector<32x128xf32>
    %c7 = arith.constant 7 : index
    %c0_39 = arith.constant 0 : index
    %c0_40 = arith.constant 0 : index
    %72 = vector.load %arg4[%c7, %c0_39, %c0_40] : memref<25x32x128xbf16, #tpu.memory_space<vmem>>, vector<1x32x128xbf16>
    %73 = vector.shape_cast %72 : vector<1x32x128xbf16> to vector<32x128xbf16>
    %74 = vector.extract_strided_slice %37 {offsets = [0, 896], sizes = [128, 128], strides = [1, 1]} : vector<128x3200xbf16> to vector<128x128xbf16>
    %cst_41 = arith.constant dense<0.000000e+00> : vector<32x128xf32>
    %75 = tpu.matmul %73, %74, %cst_41 {dimension_numbers = #tpu.dot_dimension_numbers<[1], [0], [0], [1], [0, 0, 1, 1], [], []>} : vector<32x128xbf16>, vector<128x128xbf16>, vector<32x128xf32> -> vector<32x128xf32>
    %76 = arith.addf %71, %75 : vector<32x128xf32>
    %c8 = arith.constant 8 : index
    %c0_42 = arith.constant 0 : index
    %c0_43 = arith.constant 0 : index
    %77 = vector.load %arg4[%c8, %c0_42, %c0_43] : memref<25x32x128xbf16, #tpu.memory_space<vmem>>, vector<1x32x128xbf16>
    %78 = vector.shape_cast %77 : vector<1x32x128xbf16> to vector<32x128xbf16>
    %79 = vector.extract_strided_slice %37 {offsets = [0, 1024], sizes = [128, 128], strides = [1, 1]} : vector<128x3200xbf16> to vector<128x128xbf16>
    %cst_44 = arith.constant dense<0.000000e+00> : vector<32x128xf32>
    %80 = tpu.matmul %78, %79, %cst_44 {dimension_numbers = #tpu.dot_dimension_numbers<[1], [0], [0], [1], [0, 0, 1, 1], [], []>} : vector<32x128xbf16>, vector<128x128xbf16>, vector<32x128xf32> -> vector<32x128xf32>
    %81 = arith.addf %76, %80 : vector<32x128xf32>
    %c9 = arith.constant 9 : index
    %c0_45 = arith.constant 0 : index
    %c0_46 = arith.constant 0 : index
    %82 = vector.load %arg4[%c9, %c0_45, %c0_46] : memref<25x32x128xbf16, #tpu.memory_space<vmem>>, vector<1x32x128xbf16>
    %83 = vector.shape_cast %82 : vector<1x32x128xbf16> to vector<32x128xbf16>
    %84 = vector.extract_strided_slice %37 {offsets = [0, 1152], sizes = [128, 128], strides = [1, 1]} : vector<128x3200xbf16> to vector<128x128xbf16>
    %cst_47 = arith.constant dense<0.000000e+00> : vector<32x128xf32>
    %85 = tpu.matmul %83, %84, %cst_47 {dimension_numbers = #tpu.dot_dimension_numbers<[1], [0], [0], [1], [0, 0, 1, 1], [], []>} : vector<32x128xbf16>, vector<128x128xbf16>, vector<32x128xf32> -> vector<32x128xf32>
    %86 = arith.addf %81, %85 : vector<32x128xf32>
    %c10 = arith.constant 10 : index
    %c0_48 = arith.constant 0 : index
    %c0_49 = arith.constant 0 : index
    %87 = vector.load %arg4[%c10, %c0_48, %c0_49] : memref<25x32x128xbf16, #tpu.memory_space<vmem>>, vector<1x32x128xbf16>
    %88 = vector.shape_cast %87 : vector<1x32x128xbf16> to vector<32x128xbf16>
    %89 = vector.extract_strided_slice %37 {offsets = [0, 1280], sizes = [128, 128], strides = [1, 1]} : vector<128x3200xbf16> to vector<128x128xbf16>
    %cst_50 = arith.constant dense<0.000000e+00> : vector<32x128xf32>
    %90 = tpu.matmul %88, %89, %cst_50 {dimension_numbers = #tpu.dot_dimension_numbers<[1], [0], [0], [1], [0, 0, 1, 1], [], []>} : vector<32x128xbf16>, vector<128x128xbf16>, vector<32x128xf32> -> vector<32x128xf32>
    %91 = arith.addf %86, %90 : vector<32x128xf32>
    %c11 = arith.constant 11 : index
    %c0_51 = arith.constant 0 : index
    %c0_52 = arith.constant 0 : index
    %92 = vector.load %arg4[%c11, %c0_51, %c0_52] : memref<25x32x128xbf16, #tpu.memory_space<vmem>>, vector<1x32x128xbf16>
    %93 = vector.shape_cast %92 : vector<1x32x128xbf16> to vector<32x128xbf16>
    %94 = vector.extract_strided_slice %37 {offsets = [0, 1408], sizes = [128, 128], strides = [1, 1]} : vector<128x3200xbf16> to vector<128x128xbf16>
    %cst_53 = arith.constant dense<0.000000e+00> : vector<32x128xf32>
    %95 = tpu.matmul %93, %94, %cst_53 {dimension_numbers = #tpu.dot_dimension_numbers<[1], [0], [0], [1], [0, 0, 1, 1], [], []>} : vector<32x128xbf16>, vector<128x128xbf16>, vector<32x128xf32> -> vector<32x128xf32>
    %96 = arith.addf %91, %95 : vector<32x128xf32>
    %c12 = arith.constant 12 : index
    %c0_54 = arith.constant 0 : index
    %c0_55 = arith.constant 0 : index
    %97 = vector.load %arg4[%c12, %c0_54, %c0_55] : memref<25x32x128xbf16, #tpu.memory_space<vmem>>, vector<1x32x128xbf16>
    %98 = vector.shape_cast %97 : vector<1x32x128xbf16> to vector<32x128xbf16>
    %99 = vector.extract_strided_slice %37 {offsets = [0, 1536], sizes = [128, 128], strides = [1, 1]} : vector<128x3200xbf16> to vector<128x128xbf16>
    %cst_56 = arith.constant dense<0.000000e+00> : vector<32x128xf32>
    %100 = tpu.matmul %98, %99, %cst_56 {dimension_numbers = #tpu.dot_dimension_numbers<[1], [0], [0], [1], [0, 0, 1, 1], [], []>} : vector<32x128xbf16>, vector<128x128xbf16>, vector<32x128xf32> -> vector<32x128xf32>
    %101 = arith.addf %96, %100 : vector<32x128xf32>
    %c13 = arith.constant 13 : index
    %c0_57 = arith.constant 0 : index
    %c0_58 = arith.constant 0 : index
    %102 = vector.load %arg4[%c13, %c0_57, %c0_58] : memref<25x32x128xbf16, #tpu.memory_space<vmem>>, vector<1x32x128xbf16>
    %103 = vector.shape_cast %102 : vector<1x32x128xbf16> to vector<32x128xbf16>
    %104 = vector.extract_strided_slice %37 {offsets = [0, 1664], sizes = [128, 128], strides = [1, 1]} : vector<128x3200xbf16> to vector<128x128xbf16>
    %cst_59 = arith.constant dense<0.000000e+00> : vector<32x128xf32>
    %105 = tpu.matmul %103, %104, %cst_59 {dimension_numbers = #tpu.dot_dimension_numbers<[1], [0], [0], [1], [0, 0, 1, 1], [], []>} : vector<32x128xbf16>, vector<128x128xbf16>, vector<32x128xf32> -> vector<32x128xf32>
    %106 = arith.addf %101, %105 : vector<32x128xf32>
    %c14 = arith.constant 14 : index
    %c0_60 = arith.constant 0 : index
    %c0_61 = arith.constant 0 : index
    %107 = vector.load %arg4[%c14, %c0_60, %c0_61] : memref<25x32x128xbf16, #tpu.memory_space<vmem>>, vector<1x32x128xbf16>
    %108 = vector.shape_cast %107 : vector<1x32x128xbf16> to vector<32x128xbf16>
    %109 = vector.extract_strided_slice %37 {offsets = [0, 1792], sizes = [128, 128], strides = [1, 1]} : vector<128x3200xbf16> to vector<128x128xbf16>
    %cst_62 = arith.constant dense<0.000000e+00> : vector<32x128xf32>
    %110 = tpu.matmul %108, %109, %cst_62 {dimension_numbers = #tpu.dot_dimension_numbers<[1], [0], [0], [1], [0, 0, 1, 1], [], []>} : vector<32x128xbf16>, vector<128x128xbf16>, vector<32x128xf32> -> vector<32x128xf32>
    %111 = arith.addf %106, %110 : vector<32x128xf32>
    %c15 = arith.constant 15 : index
    %c0_63 = arith.constant 0 : index
    %c0_64 = arith.constant 0 : index
    %112 = vector.load %arg4[%c15, %c0_63, %c0_64] : memref<25x32x128xbf16, #tpu.memory_space<vmem>>, vector<1x32x128xbf16>
    %113 = vector.shape_cast %112 : vector<1x32x128xbf16> to vector<32x128xbf16>
    %114 = vector.extract_strided_slice %37 {offsets = [0, 1920], sizes = [128, 128], strides = [1, 1]} : vector<128x3200xbf16> to vector<128x128xbf16>
    %cst_65 = arith.constant dense<0.000000e+00> : vector<32x128xf32>
    %115 = tpu.matmul %113, %114, %cst_65 {dimension_numbers = #tpu.dot_dimension_numbers<[1], [0], [0], [1], [0, 0, 1, 1], [], []>} : vector<32x128xbf16>, vector<128x128xbf16>, vector<32x128xf32> -> vector<32x128xf32>
    %116 = arith.addf %111, %115 : vector<32x128xf32>
    %c16 = arith.constant 16 : index
    %c0_66 = arith.constant 0 : index
    %c0_67 = arith.constant 0 : index
    %117 = vector.load %arg4[%c16, %c0_66, %c0_67] : memref<25x32x128xbf16, #tpu.memory_space<vmem>>, vector<1x32x128xbf16>
    %118 = vector.shape_cast %117 : vector<1x32x128xbf16> to vector<32x128xbf16>
    %119 = vector.extract_strided_slice %37 {offsets = [0, 2048], sizes = [128, 128], strides = [1, 1]} : vector<128x3200xbf16> to vector<128x128xbf16>
    %cst_68 = arith.constant dense<0.000000e+00> : vector<32x128xf32>
    %120 = tpu.matmul %118, %119, %cst_68 {dimension_numbers = #tpu.dot_dimension_numbers<[1], [0], [0], [1], [0, 0, 1, 1], [], []>} : vector<32x128xbf16>, vector<128x128xbf16>, vector<32x128xf32> -> vector<32x128xf32>
    %121 = arith.addf %116, %120 : vector<32x128xf32>
    %c17 = arith.constant 17 : index
    %c0_69 = arith.constant 0 : index
    %c0_70 = arith.constant 0 : index
    %122 = vector.load %arg4[%c17, %c0_69, %c0_70] : memref<25x32x128xbf16, #tpu.memory_space<vmem>>, vector<1x32x128xbf16>
    %123 = vector.shape_cast %122 : vector<1x32x128xbf16> to vector<32x128xbf16>
    %124 = vector.extract_strided_slice %37 {offsets = [0, 2176], sizes = [128, 128], strides = [1, 1]} : vector<128x3200xbf16> to vector<128x128xbf16>
    %cst_71 = arith.constant dense<0.000000e+00> : vector<32x128xf32>
    %125 = tpu.matmul %123, %124, %cst_71 {dimension_numbers = #tpu.dot_dimension_numbers<[1], [0], [0], [1], [0, 0, 1, 1], [], []>} : vector<32x128xbf16>, vector<128x128xbf16>, vector<32x128xf32> -> vector<32x128xf32>
    %126 = arith.addf %121, %125 : vector<32x128xf32>
    %c18 = arith.constant 18 : index
    %c0_72 = arith.constant 0 : index
    %c0_73 = arith.constant 0 : index
    %127 = vector.load %arg4[%c18, %c0_72, %c0_73] : memref<25x32x128xbf16, #tpu.memory_space<vmem>>, vector<1x32x128xbf16>
    %128 = vector.shape_cast %127 : vector<1x32x128xbf16> to vector<32x128xbf16>
    %129 = vector.extract_strided_slice %37 {offsets = [0, 2304], sizes = [128, 128], strides = [1, 1]} : vector<128x3200xbf16> to vector<128x128xbf16>
    %cst_74 = arith.constant dense<0.000000e+00> : vector<32x128xf32>
    %130 = tpu.matmul %128, %129, %cst_74 {dimension_numbers = #tpu.dot_dimension_numbers<[1], [0], [0], [1], [0, 0, 1, 1], [], []>} : vector<32x128xbf16>, vector<128x128xbf16>, vector<32x128xf32> -> vector<32x128xf32>
    %131 = arith.addf %126, %130 : vector<32x128xf32>
    %c19 = arith.constant 19 : index
    %c0_75 = arith.constant 0 : index
    %c0_76 = arith.constant 0 : index
    %132 = vector.load %arg4[%c19, %c0_75, %c0_76] : memref<25x32x128xbf16, #tpu.memory_space<vmem>>, vector<1x32x128xbf16>
    %133 = vector.shape_cast %132 : vector<1x32x128xbf16> to vector<32x128xbf16>
    %134 = vector.extract_strided_slice %37 {offsets = [0, 2432], sizes = [128, 128], strides = [1, 1]} : vector<128x3200xbf16> to vector<128x128xbf16>
    %cst_77 = arith.constant dense<0.000000e+00> : vector<32x128xf32>
    %135 = tpu.matmul %133, %134, %cst_77 {dimension_numbers = #tpu.dot_dimension_numbers<[1], [0], [0], [1], [0, 0, 1, 1], [], []>} : vector<32x128xbf16>, vector<128x128xbf16>, vector<32x128xf32> -> vector<32x128xf32>
    %136 = arith.addf %131, %135 : vector<32x128xf32>
    %c20 = arith.constant 20 : index
    %c0_78 = arith.constant 0 : index
    %c0_79 = arith.constant 0 : index
    %137 = vector.load %arg4[%c20, %c0_78, %c0_79] : memref<25x32x128xbf16, #tpu.memory_space<vmem>>, vector<1x32x128xbf16>
    %138 = vector.shape_cast %137 : vector<1x32x128xbf16> to vector<32x128xbf16>
    %139 = vector.extract_strided_slice %37 {offsets = [0, 2560], sizes = [128, 128], strides = [1, 1]} : vector<128x3200xbf16> to vector<128x128xbf16>
    %cst_80 = arith.constant dense<0.000000e+00> : vector<32x128xf32>
    %140 = tpu.matmul %138, %139, %cst_80 {dimension_numbers = #tpu.dot_dimension_numbers<[1], [0], [0], [1], [0, 0, 1, 1], [], []>} : vector<32x128xbf16>, vector<128x128xbf16>, vector<32x128xf32> -> vector<32x128xf32>
    %141 = arith.addf %136, %140 : vector<32x128xf32>
    %c21 = arith.constant 21 : index
    %c0_81 = arith.constant 0 : index
    %c0_82 = arith.constant 0 : index
    %142 = vector.load %arg4[%c21, %c0_81, %c0_82] : memref<25x32x128xbf16, #tpu.memory_space<vmem>>, vector<1x32x128xbf16>
    %143 = vector.shape_cast %142 : vector<1x32x128xbf16> to vector<32x128xbf16>
    %144 = vector.extract_strided_slice %37 {offsets = [0, 2688], sizes = [128, 128], strides = [1, 1]} : vector<128x3200xbf16> to vector<128x128xbf16>
    %cst_83 = arith.constant dense<0.000000e+00> : vector<32x128xf32>
    %145 = tpu.matmul %143, %144, %cst_83 {dimension_numbers = #tpu.dot_dimension_numbers<[1], [0], [0], [1], [0, 0, 1, 1], [], []>} : vector<32x128xbf16>, vector<128x128xbf16>, vector<32x128xf32> -> vector<32x128xf32>
    %146 = arith.addf %141, %145 : vector<32x128xf32>
    %c22 = arith.constant 22 : index
    %c0_84 = arith.constant 0 : index
    %c0_85 = arith.constant 0 : index
    %147 = vector.load %arg4[%c22, %c0_84, %c0_85] : memref<25x32x128xbf16, #tpu.memory_space<vmem>>, vector<1x32x128xbf16>
    %148 = vector.shape_cast %147 : vector<1x32x128xbf16> to vector<32x128xbf16>
    %149 = vector.extract_strided_slice %37 {offsets = [0, 2816], sizes = [128, 128], strides = [1, 1]} : vector<128x3200xbf16> to vector<128x128xbf16>
    %cst_86 = arith.constant dense<0.000000e+00> : vector<32x128xf32>
    %150 = tpu.matmul %148, %149, %cst_86 {dimension_numbers = #tpu.dot_dimension_numbers<[1], [0], [0], [1], [0, 0, 1, 1], [], []>} : vector<32x128xbf16>, vector<128x128xbf16>, vector<32x128xf32> -> vector<32x128xf32>
    %151 = arith.addf %146, %150 : vector<32x128xf32>
    %c23 = arith.constant 23 : index
    %c0_87 = arith.constant 0 : index
    %c0_88 = arith.constant 0 : index
    %152 = vector.load %arg4[%c23, %c0_87, %c0_88] : memref<25x32x128xbf16, #tpu.memory_space<vmem>>, vector<1x32x128xbf16>
    %153 = vector.shape_cast %152 : vector<1x32x128xbf16> to vector<32x128xbf16>
    %154 = vector.extract_strided_slice %37 {offsets = [0, 2944], sizes = [128, 128], strides = [1, 1]} : vector<128x3200xbf16> to vector<128x128xbf16>
    %cst_89 = arith.constant dense<0.000000e+00> : vector<32x128xf32>
    %155 = tpu.matmul %153, %154, %cst_89 {dimension_numbers = #tpu.dot_dimension_numbers<[1], [0], [0], [1], [0, 0, 1, 1], [], []>} : vector<32x128xbf16>, vector<128x128xbf16>, vector<32x128xf32> -> vector<32x128xf32>
    %156 = arith.addf %151, %155 : vector<32x128xf32>
    %c24 = arith.constant 24 : index
    %c0_90 = arith.constant 0 : index
    %c0_91 = arith.constant 0 : index
    %157 = vector.load %arg4[%c24, %c0_90, %c0_91] : memref<25x32x128xbf16, #tpu.memory_space<vmem>>, vector<1x32x128xbf16>
    %158 = vector.shape_cast %157 : vector<1x32x128xbf16> to vector<32x128xbf16>
    %159 = vector.extract_strided_slice %37 {offsets = [0, 3072], sizes = [128, 128], strides = [1, 1]} : vector<128x3200xbf16> to vector<128x128xbf16>
    %cst_92 = arith.constant dense<0.000000e+00> : vector<32x128xf32>
    %160 = tpu.matmul %158, %159, %cst_92 {dimension_numbers = #tpu.dot_dimension_numbers<[1], [0], [0], [1], [0, 0, 1, 1], [], []>} : vector<32x128xbf16>, vector<128x128xbf16>, vector<32x128xf32> -> vector<32x128xf32>
    %161 = arith.addf %156, %160 : vector<32x128xf32>
    %cst_93 = arith.constant dense<0.000000e+00> : vector<128xf32>
    %162 = vector.multi_reduction <add>, %161, %cst_93 [0] : vector<32x128xf32> to vector<128xf32>
    %163 = vector.shape_cast %162 : vector<128xf32> to vector<1x128xf32>
    %164 = arith.mulf %161, %161 : vector<32x128xf32>
    %cst_94 = arith.constant dense<0.000000e+00> : vector<128xf32>
    %165 = vector.multi_reduction <add>, %164, %cst_94 [0] : vector<32x128xf32> to vector<128xf32>
    %166 = vector.shape_cast %165 : vector<128xf32> to vector<1x128xf32>
    %cst_95 = arith.constant 3.125000e-02 : f32
    %167 = vector.broadcast %cst_95 : f32 to vector<1x128xf32>
    %168 = arith.mulf %163, %167 : vector<1x128xf32>
    %cst_96 = arith.constant 3.125000e-02 : f32
    %169 = vector.broadcast %cst_96 : f32 to vector<1x128xf32>
    %170 = arith.mulf %166, %169 : vector<1x128xf32>
    %171 = arith.mulf %168, %168 : vector<1x128xf32>
    %172 = arith.subf %170, %171 : vector<1x128xf32>
    %c0_97 = arith.constant 0 : index
    %c0_98 = arith.constant 0 : index
    %173 = vector.load %arg5[%c0_97, %c0_98] : memref<1x128xf32, #tpu.memory_space<vmem>>, vector<1x128xf32>
    %cst_99 = arith.constant 9.99999974E-6 : f32
    %174 = vector.broadcast %cst_99 : f32 to vector<1x128xf32>
    %175 = arith.addf %172, %174 : vector<1x128xf32>
    %176 = math.rsqrt %175 : vector<1x128xf32>
    %177 = arith.mulf %173, %176 : vector<1x128xf32>
    %c0_100 = arith.constant 0 : index
    %c0_101 = arith.constant 0 : index
    %178 = vector.load %arg6[%c0_100, %c0_101] : memref<1x128xf32, #tpu.memory_space<vmem>>, vector<1x128xf32>
    %179 = arith.mulf %168, %177 : vector<1x128xf32>
    %180 = arith.subf %178, %179 : vector<1x128xf32>
    %181 = vector.broadcast %177 : vector<1x128xf32> to vector<32x128xf32>
    %182 = arith.mulf %161, %181 : vector<32x128xf32>
    %183 = vector.broadcast %180 : vector<1x128xf32> to vector<32x128xf32>
    %184 = arith.addf %182, %183 : vector<32x128xf32>
    %cst_102 = arith.constant 0.000000e+00 : f32
    %185 = vector.broadcast %cst_102 : f32 to vector<32x128xf32>
    %186 = arith.maximumf %184, %185 : vector<32x128xf32>
    %187 = arith.truncf %186 : vector<32x128xf32> to vector<32x128xbf16>
    %c1_i32_103 = arith.constant 1 : i32
    %188 = tpu.memref_slice %arg17[%c1_i32_103] : memref<2x!tpu.dma_semaphore, #tpu.memory_space<semaphore_mem>> -> memref<1x!tpu.dma_semaphore, #tpu.memory_space<semaphore_mem>>
    %189 = tpu.memref_squeeze %188 : memref<1x!tpu.dma_semaphore, #tpu.memory_space<semaphore_mem>> -> memref<!tpu.dma_semaphore, #tpu.memory_space<semaphore_mem>>
    tpu.wait_dma2 semaphore(%189 : memref<!tpu.dma_semaphore, #tpu.memory_space<semaphore_mem>>) src(%arg13 : memref<128x6400xbf16, #tpu.memory_space<any>>) dst(%arg16 : memref<128x6400xbf16, #tpu.memory_space<vmem>>)
    %c0_104 = arith.constant 0 : index
    %c0_105 = arith.constant 0 : index
    %190 = vector.load %arg16[%c0_104, %c0_105] : memref<128x6400xbf16, #tpu.memory_space<vmem>>, vector<128x6400xbf16>
    %cst_106 = arith.constant dense<0.000000e+00> : vector<32x6400xf32>
    %191 = tpu.matmul %187, %190, %cst_106 {dimension_numbers = #tpu.dot_dimension_numbers<[1], [0], [0], [1], [0, 0, 1, 1], [], []>} : vector<32x128xbf16>, vector<128x6400xbf16>, vector<32x6400xf32> -> vector<32x6400xf32>
    %192 = arith.truncf %191 : vector<32x6400xf32> to vector<32x6400xbf16>
    %c0_107 = arith.constant 0 : index
    %c0_108 = arith.constant 0 : index
    %c0_109 = arith.constant 0 : index
    %193 = vector.load %arg7[%c0_107, %c0_108, %c0_109] : memref<25x8x32xbf16, #tpu.memory_space<vmem>>, vector<1x8x32xbf16>
    %194 = vector.shape_cast %193 : vector<1x8x32xbf16> to vector<8x32xbf16>
    %195 = vector.extract_strided_slice %192 {offsets = [0, 0], sizes = [32, 256], strides = [1, 1]} : vector<32x6400xbf16> to vector<32x256xbf16>
    %cst_110 = arith.constant dense<0.000000e+00> : vector<8x256xf32>
    %196 = tpu.matmul %194, %195, %cst_110 {dimension_numbers = #tpu.dot_dimension_numbers<[1], [0], [0], [1], [0, 0, 1, 1], [], []>} : vector<8x32xbf16>, vector<32x256xbf16>, vector<8x256xf32> -> vector<8x256xf32>
    %c1_111 = arith.constant 1 : index
    %c0_112 = arith.constant 0 : index
    %c0_113 = arith.constant 0 : index
    %197 = vector.load %arg7[%c1_111, %c0_112, %c0_113] : memref<25x8x32xbf16, #tpu.memory_space<vmem>>, vector<1x8x32xbf16>
    %198 = vector.shape_cast %197 : vector<1x8x32xbf16> to vector<8x32xbf16>
    %199 = vector.extract_strided_slice %192 {offsets = [0, 256], sizes = [32, 256], strides = [1, 1]} : vector<32x6400xbf16> to vector<32x256xbf16>
    %cst_114 = arith.constant dense<0.000000e+00> : vector<8x256xf32>
    %200 = tpu.matmul %198, %199, %cst_114 {dimension_numbers = #tpu.dot_dimension_numbers<[1], [0], [0], [1], [0, 0, 1, 1], [], []>} : vector<8x32xbf16>, vector<32x256xbf16>, vector<8x256xf32> -> vector<8x256xf32>
    %201 = arith.addf %196, %200 : vector<8x256xf32>
    %c2_115 = arith.constant 2 : index
    %c0_116 = arith.constant 0 : index
    %c0_117 = arith.constant 0 : index
    %202 = vector.load %arg7[%c2_115, %c0_116, %c0_117] : memref<25x8x32xbf16, #tpu.memory_space<vmem>>, vector<1x8x32xbf16>
    %203 = vector.shape_cast %202 : vector<1x8x32xbf16> to vector<8x32xbf16>
    %204 = vector.extract_strided_slice %192 {offsets = [0, 512], sizes = [32, 256], strides = [1, 1]} : vector<32x6400xbf16> to vector<32x256xbf16>
    %cst_118 = arith.constant dense<0.000000e+00> : vector<8x256xf32>
    %205 = tpu.matmul %203, %204, %cst_118 {dimension_numbers = #tpu.dot_dimension_numbers<[1], [0], [0], [1], [0, 0, 1, 1], [], []>} : vector<8x32xbf16>, vector<32x256xbf16>, vector<8x256xf32> -> vector<8x256xf32>
    %206 = arith.addf %201, %205 : vector<8x256xf32>
    %c3_119 = arith.constant 3 : index
    %c0_120 = arith.constant 0 : index
    %c0_121 = arith.constant 0 : index
    %207 = vector.load %arg7[%c3_119, %c0_120, %c0_121] : memref<25x8x32xbf16, #tpu.memory_space<vmem>>, vector<1x8x32xbf16>
    %208 = vector.shape_cast %207 : vector<1x8x32xbf16> to vector<8x32xbf16>
    %209 = vector.extract_strided_slice %192 {offsets = [0, 768], sizes = [32, 256], strides = [1, 1]} : vector<32x6400xbf16> to vector<32x256xbf16>
    %cst_122 = arith.constant dense<0.000000e+00> : vector<8x256xf32>
    %210 = tpu.matmul %208, %209, %cst_122 {dimension_numbers = #tpu.dot_dimension_numbers<[1], [0], [0], [1], [0, 0, 1, 1], [], []>} : vector<8x32xbf16>, vector<32x256xbf16>, vector<8x256xf32> -> vector<8x256xf32>
    %211 = arith.addf %206, %210 : vector<8x256xf32>
    %c4_123 = arith.constant 4 : index
    %c0_124 = arith.constant 0 : index
    %c0_125 = arith.constant 0 : index
    %212 = vector.load %arg7[%c4_123, %c0_124, %c0_125] : memref<25x8x32xbf16, #tpu.memory_space<vmem>>, vector<1x8x32xbf16>
    %213 = vector.shape_cast %212 : vector<1x8x32xbf16> to vector<8x32xbf16>
    %214 = vector.extract_strided_slice %192 {offsets = [0, 1024], sizes = [32, 256], strides = [1, 1]} : vector<32x6400xbf16> to vector<32x256xbf16>
    %cst_126 = arith.constant dense<0.000000e+00> : vector<8x256xf32>
    %215 = tpu.matmul %213, %214, %cst_126 {dimension_numbers = #tpu.dot_dimension_numbers<[1], [0], [0], [1], [0, 0, 1, 1], [], []>} : vector<8x32xbf16>, vector<32x256xbf16>, vector<8x256xf32> -> vector<8x256xf32>
    %216 = arith.addf %211, %215 : vector<8x256xf32>
    %c5_127 = arith.constant 5 : index
    %c0_128 = arith.constant 0 : index
    %c0_129 = arith.constant 0 : index
    %217 = vector.load %arg7[%c5_127, %c0_128, %c0_129] : memref<25x8x32xbf16, #tpu.memory_space<vmem>>, vector<1x8x32xbf16>
    %218 = vector.shape_cast %217 : vector<1x8x32xbf16> to vector<8x32xbf16>
    %219 = vector.extract_strided_slice %192 {offsets = [0, 1280], sizes = [32, 256], strides = [1, 1]} : vector<32x6400xbf16> to vector<32x256xbf16>
    %cst_130 = arith.constant dense<0.000000e+00> : vector<8x256xf32>
    %220 = tpu.matmul %218, %219, %cst_130 {dimension_numbers = #tpu.dot_dimension_numbers<[1], [0], [0], [1], [0, 0, 1, 1], [], []>} : vector<8x32xbf16>, vector<32x256xbf16>, vector<8x256xf32> -> vector<8x256xf32>
    %221 = arith.addf %216, %220 : vector<8x256xf32>
    %c6_131 = arith.constant 6 : index
    %c0_132 = arith.constant 0 : index
    %c0_133 = arith.constant 0 : index
    %222 = vector.load %arg7[%c6_131, %c0_132, %c0_133] : memref<25x8x32xbf16, #tpu.memory_space<vmem>>, vector<1x8x32xbf16>
    %223 = vector.shape_cast %222 : vector<1x8x32xbf16> to vector<8x32xbf16>
    %224 = vector.extract_strided_slice %192 {offsets = [0, 1536], sizes = [32, 256], strides = [1, 1]} : vector<32x6400xbf16> to vector<32x256xbf16>
    %cst_134 = arith.constant dense<0.000000e+00> : vector<8x256xf32>
    %225 = tpu.matmul %223, %224, %cst_134 {dimension_numbers = #tpu.dot_dimension_numbers<[1], [0], [0], [1], [0, 0, 1, 1], [], []>} : vector<8x32xbf16>, vector<32x256xbf16>, vector<8x256xf32> -> vector<8x256xf32>
    %226 = arith.addf %221, %225 : vector<8x256xf32>
    %c7_135 = arith.constant 7 : index
    %c0_136 = arith.constant 0 : index
    %c0_137 = arith.constant 0 : index
    %227 = vector.load %arg7[%c7_135, %c0_136, %c0_137] : memref<25x8x32xbf16, #tpu.memory_space<vmem>>, vector<1x8x32xbf16>
    %228 = vector.shape_cast %227 : vector<1x8x32xbf16> to vector<8x32xbf16>
    %229 = vector.extract_strided_slice %192 {offsets = [0, 1792], sizes = [32, 256], strides = [1, 1]} : vector<32x6400xbf16> to vector<32x256xbf16>
    %cst_138 = arith.constant dense<0.000000e+00> : vector<8x256xf32>
    %230 = tpu.matmul %228, %229, %cst_138 {dimension_numbers = #tpu.dot_dimension_numbers<[1], [0], [0], [1], [0, 0, 1, 1], [], []>} : vector<8x32xbf16>, vector<32x256xbf16>, vector<8x256xf32> -> vector<8x256xf32>
    %231 = arith.addf %226, %230 : vector<8x256xf32>
    %c8_139 = arith.constant 8 : index
    %c0_140 = arith.constant 0 : index
    %c0_141 = arith.constant 0 : index
    %232 = vector.load %arg7[%c8_139, %c0_140, %c0_141] : memref<25x8x32xbf16, #tpu.memory_space<vmem>>, vector<1x8x32xbf16>
    %233 = vector.shape_cast %232 : vector<1x8x32xbf16> to vector<8x32xbf16>
    %234 = vector.extract_strided_slice %192 {offsets = [0, 2048], sizes = [32, 256], strides = [1, 1]} : vector<32x6400xbf16> to vector<32x256xbf16>
    %cst_142 = arith.constant dense<0.000000e+00> : vector<8x256xf32>
    %235 = tpu.matmul %233, %234, %cst_142 {dimension_numbers = #tpu.dot_dimension_numbers<[1], [0], [0], [1], [0, 0, 1, 1], [], []>} : vector<8x32xbf16>, vector<32x256xbf16>, vector<8x256xf32> -> vector<8x256xf32>
    %236 = arith.addf %231, %235 : vector<8x256xf32>
    %c9_143 = arith.constant 9 : index
    %c0_144 = arith.constant 0 : index
    %c0_145 = arith.constant 0 : index
    %237 = vector.load %arg7[%c9_143, %c0_144, %c0_145] : memref<25x8x32xbf16, #tpu.memory_space<vmem>>, vector<1x8x32xbf16>
    %238 = vector.shape_cast %237 : vector<1x8x32xbf16> to vector<8x32xbf16>
    %239 = vector.extract_strided_slice %192 {offsets = [0, 2304], sizes = [32, 256], strides = [1, 1]} : vector<32x6400xbf16> to vector<32x256xbf16>
    %cst_146 = arith.constant dense<0.000000e+00> : vector<8x256xf32>
    %240 = tpu.matmul %238, %239, %cst_146 {dimension_numbers = #tpu.dot_dimension_numbers<[1], [0], [0], [1], [0, 0, 1, 1], [], []>} : vector<8x32xbf16>, vector<32x256xbf16>, vector<8x256xf32> -> vector<8x256xf32>
    %241 = arith.addf %236, %240 : vector<8x256xf32>
    %c10_147 = arith.constant 10 : index
    %c0_148 = arith.constant 0 : index
    %c0_149 = arith.constant 0 : index
    %242 = vector.load %arg7[%c10_147, %c0_148, %c0_149] : memref<25x8x32xbf16, #tpu.memory_space<vmem>>, vector<1x8x32xbf16>
    %243 = vector.shape_cast %242 : vector<1x8x32xbf16> to vector<8x32xbf16>
    %244 = vector.extract_strided_slice %192 {offsets = [0, 2560], sizes = [32, 256], strides = [1, 1]} : vector<32x6400xbf16> to vector<32x256xbf16>
    %cst_150 = arith.constant dense<0.000000e+00> : vector<8x256xf32>
    %245 = tpu.matmul %243, %244, %cst_150 {dimension_numbers = #tpu.dot_dimension_numbers<[1], [0], [0], [1], [0, 0, 1, 1], [], []>} : vector<8x32xbf16>, vector<32x256xbf16>, vector<8x256xf32> -> vector<8x256xf32>
    %246 = arith.addf %241, %245 : vector<8x256xf32>
    %c11_151 = arith.constant 11 : index
    %c0_152 = arith.constant 0 : index
    %c0_153 = arith.constant 0 : index
    %247 = vector.load %arg7[%c11_151, %c0_152, %c0_153] : memref<25x8x32xbf16, #tpu.memory_space<vmem>>, vector<1x8x32xbf16>
    %248 = vector.shape_cast %247 : vector<1x8x32xbf16> to vector<8x32xbf16>
    %249 = vector.extract_strided_slice %192 {offsets = [0, 2816], sizes = [32, 256], strides = [1, 1]} : vector<32x6400xbf16> to vector<32x256xbf16>
    %cst_154 = arith.constant dense<0.000000e+00> : vector<8x256xf32>
    %250 = tpu.matmul %248, %249, %cst_154 {dimension_numbers = #tpu.dot_dimension_numbers<[1], [0], [0], [1], [0, 0, 1, 1], [], []>} : vector<8x32xbf16>, vector<32x256xbf16>, vector<8x256xf32> -> vector<8x256xf32>
    %251 = arith.addf %246, %250 : vector<8x256xf32>
    %c12_155 = arith.constant 12 : index
    %c0_156 = arith.constant 0 : index
    %c0_157 = arith.constant 0 : index
    %252 = vector.load %arg7[%c12_155, %c0_156, %c0_157] : memref<25x8x32xbf16, #tpu.memory_space<vmem>>, vector<1x8x32xbf16>
    %253 = vector.shape_cast %252 : vector<1x8x32xbf16> to vector<8x32xbf16>
    %254 = vector.extract_strided_slice %192 {offsets = [0, 3072], sizes = [32, 256], strides = [1, 1]} : vector<32x6400xbf16> to vector<32x256xbf16>
    %cst_158 = arith.constant dense<0.000000e+00> : vector<8x256xf32>
    %255 = tpu.matmul %253, %254, %cst_158 {dimension_numbers = #tpu.dot_dimension_numbers<[1], [0], [0], [1], [0, 0, 1, 1], [], []>} : vector<8x32xbf16>, vector<32x256xbf16>, vector<8x256xf32> -> vector<8x256xf32>
    %256 = arith.addf %251, %255 : vector<8x256xf32>
    %c13_159 = arith.constant 13 : index
    %c0_160 = arith.constant 0 : index
    %c0_161 = arith.constant 0 : index
    %257 = vector.load %arg7[%c13_159, %c0_160, %c0_161] : memref<25x8x32xbf16, #tpu.memory_space<vmem>>, vector<1x8x32xbf16>
    %258 = vector.shape_cast %257 : vector<1x8x32xbf16> to vector<8x32xbf16>
    %259 = vector.extract_strided_slice %192 {offsets = [0, 3328], sizes = [32, 256], strides = [1, 1]} : vector<32x6400xbf16> to vector<32x256xbf16>
    %cst_162 = arith.constant dense<0.000000e+00> : vector<8x256xf32>
    %260 = tpu.matmul %258, %259, %cst_162 {dimension_numbers = #tpu.dot_dimension_numbers<[1], [0], [0], [1], [0, 0, 1, 1], [], []>} : vector<8x32xbf16>, vector<32x256xbf16>, vector<8x256xf32> -> vector<8x256xf32>
    %261 = arith.addf %256, %260 : vector<8x256xf32>
    %c14_163 = arith.constant 14 : index
    %c0_164 = arith.constant 0 : index
    %c0_165 = arith.constant 0 : index
    %262 = vector.load %arg7[%c14_163, %c0_164, %c0_165] : memref<25x8x32xbf16, #tpu.memory_space<vmem>>, vector<1x8x32xbf16>
    %263 = vector.shape_cast %262 : vector<1x8x32xbf16> to vector<8x32xbf16>
    %264 = vector.extract_strided_slice %192 {offsets = [0, 3584], sizes = [32, 256], strides = [1, 1]} : vector<32x6400xbf16> to vector<32x256xbf16>
    %cst_166 = arith.constant dense<0.000000e+00> : vector<8x256xf32>
    %265 = tpu.matmul %263, %264, %cst_166 {dimension_numbers = #tpu.dot_dimension_numbers<[1], [0], [0], [1], [0, 0, 1, 1], [], []>} : vector<8x32xbf16>, vector<32x256xbf16>, vector<8x256xf32> -> vector<8x256xf32>
    %266 = arith.addf %261, %265 : vector<8x256xf32>
    %c15_167 = arith.constant 15 : index
    %c0_168 = arith.constant 0 : index
    %c0_169 = arith.constant 0 : index
    %267 = vector.load %arg7[%c15_167, %c0_168, %c0_169] : memref<25x8x32xbf16, #tpu.memory_space<vmem>>, vector<1x8x32xbf16>
    %268 = vector.shape_cast %267 : vector<1x8x32xbf16> to vector<8x32xbf16>
    %269 = vector.extract_strided_slice %192 {offsets = [0, 3840], sizes = [32, 256], strides = [1, 1]} : vector<32x6400xbf16> to vector<32x256xbf16>
    %cst_170 = arith.constant dense<0.000000e+00> : vector<8x256xf32>
    %270 = tpu.matmul %268, %269, %cst_170 {dimension_numbers = #tpu.dot_dimension_numbers<[1], [0], [0], [1], [0, 0, 1, 1], [], []>} : vector<8x32xbf16>, vector<32x256xbf16>, vector<8x256xf32> -> vector<8x256xf32>
    %271 = arith.addf %266, %270 : vector<8x256xf32>
    %c16_171 = arith.constant 16 : index
    %c0_172 = arith.constant 0 : index
    %c0_173 = arith.constant 0 : index
    %272 = vector.load %arg7[%c16_171, %c0_172, %c0_173] : memref<25x8x32xbf16, #tpu.memory_space<vmem>>, vector<1x8x32xbf16>
    %273 = vector.shape_cast %272 : vector<1x8x32xbf16> to vector<8x32xbf16>
    %274 = vector.extract_strided_slice %192 {offsets = [0, 4096], sizes = [32, 256], strides = [1, 1]} : vector<32x6400xbf16> to vector<32x256xbf16>
    %cst_174 = arith.constant dense<0.000000e+00> : vector<8x256xf32>
    %275 = tpu.matmul %273, %274, %cst_174 {dimension_numbers = #tpu.dot_dimension_numbers<[1], [0], [0], [1], [0, 0, 1, 1], [], []>} : vector<8x32xbf16>, vector<32x256xbf16>, vector<8x256xf32> -> vector<8x256xf32>
    %276 = arith.addf %271, %275 : vector<8x256xf32>
    %c17_175 = arith.constant 17 : index
    %c0_176 = arith.constant 0 : index
    %c0_177 = arith.constant 0 : index
    %277 = vector.load %arg7[%c17_175, %c0_176, %c0_177] : memref<25x8x32xbf16, #tpu.memory_space<vmem>>, vector<1x8x32xbf16>
    %278 = vector.shape_cast %277 : vector<1x8x32xbf16> to vector<8x32xbf16>
    %279 = vector.extract_strided_slice %192 {offsets = [0, 4352], sizes = [32, 256], strides = [1, 1]} : vector<32x6400xbf16> to vector<32x256xbf16>
    %cst_178 = arith.constant dense<0.000000e+00> : vector<8x256xf32>
    %280 = tpu.matmul %278, %279, %cst_178 {dimension_numbers = #tpu.dot_dimension_numbers<[1], [0], [0], [1], [0, 0, 1, 1], [], []>} : vector<8x32xbf16>, vector<32x256xbf16>, vector<8x256xf32> -> vector<8x256xf32>
    %281 = arith.addf %276, %280 : vector<8x256xf32>
    %c18_179 = arith.constant 18 : index
    %c0_180 = arith.constant 0 : index
    %c0_181 = arith.constant 0 : index
    %282 = vector.load %arg7[%c18_179, %c0_180, %c0_181] : memref<25x8x32xbf16, #tpu.memory_space<vmem>>, vector<1x8x32xbf16>
    %283 = vector.shape_cast %282 : vector<1x8x32xbf16> to vector<8x32xbf16>
    %284 = vector.extract_strided_slice %192 {offsets = [0, 4608], sizes = [32, 256], strides = [1, 1]} : vector<32x6400xbf16> to vector<32x256xbf16>
    %cst_182 = arith.constant dense<0.000000e+00> : vector<8x256xf32>
    %285 = tpu.matmul %283, %284, %cst_182 {dimension_numbers = #tpu.dot_dimension_numbers<[1], [0], [0], [1], [0, 0, 1, 1], [], []>} : vector<8x32xbf16>, vector<32x256xbf16>, vector<8x256xf32> -> vector<8x256xf32>
    %286 = arith.addf %281, %285 : vector<8x256xf32>
    %c19_183 = arith.constant 19 : index
    %c0_184 = arith.constant 0 : index
    %c0_185 = arith.constant 0 : index
    %287 = vector.load %arg7[%c19_183, %c0_184, %c0_185] : memref<25x8x32xbf16, #tpu.memory_space<vmem>>, vector<1x8x32xbf16>
    %288 = vector.shape_cast %287 : vector<1x8x32xbf16> to vector<8x32xbf16>
    %289 = vector.extract_strided_slice %192 {offsets = [0, 4864], sizes = [32, 256], strides = [1, 1]} : vector<32x6400xbf16> to vector<32x256xbf16>
    %cst_186 = arith.constant dense<0.000000e+00> : vector<8x256xf32>
    %290 = tpu.matmul %288, %289, %cst_186 {dimension_numbers = #tpu.dot_dimension_numbers<[1], [0], [0], [1], [0, 0, 1, 1], [], []>} : vector<8x32xbf16>, vector<32x256xbf16>, vector<8x256xf32> -> vector<8x256xf32>
    %291 = arith.addf %286, %290 : vector<8x256xf32>
    %c20_187 = arith.constant 20 : index
    %c0_188 = arith.constant 0 : index
    %c0_189 = arith.constant 0 : index
    %292 = vector.load %arg7[%c20_187, %c0_188, %c0_189] : memref<25x8x32xbf16, #tpu.memory_space<vmem>>, vector<1x8x32xbf16>
    %293 = vector.shape_cast %292 : vector<1x8x32xbf16> to vector<8x32xbf16>
    %294 = vector.extract_strided_slice %192 {offsets = [0, 5120], sizes = [32, 256], strides = [1, 1]} : vector<32x6400xbf16> to vector<32x256xbf16>
    %cst_190 = arith.constant dense<0.000000e+00> : vector<8x256xf32>
    %295 = tpu.matmul %293, %294, %cst_190 {dimension_numbers = #tpu.dot_dimension_numbers<[1], [0], [0], [1], [0, 0, 1, 1], [], []>} : vector<8x32xbf16>, vector<32x256xbf16>, vector<8x256xf32> -> vector<8x256xf32>
    %296 = arith.addf %291, %295 : vector<8x256xf32>
    %c21_191 = arith.constant 21 : index
    %c0_192 = arith.constant 0 : index
    %c0_193 = arith.constant 0 : index
    %297 = vector.load %arg7[%c21_191, %c0_192, %c0_193] : memref<25x8x32xbf16, #tpu.memory_space<vmem>>, vector<1x8x32xbf16>
    %298 = vector.shape_cast %297 : vector<1x8x32xbf16> to vector<8x32xbf16>
    %299 = vector.extract_strided_slice %192 {offsets = [0, 5376], sizes = [32, 256], strides = [1, 1]} : vector<32x6400xbf16> to vector<32x256xbf16>
    %cst_194 = arith.constant dense<0.000000e+00> : vector<8x256xf32>
    %300 = tpu.matmul %298, %299, %cst_194 {dimension_numbers = #tpu.dot_dimension_numbers<[1], [0], [0], [1], [0, 0, 1, 1], [], []>} : vector<8x32xbf16>, vector<32x256xbf16>, vector<8x256xf32> -> vector<8x256xf32>
    %301 = arith.addf %296, %300 : vector<8x256xf32>
    %c22_195 = arith.constant 22 : index
    %c0_196 = arith.constant 0 : index
    %c0_197 = arith.constant 0 : index
    %302 = vector.load %arg7[%c22_195, %c0_196, %c0_197] : memref<25x8x32xbf16, #tpu.memory_space<vmem>>, vector<1x8x32xbf16>
    %303 = vector.shape_cast %302 : vector<1x8x32xbf16> to vector<8x32xbf16>
    %304 = vector.extract_strided_slice %192 {offsets = [0, 5632], sizes = [32, 256], strides = [1, 1]} : vector<32x6400xbf16> to vector<32x256xbf16>
    %cst_198 = arith.constant dense<0.000000e+00> : vector<8x256xf32>
    %305 = tpu.matmul %303, %304, %cst_198 {dimension_numbers = #tpu.dot_dimension_numbers<[1], [0], [0], [1], [0, 0, 1, 1], [], []>} : vector<8x32xbf16>, vector<32x256xbf16>, vector<8x256xf32> -> vector<8x256xf32>
    %306 = arith.addf %301, %305 : vector<8x256xf32>
    %c23_199 = arith.constant 23 : index
    %c0_200 = arith.constant 0 : index
    %c0_201 = arith.constant 0 : index
    %307 = vector.load %arg7[%c23_199, %c0_200, %c0_201] : memref<25x8x32xbf16, #tpu.memory_space<vmem>>, vector<1x8x32xbf16>
    %308 = vector.shape_cast %307 : vector<1x8x32xbf16> to vector<8x32xbf16>
    %309 = vector.extract_strided_slice %192 {offsets = [0, 5888], sizes = [32, 256], strides = [1, 1]} : vector<32x6400xbf16> to vector<32x256xbf16>
    %cst_202 = arith.constant dense<0.000000e+00> : vector<8x256xf32>
    %310 = tpu.matmul %308, %309, %cst_202 {dimension_numbers = #tpu.dot_dimension_numbers<[1], [0], [0], [1], [0, 0, 1, 1], [], []>} : vector<8x32xbf16>, vector<32x256xbf16>, vector<8x256xf32> -> vector<8x256xf32>
    %311 = arith.addf %306, %310 : vector<8x256xf32>
    %c24_203 = arith.constant 24 : index
    %c0_204 = arith.constant 0 : index
    %c0_205 = arith.constant 0 : index
    %312 = vector.load %arg7[%c24_203, %c0_204, %c0_205] : memref<25x8x32xbf16, #tpu.memory_space<vmem>>, vector<1x8x32xbf16>
    %313 = vector.shape_cast %312 : vector<1x8x32xbf16> to vector<8x32xbf16>
    %314 = vector.extract_strided_slice %192 {offsets = [0, 6144], sizes = [32, 256], strides = [1, 1]} : vector<32x6400xbf16> to vector<32x256xbf16>
    %cst_206 = arith.constant dense<0.000000e+00> : vector<8x256xf32>
    %315 = tpu.matmul %313, %314, %cst_206 {dimension_numbers = #tpu.dot_dimension_numbers<[1], [0], [0], [1], [0, 0, 1, 1], [], []>} : vector<8x32xbf16>, vector<32x256xbf16>, vector<8x256xf32> -> vector<8x256xf32>
    %316 = arith.addf %311, %315 : vector<8x256xf32>
    %cst_207 = arith.constant dense<0.000000e+00> : vector<256xf32>
    %317 = vector.multi_reduction <add>, %316, %cst_207 [0] : vector<8x256xf32> to vector<256xf32>
    %318 = vector.shape_cast %317 : vector<256xf32> to vector<1x256xf32>
    %319 = arith.mulf %316, %316 : vector<8x256xf32>
    %cst_208 = arith.constant dense<0.000000e+00> : vector<256xf32>
    %320 = vector.multi_reduction <add>, %319, %cst_208 [0] : vector<8x256xf32> to vector<256xf32>
    %321 = vector.shape_cast %320 : vector<256xf32> to vector<1x256xf32>
    %cst_209 = arith.constant 1.250000e-01 : f32
    %322 = vector.broadcast %cst_209 : f32 to vector<1x256xf32>
    %323 = arith.mulf %318, %322 : vector<1x256xf32>
    %cst_210 = arith.constant 1.250000e-01 : f32
    %324 = vector.broadcast %cst_210 : f32 to vector<1x256xf32>
    %325 = arith.mulf %321, %324 : vector<1x256xf32>
    %326 = arith.mulf %323, %323 : vector<1x256xf32>
    %327 = arith.subf %325, %326 : vector<1x256xf32>
    %c0_211 = arith.constant 0 : index
    %c0_212 = arith.constant 0 : index
    %328 = vector.load %arg8[%c0_211, %c0_212] : memref<1x256xf32, #tpu.memory_space<vmem>>, vector<1x256xf32>
    %cst_213 = arith.constant 9.99999974E-6 : f32
    %329 = vector.broadcast %cst_213 : f32 to vector<1x256xf32>
    %330 = arith.addf %327, %329 : vector<1x256xf32>
    %331 = math.rsqrt %330 : vector<1x256xf32>
    %332 = arith.mulf %328, %331 : vector<1x256xf32>
    %c0_214 = arith.constant 0 : index
    %c0_215 = arith.constant 0 : index
    %333 = vector.load %arg9[%c0_214, %c0_215] : memref<1x256xf32, #tpu.memory_space<vmem>>, vector<1x256xf32>
    %334 = arith.mulf %323, %332 : vector<1x256xf32>
    %335 = arith.subf %333, %334 : vector<1x256xf32>
    %336 = vector.broadcast %332 : vector<1x256xf32> to vector<8x256xf32>
    %337 = arith.mulf %316, %336 : vector<8x256xf32>
    %338 = vector.broadcast %335 : vector<1x256xf32> to vector<8x256xf32>
    %339 = arith.addf %337, %338 : vector<8x256xf32>
    %cst_216 = arith.constant 0.000000e+00 : f32
    %340 = vector.broadcast %cst_216 : f32 to vector<8x256xf32>
    %341 = arith.maximumf %339, %340 : vector<8x256xf32>
    %342 = arith.truncf %341 : vector<8x256xf32> to vector<8x256xbf16>
    %c0_217 = arith.constant 0 : index
    %c0_218 = arith.constant 0 : index
    %343 = vector.load %arg11[%c0_217, %c0_218] : memref<256x32xbf16, #tpu.memory_space<vmem>>, vector<256x32xbf16>
    %cst_219 = arith.constant dense<0.000000e+00> : vector<8x32xf32>
    %344 = tpu.matmul %342, %343, %cst_219 {dimension_numbers = #tpu.dot_dimension_numbers<[1], [0], [0], [1], [0, 0, 1, 1], [], []>} : vector<8x256xbf16>, vector<256x32xbf16>, vector<8x32xf32> -> vector<8x32xf32>
    %345 = arith.truncf %344 : vector<8x32xf32> to vector<8x32xbf16>
    %c0_220 = arith.constant 0 : index
    %c0_221 = arith.constant 0 : index
    %c0_222 = arith.constant 0 : index
    %346 = vector.load %arg10[%c0_220, %c0_221, %c0_222] : memref<4x2x8xbf16, #tpu.memory_space<vmem>>, vector<1x2x8xbf16>
    %347 = vector.shape_cast %346 : vector<1x2x8xbf16> to vector<2x8xbf16>
    %348 = vector.extract_strided_slice %345 {offsets = [0, 0], sizes = [8, 8], strides = [1, 1]} : vector<8x32xbf16> to vector<8x8xbf16>
    %cst_223 = arith.constant dense<0.000000e+00> : vector<2x8xf32>
    %349 = tpu.matmul %347, %348, %cst_223 {dimension_numbers = #tpu.dot_dimension_numbers<[1], [0], [0], [1], [0, 0, 1, 1], [], []>} : vector<2x8xbf16>, vector<8x8xbf16>, vector<2x8xf32> -> vector<2x8xf32>
    %c1_224 = arith.constant 1 : index
    %c0_225 = arith.constant 0 : index
    %c0_226 = arith.constant 0 : index
    %350 = vector.load %arg10[%c1_224, %c0_225, %c0_226] : memref<4x2x8xbf16, #tpu.memory_space<vmem>>, vector<1x2x8xbf16>
    %351 = vector.shape_cast %350 : vector<1x2x8xbf16> to vector<2x8xbf16>
    %352 = vector.extract_strided_slice %345 {offsets = [0, 8], sizes = [8, 8], strides = [1, 1]} : vector<8x32xbf16> to vector<8x8xbf16>
    %cst_227 = arith.constant dense<0.000000e+00> : vector<2x8xf32>
    %353 = tpu.matmul %351, %352, %cst_227 {dimension_numbers = #tpu.dot_dimension_numbers<[1], [0], [0], [1], [0, 0, 1, 1], [], []>} : vector<2x8xbf16>, vector<8x8xbf16>, vector<2x8xf32> -> vector<2x8xf32>
    %354 = arith.addf %349, %353 : vector<2x8xf32>
    %c2_228 = arith.constant 2 : index
    %c0_229 = arith.constant 0 : index
    %c0_230 = arith.constant 0 : index
    %355 = vector.load %arg10[%c2_228, %c0_229, %c0_230] : memref<4x2x8xbf16, #tpu.memory_space<vmem>>, vector<1x2x8xbf16>
    %356 = vector.shape_cast %355 : vector<1x2x8xbf16> to vector<2x8xbf16>
    %357 = vector.extract_strided_slice %345 {offsets = [0, 16], sizes = [8, 8], strides = [1, 1]} : vector<8x32xbf16> to vector<8x8xbf16>
    %cst_231 = arith.constant dense<0.000000e+00> : vector<2x8xf32>
    %358 = tpu.matmul %356, %357, %cst_231 {dimension_numbers = #tpu.dot_dimension_numbers<[1], [0], [0], [1], [0, 0, 1, 1], [], []>} : vector<2x8xbf16>, vector<8x8xbf16>, vector<2x8xf32> -> vector<2x8xf32>
    %359 = arith.addf %354, %358 : vector<2x8xf32>
    %c3_232 = arith.constant 3 : index
    %c0_233 = arith.constant 0 : index
    %c0_234 = arith.constant 0 : index
    %360 = vector.load %arg10[%c3_232, %c0_233, %c0_234] : memref<4x2x8xbf16, #tpu.memory_space<vmem>>, vector<1x2x8xbf16>
    %361 = vector.shape_cast %360 : vector<1x2x8xbf16> to vector<2x8xbf16>
    %362 = vector.extract_strided_slice %345 {offsets = [0, 24], sizes = [8, 8], strides = [1, 1]} : vector<8x32xbf16> to vector<8x8xbf16>
    %cst_235 = arith.constant dense<0.000000e+00> : vector<2x8xf32>
    %363 = tpu.matmul %361, %362, %cst_235 {dimension_numbers = #tpu.dot_dimension_numbers<[1], [0], [0], [1], [0, 0, 1, 1], [], []>} : vector<2x8xbf16>, vector<8x8xbf16>, vector<2x8xf32> -> vector<2x8xf32>
    %364 = arith.addf %359, %363 : vector<2x8xf32>
    %c0_236 = arith.constant 0 : index
    %c0_237 = arith.constant 0 : index
    %365 = vector.load %arg14[%c0_236, %c0_237] : memref<2x8xf32, #tpu.memory_space<vmem>>, vector<2x8xf32>
    tpu.vector_store %arg14[%c0_236, %c0_237], %364 {strides = array<i32>} : memref<2x8xf32, #tpu.memory_space<vmem>>, vector<2x8xf32>,
    return
  }
}

</mosaic_0001>

<llo_original>
// kernel: encoder_forward.1
$region0: #{encoder_forward.1}
  #allocation0 [shape = 'u32[]', space=smem, size = 0x4, offset = 0x4, fixed_abs, tag = 'smem constant byte address 0x4 - core index']
  #allocation1 [shape = 'u32[144,128]{1,0:T(1,128)}', space=vmem, size = 0x12000, scoped, tag = 'internal scratch']
  #allocation2 [shape = 'bf16[64,3200]{1,0:T(8,128)(2,1)}', space=vmem, size = 0x64000, scoped, tag = 'scratch operand']
  #allocation3 [shape = 'bf16[128,6400]{1,0:T(8,128)(2,1)}', space=vmem, size = 0x190000, scoped, tag = 'scratch operand']
  #allocation4 [shape = 's32[2]{0}', space=sflag, size = 0x8, scoped, tag = 'scratch operand']
  #allocation7 [shape = 's32[]', space=sflag, size = 0x4, offset = 0, fixed_abs, tag = 'sflag constant byte address 0x0 - dummy sync flag']
  #allocation8 [shape = 's32[]', space=sflag, size = 0x4, offset = 0, fixed_abs, tag = 'sflag constant byte address 0x0 - dummy sync flag']
  %s0 = inlined_call_operand.vmem [shape: bf16[128,75], index: 0, kind: input, shape index: {}]
  %s1 = inlined_call_operand.vmem [shape: bf16[75,64], index: 1, kind: input, shape index: {}]
  %s2 = inlined_call_operand.vmem [shape: f32[1,64], index: 2, kind: input, shape index: {}]
  %s3 = inlined_call_operand.vmem [shape: f32[1,64], index: 3, kind: input, shape index: {}]
  %s4 = inlined_call_operand.vmem [shape: bf16[25,32,128], index: 4, kind: input, shape index: {}]
  %s5 = inlined_call_operand.vmem [shape: f32[1,128], index: 5, kind: input, shape index: {}]
  %s6 = inlined_call_operand.vmem [shape: f32[1,128], index: 6, kind: input, shape index: {}]
  %s7 = inlined_call_operand.vmem [shape: bf16[25,8,32], index: 7, kind: input, shape index: {}]
  %s8 = inlined_call_operand.vmem [shape: f32[1,256], index: 8, kind: input, shape index: {}]
  %s9 = inlined_call_operand.vmem [shape: f32[1,256], index: 9, kind: input, shape index: {}]
  %s10 = inlined_call_operand.vmem [shape: bf16[4,2,8], index: 10, kind: input, shape index: {}]
  %s11 = inlined_call_operand.vmem [shape: bf16[256,32], index: 11, kind: input, shape index: {}]
  %s12 = inlined_call_operand.vmem [shape: bf16[64,3200], index: 12, kind: input, shape index: {}]
  %s13 = inlined_call_operand.vmem [shape: bf16[128,6400], index: 13, kind: input, shape index: {}]
  %s14 = inlined_call_operand.hbm [shape: f32[2,8], index: 14, kind: output, shape index: {}]
  %s15 = sld [smem:[#allocation0]]
  $region126: #{encoder_forward.1} parent=0
    _
  %s17 = ssub.s32 1, %s15
  %s18 = scalar_select 0, %s17, %s15
  $region1: #{encoder_forward.1} parent=0
    #allocation5 [shape = 'u8[1024]{0}', space=vmem, size = 0x400, scoped, tag = 'output window, operand 0, single buffered']
    #allocation6 [shape = 's32[1]{0}', space=sflag, size = 0x4, scoped, tag = 'scoped memory for encoder_forward.1']
    %19 = vsyncpa [#allocation6], 0
    // Predicated region
    $region2: #{encoder_forward.1} parent=1 // pred_check
      _
    $region3: #{encoder_forward.1} parent=1 // pred_check_branch
      %21 = sbr.rel (0) target = $region5
    $region4: #{encoder_forward.1} parent=1 // pred_region
      _
    $region5: #{encoder_forward.1} parent=1 // pred_fallthru
      _
    // Predicated region
    $region6: #{encoder_forward.1} parent=1 // pred_check
      _
    $region7: #{encoder_forward.1} parent=1 // pred_check_branch
      %23 = sbr.rel (0) target = $region9
    $region8: #{encoder_forward.1} parent=1 // pred_region
      _
    $region9: #{encoder_forward.1} parent=1 // pred_fallthru
      _
    // Predicated region
    $region10: #{encoder_forward.1} parent=1 // pred_check
      _
    $region11: #{encoder_forward.1} parent=1 // pred_check_branch
      %25 = sbr.rel (0) target = $region13
    $region12: #{encoder_forward.1} parent=1 // pred_region
      _
    $region13: #{encoder_forward.1} parent=1 // pred_fallthru
      _
    // Predicated region
    $region14: #{encoder_forward.1} parent=1 // pred_check
      _
    $region15: #{encoder_forward.1} parent=1 // pred_check_branch
      %27 = sbr.rel (0) target = $region17
    $region16: #{encoder_forward.1} parent=1 // pred_region
      _
    $region17: #{encoder_forward.1} parent=1 // pred_fallthru
      _
    // Predicated region
    $region18: #{encoder_forward.1} parent=1 // pred_check
      _
    $region19: #{encoder_forward.1} parent=1 // pred_check_branch
      %29 = sbr.rel (0) target = $region21
    $region20: #{encoder_forward.1} parent=1 // pred_region
      _
    $region21: #{encoder_forward.1} parent=1 // pred_fallthru
      _
    // Predicated region
    $region22: #{encoder_forward.1} parent=1 // pred_check
      _
    $region23: #{encoder_forward.1} parent=1 // pred_check_branch
      %31 = sbr.rel (0) target = $region25
    $region24: #{encoder_forward.1} parent=1 // pred_region
      _
    $region25: #{encoder_forward.1} parent=1 // pred_fallthru
      _
    // Predicated region
    $region26: #{encoder_forward.1} parent=1 // pred_check
      _
    $region27: #{encoder_forward.1} parent=1 // pred_check_branch
      %33 = sbr.rel (0) target = $region29
    $region28: #{encoder_forward.1} parent=1 // pred_region
      _
    $region29: #{encoder_forward.1} parent=1 // pred_fallthru
      _
    // Predicated region
    $region30: #{encoder_forward.1} parent=1 // pred_check
      _
    $region31: #{encoder_forward.1} parent=1 // pred_check_branch
      %35 = sbr.rel (0) target = $region33
    $region32: #{encoder_forward.1} parent=1 // pred_region
      _
    $region33: #{encoder_forward.1} parent=1 // pred_fallthru
      _
    // Predicated region
    $region34: #{encoder_forward.1} parent=1 // pred_check
      _
    $region35: #{encoder_forward.1} parent=1 // pred_check_branch
      %37 = sbr.rel (0) target = $region37
    $region36: #{encoder_forward.1} parent=1 // pred_region
      _
    $region37: #{encoder_forward.1} parent=1 // pred_fallthru
      _
    // Predicated region
    $region38: #{encoder_forward.1} parent=1 // pred_check
      _
    $region39: #{encoder_forward.1} parent=1 // pred_check_branch
      %39 = sbr.rel (0) target = $region41
    $region40: #{encoder_forward.1} parent=1 // pred_region
      _
    $region41: #{encoder_forward.1} parent=1 // pred_fallthru
      _
    // Predicated region
    $region42: #{encoder_forward.1} parent=1 // pred_check
      _
    $region43: #{encoder_forward.1} parent=1 // pred_check_branch
      %41 = sbr.rel (0) target = $region45
    $region44: #{encoder_forward.1} parent=1 // pred_region
      _
    $region45: #{encoder_forward.1} parent=1 // pred_fallthru
      _
    // Predicated region
    $region46: #{encoder_forward.1} parent=1 // pred_check
      _
    $region47: #{encoder_forward.1} parent=1 // pred_check_branch
      %43 = sbr.rel (0) target = $region49
    $region48: #{encoder_forward.1} parent=1 // pred_region
      _
    $region49: #{encoder_forward.1} parent=1 // pred_fallthru
      _
    %p46 = scmp.lt.u32.totalorder 800, 8
    %p47 = pneg %p46
    // Predicated region
    $region50: #{encoder_forward.1} parent=1 // pred_check
      _
    $region51: #{encoder_forward.1} parent=1 // pred_check_branch
      %49 = sbr.rel (%p46) target = $region53
    $region52: #{encoder_forward.1} parent=1 // pred_region
      %s65 = sand.u32 800, 7
      %p66 = scmp.eq.s32.totalorder %s65, 0
      // Predicated region
      $region65: #{encoder_forward.1} parent=52 // pred_check
        %p67 = pneg %p66
      $region66: #{encoder_forward.1} parent=52 // pred_check_branch
        %69 = sbr.rel (%p67) target = $region68
      $region67: #{encoder_forward.1} parent=52 // pred_region
        loop: start=0, step=1, limit=1
        $region69: #{encoder_forward.1} parent=67 // loop_pre_header
          _
        $region70: #{encoder_forward.1} parent=67 // loop_header
          %s71 = sphi 0, %s75
          %p72 = scmp.ge.s32.totalorder %s71, 1
          %s76 = sphi %s12, %s12
          %s77 = sphi [#allocation2], [#allocation2]
        $region71: #{encoder_forward.1} parent=67 // loop_header_branch
          %74 = sbr.rel (%p72) target = $region75
        $region72: #{encoder_forward.1} parent=67 // loop_body
          %v78 = vld [vmem:[%s76] sm:$0xff]
          %79 = vst [vmem:[%s77] sm:$0xff] %v78
          %v80 = vld [vmem:[%s76 + $0x8] sm:$0xff]
          %81 = vst [vmem:[%s77 + $0x8] sm:$0xff] %v80
          %v82 = vld [vmem:[%s76 + $0x10] sm:$0xff]
          %83 = vst [vmem:[%s77 + $0x10] sm:$0xff] %v82
          %v84 = vld [vmem:[%s76 + $0x18] sm:$0xff]
          %85 = vst [vmem:[%s77 + $0x18] sm:$0xff] %v84
          %v86 = vld [vmem:[%s76 + $0x20] sm:$0xff]
          %87 = vst [vmem:[%s77 + $0x20] sm:$0xff] %v86
          %v88 = vld [vmem:[%s76 + $0x28] sm:$0xff]
          %89 = vst [vmem:[%s77 + $0x28] sm:$0xff] %v88
          %v90 = vld [vmem:[%s76 + $0x30] sm:$0xff]
          %91 = vst [vmem:[%s77 + $0x30] sm:$0xff] %v90
          %v92 = vld [vmem:[%s76 + $0x38] sm:$0xff]
          %93 = vst [vmem:[%s77 + $0x38] sm:$0xff] %v92
          %v94 = vld [vmem:[%s76 + $0x40] sm:$0xff]
          %95 = vst [vmem:[%s77 + $0x40] sm:$0xff] %v94
          %v96 = vld [vmem:[%s76 + $0x48] sm:$0xff]
          %97 = vst [vmem:[%s77 + $0x48] sm:$0xff] %v96
          %v98 = vld [vmem:[%s76 + $0x50] sm:$0xff]
          %99 = vst [vmem:[%s77 + $0x50] sm:$0xff] %v98
          %v100 = vld [vmem:[%s76 + $0x58] sm:$0xff]
          %101 = vst [vmem:[%s77 + $0x58] sm:$0xff] %v100
          %v102 = vld [vmem:[%s76 + $0x60] sm:$0xff]
          %103 = vst [vmem:[%s77 + $0x60] sm:$0xff] %v102
          %v104 = vld [vmem:[%s76 + $0x68] sm:$0xff]
          %105 = vst [vmem:[%s77 + $0x68] sm:$0xff] %v104
          %v106 = vld [vmem:[%s76 + $0x70] sm:$0xff]
          %107 = vst [vmem:[%s77 + $0x70] sm:$0xff] %v106
          %v108 = vld [vmem:[%s76 + $0x78] sm:$0xff]
          %109 = vst [vmem:[%s77 + $0x78] sm:$0xff] %v108
          %v110 = vld [vmem:[%s76 + $0x80] sm:$0xff]
          %111 = vst [vmem:[%s77 + $0x80] sm:$0xff] %v110
          %v112 = vld [vmem:[%s76 + $0x88] sm:$0xff]
          %113 = vst [vmem:[%s77 + $0x88] sm:$0xff] %v112
          %v114 = vld [vmem:[%s76 + $0x90] sm:$0xff]
          %115 = vst [vmem:[%s77 + $0x90] sm:$0xff] %v114
          %v116 = vld [vmem:[%s76 + $0x98] sm:$0xff]
          %117 = vst [vmem:[%s77 + $0x98] sm:$0xff] %v116
          %v118 = vld [vmem:[%s76 + $0xa0] sm:$0xff]
          %119 = vst [vmem:[%s77 + $0xa0] sm:$0xff] %v118
          %v120 = vld [vmem:[%s76 + $0xa8] sm:$0xff]
          %121 = vst [vmem:[%s77 + $0xa8] sm:$0xff] %v120
          %v122 = vld [vmem:[%s76 + $0xb0] sm:$0xff]
          %123 = vst [vmem:[%s77 + $0xb0] sm:$0xff] %v122
          %v124 = vld [vmem:[%s76 + $0xb8] sm:$0xff]
          %125 = vst [vmem:[%s77 + $0xb8] sm:$0xff] %v124
          %v126 = vld [vmem:[%s76 + $0xc0] sm:$0xff]
          %127 = vst [vmem:[%s77 + $0xc0] sm:$0xff] %v126
          %v128 = vld [vmem:[%s76 + $0xc8] sm:$0xff]
          %129 = vst [vmem:[%s77 + $0xc8] sm:$0xff] %v128
          %v130 = vld [vmem:[%s76 + $0xd0] sm:$0xff]
          %131 = vst [vmem:[%s77 + $0xd0] sm:$0xff] %v130
          %v132 = vld [vmem:[%s76 + $0xd8] sm:$0xff]
          %133 = vst [vmem:[%s77 + $0xd8] sm:$0xff] %v132
          %v134 = vld [vmem:[%s76 + $0xe0] sm:$0xff]
          %135 = vst [vmem:[%s77 + $0xe0] sm:$0xff] %v134
          %v136 = vld [vmem:[%s76 + $0xe8] sm:$0xff]
          %137 = vst [vmem:[%s77 + $0xe8] sm:$0xff] %v136
          %v138 = vld [vmem:[%s76 + $0xf0] sm:$0xff]
          %139 = vst [vmem:[%s77 + $0xf0] sm:$0xff] %v138
          %v140 = vld [vmem:[%s76 + $0xf8] sm:$0xff]
          %141 = vst [vmem:[%s77 + $0xf8] sm:$0xff] %v140
          %v142 = vld [vmem:[%s76 + $0x100] sm:$0xff]
          %143 = vst [vmem:[%s77 + $0x100] sm:$0xff] %v142
          %v144 = vld [vmem:[%s76 + $0x108] sm:$0xff]
          %145 = vst [vmem:[%s77 + $0x108] sm:$0xff] %v144
          %v146 = vld [vmem:[%s76 + $0x110] sm:$0xff]
          %147 = vst [vmem:[%s77 + $0x110] sm:$0xff] %v146
          %v148 = vld [vmem:[%s76 + $0x118] sm:$0xff]
          %149 = vst [vmem:[%s77 + $0x118] sm:$0xff] %v148
          %v150 = vld [vmem:[%s76 + $0x120] sm:$0xff]
          %151 = vst [vmem:[%s77 + $0x120] sm:$0xff] %v150
          %v152 = vld [vmem:[%s76 + $0x128] sm:$0xff]
          %153 = vst [vmem:[%s77 + $0x128] sm:$0xff] %v152
          %v154 = vld [vmem:[%s76 + $0x130] sm:$0xff]
          %155 = vst [vmem:[%s77 + $0x130] sm:$0xff] %v154
          %v156 = vld [vmem:[%s76 + $0x138] sm:$0xff]
          %157 = vst [vmem:[%s77 + $0x138] sm:$0xff] %v156
          %v158 = vld [vmem:[%s76 + $0x140] sm:$0xff]
          %159 = vst [vmem:[%s77 + $0x140] sm:$0xff] %v158
          %v160 = vld [vmem:[%s76 + $0x148] sm:$0xff]
          %161 = vst [vmem:[%s77 + $0x148] sm:$0xff] %v160
          %v162 = vld [vmem:[%s76 + $0x150] sm:$0xff]
          %163 = vst [vmem:[%s77 + $0x150] sm:$0xff] %v162
          %v164 = vld [vmem:[%s76 + $0x158] sm:$0xff]
          %165 = vst [vmem:[%s77 + $0x158] sm:$0xff] %v164
          %v166 = vld [vmem:[%s76 + $0x160] sm:$0xff]
          %167 = vst [vmem:[%s77 + $0x160] sm:$0xff] %v166
          %v168 = vld [vmem:[%s76 + $0x168] sm:$0xff]
          %169 = vst [vmem:[%s77 + $0x168] sm:$0xff] %v168
          %v170 = vld [vmem:[%s76 + $0x170] sm:$0xff]
          %171 = vst [vmem:[%s77 + $0x170] sm:$0xff] %v170
          %v172 = vld [vmem:[%s76 + $0x178] sm:$0xff]
          %173 = vst [vmem:[%s77 + $0x178] sm:$0xff] %v172
          %v174 = vld [vmem:[%s76 + $0x180] sm:$0xff]
          %175 = vst [vmem:[%s77 + $0x180] sm:$0xff] %v174
          %v176 = vld [vmem:[%s76 + $0x188] sm:$0xff]
          %177 = vst [vmem:[%s77 + $0x188] sm:$0xff] %v176
          %v178 = vld [vmem:[%s76 + $0x190] sm:$0xff]
          %179 = vst [vmem:[%s77 + $0x190] sm:$0xff] %v178
          %v180 = vld [vmem:[%s76 + $0x198] sm:$0xff]
          %181 = vst [vmem:[%s77 + $0x198] sm:$0xff] %v180
          %v182 = vld [vmem:[%s76 + $0x1a0] sm:$0xff]
          %183 = vst [vmem:[%s77 + $0x1a0] sm:$0xff] %v182
          %v184 = vld [vmem:[%s76 + $0x1a8] sm:$0xff]
          %185 = vst [vmem:[%s77 + $0x1a8] sm:$0xff] %v184
          %v186 = vld [vmem:[%s76 + $0x1b0] sm:$0xff]
          %187 = vst [vmem:[%s77 + $0x1b0] sm:$0xff] %v186
          %v188 = vld [vmem:[%s76 + $0x1b8] sm:$0xff]
          %189 = vst [vmem:[%s77 + $0x1b8] sm:$0xff] %v188
          %v190 = vld [vmem:[%s76 + $0x1c0] sm:$0xff]
          %191 = vst [vmem:[%s77 + $0x1c0] sm:$0xff] %v190
          %v192 = vld [vmem:[%s76 + $0x1c8] sm:$0xff]
          %193 = vst [vmem:[%s77 + $0x1c8] sm:$0xff] %v192
          %v194 = vld [vmem:[%s76 + $0x1d0] sm:$0xff]
          %195 = vst [vmem:[%s77 + $0x1d0] sm:$0xff] %v194
          %v196 = vld [vmem:[%s76 + $0x1d8] sm:$0xff]
          %197 = vst [vmem:[%s77 + $0x1d8] sm:$0xff] %v196
          %v198 = vld [vmem:[%s76 + $0x1e0] sm:$0xff]
          %199 = vst [vmem:[%s77 + $0x1e0] sm:$0xff] %v198
          %v200 = vld [vmem:[%s76 + $0x1e8] sm:$0xff]
          %201 = vst [vmem:[%s77 + $0x1e8] sm:$0xff] %v200
          %v202 = vld [vmem:[%s76 + $0x1f0] sm:$0xff]
          %203 = vst [vmem:[%s77 + $0x1f0] sm:$0xff] %v202
          %v204 = vld [vmem:[%s76 + $0x1f8] sm:$0xff]
          %205 = vst [vmem:[%s77 + $0x1f8] sm:$0xff] %v204
          %v206 = vld [vmem:[%s76 + $0x200] sm:$0xff]
          %207 = vst [vmem:[%s77 + $0x200] sm:$0xff] %v206
          %v208 = vld [vmem:[%s76 + $0x208] sm:$0xff]
          %209 = vst [vmem:[%s77 + $0x208] sm:$0xff] %v208
          %v210 = vld [vmem:[%s76 + $0x210] sm:$0xff]
          %211 = vst [vmem:[%s77 + $0x210] sm:$0xff] %v210
          %v212 = vld [vmem:[%s76 + $0x218] sm:$0xff]
          %213 = vst [vmem:[%s77 + $0x218] sm:$0xff] %v212
          %v214 = vld [vmem:[%s76 + $0x220] sm:$0xff]
          %215 = vst [vmem:[%s77 + $0x220] sm:$0xff] %v214
          %v216 = vld [vmem:[%s76 + $0x228] sm:$0xff]
          %217 = vst [vmem:[%s77 + $0x228] sm:$0xff] %v216
          %v218 = vld [vmem:[%s76 + $0x230] sm:$0xff]
          %219 = vst [vmem:[%s77 + $0x230] sm:$0xff] %v218
          %v220 = vld [vmem:[%s76 + $0x238] sm:$0xff]
          %221 = vst [vmem:[%s77 + $0x238] sm:$0xff] %v220
          %v222 = vld [vmem:[%s76 + $0x240] sm:$0xff]
          %223 = vst [vmem:[%s77 + $0x240] sm:$0xff] %v222
          %v224 = vld [vmem:[%s76 + $0x248] sm:$0xff]
          %225 = vst [vmem:[%s77 + $0x248] sm:$0xff] %v224
          %v226 = vld [vmem:[%s76 + $0x250] sm:$0xff]
          %227 = vst [vmem:[%s77 + $0x250] sm:$0xff] %v226
          %v228 = vld [vmem:[%s76 + $0x258] sm:$0xff]
          %229 = vst [vmem:[%s77 + $0x258] sm:$0xff] %v228
          %v230 = vld [vmem:[%s76 + $0x260] sm:$0xff]
          %231 = vst [vmem:[%s77 + $0x260] sm:$0xff] %v230
          %v232 = vld [vmem:[%s76 + $0x268] sm:$0xff]
          %233 = vst [vmem:[%s77 + $0x268] sm:$0xff] %v232
          %v234 = vld [vmem:[%s76 + $0x270] sm:$0xff]
          %235 = vst [vmem:[%s77 + $0x270] sm:$0xff] %v234
          %v236 = vld [vmem:[%s76 + $0x278] sm:$0xff]
          %237 = vst [vmem:[%s77 + $0x278] sm:$0xff] %v236
          %v238 = vld [vmem:[%s76 + $0x280] sm:$0xff]
          %239 = vst [vmem:[%s77 + $0x280] sm:$0xff] %v238
          %v240 = vld [vmem:[%s76 + $0x288] sm:$0xff]
          %241 = vst [vmem:[%s77 + $0x288] sm:$0xff] %v240
          %v242 = vld [vmem:[%s76 + $0x290] sm:$0xff]
          %243 = vst [vmem:[%s77 + $0x290] sm:$0xff] %v242
          %v244 = vld [vmem:[%s76 + $0x298] sm:$0xff]
          %245 = vst [vmem:[%s77 + $0x298] sm:$0xff] %v244
          %v246 = vld [vmem:[%s76 + $0x2a0] sm:$0xff]
          %247 = vst [vmem:[%s77 + $0x2a0] sm:$0xff] %v246
          %v248 = vld [vmem:[%s76 + $0x2a8] sm:$0xff]
          %249 = vst [vmem:[%s77 + $0x2a8] sm:$0xff] %v248
          %v250 = vld [vmem:[%s76 + $0x2b0] sm:$0xff]
          %251 = vst [vmem:[%s77 + $0x2b0] sm:$0xff] %v250
          %v252 = vld [vmem:[%s76 + $0x2b8] sm:$0xff]
          %253 = vst [vmem:[%s77 + $0x2b8] sm:$0xff] %v252
          %v254 = vld [vmem:[%s76 + $0x2c0] sm:$0xff]
          %255 = vst [vmem:[%s77 + $0x2c0] sm:$0xff] %v254
          %v256 = vld [vmem:[%s76 + $0x2c8] sm:$0xff]
          %257 = vst [vmem:[%s77 + $0x2c8] sm:$0xff] %v256
          %v258 = vld [vmem:[%s76 + $0x2d0] sm:$0xff]
          %259 = vst [vmem:[%s77 + $0x2d0] sm:$0xff] %v258
          %v260 = vld [vmem:[%s76 + $0x2d8] sm:$0xff]
          %261 = vst [vmem:[%s77 + $0x2d8] sm:$0xff] %v260
          %v262 = vld [vmem:[%s76 + $0x2e0] sm:$0xff]
          %263 = vst [vmem:[%s77 + $0x2e0] sm:$0xff] %v262
          %v264 = vld [vmem:[%s76 + $0x2e8] sm:$0xff]
          %265 = vst [vmem:[%s77 + $0x2e8] sm:$0xff] %v264
          %v266 = vld [vmem:[%s76 + $0x2f0] sm:$0xff]
          %267 = vst [vmem:[%s77 + $0x2f0] sm:$0xff] %v266
          %v268 = vld [vmem:[%s76 + $0x2f8] sm:$0xff]
          %269 = vst [vmem:[%s77 + $0x2f8] sm:$0xff] %v268
          %v270 = vld [vmem:[%s76 + $0x300] sm:$0xff]
          %271 = vst [vmem:[%s77 + $0x300] sm:$0xff] %v270
          %v272 = vld [vmem:[%s76 + $0x308] sm:$0xff]
          %273 = vst [vmem:[%s77 + $0x308] sm:$0xff] %v272
          %v274 = vld [vmem:[%s76 + $0x310] sm:$0xff]
          %275 = vst [vmem:[%s77 + $0x310] sm:$0xff] %v274
          %v276 = vld [vmem:[%s76 + $0x318] sm:$0xff]
          %277 = vst [vmem:[%s77 + $0x318] sm:$0xff] %v276
        $region73: #{encoder_forward.1} parent=67 // loop_footer
          %s75 = sadd.s32 1, %s71
        $region74: #{encoder_forward.1} parent=67 // loop_footer_branch
          %70 = sbr.rel target = $region70
        $region75: #{encoder_forward.1} parent=67 // loop_exit
          _
      $region68: #{encoder_forward.1} parent=52 // pred_fallthru
        _
      %p278 = pneg %p66
      // Predicated region
      $region76: #{encoder_forward.1} parent=52 // pred_check
        _
      $region77: #{encoder_forward.1} parent=52 // pred_check_branch
        %280 = sbr.rel (%p66) target = $region79
      $region78: #{encoder_forward.1} parent=52 // pred_region
        %s281 = sand.u32 800, 7
      $region79: #{encoder_forward.1} parent=52 // pred_fallthru
        _
    $region53: #{encoder_forward.1} parent=1 // pred_fallthru
      _
    // Predicated region
    $region54: #{encoder_forward.1} parent=1 // pred_check
      %p50 = pneg %p46
    $region55: #{encoder_forward.1} parent=1 // pred_check_branch
      %52 = sbr.rel (%p50) target = $region57
    $region56: #{encoder_forward.1} parent=1 // pred_region
      %s53 = sshll.u32 1, 800
      %s54 = ssub.s32 %s53, 1
      loop: start=0, step=1, limit=1
      $region58: #{encoder_forward.1} parent=56 // loop_pre_header
        _
      $region59: #{encoder_forward.1} parent=56 // loop_header
        %s56 = sphi 0, %s60
        %p57 = scmp.ge.s32.totalorder %s56, 1
        %s61 = sphi %s12, %s12
        %s62 = sphi [#allocation2], [#allocation2]
      $region60: #{encoder_forward.1} parent=56 // loop_header_branch
        %59 = sbr.rel (%p57) target = $region64
      $region61: #{encoder_forward.1} parent=56 // loop_body
        %v63 = vld [vmem:[%s61] sm:%s54]
        %64 = vst [vmem:[%s62] sm:%s54] %v63
      $region62: #{encoder_forward.1} parent=56 // loop_footer
        %s60 = sadd.s32 1, %s56
      $region63: #{encoder_forward.1} parent=56 // loop_footer_branch
        %55 = sbr.rel target = $region59
      $region64: #{encoder_forward.1} parent=56 // loop_exit
        _
    $region57: #{encoder_forward.1} parent=1 // pred_fallthru
      _
    // Predicated region
    $region80: #{encoder_forward.1} parent=1 // pred_check
      _
    $region81: #{encoder_forward.1} parent=1 // pred_check_branch
      %284 = sbr.rel (0) target = $region83
    $region82: #{encoder_forward.1} parent=1 // pred_region
      %285 = vsyncadd [#allocation4], 12800
    $region83: #{encoder_forward.1} parent=1 // pred_fallthru
      _
    %s286 = scalar_lea.sflag [#allocation4], 1
    %p288 = scmp.lt.u32.totalorder 3200, 8
    %p289 = pneg %p288
    // Predicated region
    $region84: #{encoder_forward.1} parent=1 // pred_check
      _
    $region85: #{encoder_forward.1} parent=1 // pred_check_branch
      %291 = sbr.rel (%p288) target = $region87
    $region86: #{encoder_forward.1} parent=1 // pred_region
      %s307 = sand.u32 3200, 7
      %p308 = scmp.eq.s32.totalorder %s307, 0
      // Predicated region
      $region99: #{encoder_forward.1} parent=86 // pred_check
        %p309 = pneg %p308
      $region100: #{encoder_forward.1} parent=86 // pred_check_branch
        %311 = sbr.rel (%p309) target = $region102
      $region101: #{encoder_forward.1} parent=86 // pred_region
        loop: start=0, step=1, limit=1
        $region103: #{encoder_forward.1} parent=101 // loop_pre_header
          _
        $region104: #{encoder_forward.1} parent=101 // loop_header
          %s313 = sphi 0, %s317
          %p314 = scmp.ge.s32.totalorder %s313, 1
          %s318 = sphi %s13, %s13
          %s319 = sphi [#allocation3], [#allocation3]
        $region105: #{encoder_forward.1} parent=101 // loop_header_branch
          %316 = sbr.rel (%p314) target = $region109
        $region106: #{encoder_forward.1} parent=101 // loop_body
          %v320 = vld [vmem:[%s318] sm:$0xff]
          %321 = vst [vmem:[%s319] sm:$0xff] %v320
          %v322 = vld [vmem:[%s318 + $0x8] sm:$0xff]
          %323 = vst [vmem:[%s319 + $0x8] sm:$0xff] %v322
          %v324 = vld [vmem:[%s318 + $0x10] sm:$0xff]
          %325 = vst [vmem:[%s319 + $0x10] sm:$0xff] %v324
          %v326 = vld [vmem:[%s318 + $0x18] sm:$0xff]
          %327 = vst [vmem:[%s319 + $0x18] sm:$0xff] %v326
          %v328 = vld [vmem:[%s318 + $0x20] sm:$0xff]
          %329 = vst [vmem:[%s319 + $0x20] sm:$0xff] %v328
          %v330 = vld [vmem:[%s318 + $0x28] sm:$0xff]
          %331 = vst [vmem:[%s319 + $0x28] sm:$0xff] %v330
          %v332 = vld [vmem:[%s318 + $0x30] sm:$0xff]
          %333 = vst [vmem:[%s319 + $0x30] sm:$0xff] %v332
          %v334 = vld [vmem:[%s318 + $0x38] sm:$0xff]
          %335 = vst [vmem:[%s319 + $0x38] sm:$0xff] %v334
          %v336 = vld [vmem:[%s318 + $0x40] sm:$0xff]
          %337 = vst [vmem:[%s319 + $0x40] sm:$0xff] %v336
          %v338 = vld [vmem:[%s318 + $0x48] sm:$0xff]
          %339 = vst [vmem:[%s319 + $0x48] sm:$0xff] %v338
          %v340 = vld [vmem:[%s318 + $0x50] sm:$0xff]
          %341 = vst [vmem:[%s319 + $0x50] sm:$0xff] %v340
          %v342 = vld [vmem:[%s318 + $0x58] sm:$0xff]
          %343 = vst [vmem:[%s319 + $0x58] sm:$0xff] %v342
          %v344 = vld [vmem:[%s318 + $0x60] sm:$0xff]
          %345 = vst [vmem:[%s319 + $0x60] sm:$0xff] %v344
          %v346 = vld [vmem:[%s318 + $0x68] sm:$0xff]
          %347 = vst [vmem:[%s319 + $0x68] sm:$0xff] %v346
          %v348 = vld [vmem:[%s318 + $0x70] sm:$0xff]
          %349 = vst [vmem:[%s319 + $0x70] sm:$0xff] %v348
          %v350 = vld [vmem:[%s318 + $0x78] sm:$0xff]
          %351 = vst [vmem:[%s319 + $0x78] sm:$0xff] %v350
          %v352 = vld [vmem:[%s318 + $0x80] sm:$0xff]
          %353 = vst [vmem:[%s319 + $0x80] sm:$0xff] %v352
          %v354 = vld [vmem:[%s318 + $0x88] sm:$0xff]
          %355 = vst [vmem:[%s319 + $0x88] sm:$0xff] %v354
          %v356 = vld [vmem:[%s318 + $0x90] sm:$0xff]
          %357 = vst [vmem:[%s319 + $0x90] sm:$0xff] %v356
          %v358 = vld [vmem:[%s318 + $0x98] sm:$0xff]
          %359 = vst [vmem:[%s319 + $0x98] sm:$0xff] %v358
          %v360 = vld [vmem:[%s318 + $0xa0] sm:$0xff]
          %361 = vst [vmem:[%s319 + $0xa0] sm:$0xff] %v360
          %v362 = vld [vmem:[%s318 + $0xa8] sm:$0xff]
          %363 = vst [vmem:[%s319 + $0xa8] sm:$0xff] %v362
          %v364 = vld [vmem:[%s318 + $0xb0] sm:$0xff]
          %365 = vst [vmem:[%s319 + $0xb0] sm:$0xff] %v364
          %v366 = vld [vmem:[%s318 + $0xb8] sm:$0xff]
          %367 = vst [vmem:[%s319 + $0xb8] sm:$0xff] %v366
          %v368 = vld [vmem:[%s318 + $0xc0] sm:$0xff]
          %369 = vst [vmem:[%s319 + $0xc0] sm:$0xff] %v368
          %v370 = vld [vmem:[%s318 + $0xc8] sm:$0xff]
          %371 = vst [vmem:[%s319 + $0xc8] sm:$0xff] %v370
          %v372 = vld [vmem:[%s318 + $0xd0] sm:$0xff]
          %373 = vst [vmem:[%s319 + $0xd0] sm:$0xff] %v372
          %v374 = vld [vmem:[%s318 + $0xd8] sm:$0xff]
          %375 = vst [vmem:[%s319 + $0xd8] sm:$0xff] %v374
          %v376 = vld [vmem:[%s318 + $0xe0] sm:$0xff]
          %377 = vst [vmem:[%s319 + $0xe0] sm:$0xff] %v376
          %v378 = vld [vmem:[%s318 + $0xe8] sm:$0xff]
          %379 = vst [vmem:[%s319 + $0xe8] sm:$0xff] %v378
          %v380 = vld [vmem:[%s318 + $0xf0] sm:$0xff]
          %381 = vst [vmem:[%s319 + $0xf0] sm:$0xff] %v380
          %v382 = vld [vmem:[%s318 + $0xf8] sm:$0xff]
          %383 = vst [vmem:[%s319 + $0xf8] sm:$0xff] %v382
          %v384 = vld [vmem:[%s318 + $0x100] sm:$0xff]
          %385 = vst [vmem:[%s319 + $0x100] sm:$0xff] %v384
          %v386 = vld [vmem:[%s318 + $0x108] sm:$0xff]
          %387 = vst [vmem:[%s319 + $0x108] sm:$0xff] %v386
          %v388 = vld [vmem:[%s318 + $0x110] sm:$0xff]
          %389 = vst [vmem:[%s319 + $0x110] sm:$0xff] %v388
          %v390 = vld [vmem:[%s318 + $0x118] sm:$0xff]
          %391 = vst [vmem:[%s319 + $0x118] sm:$0xff] %v390
          %v392 = vld [vmem:[%s318 + $0x120] sm:$0xff]
          %393 = vst [vmem:[%s319 + $0x120] sm:$0xff] %v392
          %v394 = vld [vmem:[%s318 + $0x128] sm:$0xff]
          %395 = vst [vmem:[%s319 + $0x128] sm:$0xff] %v394
          %v396 = vld [vmem:[%s318 + $0x130] sm:$0xff]
          %397 = vst [vmem:[%s319 + $0x130] sm:$0xff] %v396
          %v398 = vld [vmem:[%s318 + $0x138] sm:$0xff]
          %399 = vst [vmem:[%s319 + $0x138] sm:$0xff] %v398
          %v400 = vld [vmem:[%s318 + $0x140] sm:$0xff]
          %401 = vst [vmem:[%s319 + $0x140] sm:$0xff] %v400
          %v402 = vld [vmem:[%s318 + $0x148] sm:$0xff]
          %403 = vst [vmem:[%s319 + $0x148] sm:$0xff] %v402
          %v404 = vld [vmem:[%s318 + $0x150] sm:$0xff]
          %405 = vst [vmem:[%s319 + $0x150] sm:$0xff] %v404
          %v406 = vld [vmem:[%s318 + $0x158] sm:$0xff]
          %407 = vst [vmem:[%s319 + $0x158] sm:$0xff] %v406
          %v408 = vld [vmem:[%s318 + $0x160] sm:$0xff]
          %409 = vst [vmem:[%s319 + $0x160] sm:$0xff] %v408
          %v410 = vld [vmem:[%s318 + $0x168] sm:$0xff]
          %411 = vst [vmem:[%s319 + $0x168] sm:$0xff] %v410
          %v412 = vld [vmem:[%s318 + $0x170] sm:$0xff]
          %413 = vst [vmem:[%s319 + $0x170] sm:$0xff] %v412
          %v414 = vld [vmem:[%s318 + $0x178] sm:$0xff]
          %415 = vst [vmem:[%s319 + $0x178] sm:$0xff] %v414
          %v416 = vld [vmem:[%s318 + $0x180] sm:$0xff]
          %417 = vst [vmem:[%s319 + $0x180] sm:$0xff] %v416
          %v418 = vld [vmem:[%s318 + $0x188] sm:$0xff]
          %419 = vst [vmem:[%s319 + $0x188] sm:$0xff] %v418
          %v420 = vld [vmem:[%s318 + $0x190] sm:$0xff]
          %421 = vst [vmem:[%s319 + $0x190] sm:$0xff] %v420
          %v422 = vld [vmem:[%s318 + $0x198] sm:$0xff]
          %423 = vst [vmem:[%s319 + $0x198] sm:$0xff] %v422
          %v424 = vld [vmem:[%s318 + $0x1a0] sm:$0xff]
          %425 = vst [vmem:[%s319 + $0x1a0] sm:$0xff] %v424
          %v426 = vld [vmem:[%s318 + $0x1a8] sm:$0xff]
          %427 = vst [vmem:[%s319 + $0x1a8] sm:$0xff] %v426
          %v428 = vld [vmem:[%s318 + $0x1b0] sm:$0xff]
          %429 = vst [vmem:[%s319 + $0x1b0] sm:$0xff] %v428
          %v430 = vld [vmem:[%s318 + $0x1b8] sm:$0xff]
          %431 = vst [vmem:[%s319 + $0x1b8] sm:$0xff] %v430
          %v432 = vld [vmem:[%s318 + $0x1c0] sm:$0xff]
          %433 = vst [vmem:[%s319 + $0x1c0] sm:$0xff] %v432
          %v434 = vld [vmem:[%s318 + $0x1c8] sm:$0xff]
          %435 = vst [vmem:[%s319 + $0x1c8] sm:$0xff] %v434
          %v436 = vld [vmem:[%s318 + $0x1d0] sm:$0xff]
          %437 = vst [vmem:[%s319 + $0x1d0] sm:$0xff] %v436
          %v438 = vld [vmem:[%s318 + $0x1d8] sm:$0xff]
          %439 = vst [vmem:[%s319 + $0x1d8] sm:$0xff] %v438
          %v440 = vld [vmem:[%s318 + $0x1e0] sm:$0xff]
          %441 = vst [vmem:[%s319 + $0x1e0] sm:$0xff] %v440
          %v442 = vld [vmem:[%s318 + $0x1e8] sm:$0xff]
          %443 = vst [vmem:[%s319 + $0x1e8] sm:$0xff] %v442
          %v444 = vld [vmem:[%s318 + $0x1f0] sm:$0xff]
          %445 = vst [vmem:[%s319 + $0x1f0] sm:$0xff] %v444
          %v446 = vld [vmem:[%s318 + $0x1f8] sm:$0xff]
          %447 = vst [vmem:[%s319 + $0x1f8] sm:$0xff] %v446
          %v448 = vld [vmem:[%s318 + $0x200] sm:$0xff]
          %449 = vst [vmem:[%s319 + $0x200] sm:$0xff] %v448
          %v450 = vld [vmem:[%s318 + $0x208] sm:$0xff]
          %451 = vst [vmem:[%s319 + $0x208] sm:$0xff] %v450
          %v452 = vld [vmem:[%s318 + $0x210] sm:$0xff]
          %453 = vst [vmem:[%s319 + $0x210] sm:$0xff] %v452
          %v454 = vld [vmem:[%s318 + $0x218] sm:$0xff]
          %455 = vst [vmem:[%s319 + $0x218] sm:$0xff] %v454
          %v456 = vld [vmem:[%s318 + $0x220] sm:$0xff]
          %457 = vst [vmem:[%s319 + $0x220] sm:$0xff] %v456
          %v458 = vld [vmem:[%s318 + $0x228] sm:$0xff]
          %459 = vst [vmem:[%s319 + $0x228] sm:$0xff] %v458
          %v460 = vld [vmem:[%s318 + $0x230] sm:$0xff]
          %461 = vst [vmem:[%s319 + $0x230] sm:$0xff] %v460
          %v462 = vld [vmem:[%s318 + $0x238] sm:$0xff]
          %463 = vst [vmem:[%s319 + $0x238] sm:$0xff] %v462
          %v464 = vld [vmem:[%s318 + $0x240] sm:$0xff]
          %465 = vst [vmem:[%s319 + $0x240] sm:$0xff] %v464
          %v466 = vld [vmem:[%s318 + $0x248] sm:$0xff]
          %467 = vst [vmem:[%s319 + $0x248] sm:$0xff] %v466
          %v468 = vld [vmem:[%s318 + $0x250] sm:$0xff]
          %469 = vst [vmem:[%s319 + $0x250] sm:$0xff] %v468
          %v470 = vld [vmem:[%s318 + $0x258] sm:$0xff]
          %471 = vst [vmem:[%s319 + $0x258] sm:$0xff] %v470
          %v472 = vld [vmem:[%s318 + $0x260] sm:$0xff]
          %473 = vst [vmem:[%s319 + $0x260] sm:$0xff] %v472
          %v474 = vld [vmem:[%s318 + $0x268] sm:$0xff]
          %475 = vst [vmem:[%s319 + $0x268] sm:$0xff] %v474
          %v476 = vld [vmem:[%s318 + $0x270] sm:$0xff]
          %477 = vst [vmem:[%s319 + $0x270] sm:$0xff] %v476
          %v478 = vld [vmem:[%s318 + $0x278] sm:$0xff]
          %479 = vst [vmem:[%s319 + $0x278] sm:$0xff] %v478
          %v480 = vld [vmem:[%s318 + $0x280] sm:$0xff]
          %481 = vst [vmem:[%s319 + $0x280] sm:$0xff] %v480
          %v482 = vld [vmem:[%s318 + $0x288] sm:$0xff]
          %483 = vst [vmem:[%s319 + $0x288] sm:$0xff] %v482
          %v484 = vld [vmem:[%s318 + $0x290] sm:$0xff]
          %485 = vst [vmem:[%s319 + $0x290] sm:$0xff] %v484
          %v486 = vld [vmem:[%s318 + $0x298] sm:$0xff]
          %487 = vst [vmem:[%s319 + $0x298] sm:$0xff] %v486
          %v488 = vld [vmem:[%s318 + $0x2a0] sm:$0xff]
          %489 = vst [vmem:[%s319 + $0x2a0] sm:$0xff] %v488
          %v490 = vld [vmem:[%s318 + $0x2a8] sm:$0xff]
          %491 = vst [vmem:[%s319 + $0x2a8] sm:$0xff] %v490
          %v492 = vld [vmem:[%s318 + $0x2b0] sm:$0xff]
          %493 = vst [vmem:[%s319 + $0x2b0] sm:$0xff] %v492
          %v494 = vld [vmem:[%s318 + $0x2b8] sm:$0xff]
          %495 = vst [vmem:[%s319 + $0x2b8] sm:$0xff] %v494
          %v496 = vld [vmem:[%s318 + $0x2c0] sm:$0xff]
          %497 = vst [vmem:[%s319 + $0x2c0] sm:$0xff] %v496
          %v498 = vld [vmem:[%s318 + $0x2c8] sm:$0xff]
          %499 = vst [vmem:[%s319 + $0x2c8] sm:$0xff] %v498
          %v500 = vld [vmem:[%s318 + $0x2d0] sm:$0xff]
          %501 = vst [vmem:[%s319 + $0x2d0] sm:$0xff] %v500
          %v502 = vld [vmem:[%s318 + $0x2d8] sm:$0xff]
          %503 = vst [vmem:[%s319 + $0x2d8] sm:$0xff] %v502
          %v504 = vld [vmem:[%s318 + $0x2e0] sm:$0xff]
          %505 = vst [vmem:[%s319 + $0x2e0] sm:$0xff] %v504
          %v506 = vld [vmem:[%s318 + $0x2e8] sm:$0xff]
          %507 = vst [vmem:[%s319 + $0x2e8] sm:$0xff] %v506
          %v508 = vld [vmem:[%s318 + $0x2f0] sm:$0xff]
          %509 = vst [vmem:[%s319 + $0x2f0] sm:$0xff] %v508
          %v510 = vld [vmem:[%s318 + $0x2f8] sm:$0xff]
          %511 = vst [vmem:[%s319 + $0x2f8] sm:$0xff] %v510
          %v512 = vld [vmem:[%s318 + $0x300] sm:$0xff]
          %513 = vst [vmem:[%s319 + $0x300] sm:$0xff] %v512
          %v514 = vld [vmem:[%s318 + $0x308] sm:$0xff]
          %515 = vst [vmem:[%s319 + $0x308] sm:$0xff] %v514
          %v516 = vld [vmem:[%s318 + $0x310] sm:$0xff]
          %517 = vst [vmem:[%s319 + $0x310] sm:$0xff] %v516
          %v518 = vld [vmem:[%s318 + $0x318] sm:$0xff]
          %519 = vst [vmem:[%s319 + $0x318] sm:$0xff] %v518
          %v520 = vld [vmem:[%s318 + $0x320] sm:$0xff]
          %521 = vst [vmem:[%s319 + $0x320] sm:$0xff] %v520
          %v522 = vld [vmem:[%s318 + $0x328] sm:$0xff]
          %523 = vst [vmem:[%s319 + $0x328] sm:$0xff] %v522
          %v524 = vld [vmem:[%s318 + $0x330] sm:$0xff]
          %525 = vst [vmem:[%s319 + $0x330] sm:$0xff] %v524
          %v526 = vld [vmem:[%s318 + $0x338] sm:$0xff]
          %527 = vst [vmem:[%s319 + $0x338] sm:$0xff] %v526
          %v528 = vld [vmem:[%s318 + $0x340] sm:$0xff]
          %529 = vst [vmem:[%s319 + $0x340] sm:$0xff] %v528
          %v530 = vld [vmem:[%s318 + $0x348] sm:$0xff]
          %531 = vst [vmem:[%s319 + $0x348] sm:$0xff] %v530
          %v532 = vld [vmem:[%s318 + $0x350] sm:$0xff]
          %533 = vst [vmem:[%s319 + $0x350] sm:$0xff] %v532
          %v534 = vld [vmem:[%s318 + $0x358] sm:$0xff]
          %535 = vst [vmem:[%s319 + $0x358] sm:$0xff] %v534
          %v536 = vld [vmem:[%s318 + $0x360] sm:$0xff]
          %537 = vst [vmem:[%s319 + $0x360] sm:$0xff] %v536
          %v538 = vld [vmem:[%s318 + $0x368] sm:$0xff]
          %539 = vst [vmem:[%s319 + $0x368] sm:$0xff] %v538
          %v540 = vld [vmem:[%s318 + $0x370] sm:$0xff]
          %541 = vst [vmem:[%s319 + $0x370] sm:$0xff] %v540
          %v542 = vld [vmem:[%s318 + $0x378] sm:$0xff]
          %543 = vst [vmem:[%s319 + $0x378] sm:$0xff] %v542
          %v544 = vld [vmem:[%s318 + $0x380] sm:$0xff]
          %545 = vst [vmem:[%s319 + $0x380] sm:$0xff] %v544
          %v546 = vld [vmem:[%s318 + $0x388] sm:$0xff]
          %547 = vst [vmem:[%s319 + $0x388] sm:$0xff] %v546
          %v548 = vld [vmem:[%s318 + $0x390] sm:$0xff]
          %549 = vst [vmem:[%s319 + $0x390] sm:$0xff] %v548
          %v550 = vld [vmem:[%s318 + $0x398] sm:$0xff]
          %551 = vst [vmem:[%s319 + $0x398] sm:$0xff] %v550
          %v552 = vld [vmem:[%s318 + $0x3a0] sm:$0xff]
          %553 = vst [vmem:[%s319 + $0x3a0] sm:$0xff] %v552
          %v554 = vld [vmem:[%s318 + $0x3a8] sm:$0xff]
          %555 = vst [vmem:[%s319 + $0x3a8] sm:$0xff] %v554
          %v556 = vld [vmem:[%s318 + $0x3b0] sm:$0xff]
          %557 = vst [vmem:[%s319 + $0x3b0] sm:$0xff] %v556
          %v558 = vld [vmem:[%s318 + $0x3b8] sm:$0xff]
          %559 = vst [vmem:[%s319 + $0x3b8] sm:$0xff] %v558
          %v560 = vld [vmem:[%s318 + $0x3c0] sm:$0xff]
          %561 = vst [vmem:[%s319 + $0x3c0] sm:$0xff] %v560
          %v562 = vld [vmem:[%s318 + $0x3c8] sm:$0xff]
          %563 = vst [vmem:[%s319 + $0x3c8] sm:$0xff] %v562
          %v564 = vld [vmem:[%s318 + $0x3d0] sm:$0xff]
          %565 = vst [vmem:[%s319 + $0x3d0] sm:$0xff] %v564
          %v566 = vld [vmem:[%s318 + $0x3d8] sm:$0xff]
          %567 = vst [vmem:[%s319 + $0x3d8] sm:$0xff] %v566
          %v568 = vld [vmem:[%s318 + $0x3e0] sm:$0xff]
          %569 = vst [vmem:[%s319 + $0x3e0] sm:$0xff] %v568
          %v570 = vld [vmem:[%s318 + $0x3e8] sm:$0xff]
          %571 = vst [vmem:[%s319 + $0x3e8] sm:$0xff] %v570
          %v572 = vld [vmem:[%s318 + $0x3f0] sm:$0xff]
          %573 = vst [vmem:[%s319 + $0x3f0] sm:$0xff] %v572
          %v574 = vld [vmem:[%s318 + $0x3f8] sm:$0xff]
          %575 = vst [vmem:[%s319 + $0x3f8] sm:$0xff] %v574
          %v576 = vld [vmem:[%s318 + $0x400] sm:$0xff]
          %577 = vst [vmem:[%s319 + $0x400] sm:$0xff] %v576
          %v578 = vld [vmem:[%s318 + $0x408] sm:$0xff]
          %579 = vst [vmem:[%s319 + $0x408] sm:$0xff] %v578
          %v580 = vld [vmem:[%s318 + $0x410] sm:$0xff]
          %581 = vst [vmem:[%s319 + $0x410] sm:$0xff] %v580
          %v582 = vld [vmem:[%s318 + $0x418] sm:$0xff]
          %583 = vst [vmem:[%s319 + $0x418] sm:$0xff] %v582
          %v584 = vld [vmem:[%s318 + $0x420] sm:$0xff]
          %585 = vst [vmem:[%s319 + $0x420] sm:$0xff] %v584
          %v586 = vld [vmem:[%s318 + $0x428] sm:$0xff]
          %587 = vst [vmem:[%s319 + $0x428] sm:$0xff] %v586
          %v588 = vld [vmem:[%s318 + $0x430] sm:$0xff]
          %589 = vst [vmem:[%s319 + $0x430] sm:$0xff] %v588
          %v590 = vld [vmem:[%s318 + $0x438] sm:$0xff]
          %591 = vst [vmem:[%s319 + $0x438] sm:$0xff] %v590
          %v592 = vld [vmem:[%s318 + $0x440] sm:$0xff]
          %593 = vst [vmem:[%s319 + $0x440] sm:$0xff] %v592
          %v594 = vld [vmem:[%s318 + $0x448] sm:$0xff]
          %595 = vst [vmem:[%s319 + $0x448] sm:$0xff] %v594
          %v596 = vld [vmem:[%s318 + $0x450] sm:$0xff]
          %597 = vst [vmem:[%s319 + $0x450] sm:$0xff] %v596
          %v598 = vld [vmem:[%s318 + $0x458] sm:$0xff]
          %599 = vst [vmem:[%s319 + $0x458] sm:$0xff] %v598
          %v600 = vld [vmem:[%s318 + $0x460] sm:$0xff]
          %601 = vst [vmem:[%s319 + $0x460] sm:$0xff] %v600
          %v602 = vld [vmem:[%s318 + $0x468] sm:$0xff]
          %603 = vst [vmem:[%s319 + $0x468] sm:$0xff] %v602
          %v604 = vld [vmem:[%s318 + $0x470] sm:$0xff]
          %605 = vst [vmem:[%s319 + $0x470] sm:$0xff] %v604
          %v606 = vld [vmem:[%s318 + $0x478] sm:$0xff]
          %607 = vst [vmem:[%s319 + $0x478] sm:$0xff] %v606
          %v608 = vld [vmem:[%s318 + $0x480] sm:$0xff]
          %609 = vst [vmem:[%s319 + $0x480] sm:$0xff] %v608
          %v610 = vld [vmem:[%s318 + $0x488] sm:$0xff]
          %611 = vst [vmem:[%s319 + $0x488] sm:$0xff] %v610
          %v612 = vld [vmem:[%s318 + $0x490] sm:$0xff]
          %613 = vst [vmem:[%s319 + $0x490] sm:$0xff] %v612
          %v614 = vld [vmem:[%s318 + $0x498] sm:$0xff]
          %615 = vst [vmem:[%s319 + $0x498] sm:$0xff] %v614
          %v616 = vld [vmem:[%s318 + $0x4a0] sm:$0xff]
          %617 = vst [vmem:[%s319 + $0x4a0] sm:$0xff] %v616
          %v618 = vld [vmem:[%s318 + $0x4a8] sm:$0xff]
          %619 = vst [vmem:[%s319 + $0x4a8] sm:$0xff] %v618
          %v620 = vld [vmem:[%s318 + $0x4b0] sm:$0xff]
          %621 = vst [vmem:[%s319 + $0x4b0] sm:$0xff] %v620
          %v622 = vld [vmem:[%s318 + $0x4b8] sm:$0xff]
          %623 = vst [vmem:[%s319 + $0x4b8] sm:$0xff] %v622
          %v624 = vld [vmem:[%s318 + $0x4c0] sm:$0xff]
          %625 = vst [vmem:[%s319 + $0x4c0] sm:$0xff] %v624
          %v626 = vld [vmem:[%s318 + $0x4c8] sm:$0xff]
          %627 = vst [vmem:[%s319 + $0x4c8] sm:$0xff] %v626
          %v628 = vld [vmem:[%s318 + $0x4d0] sm:$0xff]
          %629 = vst [vmem:[%s319 + $0x4d0] sm:$0xff] %v628
          %v630 = vld [vmem:[%s318 + $0x4d8] sm:$0xff]
          %631 = vst [vmem:[%s319 + $0x4d8] sm:$0xff] %v630
          %v632 = vld [vmem:[%s318 + $0x4e0] sm:$0xff]
          %633 = vst [vmem:[%s319 + $0x4e0] sm:$0xff] %v632
          %v634 = vld [vmem:[%s318 + $0x4e8] sm:$0xff]
          %635 = vst [vmem:[%s319 + $0x4e8] sm:$0xff] %v634
          %v636 = vld [vmem:[%s318 + $0x4f0] sm:$0xff]
          %637 = vst [vmem:[%s319 + $0x4f0] sm:$0xff] %v636
          %v638 = vld [vmem:[%s318 + $0x4f8] sm:$0xff]
          %639 = vst [vmem:[%s319 + $0x4f8] sm:$0xff] %v638
          %v640 = vld [vmem:[%s318 + $0x500] sm:$0xff]
          %641 = vst [vmem:[%s319 + $0x500] sm:$0xff] %v640
          %v642 = vld [vmem:[%s318 + $0x508] sm:$0xff]
          %643 = vst [vmem:[%s319 + $0x508] sm:$0xff] %v642
          %v644 = vld [vmem:[%s318 + $0x510] sm:$0xff]
          %645 = vst [vmem:[%s319 + $0x510] sm:$0xff] %v644
          %v646 = vld [vmem:[%s318 + $0x518] sm:$0xff]
          %647 = vst [vmem:[%s319 + $0x518] sm:$0xff] %v646
          %v648 = vld [vmem:[%s318 + $0x520] sm:$0xff]
          %649 = vst [vmem:[%s319 + $0x520] sm:$0xff] %v648
          %v650 = vld [vmem:[%s318 + $0x528] sm:$0xff]
          %651 = vst [vmem:[%s319 + $0x528] sm:$0xff] %v650
          %v652 = vld [vmem:[%s318 + $0x530] sm:$0xff]
          %653 = vst [vmem:[%s319 + $0x530] sm:$0xff] %v652
          %v654 = vld [vmem:[%s318 + $0x538] sm:$0xff]
          %655 = vst [vmem:[%s319 + $0x538] sm:$0xff] %v654
          %v656 = vld [vmem:[%s318 + $0x540] sm:$0xff]
          %657 = vst [vmem:[%s319 + $0x540] sm:$0xff] %v656
          %v658 = vld [vmem:[%s318 + $0x548] sm:$0xff]
          %659 = vst [vmem:[%s319 + $0x548] sm:$0xff] %v658
          %v660 = vld [vmem:[%s318 + $0x550] sm:$0xff]
          %661 = vst [vmem:[%s319 + $0x550] sm:$0xff] %v660
          %v662 = vld [vmem:[%s318 + $0x558] sm:$0xff]
          %663 = vst [vmem:[%s319 + $0x558] sm:$0xff] %v662
          %v664 = vld [vmem:[%s318 + $0x560] sm:$0xff]
          %665 = vst [vmem:[%s319 + $0x560] sm:$0xff] %v664
          %v666 = vld [vmem:[%s318 + $0x568] sm:$0xff]
          %667 = vst [vmem:[%s319 + $0x568] sm:$0xff] %v666
          %v668 = vld [vmem:[%s318 + $0x570] sm:$0xff]
          %669 = vst [vmem:[%s319 + $0x570] sm:$0xff] %v668
          %v670 = vld [vmem:[%s318 + $0x578] sm:$0xff]
          %671 = vst [vmem:[%s319 + $0x578] sm:$0xff] %v670
          %v672 = vld [vmem:[%s318 + $0x580] sm:$0xff]
          %673 = vst [vmem:[%s319 + $0x580] sm:$0xff] %v672
          %v674 = vld [vmem:[%s318 + $0x588] sm:$0xff]
          %675 = vst [vmem:[%s319 + $0x588] sm:$0xff] %v674
          %v676 = vld [vmem:[%s318 + $0x590] sm:$0xff]
          %677 = vst [vmem:[%s319 + $0x590] sm:$0xff] %v676
          %v678 = vld [vmem:[%s318 + $0x598] sm:$0xff]
          %679 = vst [vmem:[%s319 + $0x598] sm:$0xff] %v678
          %v680 = vld [vmem:[%s318 + $0x5a0] sm:$0xff]
          %681 = vst [vmem:[%s319 + $0x5a0] sm:$0xff] %v680
          %v682 = vld [vmem:[%s318 + $0x5a8] sm:$0xff]
          %683 = vst [vmem:[%s319 + $0x5a8] sm:$0xff] %v682
          %v684 = vld [vmem:[%s318 + $0x5b0] sm:$0xff]
          %685 = vst [vmem:[%s319 + $0x5b0] sm:$0xff] %v684
          %v686 = vld [vmem:[%s318 + $0x5b8] sm:$0xff]
          %687 = vst [vmem:[%s319 + $0x5b8] sm:$0xff] %v686
          %v688 = vld [vmem:[%s318 + $0x5c0] sm:$0xff]
          %689 = vst [vmem:[%s319 + $0x5c0] sm:$0xff] %v688
          %v690 = vld [vmem:[%s318 + $0x5c8] sm:$0xff]
          %691 = vst [vmem:[%s319 + $0x5c8] sm:$0xff] %v690
          %v692 = vld [vmem:[%s318 + $0x5d0] sm:$0xff]
          %693 = vst [vmem:[%s319 + $0x5d0] sm:$0xff] %v692
          %v694 = vld [vmem:[%s318 + $0x5d8] sm:$0xff]
          %695 = vst [vmem:[%s319 + $0x5d8] sm:$0xff] %v694
          %v696 = vld [vmem:[%s318 + $0x5e0] sm:$0xff]
          %697 = vst [vmem:[%s319 + $0x5e0] sm:$0xff] %v696
          %v698 = vld [vmem:[%s318 + $0x5e8] sm:$0xff]
          %699 = vst [vmem:[%s319 + $0x5e8] sm:$0xff] %v698
          %v700 = vld [vmem:[%s318 + $0x5f0] sm:$0xff]
          %701 = vst [vmem:[%s319 + $0x5f0] sm:$0xff] %v700
          %v702 = vld [vmem:[%s318 + $0x5f8] sm:$0xff]
          %703 = vst [vmem:[%s319 + $0x5f8] sm:$0xff] %v702
          %v704 = vld [vmem:[%s318 + $0x600] sm:$0xff]
          %705 = vst [vmem:[%s319 + $0x600] sm:$0xff] %v704
          %v706 = vld [vmem:[%s318 + $0x608] sm:$0xff]
          %707 = vst [vmem:[%s319 + $0x608] sm:$0xff] %v706
          %v708 = vld [vmem:[%s318 + $0x610] sm:$0xff]
          %709 = vst [vmem:[%s319 + $0x610] sm:$0xff] %v708
          %v710 = vld [vmem:[%s318 + $0x618] sm:$0xff]
          %711 = vst [vmem:[%s319 + $0x618] sm:$0xff] %v710
          %v712 = vld [vmem:[%s318 + $0x620] sm:$0xff]
          %713 = vst [vmem:[%s319 + $0x620] sm:$0xff] %v712
          %v714 = vld [vmem:[%s318 + $0x628] sm:$0xff]
          %715 = vst [vmem:[%s319 + $0x628] sm:$0xff] %v714
          %v716 = vld [vmem:[%s318 + $0x630] sm:$0xff]
          %717 = vst [vmem:[%s319 + $0x630] sm:$0xff] %v716
          %v718 = vld [vmem:[%s318 + $0x638] sm:$0xff]
          %719 = vst [vmem:[%s319 + $0x638] sm:$0xff] %v718
          %v720 = vld [vmem:[%s318 + $0x640] sm:$0xff]
          %721 = vst [vmem:[%s319 + $0x640] sm:$0xff] %v720
          %v722 = vld [vmem:[%s318 + $0x648] sm:$0xff]
          %723 = vst [vmem:[%s319 + $0x648] sm:$0xff] %v722
          %v724 = vld [vmem:[%s318 + $0x650] sm:$0xff]
          %725 = vst [vmem:[%s319 + $0x650] sm:$0xff] %v724
          %v726 = vld [vmem:[%s318 + $0x658] sm:$0xff]
          %727 = vst [vmem:[%s319 + $0x658] sm:$0xff] %v726
          %v728 = vld [vmem:[%s318 + $0x660] sm:$0xff]
          %729 = vst [vmem:[%s319 + $0x660] sm:$0xff] %v728
          %v730 = vld [vmem:[%s318 + $0x668] sm:$0xff]
          %731 = vst [vmem:[%s319 + $0x668] sm:$0xff] %v730
          %v732 = vld [vmem:[%s318 + $0x670] sm:$0xff]
          %733 = vst [vmem:[%s319 + $0x670] sm:$0xff] %v732
          %v734 = vld [vmem:[%s318 + $0x678] sm:$0xff]
          %735 = vst [vmem:[%s319 + $0x678] sm:$0xff] %v734
          %v736 = vld [vmem:[%s318 + $0x680] sm:$0xff]
          %737 = vst [vmem:[%s319 + $0x680] sm:$0xff] %v736
          %v738 = vld [vmem:[%s318 + $0x688] sm:$0xff]
          %739 = vst [vmem:[%s319 + $0x688] sm:$0xff] %v738
          %v740 = vld [vmem:[%s318 + $0x690] sm:$0xff]
          %741 = vst [vmem:[%s319 + $0x690] sm:$0xff] %v740
          %v742 = vld [vmem:[%s318 + $0x698] sm:$0xff]
          %743 = vst [vmem:[%s319 + $0x698] sm:$0xff] %v742
          %v744 = vld [vmem:[%s318 + $0x6a0] sm:$0xff]
          %745 = vst [vmem:[%s319 + $0x6a0] sm:$0xff] %v744
          %v746 = vld [vmem:[%s318 + $0x6a8] sm:$0xff]
          %747 = vst [vmem:[%s319 + $0x6a8] sm:$0xff] %v746
          %v748 = vld [vmem:[%s318 + $0x6b0] sm:$0xff]
          %749 = vst [vmem:[%s319 + $0x6b0] sm:$0xff] %v748
          %v750 = vld [vmem:[%s318 + $0x6b8] sm:$0xff]
          %751 = vst [vmem:[%s319 + $0x6b8] sm:$0xff] %v750
          %v752 = vld [vmem:[%s318 + $0x6c0] sm:$0xff]
          %753 = vst [vmem:[%s319 + $0x6c0] sm:$0xff] %v752
          %v754 = vld [vmem:[%s318 + $0x6c8] sm:$0xff]
          %755 = vst [vmem:[%s319 + $0x6c8] sm:$0xff] %v754
          %v756 = vld [vmem:[%s318 + $0x6d0] sm:$0xff]
          %757 = vst [vmem:[%s319 + $0x6d0] sm:$0xff] %v756
          %v758 = vld [vmem:[%s318 + $0x6d8] sm:$0xff]
          %759 = vst [vmem:[%s319 + $0x6d8] sm:$0xff] %v758
          %v760 = vld [vmem:[%s318 + $0x6e0] sm:$0xff]
          %761 = vst [vmem:[%s319 + $0x6e0] sm:$0xff] %v760
          %v762 = vld [vmem:[%s318 + $0x6e8] sm:$0xff]
          %763 = vst [vmem:[%s319 + $0x6e8] sm:$0xff] %v762
          %v764 = vld [vmem:[%s318 + $0x6f0] sm:$0xff]
          %765 = vst [vmem:[%s319 + $0x6f0] sm:$0xff] %v764
          %v766 = vld [vmem:[%s318 + $0x6f8] sm:$0xff]
          %767 = vst [vmem:[%s319 + $0x6f8] sm:$0xff] %v766
          %v768 = vld [vmem:[%s318 + $0x700] sm:$0xff]
          %769 = vst [vmem:[%s319 + $0x700] sm:$0xff] %v768
          %v770 = vld [vmem:[%s318 + $0x708] sm:$0xff]
          %771 = vst [vmem:[%s319 + $0x708] sm:$0xff] %v770
          %v772 = vld [vmem:[%s318 + $0x710] sm:$0xff]
          %773 = vst [vmem:[%s319 + $0x710] sm:$0xff] %v772
          %v774 = vld [vmem:[%s318 + $0x718] sm:$0xff]
          %775 = vst [vmem:[%s319 + $0x718] sm:$0xff] %v774
          %v776 = vld [vmem:[%s318 + $0x720] sm:$0xff]
          %777 = vst [vmem:[%s319 + $0x720] sm:$0xff] %v776
          %v778 = vld [vmem:[%s318 + $0x728] sm:$0xff]
          %779 = vst [vmem:[%s319 + $0x728] sm:$0xff] %v778
          %v780 = vld [vmem:[%s318 + $0x730] sm:$0xff]
          %781 = vst [vmem:[%s319 + $0x730] sm:$0xff] %v780
          %v782 = vld [vmem:[%s318 + $0x738] sm:$0xff]
          %783 = vst [vmem:[%s319 + $0x738] sm:$0xff] %v782
          %v784 = vld [vmem:[%s318 + $0x740] sm:$0xff]
          %785 = vst [vmem:[%s319 + $0x740] sm:$0xff] %v784
          %v786 = vld [vmem:[%s318 + $0x748] sm:$0xff]
          %787 = vst [vmem:[%s319 + $0x748] sm:$0xff] %v786
          %v788 = vld [vmem:[%s318 + $0x750] sm:$0xff]
          %789 = vst [vmem:[%s319 + $0x750] sm:$0xff] %v788
          %v790 = vld [vmem:[%s318 + $0x758] sm:$0xff]
          %791 = vst [vmem:[%s319 + $0x758] sm:$0xff] %v790
          %v792 = vld [vmem:[%s318 + $0x760] sm:$0xff]
          %793 = vst [vmem:[%s319 + $0x760] sm:$0xff] %v792
          %v794 = vld [vmem:[%s318 + $0x768] sm:$0xff]
          %795 = vst [vmem:[%s319 + $0x768] sm:$0xff] %v794
          %v796 = vld [vmem:[%s318 + $0x770] sm:$0xff]
          %797 = vst [vmem:[%s319 + $0x770] sm:$0xff] %v796
          %v798 = vld [vmem:[%s318 + $0x778] sm:$0xff]
          %799 = vst [vmem:[%s319 + $0x778] sm:$0xff] %v798
          %v800 = vld [vmem:[%s318 + $0x780] sm:$0xff]
          %801 = vst [vmem:[%s319 + $0x780] sm:$0xff] %v800
          %v802 = vld [vmem:[%s318 + $0x788] sm:$0xff]
          %803 = vst [vmem:[%s319 + $0x788] sm:$0xff] %v802
          %v804 = vld [vmem:[%s318 + $0x790] sm:$0xff]
          %805 = vst [vmem:[%s319 + $0x790] sm:$0xff] %v804
          %v806 = vld [vmem:[%s318 + $0x798] sm:$0xff]
          %807 = vst [vmem:[%s319 + $0x798] sm:$0xff] %v806
          %v808 = vld [vmem:[%s318 + $0x7a0] sm:$0xff]
          %809 = vst [vmem:[%s319 + $0x7a0] sm:$0xff] %v808
          %v810 = vld [vmem:[%s318 + $0x7a8] sm:$0xff]
          %811 = vst [vmem:[%s319 + $0x7a8] sm:$0xff] %v810
          %v812 = vld [vmem:[%s318 + $0x7b0] sm:$0xff]
          %813 = vst [vmem:[%s319 + $0x7b0] sm:$0xff] %v812
          %v814 = vld [vmem:[%s318 + $0x7b8] sm:$0xff]
          %815 = vst [vmem:[%s319 + $0x7b8] sm:$0xff] %v814
          %v816 = vld [vmem:[%s318 + $0x7c0] sm:$0xff]
          %817 = vst [vmem:[%s319 + $0x7c0] sm:$0xff] %v816
          %v818 = vld [vmem:[%s318 + $0x7c8] sm:$0xff]
          %819 = vst [vmem:[%s319 + $0x7c8] sm:$0xff] %v818
          %v820 = vld [vmem:[%s318 + $0x7d0] sm:$0xff]
          %821 = vst [vmem:[%s319 + $0x7d0] sm:$0xff] %v820
          %v822 = vld [vmem:[%s318 + $0x7d8] sm:$0xff]
          %823 = vst [vmem:[%s319 + $0x7d8] sm:$0xff] %v822
          %v824 = vld [vmem:[%s318 + $0x7e0] sm:$0xff]
          %825 = vst [vmem:[%s319 + $0x7e0] sm:$0xff] %v824
          %v826 = vld [vmem:[%s318 + $0x7e8] sm:$0xff]
          %827 = vst [vmem:[%s319 + $0x7e8] sm:$0xff] %v826
          %v828 = vld [vmem:[%s318 + $0x7f0] sm:$0xff]
          %829 = vst [vmem:[%s319 + $0x7f0] sm:$0xff] %v828
          %v830 = vld [vmem:[%s318 + $0x7f8] sm:$0xff]
          %831 = vst [vmem:[%s319 + $0x7f8] sm:$0xff] %v830
          %v832 = vld [vmem:[%s318 + $0x800] sm:$0xff]
          %833 = vst [vmem:[%s319 + $0x800] sm:$0xff] %v832
          %v834 = vld [vmem:[%s318 + $0x808] sm:$0xff]
          %835 = vst [vmem:[%s319 + $0x808] sm:$0xff] %v834
          %v836 = vld [vmem:[%s318 + $0x810] sm:$0xff]
          %837 = vst [vmem:[%s319 + $0x810] sm:$0xff] %v836
          %v838 = vld [vmem:[%s318 + $0x818] sm:$0xff]
          %839 = vst [vmem:[%s319 + $0x818] sm:$0xff] %v838
          %v840 = vld [vmem:[%s318 + $0x820] sm:$0xff]
          %841 = vst [vmem:[%s319 + $0x820] sm:$0xff] %v840
          %v842 = vld [vmem:[%s318 + $0x828] sm:$0xff]
          %843 = vst [vmem:[%s319 + $0x828] sm:$0xff] %v842
          %v844 = vld [vmem:[%s318 + $0x830] sm:$0xff]
          %845 = vst [vmem:[%s319 + $0x830] sm:$0xff] %v844
          %v846 = vld [vmem:[%s318 + $0x838] sm:$0xff]
          %847 = vst [vmem:[%s319 + $0x838] sm:$0xff] %v846
          %v848 = vld [vmem:[%s318 + $0x840] sm:$0xff]
          %849 = vst [vmem:[%s319 + $0x840] sm:$0xff] %v848
          %v850 = vld [vmem:[%s318 + $0x848] sm:$0xff]
          %851 = vst [vmem:[%s319 + $0x848] sm:$0xff] %v850
          %v852 = vld [vmem:[%s318 + $0x850] sm:$0xff]
          %853 = vst [vmem:[%s319 + $0x850] sm:$0xff] %v852
          %v854 = vld [vmem:[%s318 + $0x858] sm:$0xff]
          %855 = vst [vmem:[%s319 + $0x858] sm:$0xff] %v854
          %v856 = vld [vmem:[%s318 + $0x860] sm:$0xff]
          %857 = vst [vmem:[%s319 + $0x860] sm:$0xff] %v856
          %v858 = vld [vmem:[%s318 + $0x868] sm:$0xff]
          %859 = vst [vmem:[%s319 + $0x868] sm:$0xff] %v858
          %v860 = vld [vmem:[%s318 + $0x870] sm:$0xff]
          %861 = vst [vmem:[%s319 + $0x870] sm:$0xff] %v860
          %v862 = vld [vmem:[%s318 + $0x878] sm:$0xff]
          %863 = vst [vmem:[%s319 + $0x878] sm:$0xff] %v862
          %v864 = vld [vmem:[%s318 + $0x880] sm:$0xff]
          %865 = vst [vmem:[%s319 + $0x880] sm:$0xff] %v864
          %v866 = vld [vmem:[%s318 + $0x888] sm:$0xff]
          %867 = vst [vmem:[%s319 + $0x888] sm:$0xff] %v866
          %v868 = vld [vmem:[%s318 + $0x890] sm:$0xff]
          %869 = vst [vmem:[%s319 + $0x890] sm:$0xff] %v868
          %v870 = vld [vmem:[%s318 + $0x898] sm:$0xff]
          %871 = vst [vmem:[%s319 + $0x898] sm:$0xff] %v870
          %v872 = vld [vmem:[%s318 + $0x8a0] sm:$0xff]
          %873 = vst [vmem:[%s319 + $0x8a0] sm:$0xff] %v872
          %v874 = vld [vmem:[%s318 + $0x8a8] sm:$0xff]
          %875 = vst [vmem:[%s319 + $0x8a8] sm:$0xff] %v874
          %v876 = vld [vmem:[%s318 + $0x8b0] sm:$0xff]
          %877 = vst [vmem:[%s319 + $0x8b0] sm:$0xff] %v876
          %v878 = vld [vmem:[%s318 + $0x8b8] sm:$0xff]
          %879 = vst [vmem:[%s319 + $0x8b8] sm:$0xff] %v878
          %v880 = vld [vmem:[%s318 + $0x8c0] sm:$0xff]
          %881 = vst [vmem:[%s319 + $0x8c0] sm:$0xff] %v880
          %v882 = vld [vmem:[%s318 + $0x8c8] sm:$0xff]
          %883 = vst [vmem:[%s319 + $0x8c8] sm:$0xff] %v882
          %v884 = vld [vmem:[%s318 + $0x8d0] sm:$0xff]
          %885 = vst [vmem:[%s319 + $0x8d0] sm:$0xff] %v884
          %v886 = vld [vmem:[%s318 + $0x8d8] sm:$0xff]
          %887 = vst [vmem:[%s319 + $0x8d8] sm:$0xff] %v886
          %v888 = vld [vmem:[%s318 + $0x8e0] sm:$0xff]
          %889 = vst [vmem:[%s319 + $0x8e0] sm:$0xff] %v888
          %v890 = vld [vmem:[%s318 + $0x8e8] sm:$0xff]
          %891 = vst [vmem:[%s319 + $0x8e8] sm:$0xff] %v890
          %v892 = vld [vmem:[%s318 + $0x8f0] sm:$0xff]
          %893 = vst [vmem:[%s319 + $0x8f0] sm:$0xff] %v892
          %v894 = vld [vmem:[%s318 + $0x8f8] sm:$0xff]
          %895 = vst [vmem:[%s319 + $0x8f8] sm:$0xff] %v894
          %v896 = vld [vmem:[%s318 + $0x900] sm:$0xff]
          %897 = vst [vmem:[%s319 + $0x900] sm:$0xff] %v896
          %v898 = vld [vmem:[%s318 + $0x908] sm:$0xff]
          %899 = vst [vmem:[%s319 + $0x908] sm:$0xff] %v898
          %v900 = vld [vmem:[%s318 + $0x910] sm:$0xff]
          %901 = vst [vmem:[%s319 + $0x910] sm:$0xff] %v900
          %v902 = vld [vmem:[%s318 + $0x918] sm:$0xff]
          %903 = vst [vmem:[%s319 + $0x918] sm:$0xff] %v902
          %v904 = vld [vmem:[%s318 + $0x920] sm:$0xff]
          %905 = vst [vmem:[%s319 + $0x920] sm:$0xff] %v904
          %v906 = vld [vmem:[%s318 + $0x928] sm:$0xff]
          %907 = vst [vmem:[%s319 + $0x928] sm:$0xff] %v906
          %v908 = vld [vmem:[%s318 + $0x930] sm:$0xff]
          %909 = vst [vmem:[%s319 + $0x930] sm:$0xff] %v908
          %v910 = vld [vmem:[%s318 + $0x938] sm:$0xff]
          %911 = vst [vmem:[%s319 + $0x938] sm:$0xff] %v910
          %v912 = vld [vmem:[%s318 + $0x940] sm:$0xff]
          %913 = vst [vmem:[%s319 + $0x940] sm:$0xff] %v912
          %v914 = vld [vmem:[%s318 + $0x948] sm:$0xff]
          %915 = vst [vmem:[%s319 + $0x948] sm:$0xff] %v914
          %v916 = vld [vmem:[%s318 + $0x950] sm:$0xff]
          %917 = vst [vmem:[%s319 + $0x950] sm:$0xff] %v916
          %v918 = vld [vmem:[%s318 + $0x958] sm:$0xff]
          %919 = vst [vmem:[%s319 + $0x958] sm:$0xff] %v918
          %v920 = vld [vmem:[%s318 + $0x960] sm:$0xff]
          %921 = vst [vmem:[%s319 + $0x960] sm:$0xff] %v920
          %v922 = vld [vmem:[%s318 + $0x968] sm:$0xff]
          %923 = vst [vmem:[%s319 + $0x968] sm:$0xff] %v922
          %v924 = vld [vmem:[%s318 + $0x970] sm:$0xff]
          %925 = vst [vmem:[%s319 + $0x970] sm:$0xff] %v924
          %v926 = vld [vmem:[%s318 + $0x978] sm:$0xff]
          %927 = vst [vmem:[%s319 + $0x978] sm:$0xff] %v926
          %v928 = vld [vmem:[%s318 + $0x980] sm:$0xff]
          %929 = vst [vmem:[%s319 + $0x980] sm:$0xff] %v928
          %v930 = vld [vmem:[%s318 + $0x988] sm:$0xff]
          %931 = vst [vmem:[%s319 + $0x988] sm:$0xff] %v930
          %v932 = vld [vmem:[%s318 + $0x990] sm:$0xff]
          %933 = vst [vmem:[%s319 + $0x990] sm:$0xff] %v932
          %v934 = vld [vmem:[%s318 + $0x998] sm:$0xff]
          %935 = vst [vmem:[%s319 + $0x998] sm:$0xff] %v934
          %v936 = vld [vmem:[%s318 + $0x9a0] sm:$0xff]
          %937 = vst [vmem:[%s319 + $0x9a0] sm:$0xff] %v936
          %v938 = vld [vmem:[%s318 + $0x9a8] sm:$0xff]
          %939 = vst [vmem:[%s319 + $0x9a8] sm:$0xff] %v938
          %v940 = vld [vmem:[%s318 + $0x9b0] sm:$0xff]
          %941 = vst [vmem:[%s319 + $0x9b0] sm:$0xff] %v940
          %v942 = vld [vmem:[%s318 + $0x9b8] sm:$0xff]
          %943 = vst [vmem:[%s319 + $0x9b8] sm:$0xff] %v942
          %v944 = vld [vmem:[%s318 + $0x9c0] sm:$0xff]
          %945 = vst [vmem:[%s319 + $0x9c0] sm:$0xff] %v944
          %v946 = vld [vmem:[%s318 + $0x9c8] sm:$0xff]
          %947 = vst [vmem:[%s319 + $0x9c8] sm:$0xff] %v946
          %v948 = vld [vmem:[%s318 + $0x9d0] sm:$0xff]
          %949 = vst [vmem:[%s319 + $0x9d0] sm:$0xff] %v948
          %v950 = vld [vmem:[%s318 + $0x9d8] sm:$0xff]
          %951 = vst [vmem:[%s319 + $0x9d8] sm:$0xff] %v950
          %v952 = vld [vmem:[%s318 + $0x9e0] sm:$0xff]
          %953 = vst [vmem:[%s319 + $0x9e0] sm:$0xff] %v952
          %v954 = vld [vmem:[%s318 + $0x9e8] sm:$0xff]
          %955 = vst [vmem:[%s319 + $0x9e8] sm:$0xff] %v954
          %v956 = vld [vmem:[%s318 + $0x9f0] sm:$0xff]
          %957 = vst [vmem:[%s319 + $0x9f0] sm:$0xff] %v956
          %v958 = vld [vmem:[%s318 + $0x9f8] sm:$0xff]
          %959 = vst [vmem:[%s319 + $0x9f8] sm:$0xff] %v958
          %v960 = vld [vmem:[%s318 + $0xa00] sm:$0xff]
          %961 = vst [vmem:[%s319 + $0xa00] sm:$0xff] %v960
          %v962 = vld [vmem:[%s318 + $0xa08] sm:$0xff]
          %963 = vst [vmem:[%s319 + $0xa08] sm:$0xff] %v962
          %v964 = vld [vmem:[%s318 + $0xa10] sm:$0xff]
          %965 = vst [vmem:[%s319 + $0xa10] sm:$0xff] %v964
          %v966 = vld [vmem:[%s318 + $0xa18] sm:$0xff]
          %967 = vst [vmem:[%s319 + $0xa18] sm:$0xff] %v966
          %v968 = vld [vmem:[%s318 + $0xa20] sm:$0xff]
          %969 = vst [vmem:[%s319 + $0xa20] sm:$0xff] %v968
          %v970 = vld [vmem:[%s318 + $0xa28] sm:$0xff]
          %971 = vst [vmem:[%s319 + $0xa28] sm:$0xff] %v970
          %v972 = vld [vmem:[%s318 + $0xa30] sm:$0xff]
          %973 = vst [vmem:[%s319 + $0xa30] sm:$0xff] %v972
          %v974 = vld [vmem:[%s318 + $0xa38] sm:$0xff]
          %975 = vst [vmem:[%s319 + $0xa38] sm:$0xff] %v974
          %v976 = vld [vmem:[%s318 + $0xa40] sm:$0xff]
          %977 = vst [vmem:[%s319 + $0xa40] sm:$0xff] %v976
          %v978 = vld [vmem:[%s318 + $0xa48] sm:$0xff]
          %979 = vst [vmem:[%s319 + $0xa48] sm:$0xff] %v978
          %v980 = vld [vmem:[%s318 + $0xa50] sm:$0xff]
          %981 = vst [vmem:[%s319 + $0xa50] sm:$0xff] %v980
          %v982 = vld [vmem:[%s318 + $0xa58] sm:$0xff]
          %983 = vst [vmem:[%s319 + $0xa58] sm:$0xff] %v982
          %v984 = vld [vmem:[%s318 + $0xa60] sm:$0xff]
          %985 = vst [vmem:[%s319 + $0xa60] sm:$0xff] %v984
          %v986 = vld [vmem:[%s318 + $0xa68] sm:$0xff]
          %987 = vst [vmem:[%s319 + $0xa68] sm:$0xff] %v986
          %v988 = vld [vmem:[%s318 + $0xa70] sm:$0xff]
          %989 = vst [vmem:[%s319 + $0xa70] sm:$0xff] %v988
          %v990 = vld [vmem:[%s318 + $0xa78] sm:$0xff]
          %991 = vst [vmem:[%s319 + $0xa78] sm:$0xff] %v990
          %v992 = vld [vmem:[%s318 + $0xa80] sm:$0xff]
          %993 = vst [vmem:[%s319 + $0xa80] sm:$0xff] %v992
          %v994 = vld [vmem:[%s318 + $0xa88] sm:$0xff]
          %995 = vst [vmem:[%s319 + $0xa88] sm:$0xff] %v994
          %v996 = vld [vmem:[%s318 + $0xa90] sm:$0xff]
          %997 = vst [vmem:[%s319 + $0xa90] sm:$0xff] %v996
          %v998 = vld [vmem:[%s318 + $0xa98] sm:$0xff]
          %999 = vst [vmem:[%s319 + $0xa98] sm:$0xff] %v998
          %v1000 = vld [vmem:[%s318 + $0xaa0] sm:$0xff]
          %1001 = vst [vmem:[%s319 + $0xaa0] sm:$0xff] %v1000
          %v1002 = vld [vmem:[%s318 + $0xaa8] sm:$0xff]
          %1003 = vst [vmem:[%s319 + $0xaa8] sm:$0xff] %v1002
          %v1004 = vld [vmem:[%s318 + $0xab0] sm:$0xff]
          %1005 = vst [vmem:[%s319 + $0xab0] sm:$0xff] %v1004
          %v1006 = vld [vmem:[%s318 + $0xab8] sm:$0xff]
          %1007 = vst [vmem:[%s319 + $0xab8] sm:$0xff] %v1006
          %v1008 = vld [vmem:[%s318 + $0xac0] sm:$0xff]
          %1009 = vst [vmem:[%s319 + $0xac0] sm:$0xff] %v1008
          %v1010 = vld [vmem:[%s318 + $0xac8] sm:$0xff]
          %1011 = vst [vmem:[%s319 + $0xac8] sm:$0xff] %v1010
          %v1012 = vld [vmem:[%s318 + $0xad0] sm:$0xff]
          %1013 = vst [vmem:[%s319 + $0xad0] sm:$0xff] %v1012
          %v1014 = vld [vmem:[%s318 + $0xad8] sm:$0xff]
          %1015 = vst [vmem:[%s319 + $0xad8] sm:$0xff] %v1014
          %v1016 = vld [vmem:[%s318 + $0xae0] sm:$0xff]
          %1017 = vst [vmem:[%s319 + $0xae0] sm:$0xff] %v1016
          %v1018 = vld [vmem:[%s318 + $0xae8] sm:$0xff]
          %1019 = vst [vmem:[%s319 + $0xae8] sm:$0xff] %v1018
          %v1020 = vld [vmem:[%s318 + $0xaf0] sm:$0xff]
          %1021 = vst [vmem:[%s319 + $0xaf0] sm:$0xff] %v1020
          %v1022 = vld [vmem:[%s318 + $0xaf8] sm:$0xff]
          %1023 = vst [vmem:[%s319 + $0xaf8] sm:$0xff] %v1022
          %v1024 = vld [vmem:[%s318 + $0xb00] sm:$0xff]
          %1025 = vst [vmem:[%s319 + $0xb00] sm:$0xff] %v1024
          %v1026 = vld [vmem:[%s318 + $0xb08] sm:$0xff]
          %1027 = vst [vmem:[%s319 + $0xb08] sm:$0xff] %v1026
          %v1028 = vld [vmem:[%s318 + $0xb10] sm:$0xff]
          %1029 = vst [vmem:[%s319 + $0xb10] sm:$0xff] %v1028
          %v1030 = vld [vmem:[%s318 + $0xb18] sm:$0xff]
          %1031 = vst [vmem:[%s319 + $0xb18] sm:$0xff] %v1030
          %v1032 = vld [vmem:[%s318 + $0xb20] sm:$0xff]
          %1033 = vst [vmem:[%s319 + $0xb20] sm:$0xff] %v1032
          %v1034 = vld [vmem:[%s318 + $0xb28] sm:$0xff]
          %1035 = vst [vmem:[%s319 + $0xb28] sm:$0xff] %v1034
          %v1036 = vld [vmem:[%s318 + $0xb30] sm:$0xff]
          %1037 = vst [vmem:[%s319 + $0xb30] sm:$0xff] %v1036
          %v1038 = vld [vmem:[%s318 + $0xb38] sm:$0xff]
          %1039 = vst [vmem:[%s319 + $0xb38] sm:$0xff] %v1038
          %v1040 = vld [vmem:[%s318 + $0xb40] sm:$0xff]
          %1041 = vst [vmem:[%s319 + $0xb40] sm:$0xff] %v1040
          %v1042 = vld [vmem:[%s318 + $0xb48] sm:$0xff]
          %1043 = vst [vmem:[%s319 + $0xb48] sm:$0xff] %v1042
          %v1044 = vld [vmem:[%s318 + $0xb50] sm:$0xff]
          %1045 = vst [vmem:[%s319 + $0xb50] sm:$0xff] %v1044
          %v1046 = vld [vmem:[%s318 + $0xb58] sm:$0xff]
          %1047 = vst [vmem:[%s319 + $0xb58] sm:$0xff] %v1046
          %v1048 = vld [vmem:[%s318 + $0xb60] sm:$0xff]
          %1049 = vst [vmem:[%s319 + $0xb60] sm:$0xff] %v1048
          %v1050 = vld [vmem:[%s318 + $0xb68] sm:$0xff]
          %1051 = vst [vmem:[%s319 + $0xb68] sm:$0xff] %v1050
          %v1052 = vld [vmem:[%s318 + $0xb70] sm:$0xff]
          %1053 = vst [vmem:[%s319 + $0xb70] sm:$0xff] %v1052
          %v1054 = vld [vmem:[%s318 + $0xb78] sm:$0xff]
          %1055 = vst [vmem:[%s319 + $0xb78] sm:$0xff] %v1054
          %v1056 = vld [vmem:[%s318 + $0xb80] sm:$0xff]
          %1057 = vst [vmem:[%s319 + $0xb80] sm:$0xff] %v1056
          %v1058 = vld [vmem:[%s318 + $0xb88] sm:$0xff]
          %1059 = vst [vmem:[%s319 + $0xb88] sm:$0xff] %v1058
          %v1060 = vld [vmem:[%s318 + $0xb90] sm:$0xff]
          %1061 = vst [vmem:[%s319 + $0xb90] sm:$0xff] %v1060
          %v1062 = vld [vmem:[%s318 + $0xb98] sm:$0xff]
          %1063 = vst [vmem:[%s319 + $0xb98] sm:$0xff] %v1062
          %v1064 = vld [vmem:[%s318 + $0xba0] sm:$0xff]
          %1065 = vst [vmem:[%s319 + $0xba0] sm:$0xff] %v1064
          %v1066 = vld [vmem:[%s318 + $0xba8] sm:$0xff]
          %1067 = vst [vmem:[%s319 + $0xba8] sm:$0xff] %v1066
          %v1068 = vld [vmem:[%s318 + $0xbb0] sm:$0xff]
          %1069 = vst [vmem:[%s319 + $0xbb0] sm:$0xff] %v1068
          %v1070 = vld [vmem:[%s318 + $0xbb8] sm:$0xff]
          %1071 = vst [vmem:[%s319 + $0xbb8] sm:$0xff] %v1070
          %v1072 = vld [vmem:[%s318 + $0xbc0] sm:$0xff]
          %1073 = vst [vmem:[%s319 + $0xbc0] sm:$0xff] %v1072
          %v1074 = vld [vmem:[%s318 + $0xbc8] sm:$0xff]
          %1075 = vst [vmem:[%s319 + $0xbc8] sm:$0xff] %v1074
          %v1076 = vld [vmem:[%s318 + $0xbd0] sm:$0xff]
          %1077 = vst [vmem:[%s319 + $0xbd0] sm:$0xff] %v1076
          %v1078 = vld [vmem:[%s318 + $0xbd8] sm:$0xff]
          %1079 = vst [vmem:[%s319 + $0xbd8] sm:$0xff] %v1078
          %v1080 = vld [vmem:[%s318 + $0xbe0] sm:$0xff]
          %1081 = vst [vmem:[%s319 + $0xbe0] sm:$0xff] %v1080
          %v1082 = vld [vmem:[%s318 + $0xbe8] sm:$0xff]
          %1083 = vst [vmem:[%s319 + $0xbe8] sm:$0xff] %v1082
          %v1084 = vld [vmem:[%s318 + $0xbf0] sm:$0xff]
          %1085 = vst [vmem:[%s319 + $0xbf0] sm:$0xff] %v1084
          %v1086 = vld [vmem:[%s318 + $0xbf8] sm:$0xff]
          %1087 = vst [vmem:[%s319 + $0xbf8] sm:$0xff] %v1086
          %v1088 = vld [vmem:[%s318 + $0xc00] sm:$0xff]
          %1089 = vst [vmem:[%s319 + $0xc00] sm:$0xff] %v1088
          %v1090 = vld [vmem:[%s318 + $0xc08] sm:$0xff]
          %1091 = vst [vmem:[%s319 + $0xc08] sm:$0xff] %v1090
          %v1092 = vld [vmem:[%s318 + $0xc10] sm:$0xff]
          %1093 = vst [vmem:[%s319 + $0xc10] sm:$0xff] %v1092
          %v1094 = vld [vmem:[%s318 + $0xc18] sm:$0xff]
          %1095 = vst [vmem:[%s319 + $0xc18] sm:$0xff] %v1094
          %v1096 = vld [vmem:[%s318 + $0xc20] sm:$0xff]
          %1097 = vst [vmem:[%s319 + $0xc20] sm:$0xff] %v1096
          %v1098 = vld [vmem:[%s318 + $0xc28] sm:$0xff]
          %1099 = vst [vmem:[%s319 + $0xc28] sm:$0xff] %v1098
          %v1100 = vld [vmem:[%s318 + $0xc30] sm:$0xff]
          %1101 = vst [vmem:[%s319 + $0xc30] sm:$0xff] %v1100
          %v1102 = vld [vmem:[%s318 + $0xc38] sm:$0xff]
          %1103 = vst [vmem:[%s319 + $0xc38] sm:$0xff] %v1102
          %v1104 = vld [vmem:[%s318 + $0xc40] sm:$0xff]
          %1105 = vst [vmem:[%s319 + $0xc40] sm:$0xff] %v1104
          %v1106 = vld [vmem:[%s318 + $0xc48] sm:$0xff]
          %1107 = vst [vmem:[%s319 + $0xc48] sm:$0xff] %v1106
          %v1108 = vld [vmem:[%s318 + $0xc50] sm:$0xff]
          %1109 = vst [vmem:[%s319 + $0xc50] sm:$0xff] %v1108
          %v1110 = vld [vmem:[%s318 + $0xc58] sm:$0xff]
          %1111 = vst [vmem:[%s319 + $0xc58] sm:$0xff] %v1110
          %v1112 = vld [vmem:[%s318 + $0xc60] sm:$0xff]
          %1113 = vst [vmem:[%s319 + $0xc60] sm:$0xff] %v1112
          %v1114 = vld [vmem:[%s318 + $0xc68] sm:$0xff]
          %1115 = vst [vmem:[%s319 + $0xc68] sm:$0xff] %v1114
          %v1116 = vld [vmem:[%s318 + $0xc70] sm:$0xff]
          %1117 = vst [vmem:[%s319 + $0xc70] sm:$0xff] %v1116
          %v1118 = vld [vmem:[%s318 + $0xc78] sm:$0xff]
          %1119 = vst [vmem:[%s319 + $0xc78] sm:$0xff] %v1118
        $region107: #{encoder_forward.1} parent=101 // loop_footer
          %s317 = sadd.s32 1, %s313
        $region108: #{encoder_forward.1} parent=101 // loop_footer_branch
          %312 = sbr.rel target = $region104
        $region109: #{encoder_forward.1} parent=101 // loop_exit
          _
      $region102: #{encoder_forward.1} parent=86 // pred_fallthru
        _
      %p1120 = pneg %p308
      // Predicated region
      $region110: #{encoder_forward.1} parent=86 // pred_check
        _
      $region111: #{encoder_forward.1} parent=86 // pred_check_branch
        %1122 = sbr.rel (%p308) target = $region113
      $region112: #{encoder_forward.1} parent=86 // pred_region
        %s1123 = sand.u32 3200, 7
      $region113: #{encoder_forward.1} parent=86 // pred_fallthru
        _
    $region87: #{encoder_forward.1} parent=1 // pred_fallthru
      _
    // Predicated region
    $region88: #{encoder_forward.1} parent=1 // pred_check
      %p292 = pneg %p288
    $region89: #{encoder_forward.1} parent=1 // pred_check_branch
      %294 = sbr.rel (%p292) target = $region91
    $region90: #{encoder_forward.1} parent=1 // pred_region
      %s295 = sshll.u32 1, 3200
      %s296 = ssub.s32 %s295, 1
      loop: start=0, step=1, limit=1
      $region92: #{encoder_forward.1} parent=90 // loop_pre_header
        _
      $region93: #{encoder_forward.1} parent=90 // loop_header
        %s298 = sphi 0, %s302
        %p299 = scmp.ge.s32.totalorder %s298, 1
        %s303 = sphi %s13, %s13
        %s304 = sphi [#allocation3], [#allocation3]
      $region94: #{encoder_forward.1} parent=90 // loop_header_branch
        %301 = sbr.rel (%p299) target = $region98
      $region95: #{encoder_forward.1} parent=90 // loop_body
        %v305 = vld [vmem:[%s303] sm:%s296]
        %306 = vst [vmem:[%s304] sm:%s296] %v305
      $region96: #{encoder_forward.1} parent=90 // loop_footer
        %s302 = sadd.s32 1, %s298
      $region97: #{encoder_forward.1} parent=90 // loop_footer_branch
        %297 = sbr.rel target = $region93
      $region98: #{encoder_forward.1} parent=90 // loop_exit
        _
    $region91: #{encoder_forward.1} parent=1 // pred_fallthru
      _
    // Predicated region
    $region114: #{encoder_forward.1} parent=1 // pred_check
      _
    $region115: #{encoder_forward.1} parent=1 // pred_check_branch
      %1126 = sbr.rel (0) target = $region117
    $region116: #{encoder_forward.1} parent=1 // pred_region
      %1127 = vsyncadd %s286, 51200
    $region117: #{encoder_forward.1} parent=1 // pred_fallthru
      _
    %v1128 = vld [vmem:[%s0] sm:$0xf]
    %v1129 = vld [vmem:[%s0 + $0x4] sm:$0xf]
    %v1130 = vld [vmem:[%s0 + $0x8] sm:$0xf]
    %v1131 = vld [vmem:[%s0 + $0xc] sm:$0xf]
    %v1132 = vld [vmem:[%s0 + $0x10] sm:$0xf]
    %v1133 = vld [vmem:[%s0 + $0x14] sm:$0xf]
    %v1134 = vld [vmem:[%s0 + $0x18] sm:$0xf]
    %v1135 = vld [vmem:[%s0 + $0x1c] sm:$0xf]
    %v1136 = vld [vmem:[%s0 + $0x20] sm:$0xf]
    %v1137 = vld [vmem:[%s0 + $0x24] sm:$0xf]
    %v1138 = vld [vmem:[%s0 + $0x28] sm:$0xf]
    %v1139 = vld [vmem:[%s0 + $0x2c] sm:$0xf]
    %v1140 = vld [vmem:[%s0 + $0x30] sm:$0xf]
    %v1141 = vld [vmem:[%s0 + $0x34] sm:$0xf]
    %v1142 = vld [vmem:[%s0 + $0x38] sm:$0xf]
    %v1143 = vld [vmem:[%s0 + $0x3c] sm:$0xf]
    %v1144 = vld [vmem:[%s1] sm:$0xf]
    %v1145 = vld [vmem:[%s1 + $0x4] sm:$0xf]
    %v1146 = vld [vmem:[%s1 + $0x8] sm:$0xf]
    %v1147 = vld [vmem:[%s1 + $0xc] sm:$0xf]
    %v1148 = vld [vmem:[%s1 + $0x10] sm:$0xf]
    %v1149 = vld [vmem:[%s1 + $0x14] sm:$0xf]
    %v1150 = vld [vmem:[%s1 + $0x18] sm:$0xf]
    %v1151 = vld [vmem:[%s1 + $0x1c] sm:$0xf]
    %v1152 = vld [vmem:[%s1 + $0x20] sm:$0xf]
    %v1153 = vld [vmem:[%s1 + $0x24] sm:$0x3]
    %v1170 = vunpack.c.l.b16 %v1128
    %v1171 = vunpack.c.l.b16 %v1129
    %v1172 = vunpack.c.l.b16 %v1130
    %v1173 = vunpack.c.l.b16 %v1131
    %v1174 = vunpack.c.l.b16 %v1132
    %v1175 = vunpack.c.l.b16 %v1133
    %v1176 = vunpack.c.l.b16 %v1134
    %v1177 = vunpack.c.l.b16 %v1135
    %v1178 = vunpack.c.l.b16 %v1136
    %v1179 = vunpack.c.l.b16 %v1137
    %v1180 = vunpack.c.l.b16 %v1138
    %v1181 = vunpack.c.l.b16 %v1139
    %v1182 = vunpack.c.l.b16 %v1140
    %v1183 = vunpack.c.l.b16 %v1141
    %v1184 = vunpack.c.l.b16 %v1142
    %v1185 = vunpack.c.l.b16 %v1143
    %v1186 = vpack.c.b16 %v1171, %v1170
    %v1187 = vpack.c.b16 %v1173, %v1172
    %v1188 = vpack.c.b16 %v1175, %v1174
    %v1189 = vpack.c.b16 %v1177, %v1176
    %v1190 = vpack.c.b16 %v1179, %v1178
    %v1191 = vpack.c.b16 %v1181, %v1180
    %v1192 = vpack.c.b16 %v1183, %v1182
    %v1193 = vpack.c.b16 %v1185, %v1184
    %v1204 = vunpack.c.l.b16 %v1144
    %v1205 = vunpack.c.l.b16 %v1145
    %v1206 = vunpack.c.l.b16 %v1146
    %v1207 = vunpack.c.l.b16 %v1147
    %v1208 = vunpack.c.l.b16 %v1148
    %v1209 = vunpack.c.l.b16 %v1149
    %v1210 = vunpack.c.l.b16 %v1150
    %v1211 = vunpack.c.l.b16 %v1151
    %v1212 = vunpack.c.l.b16 %v1152
    %v1213 = vunpack.c.l.b16 %v1153
    %v1214 = vpack.c.b16 %v1205, %v1204
    %v1215 = vpack.c.b16 %v1207, %v1206
    %v1216 = vpack.c.b16 %v1209, %v1208
    %v1217 = vpack.c.b16 %v1211, %v1210
    %v1218 = vpack.c.b16 %v1213, %v1212
    %vm1223 = vcmask 613376
    %v1225 = vsel %vm1223, %v1186, 0
    %v1228 = vsel %vm1223, %v1187, 0
    %v1231 = vsel %vm1223, %v1188, 0
    %v1234 = vsel %vm1223, %v1189, 0
    %v1237 = vsel %vm1223, %v1190, 0
    %v1240 = vsel %vm1223, %v1191, 0
    %v1243 = vsel %vm1223, %v1192, 0
    %v1246 = vsel %vm1223, %v1193, 0
    %vm1248 = vcmask 1044480
    %vm1249 = vcmask 1045504
    %v1250 = vsel %vm1248, 4294967295, 65535
    %v1251 = vsel %vm1249, %v1250, 0
    %v1253 = vand.u32 %v1218, %v1251
    %1255 = vmatprep.subr.bf16.mxu0 0
    %1256 = vmatpush1.bf16.msra.mxu0 0
    %1257 = vmatprep.subr.bf16.mxu0 0
    %1258 = vmatpush1.bf16.msra.mxu0 0
    %1259 = vmatprep.subr.bf16.mxu0 0
    %1260 = vmatpush1.bf16.msra.mxu0 0
    %1261 = vmatprep.subr.bf16.mxu0 0
    %1262 = vmatpush1.bf16.msra.mxu0 %v1253
    %1263 = vmatprep.subr.bf16.mxu0 0
    %1264 = vmatpush1.bf16.msra.mxu0 %v1217
    %1265 = vmatprep.subr.bf16.mxu0 0
    %1266 = vmatpush1.bf16.msra.mxu0 %v1216
    %1267 = vmatprep.subr.bf16.mxu0 0
    %1268 = vmatpush1.bf16.msra.mxu0 %v1215
    %1269 = vmatprep.subr.bf16.mxu0 0
    %1270 = vmatpush1.bf16.msra.mxu0 %v1214
    %1271 = vmatprep.subr.bf16.mxu0 0
    %1272 = vmatpush2.bf16.msra.mxu0 0
    %1273 = vmatprep.subr.bf16.mxu0 0
    %1274 = vmatpush2.bf16.msra.mxu0 0
    %1275 = vmatprep.subr.bf16.mxu0 0
    %1276 = vmatpush2.bf16.msra.mxu0 0
    %1277 = vmatprep.subr.bf16.mxu0 0
    %1278 = vmatpush2.bf16.msra.mxu0 0
    %1279 = vmatprep.subr.bf16.mxu0 0
    %1280 = vmatpush2.bf16.msra.mxu0 0
    %1281 = vmatprep.subr.bf16.mxu0 0
    %1282 = vmatpush2.bf16.msra.mxu0 0
    %1283 = vmatprep.subr.bf16.mxu0 0
    %1284 = vmatpush2.bf16.msra.mxu0 0
    %1285 = vmatprep.subr.bf16.mxu0 0
    %1286 = vmatpush2.bf16.msra.mxu0 0
    %1287 = vmatprep.mubr.bf16.mxu0 0
    %1288 = vmatmul.mubr.bf16.gmra.mxu0 %v1225
    %v1289 = vpop.f32.mrf.mxu0
    %v1290 = vadd.f32 0.0, %v1289
    %v1291 = vpop.f32.mrf.mxu0
    %v1292 = vpop.f32.mrf.mxu0
    %v1293 = vadd.f32 0.0, %v1292
    %v1294 = vpop.f32.mrf.mxu0
    %1295 = vmatprep.mubr.bf16.mxu0 0
    %1296 = vmatmul.mubr.bf16.gmra.mxu0 %v1228
    %v1297 = vpop.f32.mrf.mxu0
    %v1298 = vadd.f32 0.0, %v1297
    %v1299 = vpop.f32.mrf.mxu0
    %v1300 = vpop.f32.mrf.mxu0
    %v1301 = vadd.f32 0.0, %v1300
    %v1302 = vpop.f32.mrf.mxu0
    %1303 = vmatprep.mubr.bf16.mxu0 0
    %1304 = vmatmul.mubr.bf16.gmra.mxu0 %v1231
    %v1305 = vpop.f32.mrf.mxu0
    %v1306 = vadd.f32 0.0, %v1305
    %v1307 = vpop.f32.mrf.mxu0
    %v1308 = vpop.f32.mrf.mxu0
    %v1309 = vadd.f32 0.0, %v1308
    %v1310 = vpop.f32.mrf.mxu0
    %1311 = vmatprep.mubr.bf16.mxu0 0
    %1312 = vmatmul.mubr.bf16.gmra.mxu0 %v1234
    %v1313 = vpop.f32.mrf.mxu0
    %v1314 = vadd.f32 0.0, %v1313
    %v1315 = vpop.f32.mrf.mxu0
    %v1316 = vpop.f32.mrf.mxu0
    %v1317 = vadd.f32 0.0, %v1316
    %v1318 = vpop.f32.mrf.mxu0
    %1319 = vmatprep.mubr.bf16.mxu0 0
    %1320 = vmatmul.mubr.bf16.gmra.mxu0 %v1237
    %v1321 = vpop.f32.mrf.mxu0
    %v1322 = vadd.f32 0.0, %v1321
    %v1323 = vpop.f32.mrf.mxu0
    %v1324 = vpop.f32.mrf.mxu0
    %v1325 = vadd.f32 0.0, %v1324
    %v1326 = vpop.f32.mrf.mxu0
    %1327 = vmatprep.mubr.bf16.mxu0 0
    %1328 = vmatmul.mubr.bf16.gmra.mxu0 %v1240
    %v1329 = vpop.f32.mrf.mxu0
    %v1330 = vadd.f32 0.0, %v1329
    %v1331 = vpop.f32.mrf.mxu0
    %v1332 = vpop.f32.mrf.mxu0
    %v1333 = vadd.f32 0.0, %v1332
    %v1334 = vpop.f32.mrf.mxu0
    %1335 = vmatprep.mubr.bf16.mxu0 0
    %1336 = vmatmul.mubr.bf16.gmra.mxu0 %v1243
    %v1337 = vpop.f32.mrf.mxu0
    %v1338 = vadd.f32 0.0, %v1337
    %v1339 = vpop.f32.mrf.mxu0
    %v1340 = vpop.f32.mrf.mxu0
    %v1341 = vadd.f32 0.0, %v1340
    %v1342 = vpop.f32.mrf.mxu0
    %1343 = vmatprep.mubr.bf16.mxu0 0
    %1344 = vmatmul.mubr.bf16.gmra.mxu0 %v1246
    %v1345 = vpop.f32.mrf.mxu0
    %v1346 = vadd.f32 0.0, %v1345
    %v1347 = vpop.f32.mrf.mxu0
    %v1348 = vpop.f32.mrf.mxu0
    %v1349 = vadd.f32 0.0, %v1348
    %v1350 = vpop.f32.mrf.mxu0
    %1351 = vdwg.mxu0
    %vm1352 = vcmask 523264
    %v1353 = vsel %vm1352, %v1290, 0.0
    %v1354 = vsel %vm1352, %v1293, 0.0
    %v1355 = vadd.f32 %v1353, %v1354
    %v1356 = vsel %vm1352, %v1298, 0.0
    %v1357 = vadd.f32 %v1355, %v1356
    %v1358 = vsel %vm1352, %v1301, 0.0
    %v1359 = vadd.f32 %v1357, %v1358
    %v1360 = vsel %vm1352, %v1306, 0.0
    %v1361 = vadd.f32 %v1359, %v1360
    %v1362 = vsel %vm1352, %v1309, 0.0
    %v1363 = vadd.f32 %v1361, %v1362
    %v1364 = vsel %vm1352, %v1314, 0.0
    %v1365 = vadd.f32 %v1363, %v1364
    %v1366 = vsel %vm1352, %v1317, 0.0
    %v1367 = vadd.f32 %v1365, %v1366
    %v1368 = vsel %vm1352, %v1322, 0.0
    %v1369 = vadd.f32 %v1367, %v1368
    %v1370 = vsel %vm1352, %v1325, 0.0
    %v1371 = vadd.f32 %v1369, %v1370
    %v1372 = vsel %vm1352, %v1330, 0.0
    %v1373 = vadd.f32 %v1371, %v1372
    %v1374 = vsel %vm1352, %v1333, 0.0
    %v1375 = vadd.f32 %v1373, %v1374
    %v1376 = vsel %vm1352, %v1338, 0.0
    %v1377 = vadd.f32 %v1375, %v1376
    %v1378 = vsel %vm1352, %v1341, 0.0
    %v1379 = vadd.f32 %v1377, %v1378
    %v1380 = vsel %vm1352, %v1346, 0.0
    %v1381 = vadd.f32 %v1379, %v1380
    %v1382 = vsel %vm1352, %v1349, 0.0
    %v1383 = vadd.f32 %v1381, %v1382
    %v1384 = vrot.slane %v1383, 4
    %v1385 = vadd.f32 %v1383, %v1384
    %v1386 = vrot.slane %v1385, 2
    %v1387 = vadd.f32 %v1385, %v1386
    %v1388 = vrot.slane %v1387, 1
    %v1389 = vadd.f32 %v1387, %v1388
    %v1390 = vmul.f32 %v1290, %v1290
    %v1391 = vmul.f32 %v1293, %v1293
    %v1392 = vmul.f32 %v1298, %v1298
    %v1393 = vmul.f32 %v1301, %v1301
    %v1394 = vmul.f32 %v1306, %v1306
    %v1395 = vmul.f32 %v1309, %v1309
    %v1396 = vmul.f32 %v1314, %v1314
    %v1397 = vmul.f32 %v1317, %v1317
    %v1398 = vmul.f32 %v1322, %v1322
    %v1399 = vmul.f32 %v1325, %v1325
    %v1400 = vmul.f32 %v1330, %v1330
    %v1401 = vmul.f32 %v1333, %v1333
    %v1402 = vmul.f32 %v1338, %v1338
    %v1403 = vmul.f32 %v1341, %v1341
    %v1404 = vmul.f32 %v1346, %v1346
    %v1405 = vmul.f32 %v1349, %v1349
    %v1406 = vsel %vm1352, %v1390, 0.0
    %v1407 = vsel %vm1352, %v1391, 0.0
    %v1408 = vadd.f32 %v1406, %v1407
    %v1409 = vsel %vm1352, %v1392, 0.0
    %v1410 = vadd.f32 %v1408, %v1409
    %v1411 = vsel %vm1352, %v1393, 0.0
    %v1412 = vadd.f32 %v1410, %v1411
    %v1413 = vsel %vm1352, %v1394, 0.0
    %v1414 = vadd.f32 %v1412, %v1413
    %v1415 = vsel %vm1352, %v1395, 0.0
    %v1416 = vadd.f32 %v1414, %v1415
    %v1417 = vsel %vm1352, %v1396, 0.0
    %v1418 = vadd.f32 %v1416, %v1417
    %v1419 = vsel %vm1352, %v1397, 0.0
    %v1420 = vadd.f32 %v1418, %v1419
    %v1421 = vsel %vm1352, %v1398, 0.0
    %v1422 = vadd.f32 %v1420, %v1421
    %v1423 = vsel %vm1352, %v1399, 0.0
    %v1424 = vadd.f32 %v1422, %v1423
    %v1425 = vsel %vm1352, %v1400, 0.0
    %v1426 = vadd.f32 %v1424, %v1425
    %v1427 = vsel %vm1352, %v1401, 0.0
    %v1428 = vadd.f32 %v1426, %v1427
    %v1429 = vsel %vm1352, %v1402, 0.0
    %v1430 = vadd.f32 %v1428, %v1429
    %v1431 = vsel %vm1352, %v1403, 0.0
    %v1432 = vadd.f32 %v1430, %v1431
    %v1433 = vsel %vm1352, %v1404, 0.0
    %v1434 = vadd.f32 %v1432, %v1433
    %v1435 = vsel %vm1352, %v1405, 0.0
    %v1436 = vadd.f32 %v1434, %v1435
    %v1437 = vrot.slane %v1436, 4
    %v1438 = vadd.f32 %v1436, %v1437
    %v1439 = vrot.slane %v1438, 2
    %v1440 = vadd.f32 %v1438, %v1439
    %v1441 = vrot.slane %v1440, 1
    %v1442 = vadd.f32 %v1440, %v1441
    %v1443 = vmul.f32 %v1389, 0.0078125
    %v1444 = vmul.f32 %v1442, 0.0078125
    %v1445 = vmul.f32 %v1443, %v1443
    %v1446 = vsub.f32 %v1444, %v1445
    %v1447 = vld [vmem:[%s2] sm:$0x1]
    %v1448 = vadd.f32 %v1446, 1e-05
    %v1449 = vrsqrt.pop %v1448
    %v1450 = vmul.f32 %v1447, %v1449
    %v1451 = vld [vmem:[%s3] sm:$0x1]
    %v1452 = vmul.f32 %v1443, %v1450
    %v1453 = vsub.f32 %v1451, %v1452
    %v1455 = vlaneseq
    %v1456 = vshrl.u32 %v1455, 7
    %v1457 = vsub.s32 0, %v1456
    %v1458 = vrot.slane %v1450, %v1457
    %v1460 = vmul.f32 %v1290, %v1458
    %v1461 = vmul.f32 %v1293, %v1458
    %v1462 = vmul.f32 %v1298, %v1458
    %v1463 = vmul.f32 %v1301, %v1458
    %v1464 = vmul.f32 %v1306, %v1458
    %v1465 = vmul.f32 %v1309, %v1458
    %v1466 = vmul.f32 %v1314, %v1458
    %v1467 = vmul.f32 %v1317, %v1458
    %v1468 = vmul.f32 %v1322, %v1458
    %v1469 = vmul.f32 %v1325, %v1458
    %v1470 = vmul.f32 %v1330, %v1458
    %v1471 = vmul.f32 %v1333, %v1458
    %v1472 = vmul.f32 %v1338, %v1458
    %v1473 = vmul.f32 %v1341, %v1458
    %v1474 = vmul.f32 %v1346, %v1458
    %v1475 = vmul.f32 %v1349, %v1458
    %v1477 = vlaneseq
    %v1478 = vshrl.u32 %v1477, 7
    %v1479 = vsub.s32 0, %v1478
    %v1480 = vrot.slane %v1453, %v1479
    %v1482 = vadd.f32 %v1460, %v1480
    %v1483 = vadd.f32 %v1461, %v1480
    %v1484 = vadd.f32 %v1462, %v1480
    %v1485 = vadd.f32 %v1463, %v1480
    %v1486 = vadd.f32 %v1464, %v1480
    %v1487 = vadd.f32 %v1465, %v1480
    %v1488 = vadd.f32 %v1466, %v1480
    %v1489 = vadd.f32 %v1467, %v1480
    %v1490 = vadd.f32 %v1468, %v1480
    %v1491 = vadd.f32 %v1469, %v1480
    %v1492 = vadd.f32 %v1470, %v1480
    %v1493 = vadd.f32 %v1471, %v1480
    %v1494 = vadd.f32 %v1472, %v1480
    %v1495 = vadd.f32 %v1473, %v1480
    %v1496 = vadd.f32 %v1474, %v1480
    %v1497 = vadd.f32 %v1475, %v1480
    %v1498 = vmax.f32 %v1482, 0.0
    %v1499 = vmax.f32 %v1483, 0.0
    %v1500 = vmax.f32 %v1484, 0.0
    %v1501 = vmax.f32 %v1485, 0.0
    %v1502 = vmax.f32 %v1486, 0.0
    %v1503 = vmax.f32 %v1487, 0.0
    %v1504 = vmax.f32 %v1488, 0.0
    %v1505 = vmax.f32 %v1489, 0.0
    %v1506 = vmax.f32 %v1490, 0.0
    %v1507 = vmax.f32 %v1491, 0.0
    %v1508 = vmax.f32 %v1492, 0.0
    %v1509 = vmax.f32 %v1493, 0.0
    %v1510 = vmax.f32 %v1494, 0.0
    %v1511 = vmax.f32 %v1495, 0.0
    %v1512 = vmax.f32 %v1496, 0.0
    %v1513 = vmax.f32 %v1497, 0.0
    %v1514 = vpack.c.bf16 %v1499, %v1498
    %v1515 = vpack.c.bf16 %v1501, %v1500
    %v1516 = vpack.c.bf16 %v1503, %v1502
    %v1517 = vpack.c.bf16 %v1505, %v1504
    %v1518 = vpack.c.bf16 %v1507, %v1506
    %v1519 = vpack.c.bf16 %v1509, %v1508
    %v1520 = vpack.c.bf16 %v1511, %v1510
    %v1521 = vpack.c.bf16 %v1513, %v1512
    %s1522 = smul.u32 4, 8
    %s1523 = smul.u32 %s1522, 25
    %s1524 = sshll.u32 %s1523, 4
    %1525 = dma.done [#allocation4], %s1524
    %v1526 = vld [vmem:[#allocation2] sm:$0xff]
    %v1527 = vld [vmem:[#allocation2 + $0x8] sm:$0xff]
    %v1528 = vld [vmem:[#allocation2 + $0x10] sm:$0xff]
    %v1529 = vld [vmem:[#allocation2 + $0x18] sm:$0xff]
    %v1530 = vld [vmem:[#allocation2 + $0x20] sm:$0xff]
    %v1531 = vld [vmem:[#allocation2 + $0x28] sm:$0xff]
    %v1532 = vld [vmem:[#allocation2 + $0x30] sm:$0xff]
    %v1533 = vld [vmem:[#allocation2 + $0x38] sm:$0xff]
    %v1534 = vld [vmem:[#allocation2 + $0x40] sm:$0xff]
    %v1535 = vld [vmem:[#allocation2 + $0x48] sm:$0xff]
    %v1536 = vld [vmem:[#allocation2 + $0x50] sm:$0xff]
    %v1537 = vld [vmem:[#allocation2 + $0x58] sm:$0xff]
    %v1538 = vld [vmem:[#allocation2 + $0x60] sm:$0xf]
    %v1539 = vld [vmem:[#allocation2 + $0x64] sm:$0xff]
    %v1540 = vld [vmem:[#allocation2 + $0x6c] sm:$0xff]
    %v1541 = vld [vmem:[#allocation2 + $0x74] sm:$0xff]
    %v1542 = vld [vmem:[#allocation2 + $0x7c] sm:$0xff]
    %v1543 = vld [vmem:[#allocation2 + $0x84] sm:$0xff]
    %v1544 = vld [vmem:[#allocation2 + $0x8c] sm:$0xff]
    %v1545 = vld [vmem:[#allocation2 + $0x94] sm:$0xff]
    %v1546 = vld [vmem:[#allocation2 + $0x9c] sm:$0xff]
    %v1547 = vld [vmem:[#allocation2 + $0xa4] sm:$0xff]
    %v1548 = vld [vmem:[#allocation2 + $0xac] sm:$0xff]
    %v1549 = vld [vmem:[#allocation2 + $0xb4] sm:$0xff]
    %v1550 = vld [vmem:[#allocation2 + $0xbc] sm:$0xff]
    %v1551 = vld [vmem:[#allocation2 + $0xc4] sm:$0xf]
    %v1552 = vld [vmem:[#allocation2 + $0xc8] sm:$0xff]
    %v1553 = vld [vmem:[#allocation2 + $0xd0] sm:$0xff]
    %v1554 = vld [vmem:[#allocation2 + $0xd8] sm:$0xff]
    %v1555 = vld [vmem:[#allocation2 + $0xe0] sm:$0xff]
    %v1556 = vld [vmem:[#allocation2 + $0xe8] sm:$0xff]
    %v1557 = vld [vmem:[#allocation2 + $0xf0] sm:$0xff]
    %v1558 = vld [vmem:[#allocation2 + $0xf8] sm:$0xff]
    %v1559 = vld [vmem:[#allocation2 + $0x100] sm:$0xff]
    %v1560 = vld [vmem:[#allocation2 + $0x108] sm:$0xff]
    %v1561 = vld [vmem:[#allocation2 + $0x110] sm:$0xff]
    %v1562 = vld [vmem:[#allocation2 + $0x118] sm:$0xff]
    %v1563 = vld [vmem:[#allocation2 + $0x120] sm:$0xff]
    %v1564 = vld [vmem:[#allocation2 + $0x128] sm:$0xf]
    %v1565 = vld [vmem:[#allocation2 + $0x12c] sm:$0xff]
    %v1566 = vld [vmem:[#allocation2 + $0x134] sm:$0xff]
    %v1567 = vld [vmem:[#allocation2 + $0x13c] sm:$0xff]
    %v1568 = vld [vmem:[#allocation2 + $0x144] sm:$0xff]
    %v1569 = vld [vmem:[#allocation2 + $0x14c] sm:$0xff]
    %v1570 = vld [vmem:[#allocation2 + $0x154] sm:$0xff]
    %v1571 = vld [vmem:[#allocation2 + $0x15c] sm:$0xff]
    %v1572 = vld [vmem:[#allocation2 + $0x164] sm:$0xff]
    %v1573 = vld [vmem:[#allocation2 + $0x16c] sm:$0xff]
    %v1574 = vld [vmem:[#allocation2 + $0x174] sm:$0xff]
    %v1575 = vld [vmem:[#allocation2 + $0x17c] sm:$0xff]
    %v1576 = vld [vmem:[#allocation2 + $0x184] sm:$0xff]
    %v1577 = vld [vmem:[#allocation2 + $0x18c] sm:$0xf]
    %v1578 = vld [vmem:[#allocation2 + $0x190] sm:$0xff]
    %v1579 = vld [vmem:[#allocation2 + $0x198] sm:$0xff]
    %v1580 = vld [vmem:[#allocation2 + $0x1a0] sm:$0xff]
    %v1581 = vld [vmem:[#allocation2 + $0x1a8] sm:$0xff]
    %v1582 = vld [vmem:[#allocation2 + $0x1b0] sm:$0xff]
    %v1583 = vld [vmem:[#allocation2 + $0x1b8] sm:$0xff]
    %v1584 = vld [vmem:[#allocation2 + $0x1c0] sm:$0xff]
    %v1585 = vld [vmem:[#allocation2 + $0x1c8] sm:$0xff]
    %v1586 = vld [vmem:[#allocation2 + $0x1d0] sm:$0xff]
    %v1587 = vld [vmem:[#allocation2 + $0x1d8] sm:$0xff]
    %v1588 = vld [vmem:[#allocation2 + $0x1e0] sm:$0xff]
    %v1589 = vld [vmem:[#allocation2 + $0x1e8] sm:$0xff]
    %v1590 = vld [vmem:[#allocation2 + $0x1f0] sm:$0xf]
    %v1591 = vld [vmem:[#allocation2 + $0x1f4] sm:$0xff]
    %v1592 = vld [vmem:[#allocation2 + $0x1fc] sm:$0xff]
    %v1593 = vld [vmem:[#allocation2 + $0x204] sm:$0xff]
    %v1594 = vld [vmem:[#allocation2 + $0x20c] sm:$0xff]
    %v1595 = vld [vmem:[#allocation2 + $0x214] sm:$0xff]
    %v1596 = vld [vmem:[#allocation2 + $0x21c] sm:$0xff]
    %v1597 = vld [vmem:[#allocation2 + $0x224] sm:$0xff]
    %v1598 = vld [vmem:[#allocation2 + $0x22c] sm:$0xff]
    %v1599 = vld [vmem:[#allocation2 + $0x234] sm:$0xff]
    %v1600 = vld [vmem:[#allocation2 + $0x23c] sm:$0xff]
    %v1601 = vld [vmem:[#allocation2 + $0x244] sm:$0xff]
    %v1602 = vld [vmem:[#allocation2 + $0x24c] sm:$0xff]
    %v1603 = vld [vmem:[#allocation2 + $0x254] sm:$0xf]
    %v1604 = vld [vmem:[#allocation2 + $0x258] sm:$0xff]
    %v1605 = vld [vmem:[#allocation2 + $0x260] sm:$0xff]
    %v1606 = vld [vmem:[#allocation2 + $0x268] sm:$0xff]
    %v1607 = vld [vmem:[#allocation2 + $0x270] sm:$0xff]
    %v1608 = vld [vmem:[#allocation2 + $0x278] sm:$0xff]
    %v1609 = vld [vmem:[#allocation2 + $0x280] sm:$0xff]
    %v1610 = vld [vmem:[#allocation2 + $0x288] sm:$0xff]
    %v1611 = vld [vmem:[#allocation2 + $0x290] sm:$0xff]
    %v1612 = vld [vmem:[#allocation2 + $0x298] sm:$0xff]
    %v1613 = vld [vmem:[#allocation2 + $0x2a0] sm:$0xff]
    %v1614 = vld [vmem:[#allocation2 + $0x2a8] sm:$0xff]
    %v1615 = vld [vmem:[#allocation2 + $0x2b0] sm:$0xff]
    %v1616 = vld [vmem:[#allocation2 + $0x2b8] sm:$0xf]
    %v1617 = vld [vmem:[#allocation2 + $0x2bc] sm:$0xff]
    %v1618 = vld [vmem:[#allocation2 + $0x2c4] sm:$0xff]
    %v1619 = vld [vmem:[#allocation2 + $0x2cc] sm:$0xff]
    %v1620 = vld [vmem:[#allocation2 + $0x2d4] sm:$0xff]
    %v1621 = vld [vmem:[#allocation2 + $0x2dc] sm:$0xff]
    %v1622 = vld [vmem:[#allocation2 + $0x2e4] sm:$0xff]
    %v1623 = vld [vmem:[#allocation2 + $0x2ec] sm:$0xff]
    %v1624 = vld [vmem:[#allocation2 + $0x2f4] sm:$0xff]
    %v1625 = vld [vmem:[#allocation2 + $0x2fc] sm:$0xff]
    %v1626 = vld [vmem:[#allocation2 + $0x304] sm:$0xff]
    %v1627 = vld [vmem:[#allocation2 + $0x30c] sm:$0xff]
    %v1628 = vld [vmem:[#allocation2 + $0x314] sm:$0xff]
    %v1629 = vld [vmem:[#allocation2 + $0x31c] sm:$0xf]
    %v1734 = vunpack.c.l.b16 %v1526
    %v1735 = vunpack.c.h.b16 %v1526
    %v1736 = vunpack.c.l.b16 %v1527
    %v1737 = vunpack.c.h.b16 %v1527
    %v1738 = vunpack.c.l.b16 %v1528
    %v1739 = vunpack.c.h.b16 %v1528
    %v1740 = vunpack.c.l.b16 %v1529
    %v1741 = vunpack.c.h.b16 %v1529
    %v1742 = vunpack.c.l.b16 %v1530
    %v1743 = vunpack.c.h.b16 %v1530
    %v1744 = vunpack.c.l.b16 %v1531
    %v1745 = vunpack.c.h.b16 %v1531
    %v1746 = vunpack.c.l.b16 %v1532
    %v1747 = vunpack.c.h.b16 %v1532
    %v1748 = vunpack.c.l.b16 %v1533
    %v1749 = vunpack.c.h.b16 %v1533
    %v1750 = vunpack.c.l.b16 %v1534
    %v1751 = vunpack.c.h.b16 %v1534
    %v1752 = vunpack.c.l.b16 %v1535
    %v1753 = vunpack.c.h.b16 %v1535
    %v1754 = vunpack.c.l.b16 %v1536
    %v1755 = vunpack.c.h.b16 %v1536
    %v1756 = vunpack.c.l.b16 %v1537
    %v1757 = vunpack.c.h.b16 %v1537
    %v1758 = vunpack.c.l.b16 %v1538
    %v1759 = vunpack.c.l.b16 %v1539
    %v1760 = vunpack.c.h.b16 %v1539
    %v1761 = vunpack.c.l.b16 %v1540
    %v1762 = vunpack.c.h.b16 %v1540
    %v1763 = vunpack.c.l.b16 %v1541
    %v1764 = vunpack.c.h.b16 %v1541
    %v1765 = vunpack.c.l.b16 %v1542
    %v1766 = vunpack.c.h.b16 %v1542
    %v1767 = vunpack.c.l.b16 %v1543
    %v1768 = vunpack.c.h.b16 %v1543
    %v1769 = vunpack.c.l.b16 %v1544
    %v1770 = vunpack.c.h.b16 %v1544
    %v1771 = vunpack.c.l.b16 %v1545
    %v1772 = vunpack.c.h.b16 %v1545
    %v1773 = vunpack.c.l.b16 %v1546
    %v1774 = vunpack.c.h.b16 %v1546
    %v1775 = vunpack.c.l.b16 %v1547
    %v1776 = vunpack.c.h.b16 %v1547
    %v1777 = vunpack.c.l.b16 %v1548
    %v1778 = vunpack.c.h.b16 %v1548
    %v1779 = vunpack.c.l.b16 %v1549
    %v1780 = vunpack.c.h.b16 %v1549
    %v1781 = vunpack.c.l.b16 %v1550
    %v1782 = vunpack.c.h.b16 %v1550
    %v1783 = vunpack.c.l.b16 %v1551
    %v1784 = vunpack.c.l.b16 %v1552
    %v1785 = vunpack.c.h.b16 %v1552
    %v1786 = vunpack.c.l.b16 %v1553
    %v1787 = vunpack.c.h.b16 %v1553
    %v1788 = vunpack.c.l.b16 %v1554
    %v1789 = vunpack.c.h.b16 %v1554
    %v1790 = vunpack.c.l.b16 %v1555
    %v1791 = vunpack.c.h.b16 %v1555
    %v1792 = vunpack.c.l.b16 %v1556
    %v1793 = vunpack.c.h.b16 %v1556
    %v1794 = vunpack.c.l.b16 %v1557
    %v1795 = vunpack.c.h.b16 %v1557
    %v1796 = vunpack.c.l.b16 %v1558
    %v1797 = vunpack.c.h.b16 %v1558
    %v1798 = vunpack.c.l.b16 %v1559
    %v1799 = vunpack.c.h.b16 %v1559
    %v1800 = vunpack.c.l.b16 %v1560
    %v1801 = vunpack.c.h.b16 %v1560
    %v1802 = vunpack.c.l.b16 %v1561
    %v1803 = vunpack.c.h.b16 %v1561
    %v1804 = vunpack.c.l.b16 %v1562
    %v1805 = vunpack.c.h.b16 %v1562
    %v1806 = vunpack.c.l.b16 %v1563
    %v1807 = vunpack.c.h.b16 %v1563
    %v1808 = vunpack.c.l.b16 %v1564
    %v1809 = vunpack.c.l.b16 %v1565
    %v1810 = vunpack.c.h.b16 %v1565
    %v1811 = vunpack.c.l.b16 %v1566
    %v1812 = vunpack.c.h.b16 %v1566
    %v1813 = vunpack.c.l.b16 %v1567
    %v1814 = vunpack.c.h.b16 %v1567
    %v1815 = vunpack.c.l.b16 %v1568
    %v1816 = vunpack.c.h.b16 %v1568
    %v1817 = vunpack.c.l.b16 %v1569
    %v1818 = vunpack.c.h.b16 %v1569
    %v1819 = vunpack.c.l.b16 %v1570
    %v1820 = vunpack.c.h.b16 %v1570
    %v1821 = vunpack.c.l.b16 %v1571
    %v1822 = vunpack.c.h.b16 %v1571
    %v1823 = vunpack.c.l.b16 %v1572
    %v1824 = vunpack.c.h.b16 %v1572
    %v1825 = vunpack.c.l.b16 %v1573
    %v1826 = vunpack.c.h.b16 %v1573
    %v1827 = vunpack.c.l.b16 %v1574
    %v1828 = vunpack.c.h.b16 %v1574
    %v1829 = vunpack.c.l.b16 %v1575
    %v1830 = vunpack.c.h.b16 %v1575
    %v1831 = vunpack.c.l.b16 %v1576
    %v1832 = vunpack.c.h.b16 %v1576
    %v1833 = vunpack.c.l.b16 %v1577
    %v1834 = vunpack.c.l.b16 %v1578
    %v1835 = vunpack.c.h.b16 %v1578
    %v1836 = vunpack.c.l.b16 %v1579
    %v1837 = vunpack.c.h.b16 %v1579
    %v1838 = vunpack.c.l.b16 %v1580
    %v1839 = vunpack.c.h.b16 %v1580
    %v1840 = vunpack.c.l.b16 %v1581
    %v1841 = vunpack.c.h.b16 %v1581
    %v1842 = vunpack.c.l.b16 %v1582
    %v1843 = vunpack.c.h.b16 %v1582
    %v1844 = vunpack.c.l.b16 %v1583
    %v1845 = vunpack.c.h.b16 %v1583
    %v1846 = vunpack.c.l.b16 %v1584
    %v1847 = vunpack.c.h.b16 %v1584
    %v1848 = vunpack.c.l.b16 %v1585
    %v1849 = vunpack.c.h.b16 %v1585
    %v1850 = vunpack.c.l.b16 %v1586
    %v1851 = vunpack.c.h.b16 %v1586
    %v1852 = vunpack.c.l.b16 %v1587
    %v1853 = vunpack.c.h.b16 %v1587
    %v1854 = vunpack.c.l.b16 %v1588
    %v1855 = vunpack.c.h.b16 %v1588
    %v1856 = vunpack.c.l.b16 %v1589
    %v1857 = vunpack.c.h.b16 %v1589
    %v1858 = vunpack.c.l.b16 %v1590
    %v1859 = vunpack.c.l.b16 %v1591
    %v1860 = vunpack.c.h.b16 %v1591
    %v1861 = vunpack.c.l.b16 %v1592
    %v1862 = vunpack.c.h.b16 %v1592
    %v1863 = vunpack.c.l.b16 %v1593
    %v1864 = vunpack.c.h.b16 %v1593
    %v1865 = vunpack.c.l.b16 %v1594
    %v1866 = vunpack.c.h.b16 %v1594
    %v1867 = vunpack.c.l.b16 %v1595
    %v1868 = vunpack.c.h.b16 %v1595
    %v1869 = vunpack.c.l.b16 %v1596
    %v1870 = vunpack.c.h.b16 %v1596
    %v1871 = vunpack.c.l.b16 %v1597
    %v1872 = vunpack.c.h.b16 %v1597
    %v1873 = vunpack.c.l.b16 %v1598
    %v1874 = vunpack.c.h.b16 %v1598
    %v1875 = vunpack.c.l.b16 %v1599
    %v1876 = vunpack.c.h.b16 %v1599
    %v1877 = vunpack.c.l.b16 %v1600
    %v1878 = vunpack.c.h.b16 %v1600
    %v1879 = vunpack.c.l.b16 %v1601
    %v1880 = vunpack.c.h.b16 %v1601
    %v1881 = vunpack.c.l.b16 %v1602
    %v1882 = vunpack.c.h.b16 %v1602
    %v1883 = vunpack.c.l.b16 %v1603
    %v1884 = vunpack.c.l.b16 %v1604
    %v1885 = vunpack.c.h.b16 %v1604
    %v1886 = vunpack.c.l.b16 %v1605
    %v1887 = vunpack.c.h.b16 %v1605
    %v1888 = vunpack.c.l.b16 %v1606
    %v1889 = vunpack.c.h.b16 %v1606
    %v1890 = vunpack.c.l.b16 %v1607
    %v1891 = vunpack.c.h.b16 %v1607
    %v1892 = vunpack.c.l.b16 %v1608
    %v1893 = vunpack.c.h.b16 %v1608
    %v1894 = vunpack.c.l.b16 %v1609
    %v1895 = vunpack.c.h.b16 %v1609
    %v1896 = vunpack.c.l.b16 %v1610
    %v1897 = vunpack.c.h.b16 %v1610
    %v1898 = vunpack.c.l.b16 %v1611
    %v1899 = vunpack.c.h.b16 %v1611
    %v1900 = vunpack.c.l.b16 %v1612
    %v1901 = vunpack.c.h.b16 %v1612
    %v1902 = vunpack.c.l.b16 %v1613
    %v1903 = vunpack.c.h.b16 %v1613
    %v1904 = vunpack.c.l.b16 %v1614
    %v1905 = vunpack.c.h.b16 %v1614
    %v1906 = vunpack.c.l.b16 %v1615
    %v1907 = vunpack.c.h.b16 %v1615
    %v1908 = vunpack.c.l.b16 %v1616
    %v1909 = vunpack.c.l.b16 %v1617
    %v1910 = vunpack.c.h.b16 %v1617
    %v1911 = vunpack.c.l.b16 %v1618
    %v1912 = vunpack.c.h.b16 %v1618
    %v1913 = vunpack.c.l.b16 %v1619
    %v1914 = vunpack.c.h.b16 %v1619
    %v1915 = vunpack.c.l.b16 %v1620
    %v1916 = vunpack.c.h.b16 %v1620
    %v1917 = vunpack.c.l.b16 %v1621
    %v1918 = vunpack.c.h.b16 %v1621
    %v1919 = vunpack.c.l.b16 %v1622
    %v1920 = vunpack.c.h.b16 %v1622
    %v1921 = vunpack.c.l.b16 %v1623
    %v1922 = vunpack.c.h.b16 %v1623
    %v1923 = vunpack.c.l.b16 %v1624
    %v1924 = vunpack.c.h.b16 %v1624
    %v1925 = vunpack.c.l.b16 %v1625
    %v1926 = vunpack.c.h.b16 %v1625
    %v1927 = vunpack.c.l.b16 %v1626
    %v1928 = vunpack.c.h.b16 %v1626
    %v1929 = vunpack.c.l.b16 %v1627
    %v1930 = vunpack.c.h.b16 %v1627
    %v1931 = vunpack.c.l.b16 %v1628
    %v1932 = vunpack.c.h.b16 %v1628
    %v1933 = vunpack.c.l.b16 %v1629
    %v1934 = vpack.c.b16 %v1759, %v1734
    %v1935 = vpack.c.b16 %v1760, %v1735
    %v1936 = vpack.c.b16 %v1761, %v1736
    %v1937 = vpack.c.b16 %v1762, %v1737
    %v1938 = vpack.c.b16 %v1763, %v1738
    %v1939 = vpack.c.b16 %v1764, %v1739
    %v1940 = vpack.c.b16 %v1765, %v1740
    %v1941 = vpack.c.b16 %v1766, %v1741
    %v1942 = vpack.c.b16 %v1767, %v1742
    %v1943 = vpack.c.b16 %v1768, %v1743
    %v1944 = vpack.c.b16 %v1769, %v1744
    %v1945 = vpack.c.b16 %v1770, %v1745
    %v1946 = vpack.c.b16 %v1771, %v1746
    %v1947 = vpack.c.b16 %v1772, %v1747
    %v1948 = vpack.c.b16 %v1773, %v1748
    %v1949 = vpack.c.b16 %v1774, %v1749
    %v1950 = vpack.c.b16 %v1775, %v1750
    %v1951 = vpack.c.b16 %v1776, %v1751
    %v1952 = vpack.c.b16 %v1777, %v1752
    %v1953 = vpack.c.b16 %v1778, %v1753
    %v1954 = vpack.c.b16 %v1779, %v1754
    %v1955 = vpack.c.b16 %v1780, %v1755
    %v1956 = vpack.c.b16 %v1781, %v1756
    %v1957 = vpack.c.b16 %v1782, %v1757
    %v1958 = vpack.c.b16 %v1783, %v1758
    %v1959 = vpack.c.b16 %v1809, %v1784
    %v1960 = vpack.c.b16 %v1810, %v1785
    %v1961 = vpack.c.b16 %v1811, %v1786
    %v1962 = vpack.c.b16 %v1812, %v1787
    %v1963 = vpack.c.b16 %v1813, %v1788
    %v1964 = vpack.c.b16 %v1814, %v1789
    %v1965 = vpack.c.b16 %v1815, %v1790
    %v1966 = vpack.c.b16 %v1816, %v1791
    %v1967 = vpack.c.b16 %v1817, %v1792
    %v1968 = vpack.c.b16 %v1818, %v1793
    %v1969 = vpack.c.b16 %v1819, %v1794
    %v1970 = vpack.c.b16 %v1820, %v1795
    %v1971 = vpack.c.b16 %v1821, %v1796
    %v1972 = vpack.c.b16 %v1822, %v1797
    %v1973 = vpack.c.b16 %v1823, %v1798
    %v1974 = vpack.c.b16 %v1824, %v1799
    %v1975 = vpack.c.b16 %v1825, %v1800
    %v1976 = vpack.c.b16 %v1826, %v1801
    %v1977 = vpack.c.b16 %v1827, %v1802
    %v1978 = vpack.c.b16 %v1828, %v1803
    %v1979 = vpack.c.b16 %v1829, %v1804
    %v1980 = vpack.c.b16 %v1830, %v1805
    %v1981 = vpack.c.b16 %v1831, %v1806
    %v1982 = vpack.c.b16 %v1832, %v1807
    %v1983 = vpack.c.b16 %v1833, %v1808
    %v1984 = vpack.c.b16 %v1859, %v1834
    %v1985 = vpack.c.b16 %v1860, %v1835
    %v1986 = vpack.c.b16 %v1861, %v1836
    %v1987 = vpack.c.b16 %v1862, %v1837
    %v1988 = vpack.c.b16 %v1863, %v1838
    %v1989 = vpack.c.b16 %v1864, %v1839
    %v1990 = vpack.c.b16 %v1865, %v1840
    %v1991 = vpack.c.b16 %v1866, %v1841
    %v1992 = vpack.c.b16 %v1867, %v1842
    %v1993 = vpack.c.b16 %v1868, %v1843
    %v1994 = vpack.c.b16 %v1869, %v1844
    %v1995 = vpack.c.b16 %v1870, %v1845
    %v1996 = vpack.c.b16 %v1871, %v1846
    %v1997 = vpack.c.b16 %v1872, %v1847
    %v1998 = vpack.c.b16 %v1873, %v1848
    %v1999 = vpack.c.b16 %v1874, %v1849
    %v2000 = vpack.c.b16 %v1875, %v1850
    %v2001 = vpack.c.b16 %v1876, %v1851
    %v2002 = vpack.c.b16 %v1877, %v1852
    %v2003 = vpack.c.b16 %v1878, %v1853
    %v2004 = vpack.c.b16 %v1879, %v1854
    %v2005 = vpack.c.b16 %v1880, %v1855
    %v2006 = vpack.c.b16 %v1881, %v1856
    %v2007 = vpack.c.b16 %v1882, %v1857
    %v2008 = vpack.c.b16 %v1883, %v1858
    %v2009 = vpack.c.b16 %v1909, %v1884
    %v2010 = vpack.c.b16 %v1910, %v1885
    %v2011 = vpack.c.b16 %v1911, %v1886
    %v2012 = vpack.c.b16 %v1912, %v1887
    %v2013 = vpack.c.b16 %v1913, %v1888
    %v2014 = vpack.c.b16 %v1914, %v1889
    %v2015 = vpack.c.b16 %v1915, %v1890
    %v2016 = vpack.c.b16 %v1916, %v1891
    %v2017 = vpack.c.b16 %v1917, %v1892
    %v2018 = vpack.c.b16 %v1918, %v1893
    %v2019 = vpack.c.b16 %v1919, %v1894
    %v2020 = vpack.c.b16 %v1920, %v1895
    %v2021 = vpack.c.b16 %v1921, %v1896
    %v2022 = vpack.c.b16 %v1922, %v1897
    %v2023 = vpack.c.b16 %v1923, %v1898
    %v2024 = vpack.c.b16 %v1924, %v1899
    %v2025 = vpack.c.b16 %v1925, %v1900
    %v2026 = vpack.c.b16 %v1926, %v1901
    %v2027 = vpack.c.b16 %v1927, %v1902
    %v2028 = vpack.c.b16 %v1928, %v1903
    %v2029 = vpack.c.b16 %v1929, %v1904
    %v2030 = vpack.c.b16 %v1930, %v1905
    %v2031 = vpack.c.b16 %v1931, %v1906
    %v2032 = vpack.c.b16 %v1932, %v1907
    %v2033 = vpack.c.b16 %v1933, %v1908
    %v2135 = vsel %vm1352, %v1514, 0
    %v2138 = vsel %vm1352, %v1515, 0
    %v2141 = vsel %vm1352, %v1516, 0
    %v2144 = vsel %vm1352, %v1517, 0
    %v2147 = vsel %vm1352, %v1518, 0
    %v2150 = vsel %vm1352, %v1519, 0
    %v2153 = vsel %vm1352, %v1520, 0
    %v2156 = vsel %vm1352, %v1521, 0
    %2158 = vmatprep.subr.bf16.mxu0 0
    %2159 = vmatpush1.bf16.msra.mxu0 0
    %2160 = vmatprep.subr.bf16.mxu0 0
    %2161 = vmatpush1.bf16.msra.mxu0 0
    %2162 = vmatprep.subr.bf16.mxu0 0
    %2163 = vmatpush1.bf16.msra.mxu0 0
    %2164 = vmatprep.subr.bf16.mxu0 0
    %2165 = vmatpush1.bf16.msra.mxu0 0
    %2166 = vmatprep.subr.bf16.mxu0 %v2010
    %2167 = vmatpush1.bf16.msra.mxu0 %v2009
    %2168 = vmatprep.subr.bf16.mxu0 %v1985
    %2169 = vmatpush1.bf16.msra.mxu0 %v1984
    %2170 = vmatprep.subr.bf16.mxu0 %v1960
    %2171 = vmatpush1.bf16.msra.mxu0 %v1959
    %2172 = vmatprep.subr.bf16.mxu0 %v1935
    %2173 = vmatpush1.bf16.msra.mxu0 %v1934
    %2174 = vmatprep.subr.bf16.mxu0 0
    %2175 = vmatpush2.bf16.msra.mxu0 0
    %2176 = vmatprep.subr.bf16.mxu0 0
    %2177 = vmatpush2.bf16.msra.mxu0 0
    %2178 = vmatprep.subr.bf16.mxu0 0
    %2179 = vmatpush2.bf16.msra.mxu0 0
    %2180 = vmatprep.subr.bf16.mxu0 0
    %2181 = vmatpush2.bf16.msra.mxu0 0
    %2182 = vmatprep.subr.bf16.mxu0 0
    %2183 = vmatpush2.bf16.msra.mxu0 0
    %2184 = vmatprep.subr.bf16.mxu0 0
    %2185 = vmatpush2.bf16.msra.mxu0 0
    %2186 = vmatprep.subr.bf16.mxu0 0
    %2187 = vmatpush2.bf16.msra.mxu0 0
    %2188 = vmatprep.subr.bf16.mxu0 0
    %2189 = vmatpush2.bf16.msra.mxu0 0
    %2190 = vmatprep.mubr.bf16.mxu0 0
    %2191 = vmatmul.mubr.bf16.gmra.mxu0 %v2135
    %v2192 = vpop.f32.mrf.mxu0
    %v2193 = vadd.f32 0.0, %v2192
    %v2194 = vpop.f32.mrf.mxu0
    %v2195 = vadd.f32 0.0, %v2194
    %v2196 = vpop.f32.mrf.mxu0
    %v2197 = vadd.f32 0.0, %v2196
    %v2198 = vpop.f32.mrf.mxu0
    %v2199 = vadd.f32 0.0, %v2198
    %2200 = vmatprep.mubr.bf16.mxu0 0
    %2201 = vmatmul.mubr.bf16.gmra.mxu0 %v2138
    %v2202 = vpop.f32.mrf.mxu0
    %v2203 = vadd.f32 0.0, %v2202
    %v2204 = vpop.f32.mrf.mxu0
    %v2205 = vadd.f32 0.0, %v2204
    %v2206 = vpop.f32.mrf.mxu0
    %v2207 = vadd.f32 0.0, %v2206
    %v2208 = vpop.f32.mrf.mxu0
    %v2209 = vadd.f32 0.0, %v2208
    %2210 = vmatprep.mubr.bf16.mxu0 0
    %2211 = vmatmul.mubr.bf16.gmra.mxu0 %v2141
    %v2212 = vpop.f32.mrf.mxu0
    %v2213 = vadd.f32 0.0, %v2212
    %v2214 = vpop.f32.mrf.mxu0
    %v2215 = vadd.f32 0.0, %v2214
    %v2216 = vpop.f32.mrf.mxu0
    %v2217 = vadd.f32 0.0, %v2216
    %v2218 = vpop.f32.mrf.mxu0
    %v2219 = vadd.f32 0.0, %v2218
    %2220 = vmatprep.mubr.bf16.mxu0 0
    %2221 = vmatmul.mubr.bf16.gmra.mxu0 %v2144
    %v2222 = vpop.f32.mrf.mxu0
    %v2223 = vadd.f32 0.0, %v2222
    %v2224 = vpop.f32.mrf.mxu0
    %v2225 = vadd.f32 0.0, %v2224
    %v2226 = vpop.f32.mrf.mxu0
    %v2227 = vadd.f32 0.0, %v2226
    %v2228 = vpop.f32.mrf.mxu0
    %v2229 = vadd.f32 0.0, %v2228
    %2230 = vmatprep.mubr.bf16.mxu0 0
    %2231 = vmatmul.mubr.bf16.gmra.mxu0 %v2147
    %v2232 = vpop.f32.mrf.mxu0
    %v2233 = vadd.f32 0.0, %v2232
    %v2234 = vpop.f32.mrf.mxu0
    %v2235 = vadd.f32 0.0, %v2234
    %v2236 = vpop.f32.mrf.mxu0
    %v2237 = vadd.f32 0.0, %v2236
    %v2238 = vpop.f32.mrf.mxu0
    %v2239 = vadd.f32 0.0, %v2238
    %2240 = vmatprep.mubr.bf16.mxu0 0
    %2241 = vmatmul.mubr.bf16.gmra.mxu0 %v2150
    %v2242 = vpop.f32.mrf.mxu0
    %v2243 = vadd.f32 0.0, %v2242
    %v2244 = vpop.f32.mrf.mxu0
    %v2245 = vadd.f32 0.0, %v2244
    %v2246 = vpop.f32.mrf.mxu0
    %v2247 = vadd.f32 0.0, %v2246
    %v2248 = vpop.f32.mrf.mxu0
    %v2249 = vadd.f32 0.0, %v2248
    %2250 = vmatprep.mubr.bf16.mxu0 0
    %2251 = vmatmul.mubr.bf16.gmra.mxu0 %v2153
    %v2252 = vpop.f32.mrf.mxu0
    %v2253 = vadd.f32 0.0, %v2252
    %v2254 = vpop.f32.mrf.mxu0
    %v2255 = vadd.f32 0.0, %v2254
    %v2256 = vpop.f32.mrf.mxu0
    %v2257 = vadd.f32 0.0, %v2256
    %v2258 = vpop.f32.mrf.mxu0
    %v2259 = vadd.f32 0.0, %v2258
    %2260 = vmatprep.mubr.bf16.mxu0 0
    %2261 = vmatmul.mubr.bf16.gmra.mxu0 %v2156
    %v2262 = vpop.f32.mrf.mxu0
    %v2263 = vadd.f32 0.0, %v2262
    %v2264 = vpop.f32.mrf.mxu0
    %v2265 = vadd.f32 0.0, %v2264
    %v2266 = vpop.f32.mrf.mxu0
    %v2267 = vadd.f32 0.0, %v2266
    %v2268 = vpop.f32.mrf.mxu0
    %v2269 = vadd.f32 0.0, %v2268
    %2270 = vdwg.mxu0
    %2271 = vmatprep.subr.bf16.mxu0 0
    %2272 = vmatpush1.bf16.msra.mxu0 0
    %2273 = vmatprep.subr.bf16.mxu0 0
    %2274 = vmatpush1.bf16.msra.mxu0 0
    %2275 = vmatprep.subr.bf16.mxu0 0
    %2276 = vmatpush1.bf16.msra.mxu0 0
    %2277 = vmatprep.subr.bf16.mxu0 0
    %2278 = vmatpush1.bf16.msra.mxu0 0
    %2279 = vmatprep.subr.bf16.mxu0 %v2012
    %2280 = vmatpush1.bf16.msra.mxu0 %v2011
    %2281 = vmatprep.subr.bf16.mxu0 %v1987
    %2282 = vmatpush1.bf16.msra.mxu0 %v1986
    %2283 = vmatprep.subr.bf16.mxu0 %v1962
    %2284 = vmatpush1.bf16.msra.mxu0 %v1961
    %2285 = vmatprep.subr.bf16.mxu0 %v1937
    %2286 = vmatpush1.bf16.msra.mxu0 %v1936
    %2287 = vmatprep.subr.bf16.mxu0 0
    %2288 = vmatpush2.bf16.msra.mxu0 0
    %2289 = vmatprep.subr.bf16.mxu0 0
    %2290 = vmatpush2.bf16.msra.mxu0 0
    %2291 = vmatprep.subr.bf16.mxu0 0
    %2292 = vmatpush2.bf16.msra.mxu0 0
    %2293 = vmatprep.subr.bf16.mxu0 0
    %2294 = vmatpush2.bf16.msra.mxu0 0
    %2295 = vmatprep.subr.bf16.mxu0 0
    %2296 = vmatpush2.bf16.msra.mxu0 0
    %2297 = vmatprep.subr.bf16.mxu0 0
    %2298 = vmatpush2.bf16.msra.mxu0 0
    %2299 = vmatprep.subr.bf16.mxu0 0
    %2300 = vmatpush2.bf16.msra.mxu0 0
    %2301 = vmatprep.subr.bf16.mxu0 0
    %2302 = vmatpush2.bf16.msra.mxu0 0
    %2303 = vmatprep.mubr.bf16.mxu0 0
    %2304 = vmatmul.mubr.bf16.gmra.mxu0 %v2135
    %v2305 = vpop.f32.mrf.mxu0
    %v2306 = vadd.f32 0.0, %v2305
    %v2307 = vpop.f32.mrf.mxu0
    %v2308 = vadd.f32 0.0, %v2307
    %v2309 = vpop.f32.mrf.mxu0
    %v2310 = vadd.f32 0.0, %v2309
    %v2311 = vpop.f32.mrf.mxu0
    %v2312 = vadd.f32 0.0, %v2311
    %2313 = vmatprep.mubr.bf16.mxu0 0
    %2314 = vmatmul.mubr.bf16.gmra.mxu0 %v2138
    %v2315 = vpop.f32.mrf.mxu0
    %v2316 = vadd.f32 0.0, %v2315
    %v2317 = vpop.f32.mrf.mxu0
    %v2318 = vadd.f32 0.0, %v2317
    %v2319 = vpop.f32.mrf.mxu0
    %v2320 = vadd.f32 0.0, %v2319
    %v2321 = vpop.f32.mrf.mxu0
    %v2322 = vadd.f32 0.0, %v2321
    %2323 = vmatprep.mubr.bf16.mxu0 0
    %2324 = vmatmul.mubr.bf16.gmra.mxu0 %v2141
    %v2325 = vpop.f32.mrf.mxu0
    %v2326 = vadd.f32 0.0, %v2325
    %v2327 = vpop.f32.mrf.mxu0
    %v2328 = vadd.f32 0.0, %v2327
    %v2329 = vpop.f32.mrf.mxu0
    %v2330 = vadd.f32 0.0, %v2329
    %v2331 = vpop.f32.mrf.mxu0
    %v2332 = vadd.f32 0.0, %v2331
    %2333 = vmatprep.mubr.bf16.mxu0 0
    %2334 = vmatmul.mubr.bf16.gmra.mxu0 %v2144
    %v2335 = vpop.f32.mrf.mxu0
    %v2336 = vadd.f32 0.0, %v2335
    %v2337 = vpop.f32.mrf.mxu0
    %v2338 = vadd.f32 0.0, %v2337
    %v2339 = vpop.f32.mrf.mxu0
    %v2340 = vadd.f32 0.0, %v2339
    %v2341 = vpop.f32.mrf.mxu0
    %v2342 = vadd.f32 0.0, %v2341
    %2343 = vmatprep.mubr.bf16.mxu0 0
    %2344 = vmatmul.mubr.bf16.gmra.mxu0 %v2147
    %v2345 = vpop.f32.mrf.mxu0
    %v2346 = vadd.f32 0.0, %v2345
    %v2347 = vpop.f32.mrf.mxu0
    %v2348 = vadd.f32 0.0, %v2347
    %v2349 = vpop.f32.mrf.mxu0
    %v2350 = vadd.f32 0.0, %v2349
    %v2351 = vpop.f32.mrf.mxu0
    %v2352 = vadd.f32 0.0, %v2351
    %2353 = vmatprep.mubr.bf16.mxu0 0
    %2354 = vmatmul.mubr.bf16.gmra.mxu0 %v2150
    %v2355 = vpop.f32.mrf.mxu0
    %v2356 = vadd.f32 0.0, %v2355
    %v2357 = vpop.f32.mrf.mxu0
    %v2358 = vadd.f32 0.0, %v2357
    %v2359 = vpop.f32.mrf.mxu0
    %v2360 = vadd.f32 0.0, %v2359
    %v2361 = vpop.f32.mrf.mxu0
    %v2362 = vadd.f32 0.0, %v2361
    %2363 = vmatprep.mubr.bf16.mxu0 0
    %2364 = vmatmul.mubr.bf16.gmra.mxu0 %v2153
    %v2365 = vpop.f32.mrf.mxu0
    %v2366 = vadd.f32 0.0, %v2365
    %v2367 = vpop.f32.mrf.mxu0
    %v2368 = vadd.f32 0.0, %v2367
    %v2369 = vpop.f32.mrf.mxu0
    %v2370 = vadd.f32 0.0, %v2369
    %v2371 = vpop.f32.mrf.mxu0
    %v2372 = vadd.f32 0.0, %v2371
    %2373 = vmatprep.mubr.bf16.mxu0 0
    %2374 = vmatmul.mubr.bf16.gmra.mxu0 %v2156
    %v2375 = vpop.f32.mrf.mxu0
    %v2376 = vadd.f32 0.0, %v2375
    %v2377 = vpop.f32.mrf.mxu0
    %v2378 = vadd.f32 0.0, %v2377
    %v2379 = vpop.f32.mrf.mxu0
    %v2380 = vadd.f32 0.0, %v2379
    %v2381 = vpop.f32.mrf.mxu0
    %v2382 = vadd.f32 0.0, %v2381
    %2383 = vdwg.mxu0
    %2384 = vmatprep.subr.bf16.mxu0 0
    %2385 = vmatpush1.bf16.msra.mxu0 0
    %2386 = vmatprep.subr.bf16.mxu0 0
    %2387 = vmatpush1.bf16.msra.mxu0 0
    %2388 = vmatprep.subr.bf16.mxu0 0
    %2389 = vmatpush1.bf16.msra.mxu0 0
    %2390 = vmatprep.subr.bf16.mxu0 0
    %2391 = vmatpush1.bf16.msra.mxu0 0
    %2392 = vmatprep.subr.bf16.mxu0 %v2014
    %2393 = vmatpush1.bf16.msra.mxu0 %v2013
    %2394 = vmatprep.subr.bf16.mxu0 %v1989
    %2395 = vmatpush1.bf16.msra.mxu0 %v1988
    %2396 = vmatprep.subr.bf16.mxu0 %v1964
    %2397 = vmatpush1.bf16.msra.mxu0 %v1963
    %2398 = vmatprep.subr.bf16.mxu0 %v1939
    %2399 = vmatpush1.bf16.msra.mxu0 %v1938
    %2400 = vmatprep.subr.bf16.mxu0 0
    %2401 = vmatpush2.bf16.msra.mxu0 0
    %2402 = vmatprep.subr.bf16.mxu0 0
    %2403 = vmatpush2.bf16.msra.mxu0 0
    %2404 = vmatprep.subr.bf16.mxu0 0
    %2405 = vmatpush2.bf16.msra.mxu0 0
    %2406 = vmatprep.subr.bf16.mxu0 0
    %2407 = vmatpush2.bf16.msra.mxu0 0
    %2408 = vmatprep.subr.bf16.mxu0 0
    %2409 = vmatpush2.bf16.msra.mxu0 0
    %2410 = vmatprep.subr.bf16.mxu0 0
    %2411 = vmatpush2.bf16.msra.mxu0 0
    %2412 = vmatprep.subr.bf16.mxu0 0
    %2413 = vmatpush2.bf16.msra.mxu0 0
    %2414 = vmatprep.subr.bf16.mxu0 0
    %2415 = vmatpush2.bf16.msra.mxu0 0
    %2416 = vmatprep.mubr.bf16.mxu0 0
    %2417 = vmatmul.mubr.bf16.gmra.mxu0 %v2135
    %v2418 = vpop.f32.mrf.mxu0
    %v2419 = vadd.f32 0.0, %v2418
    %v2420 = vpop.f32.mrf.mxu0
    %v2421 = vadd.f32 0.0, %v2420
    %v2422 = vpop.f32.mrf.mxu0
    %v2423 = vadd.f32 0.0, %v2422
    %v2424 = vpop.f32.mrf.mxu0
    %v2425 = vadd.f32 0.0, %v2424
    %2426 = vmatprep.mubr.bf16.mxu0 0
    %2427 = vmatmul.mubr.bf16.gmra.mxu0 %v2138
    %v2428 = vpop.f32.mrf.mxu0
    %v2429 = vadd.f32 0.0, %v2428
    %v2430 = vpop.f32.mrf.mxu0
    %v2431 = vadd.f32 0.0, %v2430
    %v2432 = vpop.f32.mrf.mxu0
    %v2433 = vadd.f32 0.0, %v2432
    %v2434 = vpop.f32.mrf.mxu0
    %v2435 = vadd.f32 0.0, %v2434
    %2436 = vmatprep.mubr.bf16.mxu0 0
    %2437 = vmatmul.mubr.bf16.gmra.mxu0 %v2141
    %v2438 = vpop.f32.mrf.mxu0
    %v2439 = vadd.f32 0.0, %v2438
    %v2440 = vpop.f32.mrf.mxu0
    %v2441 = vadd.f32 0.0, %v2440
    %v2442 = vpop.f32.mrf.mxu0
    %v2443 = vadd.f32 0.0, %v2442
    %v2444 = vpop.f32.mrf.mxu0
    %v2445 = vadd.f32 0.0, %v2444
    %2446 = vmatprep.mubr.bf16.mxu0 0
    %2447 = vmatmul.mubr.bf16.gmra.mxu0 %v2144
    %v2448 = vpop.f32.mrf.mxu0
    %v2449 = vadd.f32 0.0, %v2448
    %v2450 = vpop.f32.mrf.mxu0
    %v2451 = vadd.f32 0.0, %v2450
    %v2452 = vpop.f32.mrf.mxu0
    %v2453 = vadd.f32 0.0, %v2452
    %v2454 = vpop.f32.mrf.mxu0
    %v2455 = vadd.f32 0.0, %v2454
    %2456 = vmatprep.mubr.bf16.mxu0 0
    %2457 = vmatmul.mubr.bf16.gmra.mxu0 %v2147
    %v2458 = vpop.f32.mrf.mxu0
    %v2459 = vadd.f32 0.0, %v2458
    %v2460 = vpop.f32.mrf.mxu0
    %v2461 = vadd.f32 0.0, %v2460
    %v2462 = vpop.f32.mrf.mxu0
    %v2463 = vadd.f32 0.0, %v2462
    %v2464 = vpop.f32.mrf.mxu0
    %v2465 = vadd.f32 0.0, %v2464
    %2466 = vmatprep.mubr.bf16.mxu0 0
    %2467 = vmatmul.mubr.bf16.gmra.mxu0 %v2150
    %v2468 = vpop.f32.mrf.mxu0
    %v2469 = vadd.f32 0.0, %v2468
    %v2470 = vpop.f32.mrf.mxu0
    %v2471 = vadd.f32 0.0, %v2470
    %v2472 = vpop.f32.mrf.mxu0
    %v2473 = vadd.f32 0.0, %v2472
    %v2474 = vpop.f32.mrf.mxu0
    %v2475 = vadd.f32 0.0, %v2474
    %2476 = vmatprep.mubr.bf16.mxu0 0
    %2477 = vmatmul.mubr.bf16.gmra.mxu0 %v2153
    %v2478 = vpop.f32.mrf.mxu0
    %v2479 = vadd.f32 0.0, %v2478
    %v2480 = vpop.f32.mrf.mxu0
    %v2481 = vadd.f32 0.0, %v2480
    %v2482 = vpop.f32.mrf.mxu0
    %v2483 = vadd.f32 0.0, %v2482
    %v2484 = vpop.f32.mrf.mxu0
    %v2485 = vadd.f32 0.0, %v2484
    %2486 = vmatprep.mubr.bf16.mxu0 0
    %2487 = vmatmul.mubr.bf16.gmra.mxu0 %v2156
    %v2488 = vpop.f32.mrf.mxu0
    %v2489 = vadd.f32 0.0, %v2488
    %v2490 = vpop.f32.mrf.mxu0
    %v2491 = vadd.f32 0.0, %v2490
    %v2492 = vpop.f32.mrf.mxu0
    %v2493 = vadd.f32 0.0, %v2492
    %v2494 = vpop.f32.mrf.mxu0
    %v2495 = vadd.f32 0.0, %v2494
    %2496 = vdwg.mxu0
    %2497 = vmatprep.subr.bf16.mxu0 0
    %2498 = vmatpush1.bf16.msra.mxu0 0
    %2499 = vmatprep.subr.bf16.mxu0 0
    %2500 = vmatpush1.bf16.msra.mxu0 0
    %2501 = vmatprep.subr.bf16.mxu0 0
    %2502 = vmatpush1.bf16.msra.mxu0 0
    %2503 = vmatprep.subr.bf16.mxu0 0
    %2504 = vmatpush1.bf16.msra.mxu0 0
    %2505 = vmatprep.subr.bf16.mxu0 %v2016
    %2506 = vmatpush1.bf16.msra.mxu0 %v2015
    %2507 = vmatprep.subr.bf16.mxu0 %v1991
    %2508 = vmatpush1.bf16.msra.mxu0 %v1990
    %2509 = vmatprep.subr.bf16.mxu0 %v1966
    %2510 = vmatpush1.bf16.msra.mxu0 %v1965
    %2511 = vmatprep.subr.bf16.mxu0 %v1941
    %2512 = vmatpush1.bf16.msra.mxu0 %v1940
    %2513 = vmatprep.subr.bf16.mxu0 0
    %2514 = vmatpush2.bf16.msra.mxu0 0
    %2515 = vmatprep.subr.bf16.mxu0 0
    %2516 = vmatpush2.bf16.msra.mxu0 0
    %2517 = vmatprep.subr.bf16.mxu0 0
    %2518 = vmatpush2.bf16.msra.mxu0 0
    %2519 = vmatprep.subr.bf16.mxu0 0
    %2520 = vmatpush2.bf16.msra.mxu0 0
    %2521 = vmatprep.subr.bf16.mxu0 0
    %2522 = vmatpush2.bf16.msra.mxu0 0
    %2523 = vmatprep.subr.bf16.mxu0 0
    %2524 = vmatpush2.bf16.msra.mxu0 0
    %2525 = vmatprep.subr.bf16.mxu0 0
    %2526 = vmatpush2.bf16.msra.mxu0 0
    %2527 = vmatprep.subr.bf16.mxu0 0
    %2528 = vmatpush2.bf16.msra.mxu0 0
    %2529 = vmatprep.mubr.bf16.mxu0 0
    %2530 = vmatmul.mubr.bf16.gmra.mxu0 %v2135
    %v2531 = vpop.f32.mrf.mxu0
    %v2532 = vadd.f32 0.0, %v2531
    %v2533 = vpop.f32.mrf.mxu0
    %v2534 = vadd.f32 0.0, %v2533
    %v2535 = vpop.f32.mrf.mxu0
    %v2536 = vadd.f32 0.0, %v2535
    %v2537 = vpop.f32.mrf.mxu0
    %v2538 = vadd.f32 0.0, %v2537
    %2539 = vmatprep.mubr.bf16.mxu0 0
    %2540 = vmatmul.mubr.bf16.gmra.mxu0 %v2138
    %v2541 = vpop.f32.mrf.mxu0
    %v2542 = vadd.f32 0.0, %v2541
    %v2543 = vpop.f32.mrf.mxu0
    %v2544 = vadd.f32 0.0, %v2543
    %v2545 = vpop.f32.mrf.mxu0
    %v2546 = vadd.f32 0.0, %v2545
    %v2547 = vpop.f32.mrf.mxu0
    %v2548 = vadd.f32 0.0, %v2547
    %2549 = vmatprep.mubr.bf16.mxu0 0
    %2550 = vmatmul.mubr.bf16.gmra.mxu0 %v2141
    %v2551 = vpop.f32.mrf.mxu0
    %v2552 = vadd.f32 0.0, %v2551
    %v2553 = vpop.f32.mrf.mxu0
    %v2554 = vadd.f32 0.0, %v2553
    %v2555 = vpop.f32.mrf.mxu0
    %v2556 = vadd.f32 0.0, %v2555
    %v2557 = vpop.f32.mrf.mxu0
    %v2558 = vadd.f32 0.0, %v2557
    %2559 = vmatprep.mubr.bf16.mxu0 0
    %2560 = vmatmul.mubr.bf16.gmra.mxu0 %v2144
    %v2561 = vpop.f32.mrf.mxu0
    %v2562 = vadd.f32 0.0, %v2561
    %v2563 = vpop.f32.mrf.mxu0
    %v2564 = vadd.f32 0.0, %v2563
    %v2565 = vpop.f32.mrf.mxu0
    %v2566 = vadd.f32 0.0, %v2565
    %v2567 = vpop.f32.mrf.mxu0
    %v2568 = vadd.f32 0.0, %v2567
    %2569 = vmatprep.mubr.bf16.mxu0 0
    %2570 = vmatmul.mubr.bf16.gmra.mxu0 %v2147
    %v2571 = vpop.f32.mrf.mxu0
    %v2572 = vadd.f32 0.0, %v2571
    %v2573 = vpop.f32.mrf.mxu0
    %v2574 = vadd.f32 0.0, %v2573
    %v2575 = vpop.f32.mrf.mxu0
    %v2576 = vadd.f32 0.0, %v2575
    %v2577 = vpop.f32.mrf.mxu0
    %v2578 = vadd.f32 0.0, %v2577
    %2579 = vmatprep.mubr.bf16.mxu0 0
    %2580 = vmatmul.mubr.bf16.gmra.mxu0 %v2150
    %v2581 = vpop.f32.mrf.mxu0
    %v2582 = vadd.f32 0.0, %v2581
    %v2583 = vpop.f32.mrf.mxu0
    %v2584 = vadd.f32 0.0, %v2583
    %v2585 = vpop.f32.mrf.mxu0
    %v2586 = vadd.f32 0.0, %v2585
    %v2587 = vpop.f32.mrf.mxu0
    %v2588 = vadd.f32 0.0, %v2587
    %2589 = vmatprep.mubr.bf16.mxu0 0
    %2590 = vmatmul.mubr.bf16.gmra.mxu0 %v2153
    %v2591 = vpop.f32.mrf.mxu0
    %v2592 = vadd.f32 0.0, %v2591
    %v2593 = vpop.f32.mrf.mxu0
    %v2594 = vadd.f32 0.0, %v2593
    %v2595 = vpop.f32.mrf.mxu0
    %v2596 = vadd.f32 0.0, %v2595
    %v2597 = vpop.f32.mrf.mxu0
    %v2598 = vadd.f32 0.0, %v2597
    %2599 = vmatprep.mubr.bf16.mxu0 0
    %2600 = vmatmul.mubr.bf16.gmra.mxu0 %v2156
    %v2601 = vpop.f32.mrf.mxu0
    %v2602 = vadd.f32 0.0, %v2601
    %v2603 = vpop.f32.mrf.mxu0
    %v2604 = vadd.f32 0.0, %v2603
    %v2605 = vpop.f32.mrf.mxu0
    %v2606 = vadd.f32 0.0, %v2605
    %v2607 = vpop.f32.mrf.mxu0
    %v2608 = vadd.f32 0.0, %v2607
    %2609 = vdwg.mxu0
    %2610 = vmatprep.subr.bf16.mxu0 0
    %2611 = vmatpush1.bf16.msra.mxu0 0
    %2612 = vmatprep.subr.bf16.mxu0 0
    %2613 = vmatpush1.bf16.msra.mxu0 0
    %2614 = vmatprep.subr.bf16.mxu0 0
    %2615 = vmatpush1.bf16.msra.mxu0 0
    %2616 = vmatprep.subr.bf16.mxu0 0
    %2617 = vmatpush1.bf16.msra.mxu0 0
    %2618 = vmatprep.subr.bf16.mxu0 %v2018
    %2619 = vmatpush1.bf16.msra.mxu0 %v2017
    %2620 = vmatprep.subr.bf16.mxu0 %v1993
    %2621 = vmatpush1.bf16.msra.mxu0 %v1992
    %2622 = vmatprep.subr.bf16.mxu0 %v1968
    %2623 = vmatpush1.bf16.msra.mxu0 %v1967
    %2624 = vmatprep.subr.bf16.mxu0 %v1943
    %2625 = vmatpush1.bf16.msra.mxu0 %v1942
    %2626 = vmatprep.subr.bf16.mxu0 0
    %2627 = vmatpush2.bf16.msra.mxu0 0
    %2628 = vmatprep.subr.bf16.mxu0 0
    %2629 = vmatpush2.bf16.msra.mxu0 0
    %2630 = vmatprep.subr.bf16.mxu0 0
    %2631 = vmatpush2.bf16.msra.mxu0 0
    %2632 = vmatprep.subr.bf16.mxu0 0
    %2633 = vmatpush2.bf16.msra.mxu0 0
    %2634 = vmatprep.subr.bf16.mxu0 0
    %2635 = vmatpush2.bf16.msra.mxu0 0
    %2636 = vmatprep.subr.bf16.mxu0 0
    %2637 = vmatpush2.bf16.msra.mxu0 0
    %2638 = vmatprep.subr.bf16.mxu0 0
    %2639 = vmatpush2.bf16.msra.mxu0 0
    %2640 = vmatprep.subr.bf16.mxu0 0
    %2641 = vmatpush2.bf16.msra.mxu0 0
    %2642 = vmatprep.mubr.bf16.mxu0 0
    %2643 = vmatmul.mubr.bf16.gmra.mxu0 %v2135
    %v2644 = vpop.f32.mrf.mxu0
    %v2645 = vadd.f32 0.0, %v2644
    %v2646 = vpop.f32.mrf.mxu0
    %v2647 = vadd.f32 0.0, %v2646
    %v2648 = vpop.f32.mrf.mxu0
    %v2649 = vadd.f32 0.0, %v2648
    %v2650 = vpop.f32.mrf.mxu0
    %v2651 = vadd.f32 0.0, %v2650
    %2652 = vmatprep.mubr.bf16.mxu0 0
    %2653 = vmatmul.mubr.bf16.gmra.mxu0 %v2138
    %v2654 = vpop.f32.mrf.mxu0
    %v2655 = vadd.f32 0.0, %v2654
    %v2656 = vpop.f32.mrf.mxu0
    %v2657 = vadd.f32 0.0, %v2656
    %v2658 = vpop.f32.mrf.mxu0
    %v2659 = vadd.f32 0.0, %v2658
    %v2660 = vpop.f32.mrf.mxu0
    %v2661 = vadd.f32 0.0, %v2660
    %2662 = vmatprep.mubr.bf16.mxu0 0
    %2663 = vmatmul.mubr.bf16.gmra.mxu0 %v2141
    %v2664 = vpop.f32.mrf.mxu0
    %v2665 = vadd.f32 0.0, %v2664
    %v2666 = vpop.f32.mrf.mxu0
    %v2667 = vadd.f32 0.0, %v2666
    %v2668 = vpop.f32.mrf.mxu0
    %v2669 = vadd.f32 0.0, %v2668
    %v2670 = vpop.f32.mrf.mxu0
    %v2671 = vadd.f32 0.0, %v2670
    %2672 = vmatprep.mubr.bf16.mxu0 0
    %2673 = vmatmul.mubr.bf16.gmra.mxu0 %v2144
    %v2674 = vpop.f32.mrf.mxu0
    %v2675 = vadd.f32 0.0, %v2674
    %v2676 = vpop.f32.mrf.mxu0
    %v2677 = vadd.f32 0.0, %v2676
    %v2678 = vpop.f32.mrf.mxu0
    %v2679 = vadd.f32 0.0, %v2678
    %v2680 = vpop.f32.mrf.mxu0
    %v2681 = vadd.f32 0.0, %v2680
    %2682 = vmatprep.mubr.bf16.mxu0 0
    %2683 = vmatmul.mubr.bf16.gmra.mxu0 %v2147
    %v2684 = vpop.f32.mrf.mxu0
    %v2685 = vadd.f32 0.0, %v2684
    %v2686 = vpop.f32.mrf.mxu0
    %v2687 = vadd.f32 0.0, %v2686
    %v2688 = vpop.f32.mrf.mxu0
    %v2689 = vadd.f32 0.0, %v2688
    %v2690 = vpop.f32.mrf.mxu0
    %v2691 = vadd.f32 0.0, %v2690
    %2692 = vmatprep.mubr.bf16.mxu0 0
    %2693 = vmatmul.mubr.bf16.gmra.mxu0 %v2150
    %v2694 = vpop.f32.mrf.mxu0
    %v2695 = vadd.f32 0.0, %v2694
    %v2696 = vpop.f32.mrf.mxu0
    %v2697 = vadd.f32 0.0, %v2696
    %v2698 = vpop.f32.mrf.mxu0
    %v2699 = vadd.f32 0.0, %v2698
    %v2700 = vpop.f32.mrf.mxu0
    %v2701 = vadd.f32 0.0, %v2700
    %2702 = vmatprep.mubr.bf16.mxu0 0
    %2703 = vmatmul.mubr.bf16.gmra.mxu0 %v2153
    %v2704 = vpop.f32.mrf.mxu0
    %v2705 = vadd.f32 0.0, %v2704
    %v2706 = vpop.f32.mrf.mxu0
    %v2707 = vadd.f32 0.0, %v2706
    %v2708 = vpop.f32.mrf.mxu0
    %v2709 = vadd.f32 0.0, %v2708
    %v2710 = vpop.f32.mrf.mxu0
    %v2711 = vadd.f32 0.0, %v2710
    %2712 = vmatprep.mubr.bf16.mxu0 0
    %2713 = vmatmul.mubr.bf16.gmra.mxu0 %v2156
    %v2714 = vpop.f32.mrf.mxu0
    %v2715 = vadd.f32 0.0, %v2714
    %v2716 = vpop.f32.mrf.mxu0
    %v2717 = vadd.f32 0.0, %v2716
    %v2718 = vpop.f32.mrf.mxu0
    %v2719 = vadd.f32 0.0, %v2718
    %v2720 = vpop.f32.mrf.mxu0
    %v2721 = vadd.f32 0.0, %v2720
    %2722 = vdwg.mxu0
    %2723 = vmatprep.subr.bf16.mxu0 0
    %2724 = vmatpush1.bf16.msra.mxu0 0
    %2725 = vmatprep.subr.bf16.mxu0 0
    %2726 = vmatpush1.bf16.msra.mxu0 0
    %2727 = vmatprep.subr.bf16.mxu0 0
    %2728 = vmatpush1.bf16.msra.mxu0 0
    %2729 = vmatprep.subr.bf16.mxu0 0
    %2730 = vmatpush1.bf16.msra.mxu0 0
    %2731 = vmatprep.subr.bf16.mxu0 %v2020
    %2732 = vmatpush1.bf16.msra.mxu0 %v2019
    %2733 = vmatprep.subr.bf16.mxu0 %v1995
    %2734 = vmatpush1.bf16.msra.mxu0 %v1994
    %2735 = vmatprep.subr.bf16.mxu0 %v1970
    %2736 = vmatpush1.bf16.msra.mxu0 %v1969
    %2737 = vmatprep.subr.bf16.mxu0 %v1945
    %2738 = vmatpush1.bf16.msra.mxu0 %v1944
    %2739 = vmatprep.subr.bf16.mxu0 0
    %2740 = vmatpush2.bf16.msra.mxu0 0
    %2741 = vmatprep.subr.bf16.mxu0 0
    %2742 = vmatpush2.bf16.msra.mxu0 0
    %2743 = vmatprep.subr.bf16.mxu0 0
    %2744 = vmatpush2.bf16.msra.mxu0 0
    %2745 = vmatprep.subr.bf16.mxu0 0
    %2746 = vmatpush2.bf16.msra.mxu0 0
    %2747 = vmatprep.subr.bf16.mxu0 0
    %2748 = vmatpush2.bf16.msra.mxu0 0
    %2749 = vmatprep.subr.bf16.mxu0 0
    %2750 = vmatpush2.bf16.msra.mxu0 0
    %2751 = vmatprep.subr.bf16.mxu0 0
    %2752 = vmatpush2.bf16.msra.mxu0 0
    %2753 = vmatprep.subr.bf16.mxu0 0
    %2754 = vmatpush2.bf16.msra.mxu0 0
    %2755 = vmatprep.mubr.bf16.mxu0 0
    %2756 = vmatmul.mubr.bf16.gmra.mxu0 %v2135
    %v2757 = vpop.f32.mrf.mxu0
    %v2758 = vadd.f32 0.0, %v2757
    %v2759 = vpop.f32.mrf.mxu0
    %v2760 = vadd.f32 0.0, %v2759
    %v2761 = vpop.f32.mrf.mxu0
    %v2762 = vadd.f32 0.0, %v2761
    %v2763 = vpop.f32.mrf.mxu0
    %v2764 = vadd.f32 0.0, %v2763
    %2765 = vmatprep.mubr.bf16.mxu0 0
    %2766 = vmatmul.mubr.bf16.gmra.mxu0 %v2138
    %v2767 = vpop.f32.mrf.mxu0
    %v2768 = vadd.f32 0.0, %v2767
    %v2769 = vpop.f32.mrf.mxu0
    %v2770 = vadd.f32 0.0, %v2769
    %v2771 = vpop.f32.mrf.mxu0
    %v2772 = vadd.f32 0.0, %v2771
    %v2773 = vpop.f32.mrf.mxu0
    %v2774 = vadd.f32 0.0, %v2773
    %2775 = vmatprep.mubr.bf16.mxu0 0
    %2776 = vmatmul.mubr.bf16.gmra.mxu0 %v2141
    %v2777 = vpop.f32.mrf.mxu0
    %v2778 = vadd.f32 0.0, %v2777
    %v2779 = vpop.f32.mrf.mxu0
    %v2780 = vadd.f32 0.0, %v2779
    %v2781 = vpop.f32.mrf.mxu0
    %v2782 = vadd.f32 0.0, %v2781
    %v2783 = vpop.f32.mrf.mxu0
    %v2784 = vadd.f32 0.0, %v2783
    %2785 = vmatprep.mubr.bf16.mxu0 0
    %2786 = vmatmul.mubr.bf16.gmra.mxu0 %v2144
    %v2787 = vpop.f32.mrf.mxu0
    %v2788 = vadd.f32 0.0, %v2787
    %v2789 = vpop.f32.mrf.mxu0
    %v2790 = vadd.f32 0.0, %v2789
    %v2791 = vpop.f32.mrf.mxu0
    %v2792 = vadd.f32 0.0, %v2791
    %v2793 = vpop.f32.mrf.mxu0
    %v2794 = vadd.f32 0.0, %v2793
    %2795 = vmatprep.mubr.bf16.mxu0 0
    %2796 = vmatmul.mubr.bf16.gmra.mxu0 %v2147
    %v2797 = vpop.f32.mrf.mxu0
    %v2798 = vadd.f32 0.0, %v2797
    %v2799 = vpop.f32.mrf.mxu0
    %v2800 = vadd.f32 0.0, %v2799
    %v2801 = vpop.f32.mrf.mxu0
    %v2802 = vadd.f32 0.0, %v2801
    %v2803 = vpop.f32.mrf.mxu0
    %v2804 = vadd.f32 0.0, %v2803
    %2805 = vmatprep.mubr.bf16.mxu0 0
    %2806 = vmatmul.mubr.bf16.gmra.mxu0 %v2150
    %v2807 = vpop.f32.mrf.mxu0
    %v2808 = vadd.f32 0.0, %v2807
    %v2809 = vpop.f32.mrf.mxu0
    %v2810 = vadd.f32 0.0, %v2809
    %v2811 = vpop.f32.mrf.mxu0
    %v2812 = vadd.f32 0.0, %v2811
    %v2813 = vpop.f32.mrf.mxu0
    %v2814 = vadd.f32 0.0, %v2813
    %2815 = vmatprep.mubr.bf16.mxu0 0
    %2816 = vmatmul.mubr.bf16.gmra.mxu0 %v2153
    %v2817 = vpop.f32.mrf.mxu0
    %v2818 = vadd.f32 0.0, %v2817
    %v2819 = vpop.f32.mrf.mxu0
    %v2820 = vadd.f32 0.0, %v2819
    %v2821 = vpop.f32.mrf.mxu0
    %v2822 = vadd.f32 0.0, %v2821
    %v2823 = vpop.f32.mrf.mxu0
    %v2824 = vadd.f32 0.0, %v2823
    %2825 = vmatprep.mubr.bf16.mxu0 0
    %2826 = vmatmul.mubr.bf16.gmra.mxu0 %v2156
    %v2827 = vpop.f32.mrf.mxu0
    %v2828 = vadd.f32 0.0, %v2827
    %v2829 = vpop.f32.mrf.mxu0
    %v2830 = vadd.f32 0.0, %v2829
    %v2831 = vpop.f32.mrf.mxu0
    %v2832 = vadd.f32 0.0, %v2831
    %v2833 = vpop.f32.mrf.mxu0
    %v2834 = vadd.f32 0.0, %v2833
    %2835 = vdwg.mxu0
    %2836 = vmatprep.subr.bf16.mxu0 0
    %2837 = vmatpush1.bf16.msra.mxu0 0
    %2838 = vmatprep.subr.bf16.mxu0 0
    %2839 = vmatpush1.bf16.msra.mxu0 0
    %2840 = vmatprep.subr.bf16.mxu0 0
    %2841 = vmatpush1.bf16.msra.mxu0 0
    %2842 = vmatprep.subr.bf16.mxu0 0
    %2843 = vmatpush1.bf16.msra.mxu0 0
    %2844 = vmatprep.subr.bf16.mxu0 %v2022
    %2845 = vmatpush1.bf16.msra.mxu0 %v2021
    %2846 = vmatprep.subr.bf16.mxu0 %v1997
    %2847 = vmatpush1.bf16.msra.mxu0 %v1996
    %2848 = vmatprep.subr.bf16.mxu0 %v1972
    %2849 = vmatpush1.bf16.msra.mxu0 %v1971
    %2850 = vmatprep.subr.bf16.mxu0 %v1947
    %2851 = vmatpush1.bf16.msra.mxu0 %v1946
    %2852 = vmatprep.subr.bf16.mxu0 0
    %2853 = vmatpush2.bf16.msra.mxu0 0
    %2854 = vmatprep.subr.bf16.mxu0 0
    %2855 = vmatpush2.bf16.msra.mxu0 0
    %2856 = vmatprep.subr.bf16.mxu0 0
    %2857 = vmatpush2.bf16.msra.mxu0 0
    %2858 = vmatprep.subr.bf16.mxu0 0
    %2859 = vmatpush2.bf16.msra.mxu0 0
    %2860 = vmatprep.subr.bf16.mxu0 0
    %2861 = vmatpush2.bf16.msra.mxu0 0
    %2862 = vmatprep.subr.bf16.mxu0 0
    %2863 = vmatpush2.bf16.msra.mxu0 0
    %2864 = vmatprep.subr.bf16.mxu0 0
    %2865 = vmatpush2.bf16.msra.mxu0 0
    %2866 = vmatprep.subr.bf16.mxu0 0
    %2867 = vmatpush2.bf16.msra.mxu0 0
    %2868 = vmatprep.mubr.bf16.mxu0 0
    %2869 = vmatmul.mubr.bf16.gmra.mxu0 %v2135
    %v2870 = vpop.f32.mrf.mxu0
    %v2871 = vadd.f32 0.0, %v2870
    %v2872 = vpop.f32.mrf.mxu0
    %v2873 = vadd.f32 0.0, %v2872
    %v2874 = vpop.f32.mrf.mxu0
    %v2875 = vadd.f32 0.0, %v2874
    %v2876 = vpop.f32.mrf.mxu0
    %v2877 = vadd.f32 0.0, %v2876
    %2878 = vmatprep.mubr.bf16.mxu0 0
    %2879 = vmatmul.mubr.bf16.gmra.mxu0 %v2138
    %v2880 = vpop.f32.mrf.mxu0
    %v2881 = vadd.f32 0.0, %v2880
    %v2882 = vpop.f32.mrf.mxu0
    %v2883 = vadd.f32 0.0, %v2882
    %v2884 = vpop.f32.mrf.mxu0
    %v2885 = vadd.f32 0.0, %v2884
    %v2886 = vpop.f32.mrf.mxu0
    %v2887 = vadd.f32 0.0, %v2886
    %2888 = vmatprep.mubr.bf16.mxu0 0
    %2889 = vmatmul.mubr.bf16.gmra.mxu0 %v2141
    %v2890 = vpop.f32.mrf.mxu0
    %v2891 = vadd.f32 0.0, %v2890
    %v2892 = vpop.f32.mrf.mxu0
    %v2893 = vadd.f32 0.0, %v2892
    %v2894 = vpop.f32.mrf.mxu0
    %v2895 = vadd.f32 0.0, %v2894
    %v2896 = vpop.f32.mrf.mxu0
    %v2897 = vadd.f32 0.0, %v2896
    %2898 = vmatprep.mubr.bf16.mxu0 0
    %2899 = vmatmul.mubr.bf16.gmra.mxu0 %v2144
    %v2900 = vpop.f32.mrf.mxu0
    %v2901 = vadd.f32 0.0, %v2900
    %v2902 = vpop.f32.mrf.mxu0
    %v2903 = vadd.f32 0.0, %v2902
    %v2904 = vpop.f32.mrf.mxu0
    %v2905 = vadd.f32 0.0, %v2904
    %v2906 = vpop.f32.mrf.mxu0
    %v2907 = vadd.f32 0.0, %v2906
    %2908 = vmatprep.mubr.bf16.mxu0 0
    %2909 = vmatmul.mubr.bf16.gmra.mxu0 %v2147
    %v2910 = vpop.f32.mrf.mxu0
    %v2911 = vadd.f32 0.0, %v2910
    %v2912 = vpop.f32.mrf.mxu0
    %v2913 = vadd.f32 0.0, %v2912
    %v2914 = vpop.f32.mrf.mxu0
    %v2915 = vadd.f32 0.0, %v2914
    %v2916 = vpop.f32.mrf.mxu0
    %v2917 = vadd.f32 0.0, %v2916
    %2918 = vmatprep.mubr.bf16.mxu0 0
    %2919 = vmatmul.mubr.bf16.gmra.mxu0 %v2150
    %v2920 = vpop.f32.mrf.mxu0
    %v2921 = vadd.f32 0.0, %v2920
    %v2922 = vpop.f32.mrf.mxu0
    %v2923 = vadd.f32 0.0, %v2922
    %v2924 = vpop.f32.mrf.mxu0
    %v2925 = vadd.f32 0.0, %v2924
    %v2926 = vpop.f32.mrf.mxu0
    %v2927 = vadd.f32 0.0, %v2926
    %2928 = vmatprep.mubr.bf16.mxu0 0
    %2929 = vmatmul.mubr.bf16.gmra.mxu0 %v2153
    %v2930 = vpop.f32.mrf.mxu0
    %v2931 = vadd.f32 0.0, %v2930
    %v2932 = vpop.f32.mrf.mxu0
    %v2933 = vadd.f32 0.0, %v2932
    %v2934 = vpop.f32.mrf.mxu0
    %v2935 = vadd.f32 0.0, %v2934
    %v2936 = vpop.f32.mrf.mxu0
    %v2937 = vadd.f32 0.0, %v2936
    %2938 = vmatprep.mubr.bf16.mxu0 0
    %2939 = vmatmul.mubr.bf16.gmra.mxu0 %v2156
    %v2940 = vpop.f32.mrf.mxu0
    %v2941 = vadd.f32 0.0, %v2940
    %v2942 = vpop.f32.mrf.mxu0
    %v2943 = vadd.f32 0.0, %v2942
    %v2944 = vpop.f32.mrf.mxu0
    %v2945 = vadd.f32 0.0, %v2944
    %v2946 = vpop.f32.mrf.mxu0
    %v2947 = vadd.f32 0.0, %v2946
    %2948 = vdwg.mxu0
    %2949 = vmatprep.subr.bf16.mxu0 0
    %2950 = vmatpush1.bf16.msra.mxu0 0
    %2951 = vmatprep.subr.bf16.mxu0 0
    %2952 = vmatpush1.bf16.msra.mxu0 0
    %2953 = vmatprep.subr.bf16.mxu0 0
    %2954 = vmatpush1.bf16.msra.mxu0 0
    %2955 = vmatprep.subr.bf16.mxu0 0
    %2956 = vmatpush1.bf16.msra.mxu0 0
    %2957 = vmatprep.subr.bf16.mxu0 %v2024
    %2958 = vmatpush1.bf16.msra.mxu0 %v2023
    %2959 = vmatprep.subr.bf16.mxu0 %v1999
    %2960 = vmatpush1.bf16.msra.mxu0 %v1998
    %2961 = vmatprep.subr.bf16.mxu0 %v1974
    %2962 = vmatpush1.bf16.msra.mxu0 %v1973
    %2963 = vmatprep.subr.bf16.mxu0 %v1949
    %2964 = vmatpush1.bf16.msra.mxu0 %v1948
    %2965 = vmatprep.subr.bf16.mxu0 0
    %2966 = vmatpush2.bf16.msra.mxu0 0
    %2967 = vmatprep.subr.bf16.mxu0 0
    %2968 = vmatpush2.bf16.msra.mxu0 0
    %2969 = vmatprep.subr.bf16.mxu0 0
    %2970 = vmatpush2.bf16.msra.mxu0 0
    %2971 = vmatprep.subr.bf16.mxu0 0
    %2972 = vmatpush2.bf16.msra.mxu0 0
    %2973 = vmatprep.subr.bf16.mxu0 0
    %2974 = vmatpush2.bf16.msra.mxu0 0
    %2975 = vmatprep.subr.bf16.mxu0 0
    %2976 = vmatpush2.bf16.msra.mxu0 0
    %2977 = vmatprep.subr.bf16.mxu0 0
    %2978 = vmatpush2.bf16.msra.mxu0 0
    %2979 = vmatprep.subr.bf16.mxu0 0
    %2980 = vmatpush2.bf16.msra.mxu0 0
    %2981 = vmatprep.mubr.bf16.mxu0 0
    %2982 = vmatmul.mubr.bf16.gmra.mxu0 %v2135
    %v2983 = vpop.f32.mrf.mxu0
    %v2984 = vadd.f32 0.0, %v2983
    %v2985 = vpop.f32.mrf.mxu0
    %v2986 = vadd.f32 0.0, %v2985
    %v2987 = vpop.f32.mrf.mxu0
    %v2988 = vadd.f32 0.0, %v2987
    %v2989 = vpop.f32.mrf.mxu0
    %v2990 = vadd.f32 0.0, %v2989
    %2991 = vmatprep.mubr.bf16.mxu0 0
    %2992 = vmatmul.mubr.bf16.gmra.mxu0 %v2138
    %v2993 = vpop.f32.mrf.mxu0
    %v2994 = vadd.f32 0.0, %v2993
    %v2995 = vpop.f32.mrf.mxu0
    %v2996 = vadd.f32 0.0, %v2995
    %v2997 = vpop.f32.mrf.mxu0
    %v2998 = vadd.f32 0.0, %v2997
    %v2999 = vpop.f32.mrf.mxu0
    %v3000 = vadd.f32 0.0, %v2999
    %3001 = vmatprep.mubr.bf16.mxu0 0
    %3002 = vmatmul.mubr.bf16.gmra.mxu0 %v2141
    %v3003 = vpop.f32.mrf.mxu0
    %v3004 = vadd.f32 0.0, %v3003
    %v3005 = vpop.f32.mrf.mxu0
    %v3006 = vadd.f32 0.0, %v3005
    %v3007 = vpop.f32.mrf.mxu0
    %v3008 = vadd.f32 0.0, %v3007
    %v3009 = vpop.f32.mrf.mxu0
    %v3010 = vadd.f32 0.0, %v3009
    %3011 = vmatprep.mubr.bf16.mxu0 0
    %3012 = vmatmul.mubr.bf16.gmra.mxu0 %v2144
    %v3013 = vpop.f32.mrf.mxu0
    %v3014 = vadd.f32 0.0, %v3013
    %v3015 = vpop.f32.mrf.mxu0
    %v3016 = vadd.f32 0.0, %v3015
    %v3017 = vpop.f32.mrf.mxu0
    %v3018 = vadd.f32 0.0, %v3017
    %v3019 = vpop.f32.mrf.mxu0
    %v3020 = vadd.f32 0.0, %v3019
    %3021 = vmatprep.mubr.bf16.mxu0 0
    %3022 = vmatmul.mubr.bf16.gmra.mxu0 %v2147
    %v3023 = vpop.f32.mrf.mxu0
    %v3024 = vadd.f32 0.0, %v3023
    %v3025 = vpop.f32.mrf.mxu0
    %v3026 = vadd.f32 0.0, %v3025
    %v3027 = vpop.f32.mrf.mxu0
    %v3028 = vadd.f32 0.0, %v3027
    %v3029 = vpop.f32.mrf.mxu0
    %v3030 = vadd.f32 0.0, %v3029
    %3031 = vmatprep.mubr.bf16.mxu0 0
    %3032 = vmatmul.mubr.bf16.gmra.mxu0 %v2150
    %v3033 = vpop.f32.mrf.mxu0
    %v3034 = vadd.f32 0.0, %v3033
    %v3035 = vpop.f32.mrf.mxu0
    %v3036 = vadd.f32 0.0, %v3035
    %v3037 = vpop.f32.mrf.mxu0
    %v3038 = vadd.f32 0.0, %v3037
    %v3039 = vpop.f32.mrf.mxu0
    %v3040 = vadd.f32 0.0, %v3039
    %3041 = vmatprep.mubr.bf16.mxu0 0
    %3042 = vmatmul.mubr.bf16.gmra.mxu0 %v2153
    %v3043 = vpop.f32.mrf.mxu0
    %v3044 = vadd.f32 0.0, %v3043
    %v3045 = vpop.f32.mrf.mxu0
    %v3046 = vadd.f32 0.0, %v3045
    %v3047 = vpop.f32.mrf.mxu0
    %v3048 = vadd.f32 0.0, %v3047
    %v3049 = vpop.f32.mrf.mxu0
    %v3050 = vadd.f32 0.0, %v3049
    %3051 = vmatprep.mubr.bf16.mxu0 0
    %3052 = vmatmul.mubr.bf16.gmra.mxu0 %v2156
    %v3053 = vpop.f32.mrf.mxu0
    %v3054 = vadd.f32 0.0, %v3053
    %v3055 = vpop.f32.mrf.mxu0
    %v3056 = vadd.f32 0.0, %v3055
    %v3057 = vpop.f32.mrf.mxu0
    %v3058 = vadd.f32 0.0, %v3057
    %v3059 = vpop.f32.mrf.mxu0
    %v3060 = vadd.f32 0.0, %v3059
    %3061 = vdwg.mxu0
    %3062 = vmatprep.subr.bf16.mxu0 0
    %3063 = vmatpush1.bf16.msra.mxu0 0
    %3064 = vmatprep.subr.bf16.mxu0 0
    %3065 = vmatpush1.bf16.msra.mxu0 0
    %3066 = vmatprep.subr.bf16.mxu0 0
    %3067 = vmatpush1.bf16.msra.mxu0 0
    %3068 = vmatprep.subr.bf16.mxu0 0
    %3069 = vmatpush1.bf16.msra.mxu0 0
    %3070 = vmatprep.subr.bf16.mxu0 %v2026
    %3071 = vmatpush1.bf16.msra.mxu0 %v2025
    %3072 = vmatprep.subr.bf16.mxu0 %v2001
    %3073 = vmatpush1.bf16.msra.mxu0 %v2000
    %3074 = vmatprep.subr.bf16.mxu0 %v1976
    %3075 = vmatpush1.bf16.msra.mxu0 %v1975
    %3076 = vmatprep.subr.bf16.mxu0 %v1951
    %3077 = vmatpush1.bf16.msra.mxu0 %v1950
    %3078 = vmatprep.subr.bf16.mxu0 0
    %3079 = vmatpush2.bf16.msra.mxu0 0
    %3080 = vmatprep.subr.bf16.mxu0 0
    %3081 = vmatpush2.bf16.msra.mxu0 0
    %3082 = vmatprep.subr.bf16.mxu0 0
    %3083 = vmatpush2.bf16.msra.mxu0 0
    %3084 = vmatprep.subr.bf16.mxu0 0
    %3085 = vmatpush2.bf16.msra.mxu0 0
    %3086 = vmatprep.subr.bf16.mxu0 0
    %3087 = vmatpush2.bf16.msra.mxu0 0
    %3088 = vmatprep.subr.bf16.mxu0 0
    %3089 = vmatpush2.bf16.msra.mxu0 0
    %3090 = vmatprep.subr.bf16.mxu0 0
    %3091 = vmatpush2.bf16.msra.mxu0 0
    %3092 = vmatprep.subr.bf16.mxu0 0
    %3093 = vmatpush2.bf16.msra.mxu0 0
    %3094 = vmatprep.mubr.bf16.mxu0 0
    %3095 = vmatmul.mubr.bf16.gmra.mxu0 %v2135
    %v3096 = vpop.f32.mrf.mxu0
    %v3097 = vadd.f32 0.0, %v3096
    %v3098 = vpop.f32.mrf.mxu0
    %v3099 = vadd.f32 0.0, %v3098
    %v3100 = vpop.f32.mrf.mxu0
    %v3101 = vadd.f32 0.0, %v3100
    %v3102 = vpop.f32.mrf.mxu0
    %v3103 = vadd.f32 0.0, %v3102
    %3104 = vmatprep.mubr.bf16.mxu0 0
    %3105 = vmatmul.mubr.bf16.gmra.mxu0 %v2138
    %v3106 = vpop.f32.mrf.mxu0
    %v3107 = vadd.f32 0.0, %v3106
    %v3108 = vpop.f32.mrf.mxu0
    %v3109 = vadd.f32 0.0, %v3108
    %v3110 = vpop.f32.mrf.mxu0
    %v3111 = vadd.f32 0.0, %v3110
    %v3112 = vpop.f32.mrf.mxu0
    %v3113 = vadd.f32 0.0, %v3112
    %3114 = vmatprep.mubr.bf16.mxu0 0
    %3115 = vmatmul.mubr.bf16.gmra.mxu0 %v2141
    %v3116 = vpop.f32.mrf.mxu0
    %v3117 = vadd.f32 0.0, %v3116
    %v3118 = vpop.f32.mrf.mxu0
    %v3119 = vadd.f32 0.0, %v3118
    %v3120 = vpop.f32.mrf.mxu0
    %v3121 = vadd.f32 0.0, %v3120
    %v3122 = vpop.f32.mrf.mxu0
    %v3123 = vadd.f32 0.0, %v3122
    %3124 = vmatprep.mubr.bf16.mxu0 0
    %3125 = vmatmul.mubr.bf16.gmra.mxu0 %v2144
    %v3126 = vpop.f32.mrf.mxu0
    %v3127 = vadd.f32 0.0, %v3126
    %v3128 = vpop.f32.mrf.mxu0
    %v3129 = vadd.f32 0.0, %v3128
    %v3130 = vpop.f32.mrf.mxu0
    %v3131 = vadd.f32 0.0, %v3130
    %v3132 = vpop.f32.mrf.mxu0
    %v3133 = vadd.f32 0.0, %v3132
    %3134 = vmatprep.mubr.bf16.mxu0 0
    %3135 = vmatmul.mubr.bf16.gmra.mxu0 %v2147
    %v3136 = vpop.f32.mrf.mxu0
    %v3137 = vadd.f32 0.0, %v3136
    %v3138 = vpop.f32.mrf.mxu0
    %v3139 = vadd.f32 0.0, %v3138
    %v3140 = vpop.f32.mrf.mxu0
    %v3141 = vadd.f32 0.0, %v3140
    %v3142 = vpop.f32.mrf.mxu0
    %v3143 = vadd.f32 0.0, %v3142
    %3144 = vmatprep.mubr.bf16.mxu0 0
    %3145 = vmatmul.mubr.bf16.gmra.mxu0 %v2150
    %v3146 = vpop.f32.mrf.mxu0
    %v3147 = vadd.f32 0.0, %v3146
    %v3148 = vpop.f32.mrf.mxu0
    %v3149 = vadd.f32 0.0, %v3148
    %v3150 = vpop.f32.mrf.mxu0
    %v3151 = vadd.f32 0.0, %v3150
    %v3152 = vpop.f32.mrf.mxu0
    %v3153 = vadd.f32 0.0, %v3152
    %3154 = vmatprep.mubr.bf16.mxu0 0
    %3155 = vmatmul.mubr.bf16.gmra.mxu0 %v2153
    %v3156 = vpop.f32.mrf.mxu0
    %v3157 = vadd.f32 0.0, %v3156
    %v3158 = vpop.f32.mrf.mxu0
    %v3159 = vadd.f32 0.0, %v3158
    %v3160 = vpop.f32.mrf.mxu0
    %v3161 = vadd.f32 0.0, %v3160
    %v3162 = vpop.f32.mrf.mxu0
    %v3163 = vadd.f32 0.0, %v3162
    %3164 = vmatprep.mubr.bf16.mxu0 0
    %3165 = vmatmul.mubr.bf16.gmra.mxu0 %v2156
    %v3166 = vpop.f32.mrf.mxu0
    %v3167 = vadd.f32 0.0, %v3166
    %v3168 = vpop.f32.mrf.mxu0
    %v3169 = vadd.f32 0.0, %v3168
    %v3170 = vpop.f32.mrf.mxu0
    %v3171 = vadd.f32 0.0, %v3170
    %v3172 = vpop.f32.mrf.mxu0
    %v3173 = vadd.f32 0.0, %v3172
    %3174 = vdwg.mxu0
    %3175 = vmatprep.subr.bf16.mxu0 0
    %3176 = vmatpush1.bf16.msra.mxu0 0
    %3177 = vmatprep.subr.bf16.mxu0 0
    %3178 = vmatpush1.bf16.msra.mxu0 0
    %3179 = vmatprep.subr.bf16.mxu0 0
    %3180 = vmatpush1.bf16.msra.mxu0 0
    %3181 = vmatprep.subr.bf16.mxu0 0
    %3182 = vmatpush1.bf16.msra.mxu0 0
    %3183 = vmatprep.subr.bf16.mxu0 %v2028
    %3184 = vmatpush1.bf16.msra.mxu0 %v2027
    %3185 = vmatprep.subr.bf16.mxu0 %v2003
    %3186 = vmatpush1.bf16.msra.mxu0 %v2002
    %3187 = vmatprep.subr.bf16.mxu0 %v1978
    %3188 = vmatpush1.bf16.msra.mxu0 %v1977
    %3189 = vmatprep.subr.bf16.mxu0 %v1953
    %3190 = vmatpush1.bf16.msra.mxu0 %v1952
    %3191 = vmatprep.subr.bf16.mxu0 0
    %3192 = vmatpush2.bf16.msra.mxu0 0
    %3193 = vmatprep.subr.bf16.mxu0 0
    %3194 = vmatpush2.bf16.msra.mxu0 0
    %3195 = vmatprep.subr.bf16.mxu0 0
    %3196 = vmatpush2.bf16.msra.mxu0 0
    %3197 = vmatprep.subr.bf16.mxu0 0
    %3198 = vmatpush2.bf16.msra.mxu0 0
    %3199 = vmatprep.subr.bf16.mxu0 0
    %3200 = vmatpush2.bf16.msra.mxu0 0
    %3201 = vmatprep.subr.bf16.mxu0 0
    %3202 = vmatpush2.bf16.msra.mxu0 0
    %3203 = vmatprep.subr.bf16.mxu0 0
    %3204 = vmatpush2.bf16.msra.mxu0 0
    %3205 = vmatprep.subr.bf16.mxu0 0
    %3206 = vmatpush2.bf16.msra.mxu0 0
    %3207 = vmatprep.mubr.bf16.mxu0 0
    %3208 = vmatmul.mubr.bf16.gmra.mxu0 %v2135
    %v3209 = vpop.f32.mrf.mxu0
    %v3210 = vadd.f32 0.0, %v3209
    %v3211 = vpop.f32.mrf.mxu0
    %v3212 = vadd.f32 0.0, %v3211
    %v3213 = vpop.f32.mrf.mxu0
    %v3214 = vadd.f32 0.0, %v3213
    %v3215 = vpop.f32.mrf.mxu0
    %v3216 = vadd.f32 0.0, %v3215
    %3217 = vmatprep.mubr.bf16.mxu0 0
    %3218 = vmatmul.mubr.bf16.gmra.mxu0 %v2138
    %v3219 = vpop.f32.mrf.mxu0
    %v3220 = vadd.f32 0.0, %v3219
    %v3221 = vpop.f32.mrf.mxu0
    %v3222 = vadd.f32 0.0, %v3221
    %v3223 = vpop.f32.mrf.mxu0
    %v3224 = vadd.f32 0.0, %v3223
    %v3225 = vpop.f32.mrf.mxu0
    %v3226 = vadd.f32 0.0, %v3225
    %3227 = vmatprep.mubr.bf16.mxu0 0
    %3228 = vmatmul.mubr.bf16.gmra.mxu0 %v2141
    %v3229 = vpop.f32.mrf.mxu0
    %v3230 = vadd.f32 0.0, %v3229
    %v3231 = vpop.f32.mrf.mxu0
    %v3232 = vadd.f32 0.0, %v3231
    %v3233 = vpop.f32.mrf.mxu0
    %v3234 = vadd.f32 0.0, %v3233
    %v3235 = vpop.f32.mrf.mxu0
    %v3236 = vadd.f32 0.0, %v3235
    %3237 = vmatprep.mubr.bf16.mxu0 0
    %3238 = vmatmul.mubr.bf16.gmra.mxu0 %v2144
    %v3239 = vpop.f32.mrf.mxu0
    %v3240 = vadd.f32 0.0, %v3239
    %v3241 = vpop.f32.mrf.mxu0
    %v3242 = vadd.f32 0.0, %v3241
    %v3243 = vpop.f32.mrf.mxu0
    %v3244 = vadd.f32 0.0, %v3243
    %v3245 = vpop.f32.mrf.mxu0
    %v3246 = vadd.f32 0.0, %v3245
    %3247 = vmatprep.mubr.bf16.mxu0 0
    %3248 = vmatmul.mubr.bf16.gmra.mxu0 %v2147
    %v3249 = vpop.f32.mrf.mxu0
    %v3250 = vadd.f32 0.0, %v3249
    %v3251 = vpop.f32.mrf.mxu0
    %v3252 = vadd.f32 0.0, %v3251
    %v3253 = vpop.f32.mrf.mxu0
    %v3254 = vadd.f32 0.0, %v3253
    %v3255 = vpop.f32.mrf.mxu0
    %v3256 = vadd.f32 0.0, %v3255
    %3257 = vmatprep.mubr.bf16.mxu0 0
    %3258 = vmatmul.mubr.bf16.gmra.mxu0 %v2150
    %v3259 = vpop.f32.mrf.mxu0
    %v3260 = vadd.f32 0.0, %v3259
    %v3261 = vpop.f32.mrf.mxu0
    %v3262 = vadd.f32 0.0, %v3261
    %v3263 = vpop.f32.mrf.mxu0
    %v3264 = vadd.f32 0.0, %v3263
    %v3265 = vpop.f32.mrf.mxu0
    %v3266 = vadd.f32 0.0, %v3265
    %3267 = vmatprep.mubr.bf16.mxu0 0
    %3268 = vmatmul.mubr.bf16.gmra.mxu0 %v2153
    %v3269 = vpop.f32.mrf.mxu0
    %v3270 = vadd.f32 0.0, %v3269
    %v3271 = vpop.f32.mrf.mxu0
    %v3272 = vadd.f32 0.0, %v3271
    %v3273 = vpop.f32.mrf.mxu0
    %v3274 = vadd.f32 0.0, %v3273
    %v3275 = vpop.f32.mrf.mxu0
    %v3276 = vadd.f32 0.0, %v3275
    %3277 = vmatprep.mubr.bf16.mxu0 0
    %3278 = vmatmul.mubr.bf16.gmra.mxu0 %v2156
    %v3279 = vpop.f32.mrf.mxu0
    %v3280 = vadd.f32 0.0, %v3279
    %v3281 = vpop.f32.mrf.mxu0
    %v3282 = vadd.f32 0.0, %v3281
    %v3283 = vpop.f32.mrf.mxu0
    %v3284 = vadd.f32 0.0, %v3283
    %v3285 = vpop.f32.mrf.mxu0
    %v3286 = vadd.f32 0.0, %v3285
    %3287 = vdwg.mxu0
    %3288 = vmatprep.subr.bf16.mxu0 0
    %3289 = vmatpush1.bf16.msra.mxu0 0
    %3290 = vmatprep.subr.bf16.mxu0 0
    %3291 = vmatpush1.bf16.msra.mxu0 0
    %3292 = vmatprep.subr.bf16.mxu0 0
    %3293 = vmatpush1.bf16.msra.mxu0 0
    %3294 = vmatprep.subr.bf16.mxu0 0
    %3295 = vmatpush1.bf16.msra.mxu0 0
    %3296 = vmatprep.subr.bf16.mxu0 %v2030
    %3297 = vmatpush1.bf16.msra.mxu0 %v2029
    %3298 = vmatprep.subr.bf16.mxu0 %v2005
    %3299 = vmatpush1.bf16.msra.mxu0 %v2004
    %3300 = vmatprep.subr.bf16.mxu0 %v1980
    %3301 = vmatpush1.bf16.msra.mxu0 %v1979
    %3302 = vmatprep.subr.bf16.mxu0 %v1955
    %3303 = vmatpush1.bf16.msra.mxu0 %v1954
    %3304 = vmatprep.subr.bf16.mxu0 0
    %3305 = vmatpush2.bf16.msra.mxu0 0
    %3306 = vmatprep.subr.bf16.mxu0 0
    %3307 = vmatpush2.bf16.msra.mxu0 0
    %3308 = vmatprep.subr.bf16.mxu0 0
    %3309 = vmatpush2.bf16.msra.mxu0 0
    %3310 = vmatprep.subr.bf16.mxu0 0
    %3311 = vmatpush2.bf16.msra.mxu0 0
    %3312 = vmatprep.subr.bf16.mxu0 0
    %3313 = vmatpush2.bf16.msra.mxu0 0
    %3314 = vmatprep.subr.bf16.mxu0 0
    %3315 = vmatpush2.bf16.msra.mxu0 0
    %3316 = vmatprep.subr.bf16.mxu0 0
    %3317 = vmatpush2.bf16.msra.mxu0 0
    %3318 = vmatprep.subr.bf16.mxu0 0
    %3319 = vmatpush2.bf16.msra.mxu0 0
    %3320 = vmatprep.mubr.bf16.mxu0 0
    %3321 = vmatmul.mubr.bf16.gmra.mxu0 %v2135
    %v3322 = vpop.f32.mrf.mxu0
    %v3323 = vadd.f32 0.0, %v3322
    %v3324 = vpop.f32.mrf.mxu0
    %v3325 = vadd.f32 0.0, %v3324
    %v3326 = vpop.f32.mrf.mxu0
    %v3327 = vadd.f32 0.0, %v3326
    %v3328 = vpop.f32.mrf.mxu0
    %v3329 = vadd.f32 0.0, %v3328
    %3330 = vmatprep.mubr.bf16.mxu0 0
    %3331 = vmatmul.mubr.bf16.gmra.mxu0 %v2138
    %v3332 = vpop.f32.mrf.mxu0
    %v3333 = vadd.f32 0.0, %v3332
    %v3334 = vpop.f32.mrf.mxu0
    %v3335 = vadd.f32 0.0, %v3334
    %v3336 = vpop.f32.mrf.mxu0
    %v3337 = vadd.f32 0.0, %v3336
    %v3338 = vpop.f32.mrf.mxu0
    %v3339 = vadd.f32 0.0, %v3338
    %3340 = vmatprep.mubr.bf16.mxu0 0
    %3341 = vmatmul.mubr.bf16.gmra.mxu0 %v2141
    %v3342 = vpop.f32.mrf.mxu0
    %v3343 = vadd.f32 0.0, %v3342
    %v3344 = vpop.f32.mrf.mxu0
    %v3345 = vadd.f32 0.0, %v3344
    %v3346 = vpop.f32.mrf.mxu0
    %v3347 = vadd.f32 0.0, %v3346
    %v3348 = vpop.f32.mrf.mxu0
    %v3349 = vadd.f32 0.0, %v3348
    %3350 = vmatprep.mubr.bf16.mxu0 0
    %3351 = vmatmul.mubr.bf16.gmra.mxu0 %v2144
    %v3352 = vpop.f32.mrf.mxu0
    %v3353 = vadd.f32 0.0, %v3352
    %v3354 = vpop.f32.mrf.mxu0
    %v3355 = vadd.f32 0.0, %v3354
    %v3356 = vpop.f32.mrf.mxu0
    %v3357 = vadd.f32 0.0, %v3356
    %v3358 = vpop.f32.mrf.mxu0
    %v3359 = vadd.f32 0.0, %v3358
    %3360 = vmatprep.mubr.bf16.mxu0 0
    %3361 = vmatmul.mubr.bf16.gmra.mxu0 %v2147
    %v3362 = vpop.f32.mrf.mxu0
    %v3363 = vadd.f32 0.0, %v3362
    %v3364 = vpop.f32.mrf.mxu0
    %v3365 = vadd.f32 0.0, %v3364
    %v3366 = vpop.f32.mrf.mxu0
    %v3367 = vadd.f32 0.0, %v3366
    %v3368 = vpop.f32.mrf.mxu0
    %v3369 = vadd.f32 0.0, %v3368
    %3370 = vmatprep.mubr.bf16.mxu0 0
    %3371 = vmatmul.mubr.bf16.gmra.mxu0 %v2150
    %v3372 = vpop.f32.mrf.mxu0
    %v3373 = vadd.f32 0.0, %v3372
    %v3374 = vpop.f32.mrf.mxu0
    %v3375 = vadd.f32 0.0, %v3374
    %v3376 = vpop.f32.mrf.mxu0
    %v3377 = vadd.f32 0.0, %v3376
    %v3378 = vpop.f32.mrf.mxu0
    %v3379 = vadd.f32 0.0, %v3378
    %3380 = vmatprep.mubr.bf16.mxu0 0
    %3381 = vmatmul.mubr.bf16.gmra.mxu0 %v2153
    %v3382 = vpop.f32.mrf.mxu0
    %v3383 = vadd.f32 0.0, %v3382
    %v3384 = vpop.f32.mrf.mxu0
    %v3385 = vadd.f32 0.0, %v3384
    %v3386 = vpop.f32.mrf.mxu0
    %v3387 = vadd.f32 0.0, %v3386
    %v3388 = vpop.f32.mrf.mxu0
    %v3389 = vadd.f32 0.0, %v3388
    %3390 = vmatprep.mubr.bf16.mxu0 0
    %3391 = vmatmul.mubr.bf16.gmra.mxu0 %v2156
    %v3392 = vpop.f32.mrf.mxu0
    %v3393 = vadd.f32 0.0, %v3392
    %v3394 = vpop.f32.mrf.mxu0
    %v3395 = vadd.f32 0.0, %v3394
    %v3396 = vpop.f32.mrf.mxu0
    %v3397 = vadd.f32 0.0, %v3396
    %v3398 = vpop.f32.mrf.mxu0
    %v3399 = vadd.f32 0.0, %v3398
    %3400 = vdwg.mxu0
    %3401 = vmatprep.subr.bf16.mxu0 0
    %3402 = vmatpush1.bf16.msra.mxu0 0
    %3403 = vmatprep.subr.bf16.mxu0 0
    %3404 = vmatpush1.bf16.msra.mxu0 0
    %3405 = vmatprep.subr.bf16.mxu0 0
    %3406 = vmatpush1.bf16.msra.mxu0 0
    %3407 = vmatprep.subr.bf16.mxu0 0
    %3408 = vmatpush1.bf16.msra.mxu0 0
    %3409 = vmatprep.subr.bf16.mxu0 %v2032
    %3410 = vmatpush1.bf16.msra.mxu0 %v2031
    %3411 = vmatprep.subr.bf16.mxu0 %v2007
    %3412 = vmatpush1.bf16.msra.mxu0 %v2006
    %3413 = vmatprep.subr.bf16.mxu0 %v1982
    %3414 = vmatpush1.bf16.msra.mxu0 %v1981
    %3415 = vmatprep.subr.bf16.mxu0 %v1957
    %3416 = vmatpush1.bf16.msra.mxu0 %v1956
    %3417 = vmatprep.subr.bf16.mxu0 0
    %3418 = vmatpush2.bf16.msra.mxu0 0
    %3419 = vmatprep.subr.bf16.mxu0 0
    %3420 = vmatpush2.bf16.msra.mxu0 0
    %3421 = vmatprep.subr.bf16.mxu0 0
    %3422 = vmatpush2.bf16.msra.mxu0 0
    %3423 = vmatprep.subr.bf16.mxu0 0
    %3424 = vmatpush2.bf16.msra.mxu0 0
    %3425 = vmatprep.subr.bf16.mxu0 0
    %3426 = vmatpush2.bf16.msra.mxu0 0
    %3427 = vmatprep.subr.bf16.mxu0 0
    %3428 = vmatpush2.bf16.msra.mxu0 0
    %3429 = vmatprep.subr.bf16.mxu0 0
    %3430 = vmatpush2.bf16.msra.mxu0 0
    %3431 = vmatprep.subr.bf16.mxu0 0
    %3432 = vmatpush2.bf16.msra.mxu0 0
    %3433 = vmatprep.mubr.bf16.mxu0 0
    %3434 = vmatmul.mubr.bf16.gmra.mxu0 %v2135
    %v3435 = vpop.f32.mrf.mxu0
    %v3436 = vadd.f32 0.0, %v3435
    %v3437 = vpop.f32.mrf.mxu0
    %v3438 = vadd.f32 0.0, %v3437
    %v3439 = vpop.f32.mrf.mxu0
    %v3440 = vadd.f32 0.0, %v3439
    %v3441 = vpop.f32.mrf.mxu0
    %v3442 = vadd.f32 0.0, %v3441
    %3443 = vmatprep.mubr.bf16.mxu0 0
    %3444 = vmatmul.mubr.bf16.gmra.mxu0 %v2138
    %v3445 = vpop.f32.mrf.mxu0
    %v3446 = vadd.f32 0.0, %v3445
    %v3447 = vpop.f32.mrf.mxu0
    %v3448 = vadd.f32 0.0, %v3447
    %v3449 = vpop.f32.mrf.mxu0
    %v3450 = vadd.f32 0.0, %v3449
    %v3451 = vpop.f32.mrf.mxu0
    %v3452 = vadd.f32 0.0, %v3451
    %3453 = vmatprep.mubr.bf16.mxu0 0
    %3454 = vmatmul.mubr.bf16.gmra.mxu0 %v2141
    %v3455 = vpop.f32.mrf.mxu0
    %v3456 = vadd.f32 0.0, %v3455
    %v3457 = vpop.f32.mrf.mxu0
    %v3458 = vadd.f32 0.0, %v3457
    %v3459 = vpop.f32.mrf.mxu0
    %v3460 = vadd.f32 0.0, %v3459
    %v3461 = vpop.f32.mrf.mxu0
    %v3462 = vadd.f32 0.0, %v3461
    %3463 = vmatprep.mubr.bf16.mxu0 0
    %3464 = vmatmul.mubr.bf16.gmra.mxu0 %v2144
    %v3465 = vpop.f32.mrf.mxu0
    %v3466 = vadd.f32 0.0, %v3465
    %v3467 = vpop.f32.mrf.mxu0
    %v3468 = vadd.f32 0.0, %v3467
    %v3469 = vpop.f32.mrf.mxu0
    %v3470 = vadd.f32 0.0, %v3469
    %v3471 = vpop.f32.mrf.mxu0
    %v3472 = vadd.f32 0.0, %v3471
    %3473 = vmatprep.mubr.bf16.mxu0 0
    %3474 = vmatmul.mubr.bf16.gmra.mxu0 %v2147
    %v3475 = vpop.f32.mrf.mxu0
    %v3476 = vadd.f32 0.0, %v3475
    %v3477 = vpop.f32.mrf.mxu0
    %v3478 = vadd.f32 0.0, %v3477
    %v3479 = vpop.f32.mrf.mxu0
    %v3480 = vadd.f32 0.0, %v3479
    %v3481 = vpop.f32.mrf.mxu0
    %v3482 = vadd.f32 0.0, %v3481
    %3483 = vmatprep.mubr.bf16.mxu0 0
    %3484 = vmatmul.mubr.bf16.gmra.mxu0 %v2150
    %v3485 = vpop.f32.mrf.mxu0
    %v3486 = vadd.f32 0.0, %v3485
    %v3487 = vpop.f32.mrf.mxu0
    %v3488 = vadd.f32 0.0, %v3487
    %v3489 = vpop.f32.mrf.mxu0
    %v3490 = vadd.f32 0.0, %v3489
    %v3491 = vpop.f32.mrf.mxu0
    %v3492 = vadd.f32 0.0, %v3491
    %3493 = vmatprep.mubr.bf16.mxu0 0
    %3494 = vmatmul.mubr.bf16.gmra.mxu0 %v2153
    %v3495 = vpop.f32.mrf.mxu0
    %v3496 = vadd.f32 0.0, %v3495
    %v3497 = vpop.f32.mrf.mxu0
    %v3498 = vadd.f32 0.0, %v3497
    %v3499 = vpop.f32.mrf.mxu0
    %v3500 = vadd.f32 0.0, %v3499
    %v3501 = vpop.f32.mrf.mxu0
    %v3502 = vadd.f32 0.0, %v3501
    %3503 = vmatprep.mubr.bf16.mxu0 0
    %3504 = vmatmul.mubr.bf16.gmra.mxu0 %v2156
    %v3505 = vpop.f32.mrf.mxu0
    %v3506 = vadd.f32 0.0, %v3505
    %v3507 = vpop.f32.mrf.mxu0
    %v3508 = vadd.f32 0.0, %v3507
    %v3509 = vpop.f32.mrf.mxu0
    %v3510 = vadd.f32 0.0, %v3509
    %v3511 = vpop.f32.mrf.mxu0
    %v3512 = vadd.f32 0.0, %v3511
    %3513 = vdwg.mxu0
    %3514 = vmatprep.subr.bf16.mxu0 0
    %3515 = vmatpush1.bf16.msra.mxu0 0
    %3516 = vmatprep.subr.bf16.mxu0 0
    %3517 = vmatpush1.bf16.msra.mxu0 0
    %3518 = vmatprep.subr.bf16.mxu0 0
    %3519 = vmatpush1.bf16.msra.mxu0 0
    %3520 = vmatprep.subr.bf16.mxu0 0
    %3521 = vmatpush1.bf16.msra.mxu0 0
    %3522 = vmatprep.subr.bf16.mxu0 0
    %3523 = vmatpush1.bf16.msra.mxu0 %v2033
    %3524 = vmatprep.subr.bf16.mxu0 0
    %3525 = vmatpush1.bf16.msra.mxu0 %v2008
    %3526 = vmatprep.subr.bf16.mxu0 0
    %3527 = vmatpush1.bf16.msra.mxu0 %v1983
    %3528 = vmatprep.subr.bf16.mxu0 0
    %3529 = vmatpush1.bf16.msra.mxu0 %v1958
    %3530 = vmatprep.subr.bf16.mxu0 0
    %3531 = vmatpush2.bf16.msra.mxu0 0
    %3532 = vmatprep.subr.bf16.mxu0 0
    %3533 = vmatpush2.bf16.msra.mxu0 0
    %3534 = vmatprep.subr.bf16.mxu0 0
    %3535 = vmatpush2.bf16.msra.mxu0 0
    %3536 = vmatprep.subr.bf16.mxu0 0
    %3537 = vmatpush2.bf16.msra.mxu0 0
    %3538 = vmatprep.subr.bf16.mxu0 0
    %3539 = vmatpush2.bf16.msra.mxu0 0
    %3540 = vmatprep.subr.bf16.mxu0 0
    %3541 = vmatpush2.bf16.msra.mxu0 0
    %3542 = vmatprep.subr.bf16.mxu0 0
    %3543 = vmatpush2.bf16.msra.mxu0 0
    %3544 = vmatprep.subr.bf16.mxu0 0
    %3545 = vmatpush2.bf16.msra.mxu0 0
    %3546 = vmatprep.mubr.bf16.mxu0 0
    %3547 = vmatmul.mubr.bf16.gmra.mxu0 %v2135
    %v3548 = vpop.f32.mrf.mxu0
    %v3549 = vadd.f32 0.0, %v3548
    %v3550 = vpop.f32.mrf.mxu0
    %v3551 = vpop.f32.mrf.mxu0
    %v3552 = vadd.f32 0.0, %v3551
    %v3553 = vpop.f32.mrf.mxu0
    %3554 = vmatprep.mubr.bf16.mxu0 0
    %3555 = vmatmul.mubr.bf16.gmra.mxu0 %v2138
    %v3556 = vpop.f32.mrf.mxu0
    %v3557 = vadd.f32 0.0, %v3556
    %v3558 = vpop.f32.mrf.mxu0
    %v3559 = vpop.f32.mrf.mxu0
    %v3560 = vadd.f32 0.0, %v3559
    %v3561 = vpop.f32.mrf.mxu0
    %3562 = vmatprep.mubr.bf16.mxu0 0
    %3563 = vmatmul.mubr.bf16.gmra.mxu0 %v2141
    %v3564 = vpop.f32.mrf.mxu0
    %v3565 = vadd.f32 0.0, %v3564
    %v3566 = vpop.f32.mrf.mxu0
    %v3567 = vpop.f32.mrf.mxu0
    %v3568 = vadd.f32 0.0, %v3567
    %v3569 = vpop.f32.mrf.mxu0
    %3570 = vmatprep.mubr.bf16.mxu0 0
    %3571 = vmatmul.mubr.bf16.gmra.mxu0 %v2144
    %v3572 = vpop.f32.mrf.mxu0
    %v3573 = vadd.f32 0.0, %v3572
    %v3574 = vpop.f32.mrf.mxu0
    %v3575 = vpop.f32.mrf.mxu0
    %v3576 = vadd.f32 0.0, %v3575
    %v3577 = vpop.f32.mrf.mxu0
    %3578 = vmatprep.mubr.bf16.mxu0 0
    %3579 = vmatmul.mubr.bf16.gmra.mxu0 %v2147
    %v3580 = vpop.f32.mrf.mxu0
    %v3581 = vadd.f32 0.0, %v3580
    %v3582 = vpop.f32.mrf.mxu0
    %v3583 = vpop.f32.mrf.mxu0
    %v3584 = vadd.f32 0.0, %v3583
    %v3585 = vpop.f32.mrf.mxu0
    %3586 = vmatprep.mubr.bf16.mxu0 0
    %3587 = vmatmul.mubr.bf16.gmra.mxu0 %v2150
    %v3588 = vpop.f32.mrf.mxu0
    %v3589 = vadd.f32 0.0, %v3588
    %v3590 = vpop.f32.mrf.mxu0
    %v3591 = vpop.f32.mrf.mxu0
    %v3592 = vadd.f32 0.0, %v3591
    %v3593 = vpop.f32.mrf.mxu0
    %3594 = vmatprep.mubr.bf16.mxu0 0
    %3595 = vmatmul.mubr.bf16.gmra.mxu0 %v2153
    %v3596 = vpop.f32.mrf.mxu0
    %v3597 = vadd.f32 0.0, %v3596
    %v3598 = vpop.f32.mrf.mxu0
    %v3599 = vpop.f32.mrf.mxu0
    %v3600 = vadd.f32 0.0, %v3599
    %v3601 = vpop.f32.mrf.mxu0
    %3602 = vmatprep.mubr.bf16.mxu0 0
    %3603 = vmatmul.mubr.bf16.gmra.mxu0 %v2156
    %v3604 = vpop.f32.mrf.mxu0
    %v3605 = vadd.f32 0.0, %v3604
    %v3606 = vpop.f32.mrf.mxu0
    %v3607 = vpop.f32.mrf.mxu0
    %v3608 = vadd.f32 0.0, %v3607
    %v3609 = vpop.f32.mrf.mxu0
    %3610 = vdwg.mxu0
    %v3611 = vpack.c.bf16 %v2197, %v2193
    %v3612 = vpack.c.bf16 %v2199, %v2195
    %v3613 = vpack.c.bf16 %v2310, %v2306
    %v3614 = vpack.c.bf16 %v2312, %v2308
    %v3615 = vpack.c.bf16 %v2423, %v2419
    %v3616 = vpack.c.bf16 %v2425, %v2421
    %v3617 = vpack.c.bf16 %v2536, %v2532
    %v3618 = vpack.c.bf16 %v2538, %v2534
    %v3619 = vpack.c.bf16 %v2649, %v2645
    %v3620 = vpack.c.bf16 %v2651, %v2647
    %v3621 = vpack.c.bf16 %v2762, %v2758
    %v3622 = vpack.c.bf16 %v2764, %v2760
    %v3623 = vpack.c.bf16 %v2875, %v2871
    %v3624 = vpack.c.bf16 %v2877, %v2873
    %v3625 = vpack.c.bf16 %v2988, %v2984
    %v3626 = vpack.c.bf16 %v2990, %v2986
    %v3627 = vpack.c.bf16 %v3101, %v3097
    %v3628 = vpack.c.bf16 %v3103, %v3099
    %v3629 = vpack.c.bf16 %v3214, %v3210
    %v3630 = vpack.c.bf16 %v3216, %v3212
    %v3631 = vpack.c.bf16 %v3327, %v3323
    %v3632 = vpack.c.bf16 %v3329, %v3325
    %v3633 = vpack.c.bf16 %v3440, %v3436
    %v3634 = vpack.c.bf16 %v3442, %v3438
    %v3635 = vpack.c.bf16 %v3552, %v3549
    %v3636 = vpack.c.bf16 %v2207, %v2203
    %v3637 = vpack.c.bf16 %v2209, %v2205
    %v3638 = vpack.c.bf16 %v2320, %v2316
    %v3639 = vpack.c.bf16 %v2322, %v2318
    %v3640 = vpack.c.bf16 %v2433, %v2429
    %v3641 = vpack.c.bf16 %v2435, %v2431
    %v3642 = vpack.c.bf16 %v2546, %v2542
    %v3643 = vpack.c.bf16 %v2548, %v2544
    %v3644 = vpack.c.bf16 %v2659, %v2655
    %v3645 = vpack.c.bf16 %v2661, %v2657
    %v3646 = vpack.c.bf16 %v2772, %v2768
    %v3647 = vpack.c.bf16 %v2774, %v2770
    %v3648 = vpack.c.bf16 %v2885, %v2881
    %v3649 = vpack.c.bf16 %v2887, %v2883
    %v3650 = vpack.c.bf16 %v2998, %v2994
    %v3651 = vpack.c.bf16 %v3000, %v2996
    %v3652 = vpack.c.bf16 %v3111, %v3107
    %v3653 = vpack.c.bf16 %v3113, %v3109
    %v3654 = vpack.c.bf16 %v3224, %v3220
    %v3655 = vpack.c.bf16 %v3226, %v3222
    %v3656 = vpack.c.bf16 %v3337, %v3333
    %v3657 = vpack.c.bf16 %v3339, %v3335
    %v3658 = vpack.c.bf16 %v3450, %v3446
    %v3659 = vpack.c.bf16 %v3452, %v3448
    %v3660 = vpack.c.bf16 %v3560, %v3557
    %v3661 = vpack.c.bf16 %v2217, %v2213
    %v3662 = vpack.c.bf16 %v2219, %v2215
    %v3663 = vpack.c.bf16 %v2330, %v2326
    %v3664 = vpack.c.bf16 %v2332, %v2328
    %v3665 = vpack.c.bf16 %v2443, %v2439
    %v3666 = vpack.c.bf16 %v2445, %v2441
    %v3667 = vpack.c.bf16 %v2556, %v2552
    %v3668 = vpack.c.bf16 %v2558, %v2554
    %v3669 = vpack.c.bf16 %v2669, %v2665
    %v3670 = vpack.c.bf16 %v2671, %v2667
    %v3671 = vpack.c.bf16 %v2782, %v2778
    %v3672 = vpack.c.bf16 %v2784, %v2780
    %v3673 = vpack.c.bf16 %v2895, %v2891
    %v3674 = vpack.c.bf16 %v2897, %v2893
    %v3675 = vpack.c.bf16 %v3008, %v3004
    %v3676 = vpack.c.bf16 %v3010, %v3006
    %v3677 = vpack.c.bf16 %v3121, %v3117
    %v3678 = vpack.c.bf16 %v3123, %v3119
    %v3679 = vpack.c.bf16 %v3234, %v3230
    %v3680 = vpack.c.bf16 %v3236, %v3232
    %v3681 = vpack.c.bf16 %v3347, %v3343
    %v3682 = vpack.c.bf16 %v3349, %v3345
    %v3683 = vpack.c.bf16 %v3460, %v3456
    %v3684 = vpack.c.bf16 %v3462, %v3458
    %v3685 = vpack.c.bf16 %v3568, %v3565
    %v3686 = vpack.c.bf16 %v2227, %v2223
    %v3687 = vpack.c.bf16 %v2229, %v2225
    %v3688 = vpack.c.bf16 %v2340, %v2336
    %v3689 = vpack.c.bf16 %v2342, %v2338
    %v3690 = vpack.c.bf16 %v2453, %v2449
    %v3691 = vpack.c.bf16 %v2455, %v2451
    %v3692 = vpack.c.bf16 %v2566, %v2562
    %v3693 = vpack.c.bf16 %v2568, %v2564
    %v3694 = vpack.c.bf16 %v2679, %v2675
    %v3695 = vpack.c.bf16 %v2681, %v2677
    %v3696 = vpack.c.bf16 %v2792, %v2788
    %v3697 = vpack.c.bf16 %v2794, %v2790
    %v3698 = vpack.c.bf16 %v2905, %v2901
    %v3699 = vpack.c.bf16 %v2907, %v2903
    %v3700 = vpack.c.bf16 %v3018, %v3014
    %v3701 = vpack.c.bf16 %v3020, %v3016
    %v3702 = vpack.c.bf16 %v3131, %v3127
    %v3703 = vpack.c.bf16 %v3133, %v3129
    %v3704 = vpack.c.bf16 %v3244, %v3240
    %v3705 = vpack.c.bf16 %v3246, %v3242
    %v3706 = vpack.c.bf16 %v3357, %v3353
    %v3707 = vpack.c.bf16 %v3359, %v3355
    %v3708 = vpack.c.bf16 %v3470, %v3466
    %v3709 = vpack.c.bf16 %v3472, %v3468
    %v3710 = vpack.c.bf16 %v3576, %v3573
    %v3711 = vpack.c.bf16 %v2237, %v2233
    %v3712 = vpack.c.bf16 %v2239, %v2235
    %v3713 = vpack.c.bf16 %v2350, %v2346
    %v3714 = vpack.c.bf16 %v2352, %v2348
    %v3715 = vpack.c.bf16 %v2463, %v2459
    %v3716 = vpack.c.bf16 %v2465, %v2461
    %v3717 = vpack.c.bf16 %v2576, %v2572
    %v3718 = vpack.c.bf16 %v2578, %v2574
    %v3719 = vpack.c.bf16 %v2689, %v2685
    %v3720 = vpack.c.bf16 %v2691, %v2687
    %v3721 = vpack.c.bf16 %v2802, %v2798
    %v3722 = vpack.c.bf16 %v2804, %v2800
    %v3723 = vpack.c.bf16 %v2915, %v2911
    %v3724 = vpack.c.bf16 %v2917, %v2913
    %v3725 = vpack.c.bf16 %v3028, %v3024
    %v3726 = vpack.c.bf16 %v3030, %v3026
    %v3727 = vpack.c.bf16 %v3141, %v3137
    %v3728 = vpack.c.bf16 %v3143, %v3139
    %v3729 = vpack.c.bf16 %v3254, %v3250
    %v3730 = vpack.c.bf16 %v3256, %v3252
    %v3731 = vpack.c.bf16 %v3367, %v3363
    %v3732 = vpack.c.bf16 %v3369, %v3365
    %v3733 = vpack.c.bf16 %v3480, %v3476
    %v3734 = vpack.c.bf16 %v3482, %v3478
    %v3735 = vpack.c.bf16 %v3584, %v3581
    %v3736 = vpack.c.bf16 %v2247, %v2243
    %v3737 = vpack.c.bf16 %v2249, %v2245
    %v3738 = vpack.c.bf16 %v2360, %v2356
    %v3739 = vpack.c.bf16 %v2362, %v2358
    %v3740 = vpack.c.bf16 %v2473, %v2469
    %v3741 = vpack.c.bf16 %v2475, %v2471
    %v3742 = vpack.c.bf16 %v2586, %v2582
    %v3743 = vpack.c.bf16 %v2588, %v2584
    %v3744 = vpack.c.bf16 %v2699, %v2695
    %v3745 = vpack.c.bf16 %v2701, %v2697
    %v3746 = vpack.c.bf16 %v2812, %v2808
    %v3747 = vpack.c.bf16 %v2814, %v2810
    %v3748 = vpack.c.bf16 %v2925, %v2921
    %v3749 = vpack.c.bf16 %v2927, %v2923
    %v3750 = vpack.c.bf16 %v3038, %v3034
    %v3751 = vpack.c.bf16 %v3040, %v3036
    %v3752 = vpack.c.bf16 %v3151, %v3147
    %v3753 = vpack.c.bf16 %v3153, %v3149
    %v3754 = vpack.c.bf16 %v3264, %v3260
    %v3755 = vpack.c.bf16 %v3266, %v3262
    %v3756 = vpack.c.bf16 %v3377, %v3373
    %v3757 = vpack.c.bf16 %v3379, %v3375
    %v3758 = vpack.c.bf16 %v3490, %v3486
    %v3759 = vpack.c.bf16 %v3492, %v3488
    %v3760 = vpack.c.bf16 %v3592, %v3589
    %v3761 = vpack.c.bf16 %v2257, %v2253
    %v3762 = vpack.c.bf16 %v2259, %v2255
    %v3763 = vpack.c.bf16 %v2370, %v2366
    %v3764 = vpack.c.bf16 %v2372, %v2368
    %v3765 = vpack.c.bf16 %v2483, %v2479
    %v3766 = vpack.c.bf16 %v2485, %v2481
    %v3767 = vpack.c.bf16 %v2596, %v2592
    %v3768 = vpack.c.bf16 %v2598, %v2594
    %v3769 = vpack.c.bf16 %v2709, %v2705
    %v3770 = vpack.c.bf16 %v2711, %v2707
    %v3771 = vpack.c.bf16 %v2822, %v2818
    %v3772 = vpack.c.bf16 %v2824, %v2820
    %v3773 = vpack.c.bf16 %v2935, %v2931
    %v3774 = vpack.c.bf16 %v2937, %v2933
    %v3775 = vpack.c.bf16 %v3048, %v3044
    %v3776 = vpack.c.bf16 %v3050, %v3046
    %v3777 = vpack.c.bf16 %v3161, %v3157
    %v3778 = vpack.c.bf16 %v3163, %v3159
    %v3779 = vpack.c.bf16 %v3274, %v3270
    %v3780 = vpack.c.bf16 %v3276, %v3272
    %v3781 = vpack.c.bf16 %v3387, %v3383
    %v3782 = vpack.c.bf16 %v3389, %v3385
    %v3783 = vpack.c.bf16 %v3500, %v3496
    %v3784 = vpack.c.bf16 %v3502, %v3498
    %v3785 = vpack.c.bf16 %v3600, %v3597
    %v3786 = vpack.c.bf16 %v2267, %v2263
    %v3787 = vpack.c.bf16 %v2269, %v2265
    %v3788 = vpack.c.bf16 %v2380, %v2376
    %v3789 = vpack.c.bf16 %v2382, %v2378
    %v3790 = vpack.c.bf16 %v2493, %v2489
    %v3791 = vpack.c.bf16 %v2495, %v2491
    %v3792 = vpack.c.bf16 %v2606, %v2602
    %v3793 = vpack.c.bf16 %v2608, %v2604
    %v3794 = vpack.c.bf16 %v2719, %v2715
    %v3795 = vpack.c.bf16 %v2721, %v2717
    %v3796 = vpack.c.bf16 %v2832, %v2828
    %v3797 = vpack.c.bf16 %v2834, %v2830
    %v3798 = vpack.c.bf16 %v2945, %v2941
    %v3799 = vpack.c.bf16 %v2947, %v2943
    %v3800 = vpack.c.bf16 %v3058, %v3054
    %v3801 = vpack.c.bf16 %v3060, %v3056
    %v3802 = vpack.c.bf16 %v3171, %v3167
    %v3803 = vpack.c.bf16 %v3173, %v3169
    %v3804 = vpack.c.bf16 %v3284, %v3280
    %v3805 = vpack.c.bf16 %v3286, %v3282
    %v3806 = vpack.c.bf16 %v3397, %v3393
    %v3807 = vpack.c.bf16 %v3399, %v3395
    %v3808 = vpack.c.bf16 %v3510, %v3506
    %v3809 = vpack.c.bf16 %v3512, %v3508
    %v3810 = vpack.c.bf16 %v3608, %v3605
    %v3811 = vld [vmem:[%s4] sm:$0xf]
    %v3812 = vld [vmem:[%s4 + $0x4] sm:$0xf]
    %v3813 = vld [vmem:[%s4 + $0x8] sm:$0xf]
    %v3814 = vld [vmem:[%s4 + $0xc] sm:$0xf]
    %s3815 = scalar_lea.vmem %s4, 16
    %v3816 = vld [vmem:[%s3815] sm:$0xf]
    %v3817 = vld [vmem:[%s3815 + $0x4] sm:$0xf]
    %v3818 = vld [vmem:[%s3815 + $0x8] sm:$0xf]
    %v3819 = vld [vmem:[%s3815 + $0xc] sm:$0xf]
    %v3824 = vunpack.c.l.b16 %v3816
    %v3825 = vunpack.c.l.b16 %v3817
    %v3826 = vunpack.c.l.b16 %v3818
    %v3827 = vunpack.c.l.b16 %v3819
    %v3828 = vpack.c.b16 %v3825, %v3824
    %v3829 = vpack.c.b16 %v3827, %v3826
    %3832 = vmatprep.subr.bf16.mxu0 0
    %3833 = vmatpush1.bf16.msra.mxu0 %v3787
    %3834 = vmatprep.subr.bf16.mxu0 0
    %3835 = vmatpush1.bf16.msra.mxu0 %v3762
    %3836 = vmatprep.subr.bf16.mxu0 0
    %3837 = vmatpush1.bf16.msra.mxu0 %v3737
    %3838 = vmatprep.subr.bf16.mxu0 0
    %3839 = vmatpush1.bf16.msra.mxu0 %v3712
    %3840 = vmatprep.subr.bf16.mxu0 0
    %3841 = vmatpush1.bf16.msra.mxu0 %v3687
    %3842 = vmatprep.subr.bf16.mxu0 0
    %3843 = vmatpush1.bf16.msra.mxu0 %v3662
    %3844 = vmatprep.subr.bf16.mxu0 0
    %3845 = vmatpush1.bf16.msra.mxu0 %v3637
    %3846 = vmatprep.subr.bf16.mxu0 0
    %3847 = vmatpush1.bf16.msra.mxu0 %v3612
    %3848 = vmatprep.subr.bf16.mxu0 0
    %3849 = vmatpush2.bf16.msra.mxu0 0
    %3850 = vmatprep.subr.bf16.mxu0 0
    %3851 = vmatpush2.bf16.msra.mxu0 0
    %3852 = vmatprep.subr.bf16.mxu0 0
    %3853 = vmatpush2.bf16.msra.mxu0 0
    %3854 = vmatprep.subr.bf16.mxu0 0
    %3855 = vmatpush2.bf16.msra.mxu0 0
    %3856 = vmatprep.subr.bf16.mxu0 0
    %3857 = vmatpush2.bf16.msra.mxu0 0
    %3858 = vmatprep.subr.bf16.mxu0 0
    %3859 = vmatpush2.bf16.msra.mxu0 0
    %3860 = vmatprep.subr.bf16.mxu0 0
    %3861 = vmatpush2.bf16.msra.mxu0 0
    %3862 = vmatprep.subr.bf16.mxu0 0
    %3863 = vmatpush2.bf16.msra.mxu0 0
    %3864 = vmatprep.mubr.bf16.mxu0 0
    %3865 = vmatmul.mubr.bf16.gmra.mxu0 %v3828
    %v3866 = vpop.f32.mrf.mxu0
    %v3867 = vadd.f32 0.0, %v3866
    %v3868 = vpop.f32.mrf.mxu0
    %v3869 = vpop.f32.mrf.mxu0
    %v3870 = vadd.f32 0.0, %v3869
    %v3871 = vpop.f32.mrf.mxu0
    %3872 = vmatprep.mubr.bf16.mxu0 0
    %3873 = vmatmul.mubr.bf16.gmra.mxu0 %v3829
    %v3874 = vpop.f32.mrf.mxu0
    %v3875 = vadd.f32 0.0, %v3874
    %v3876 = vpop.f32.mrf.mxu0
    %v3877 = vpop.f32.mrf.mxu0
    %v3878 = vadd.f32 0.0, %v3877
    %v3879 = vpop.f32.mrf.mxu0
    %3880 = vdwg.mxu0
    %v3885 = vunpack.c.l.b16 %v3811
    %v3886 = vunpack.c.l.b16 %v3812
    %v3887 = vunpack.c.l.b16 %v3813
    %v3888 = vunpack.c.l.b16 %v3814
    %v3889 = vpack.c.b16 %v3886, %v3885
    %v3890 = vpack.c.b16 %v3888, %v3887
    %3893 = vmatprep.subr.bf16.mxu0 0
    %3894 = vmatpush1.bf16.msra.mxu0 %v3786
    %3895 = vmatprep.subr.bf16.mxu0 0
    %3896 = vmatpush1.bf16.msra.mxu0 %v3761
    %3897 = vmatprep.subr.bf16.mxu0 0
    %3898 = vmatpush1.bf16.msra.mxu0 %v3736
    %3899 = vmatprep.subr.bf16.mxu0 0
    %3900 = vmatpush1.bf16.msra.mxu0 %v3711
    %3901 = vmatprep.subr.bf16.mxu0 0
    %3902 = vmatpush1.bf16.msra.mxu0 %v3686
    %3903 = vmatprep.subr.bf16.mxu0 0
    %3904 = vmatpush1.bf16.msra.mxu0 %v3661
    %3905 = vmatprep.subr.bf16.mxu0 0
    %3906 = vmatpush1.bf16.msra.mxu0 %v3636
    %3907 = vmatprep.subr.bf16.mxu0 0
    %3908 = vmatpush1.bf16.msra.mxu0 %v3611
    %3909 = vmatprep.subr.bf16.mxu0 0
    %3910 = vmatpush2.bf16.msra.mxu0 0
    %3911 = vmatprep.subr.bf16.mxu0 0
    %3912 = vmatpush2.bf16.msra.mxu0 0
    %3913 = vmatprep.subr.bf16.mxu0 0
    %3914 = vmatpush2.bf16.msra.mxu0 0
    %3915 = vmatprep.subr.bf16.mxu0 0
    %3916 = vmatpush2.bf16.msra.mxu0 0
    %3917 = vmatprep.subr.bf16.mxu0 0
    %3918 = vmatpush2.bf16.msra.mxu0 0
    %3919 = vmatprep.subr.bf16.mxu0 0
    %3920 = vmatpush2.bf16.msra.mxu0 0
    %3921 = vmatprep.subr.bf16.mxu0 0
    %3922 = vmatpush2.bf16.msra.mxu0 0
    %3923 = vmatprep.subr.bf16.mxu0 0
    %3924 = vmatpush2.bf16.msra.mxu0 0
    %3925 = vmatprep.mubr.bf16.mxu0 0
    %3926 = vmatmul.mubr.bf16.gmra.mxu0 %v3889
    %v3927 = vpop.f32.mrf.mxu0
    %v3928 = vadd.f32 %v3867, %v3927
    %v3929 = vpop.f32.mrf.mxu0
    %v3930 = vpop.f32.mrf.mxu0
    %v3931 = vadd.f32 %v3870, %v3930
    %v3932 = vpop.f32.mrf.mxu0
    %3933 = vmatprep.mubr.bf16.mxu0 0
    %3934 = vmatmul.mubr.bf16.gmra.mxu0 %v3890
    %v3935 = vpop.f32.mrf.mxu0
    %v3936 = vadd.f32 %v3875, %v3935
    %v3937 = vpop.f32.mrf.mxu0
    %v3938 = vpop.f32.mrf.mxu0
    %v3939 = vadd.f32 %v3878, %v3938
    %v3940 = vpop.f32.mrf.mxu0
    %3941 = vdwg.mxu0
    %s3942 = scalar_lea.vmem %s4, 32
    %v3943 = vld [vmem:[%s3942] sm:$0xf]
    %v3944 = vld [vmem:[%s3942 + $0x4] sm:$0xf]
    %v3945 = vld [vmem:[%s3942 + $0x8] sm:$0xf]
    %v3946 = vld [vmem:[%s3942 + $0xc] sm:$0xf]
    %v3951 = vunpack.c.l.b16 %v3943
    %v3952 = vunpack.c.l.b16 %v3944
    %v3953 = vunpack.c.l.b16 %v3945
    %v3954 = vunpack.c.l.b16 %v3946
    %v3955 = vpack.c.b16 %v3952, %v3951
    %v3956 = vpack.c.b16 %v3954, %v3953
    %3959 = vmatprep.subr.bf16.mxu0 0
    %3960 = vmatpush1.bf16.msra.mxu0 %v3788
    %3961 = vmatprep.subr.bf16.mxu0 0
    %3962 = vmatpush1.bf16.msra.mxu0 %v3763
    %3963 = vmatprep.subr.bf16.mxu0 0
    %3964 = vmatpush1.bf16.msra.mxu0 %v3738
    %3965 = vmatprep.subr.bf16.mxu0 0
    %3966 = vmatpush1.bf16.msra.mxu0 %v3713
    %3967 = vmatprep.subr.bf16.mxu0 0
    %3968 = vmatpush1.bf16.msra.mxu0 %v3688
    %3969 = vmatprep.subr.bf16.mxu0 0
    %3970 = vmatpush1.bf16.msra.mxu0 %v3663
    %3971 = vmatprep.subr.bf16.mxu0 0
    %3972 = vmatpush1.bf16.msra.mxu0 %v3638
    %3973 = vmatprep.subr.bf16.mxu0 0
    %3974 = vmatpush1.bf16.msra.mxu0 %v3613
    %3975 = vmatprep.subr.bf16.mxu0 0
    %3976 = vmatpush2.bf16.msra.mxu0 0
    %3977 = vmatprep.subr.bf16.mxu0 0
    %3978 = vmatpush2.bf16.msra.mxu0 0
    %3979 = vmatprep.subr.bf16.mxu0 0
    %3980 = vmatpush2.bf16.msra.mxu0 0
    %3981 = vmatprep.subr.bf16.mxu0 0
    %3982 = vmatpush2.bf16.msra.mxu0 0
    %3983 = vmatprep.subr.bf16.mxu0 0
    %3984 = vmatpush2.bf16.msra.mxu0 0
    %3985 = vmatprep.subr.bf16.mxu0 0
    %3986 = vmatpush2.bf16.msra.mxu0 0
    %3987 = vmatprep.subr.bf16.mxu0 0
    %3988 = vmatpush2.bf16.msra.mxu0 0
    %3989 = vmatprep.subr.bf16.mxu0 0
    %3990 = vmatpush2.bf16.msra.mxu0 0
    %3991 = vmatprep.mubr.bf16.mxu0 0
    %3992 = vmatmul.mubr.bf16.gmra.mxu0 %v3955
    %v3993 = vpop.f32.mrf.mxu0
    %v3994 = vadd.f32 0.0, %v3993
    %v3995 = vpop.f32.mrf.mxu0
    %v3996 = vpop.f32.mrf.mxu0
    %v3997 = vadd.f32 0.0, %v3996
    %v3998 = vpop.f32.mrf.mxu0
    %3999 = vmatprep.mubr.bf16.mxu0 0
    %4000 = vmatmul.mubr.bf16.gmra.mxu0 %v3956
    %v4001 = vpop.f32.mrf.mxu0
    %v4002 = vadd.f32 0.0, %v4001
    %v4003 = vpop.f32.mrf.mxu0
    %v4004 = vpop.f32.mrf.mxu0
    %v4005 = vadd.f32 0.0, %v4004
    %v4006 = vpop.f32.mrf.mxu0
    %4007 = vdwg.mxu0
    %v4008 = vadd.f32 %v3928, %v3994
    %v4009 = vadd.f32 %v3931, %v3997
    %v4010 = vadd.f32 %v3936, %v4002
    %v4011 = vadd.f32 %v3939, %v4005
    %s4012 = scalar_lea.vmem %s4, 48
    %v4013 = vld [vmem:[%s4012] sm:$0xf]
    %v4014 = vld [vmem:[%s4012 + $0x4] sm:$0xf]
    %v4015 = vld [vmem:[%s4012 + $0x8] sm:$0xf]
    %v4016 = vld [vmem:[%s4012 + $0xc] sm:$0xf]
    %v4021 = vunpack.c.l.b16 %v4013
    %v4022 = vunpack.c.l.b16 %v4014
    %v4023 = vunpack.c.l.b16 %v4015
    %v4024 = vunpack.c.l.b16 %v4016
    %v4025 = vpack.c.b16 %v4022, %v4021
    %v4026 = vpack.c.b16 %v4024, %v4023
    %4029 = vmatprep.subr.bf16.mxu0 0
    %4030 = vmatpush1.bf16.msra.mxu0 %v3789
    %4031 = vmatprep.subr.bf16.mxu0 0
    %4032 = vmatpush1.bf16.msra.mxu0 %v3764
    %4033 = vmatprep.subr.bf16.mxu0 0
    %4034 = vmatpush1.bf16.msra.mxu0 %v3739
    %4035 = vmatprep.subr.bf16.mxu0 0
    %4036 = vmatpush1.bf16.msra.mxu0 %v3714
    %4037 = vmatprep.subr.bf16.mxu0 0
    %4038 = vmatpush1.bf16.msra.mxu0 %v3689
    %4039 = vmatprep.subr.bf16.mxu0 0
    %4040 = vmatpush1.bf16.msra.mxu0 %v3664
    %4041 = vmatprep.subr.bf16.mxu0 0
    %4042 = vmatpush1.bf16.msra.mxu0 %v3639
    %4043 = vmatprep.subr.bf16.mxu0 0
    %4044 = vmatpush1.bf16.msra.mxu0 %v3614
    %4045 = vmatprep.subr.bf16.mxu0 0
    %4046 = vmatpush2.bf16.msra.mxu0 0
    %4047 = vmatprep.subr.bf16.mxu0 0
    %4048 = vmatpush2.bf16.msra.mxu0 0
    %4049 = vmatprep.subr.bf16.mxu0 0
    %4050 = vmatpush2.bf16.msra.mxu0 0
    %4051 = vmatprep.subr.bf16.mxu0 0
    %4052 = vmatpush2.bf16.msra.mxu0 0
    %4053 = vmatprep.subr.bf16.mxu0 0
    %4054 = vmatpush2.bf16.msra.mxu0 0
    %4055 = vmatprep.subr.bf16.mxu0 0
    %4056 = vmatpush2.bf16.msra.mxu0 0
    %4057 = vmatprep.subr.bf16.mxu0 0
    %4058 = vmatpush2.bf16.msra.mxu0 0
    %4059 = vmatprep.subr.bf16.mxu0 0
    %4060 = vmatpush2.bf16.msra.mxu0 0
    %4061 = vmatprep.mubr.bf16.mxu0 0
    %4062 = vmatmul.mubr.bf16.gmra.mxu0 %v4025
    %v4063 = vpop.f32.mrf.mxu0
    %v4064 = vadd.f32 0.0, %v4063
    %v4065 = vpop.f32.mrf.mxu0
    %v4066 = vpop.f32.mrf.mxu0
    %v4067 = vadd.f32 0.0, %v4066
    %v4068 = vpop.f32.mrf.mxu0
    %4069 = vmatprep.mubr.bf16.mxu0 0
    %4070 = vmatmul.mubr.bf16.gmra.mxu0 %v4026
    %v4071 = vpop.f32.mrf.mxu0
    %v4072 = vadd.f32 0.0, %v4071
    %v4073 = vpop.f32.mrf.mxu0
    %v4074 = vpop.f32.mrf.mxu0
    %v4075 = vadd.f32 0.0, %v4074
    %v4076 = vpop.f32.mrf.mxu0
    %4077 = vdwg.mxu0
    %v4078 = vadd.f32 %v4008, %v4064
    %v4079 = vadd.f32 %v4009, %v4067
    %v4080 = vadd.f32 %v4010, %v4072
    %v4081 = vadd.f32 %v4011, %v4075
    %s4082 = scalar_lea.vmem %s4, 64
    %v4083 = vld [vmem:[%s4082] sm:$0xf]
    %v4084 = vld [vmem:[%s4082 + $0x4] sm:$0xf]
    %v4085 = vld [vmem:[%s4082 + $0x8] sm:$0xf]
    %v4086 = vld [vmem:[%s4082 + $0xc] sm:$0xf]
    %v4091 = vunpack.c.l.b16 %v4083
    %v4092 = vunpack.c.l.b16 %v4084
    %v4093 = vunpack.c.l.b16 %v4085
    %v4094 = vunpack.c.l.b16 %v4086
    %v4095 = vpack.c.b16 %v4092, %v4091
    %v4096 = vpack.c.b16 %v4094, %v4093
    %4099 = vmatprep.subr.bf16.mxu0 0
    %4100 = vmatpush1.bf16.msra.mxu0 %v3790
    %4101 = vmatprep.subr.bf16.mxu0 0
    %4102 = vmatpush1.bf16.msra.mxu0 %v3765
    %4103 = vmatprep.subr.bf16.mxu0 0
    %4104 = vmatpush1.bf16.msra.mxu0 %v3740
    %4105 = vmatprep.subr.bf16.mxu0 0
    %4106 = vmatpush1.bf16.msra.mxu0 %v3715
    %4107 = vmatprep.subr.bf16.mxu0 0
    %4108 = vmatpush1.bf16.msra.mxu0 %v3690
    %4109 = vmatprep.subr.bf16.mxu0 0
    %4110 = vmatpush1.bf16.msra.mxu0 %v3665
    %4111 = vmatprep.subr.bf16.mxu0 0
    %4112 = vmatpush1.bf16.msra.mxu0 %v3640
    %4113 = vmatprep.subr.bf16.mxu0 0
    %4114 = vmatpush1.bf16.msra.mxu0 %v3615
    %4115 = vmatprep.subr.bf16.mxu0 0
    %4116 = vmatpush2.bf16.msra.mxu0 0
    %4117 = vmatprep.subr.bf16.mxu0 0
    %4118 = vmatpush2.bf16.msra.mxu0 0
    %4119 = vmatprep.subr.bf16.mxu0 0
    %4120 = vmatpush2.bf16.msra.mxu0 0
    %4121 = vmatprep.subr.bf16.mxu0 0
    %4122 = vmatpush2.bf16.msra.mxu0 0
    %4123 = vmatprep.subr.bf16.mxu0 0
    %4124 = vmatpush2.bf16.msra.mxu0 0
    %4125 = vmatprep.subr.bf16.mxu0 0
    %4126 = vmatpush2.bf16.msra.mxu0 0
    %4127 = vmatprep.subr.bf16.mxu0 0
    %4128 = vmatpush2.bf16.msra.mxu0 0
    %4129 = vmatprep.subr.bf16.mxu0 0
    %4130 = vmatpush2.bf16.msra.mxu0 0
    %4131 = vmatprep.mubr.bf16.mxu0 0
    %4132 = vmatmul.mubr.bf16.gmra.mxu0 %v4095
    %v4133 = vpop.f32.mrf.mxu0
    %v4134 = vadd.f32 0.0, %v4133
    %v4135 = vpop.f32.mrf.mxu0
    %v4136 = vpop.f32.mrf.mxu0
    %v4137 = vadd.f32 0.0, %v4136
    %v4138 = vpop.f32.mrf.mxu0
    %4139 = vmatprep.mubr.bf16.mxu0 0
    %4140 = vmatmul.mubr.bf16.gmra.mxu0 %v4096
    %v4141 = vpop.f32.mrf.mxu0
    %v4142 = vadd.f32 0.0, %v4141
    %v4143 = vpop.f32.mrf.mxu0
    %v4144 = vpop.f32.mrf.mxu0
    %v4145 = vadd.f32 0.0, %v4144
    %v4146 = vpop.f32.mrf.mxu0
    %4147 = vdwg.mxu0
    %v4148 = vadd.f32 %v4078, %v4134
    %v4149 = vadd.f32 %v4079, %v4137
    %v4150 = vadd.f32 %v4080, %v4142
    %v4151 = vadd.f32 %v4081, %v4145
    %s4152 = scalar_lea.vmem %s4, 80
    %v4153 = vld [vmem:[%s4152] sm:$0xf]
    %v4154 = vld [vmem:[%s4152 + $0x4] sm:$0xf]
    %v4155 = vld [vmem:[%s4152 + $0x8] sm:$0xf]
    %v4156 = vld [vmem:[%s4152 + $0xc] sm:$0xf]
    %v4161 = vunpack.c.l.b16 %v4153
    %v4162 = vunpack.c.l.b16 %v4154
    %v4163 = vunpack.c.l.b16 %v4155
    %v4164 = vunpack.c.l.b16 %v4156
    %v4165 = vpack.c.b16 %v4162, %v4161
    %v4166 = vpack.c.b16 %v4164, %v4163
    %4169 = vmatprep.subr.bf16.mxu0 0
    %4170 = vmatpush1.bf16.msra.mxu0 %v3791
    %4171 = vmatprep.subr.bf16.mxu0 0
    %4172 = vmatpush1.bf16.msra.mxu0 %v3766
    %4173 = vmatprep.subr.bf16.mxu0 0
    %4174 = vmatpush1.bf16.msra.mxu0 %v3741
    %4175 = vmatprep.subr.bf16.mxu0 0
    %4176 = vmatpush1.bf16.msra.mxu0 %v3716
    %4177 = vmatprep.subr.bf16.mxu0 0
    %4178 = vmatpush1.bf16.msra.mxu0 %v3691
    %4179 = vmatprep.subr.bf16.mxu0 0
    %4180 = vmatpush1.bf16.msra.mxu0 %v3666
    %4181 = vmatprep.subr.bf16.mxu0 0
    %4182 = vmatpush1.bf16.msra.mxu0 %v3641
    %4183 = vmatprep.subr.bf16.mxu0 0
    %4184 = vmatpush1.bf16.msra.mxu0 %v3616
    %4185 = vmatprep.subr.bf16.mxu0 0
    %4186 = vmatpush2.bf16.msra.mxu0 0
    %4187 = vmatprep.subr.bf16.mxu0 0
    %4188 = vmatpush2.bf16.msra.mxu0 0
    %4189 = vmatprep.subr.bf16.mxu0 0
    %4190 = vmatpush2.bf16.msra.mxu0 0
    %4191 = vmatprep.subr.bf16.mxu0 0
    %4192 = vmatpush2.bf16.msra.mxu0 0
    %4193 = vmatprep.subr.bf16.mxu0 0
    %4194 = vmatpush2.bf16.msra.mxu0 0
    %4195 = vmatprep.subr.bf16.mxu0 0
    %4196 = vmatpush2.bf16.msra.mxu0 0
    %4197 = vmatprep.subr.bf16.mxu0 0
    %4198 = vmatpush2.bf16.msra.mxu0 0
    %4199 = vmatprep.subr.bf16.mxu0 0
    %4200 = vmatpush2.bf16.msra.mxu0 0
    %4201 = vmatprep.mubr.bf16.mxu0 0
    %4202 = vmatmul.mubr.bf16.gmra.mxu0 %v4165
    %v4203 = vpop.f32.mrf.mxu0
    %v4204 = vadd.f32 0.0, %v4203
    %v4205 = vpop.f32.mrf.mxu0
    %v4206 = vpop.f32.mrf.mxu0
    %v4207 = vadd.f32 0.0, %v4206
    %v4208 = vpop.f32.mrf.mxu0
    %4209 = vmatprep.mubr.bf16.mxu0 0
    %4210 = vmatmul.mubr.bf16.gmra.mxu0 %v4166
    %v4211 = vpop.f32.mrf.mxu0
    %v4212 = vadd.f32 0.0, %v4211
    %v4213 = vpop.f32.mrf.mxu0
    %v4214 = vpop.f32.mrf.mxu0
    %v4215 = vadd.f32 0.0, %v4214
    %v4216 = vpop.f32.mrf.mxu0
    %4217 = vdwg.mxu0
    %v4218 = vadd.f32 %v4148, %v4204
    %v4219 = vadd.f32 %v4149, %v4207
    %v4220 = vadd.f32 %v4150, %v4212
    %v4221 = vadd.f32 %v4151, %v4215
    %s4222 = scalar_lea.vmem %s4, 96
    %v4223 = vld [vmem:[%s4222] sm:$0xf]
    %v4224 = vld [vmem:[%s4222 + $0x4] sm:$0xf]
    %v4225 = vld [vmem:[%s4222 + $0x8] sm:$0xf]
    %v4226 = vld [vmem:[%s4222 + $0xc] sm:$0xf]
    %v4231 = vunpack.c.l.b16 %v4223
    %v4232 = vunpack.c.l.b16 %v4224
    %v4233 = vunpack.c.l.b16 %v4225
    %v4234 = vunpack.c.l.b16 %v4226
    %v4235 = vpack.c.b16 %v4232, %v4231
    %v4236 = vpack.c.b16 %v4234, %v4233
    %4239 = vmatprep.subr.bf16.mxu0 0
    %4240 = vmatpush1.bf16.msra.mxu0 %v3792
    %4241 = vmatprep.subr.bf16.mxu0 0
    %4242 = vmatpush1.bf16.msra.mxu0 %v3767
    %4243 = vmatprep.subr.bf16.mxu0 0
    %4244 = vmatpush1.bf16.msra.mxu0 %v3742
    %4245 = vmatprep.subr.bf16.mxu0 0
    %4246 = vmatpush1.bf16.msra.mxu0 %v3717
    %4247 = vmatprep.subr.bf16.mxu0 0
    %4248 = vmatpush1.bf16.msra.mxu0 %v3692
    %4249 = vmatprep.subr.bf16.mxu0 0
    %4250 = vmatpush1.bf16.msra.mxu0 %v3667
    %4251 = vmatprep.subr.bf16.mxu0 0
    %4252 = vmatpush1.bf16.msra.mxu0 %v3642
    %4253 = vmatprep.subr.bf16.mxu0 0
    %4254 = vmatpush1.bf16.msra.mxu0 %v3617
    %4255 = vmatprep.subr.bf16.mxu0 0
    %4256 = vmatpush2.bf16.msra.mxu0 0
    %4257 = vmatprep.subr.bf16.mxu0 0
    %4258 = vmatpush2.bf16.msra.mxu0 0
    %4259 = vmatprep.subr.bf16.mxu0 0
    %4260 = vmatpush2.bf16.msra.mxu0 0
    %4261 = vmatprep.subr.bf16.mxu0 0
    %4262 = vmatpush2.bf16.msra.mxu0 0
    %4263 = vmatprep.subr.bf16.mxu0 0
    %4264 = vmatpush2.bf16.msra.mxu0 0
    %4265 = vmatprep.subr.bf16.mxu0 0
    %4266 = vmatpush2.bf16.msra.mxu0 0
    %4267 = vmatprep.subr.bf16.mxu0 0
    %4268 = vmatpush2.bf16.msra.mxu0 0
    %4269 = vmatprep.subr.bf16.mxu0 0
    %4270 = vmatpush2.bf16.msra.mxu0 0
    %4271 = vmatprep.mubr.bf16.mxu0 0
    %4272 = vmatmul.mubr.bf16.gmra.mxu0 %v4235
    %v4273 = vpop.f32.mrf.mxu0
    %v4274 = vadd.f32 0.0, %v4273
    %v4275 = vpop.f32.mrf.mxu0
    %v4276 = vpop.f32.mrf.mxu0
    %v4277 = vadd.f32 0.0, %v4276
    %v4278 = vpop.f32.mrf.mxu0
    %4279 = vmatprep.mubr.bf16.mxu0 0
    %4280 = vmatmul.mubr.bf16.gmra.mxu0 %v4236
    %v4281 = vpop.f32.mrf.mxu0
    %v4282 = vadd.f32 0.0, %v4281
    %v4283 = vpop.f32.mrf.mxu0
    %v4284 = vpop.f32.mrf.mxu0
    %v4285 = vadd.f32 0.0, %v4284
    %v4286 = vpop.f32.mrf.mxu0
    %4287 = vdwg.mxu0
    %v4288 = vadd.f32 %v4218, %v4274
    %v4289 = vadd.f32 %v4219, %v4277
    %v4290 = vadd.f32 %v4220, %v4282
    %v4291 = vadd.f32 %v4221, %v4285
    %s4292 = scalar_lea.vmem %s4, 112
    %v4293 = vld [vmem:[%s4292] sm:$0xf]
    %v4294 = vld [vmem:[%s4292 + $0x4] sm:$0xf]
    %v4295 = vld [vmem:[%s4292 + $0x8] sm:$0xf]
    %v4296 = vld [vmem:[%s4292 + $0xc] sm:$0xf]
    %v4301 = vunpack.c.l.b16 %v4293
    %v4302 = vunpack.c.l.b16 %v4294
    %v4303 = vunpack.c.l.b16 %v4295
    %v4304 = vunpack.c.l.b16 %v4296
    %v4305 = vpack.c.b16 %v4302, %v4301
    %v4306 = vpack.c.b16 %v4304, %v4303
    %4309 = vmatprep.subr.bf16.mxu0 0
    %4310 = vmatpush1.bf16.msra.mxu0 %v3793
    %4311 = vmatprep.subr.bf16.mxu0 0
    %4312 = vmatpush1.bf16.msra.mxu0 %v3768
    %4313 = vmatprep.subr.bf16.mxu0 0
    %4314 = vmatpush1.bf16.msra.mxu0 %v3743
    %4315 = vmatprep.subr.bf16.mxu0 0
    %4316 = vmatpush1.bf16.msra.mxu0 %v3718
    %4317 = vmatprep.subr.bf16.mxu0 0
    %4318 = vmatpush1.bf16.msra.mxu0 %v3693
    %4319 = vmatprep.subr.bf16.mxu0 0
    %4320 = vmatpush1.bf16.msra.mxu0 %v3668
    %4321 = vmatprep.subr.bf16.mxu0 0
    %4322 = vmatpush1.bf16.msra.mxu0 %v3643
    %4323 = vmatprep.subr.bf16.mxu0 0
    %4324 = vmatpush1.bf16.msra.mxu0 %v3618
    %4325 = vmatprep.subr.bf16.mxu0 0
    %4326 = vmatpush2.bf16.msra.mxu0 0
    %4327 = vmatprep.subr.bf16.mxu0 0
    %4328 = vmatpush2.bf16.msra.mxu0 0
    %4329 = vmatprep.subr.bf16.mxu0 0
    %4330 = vmatpush2.bf16.msra.mxu0 0
    %4331 = vmatprep.subr.bf16.mxu0 0
    %4332 = vmatpush2.bf16.msra.mxu0 0
    %4333 = vmatprep.subr.bf16.mxu0 0
    %4334 = vmatpush2.bf16.msra.mxu0 0
    %4335 = vmatprep.subr.bf16.mxu0 0
    %4336 = vmatpush2.bf16.msra.mxu0 0
    %4337 = vmatprep.subr.bf16.mxu0 0
    %4338 = vmatpush2.bf16.msra.mxu0 0
    %4339 = vmatprep.subr.bf16.mxu0 0
    %4340 = vmatpush2.bf16.msra.mxu0 0
    %4341 = vmatprep.mubr.bf16.mxu0 0
    %4342 = vmatmul.mubr.bf16.gmra.mxu0 %v4305
    %v4343 = vpop.f32.mrf.mxu0
    %v4344 = vadd.f32 0.0, %v4343
    %v4345 = vpop.f32.mrf.mxu0
    %v4346 = vpop.f32.mrf.mxu0
    %v4347 = vadd.f32 0.0, %v4346
    %v4348 = vpop.f32.mrf.mxu0
    %4349 = vmatprep.mubr.bf16.mxu0 0
    %4350 = vmatmul.mubr.bf16.gmra.mxu0 %v4306
    %v4351 = vpop.f32.mrf.mxu0
    %v4352 = vadd.f32 0.0, %v4351
    %v4353 = vpop.f32.mrf.mxu0
    %v4354 = vpop.f32.mrf.mxu0
    %v4355 = vadd.f32 0.0, %v4354
    %v4356 = vpop.f32.mrf.mxu0
    %4357 = vdwg.mxu0
    %v4358 = vadd.f32 %v4288, %v4344
    %v4359 = vadd.f32 %v4289, %v4347
    %v4360 = vadd.f32 %v4290, %v4352
    %v4361 = vadd.f32 %v4291, %v4355
    %s4362 = scalar_lea.vmem %s4, 128
    %v4363 = vld [vmem:[%s4362] sm:$0xf]
    %v4364 = vld [vmem:[%s4362 + $0x4] sm:$0xf]
    %v4365 = vld [vmem:[%s4362 + $0x8] sm:$0xf]
    %v4366 = vld [vmem:[%s4362 + $0xc] sm:$0xf]
    %v4371 = vunpack.c.l.b16 %v4363
    %v4372 = vunpack.c.l.b16 %v4364
    %v4373 = vunpack.c.l.b16 %v4365
    %v4374 = vunpack.c.l.b16 %v4366
    %v4375 = vpack.c.b16 %v4372, %v4371
    %v4376 = vpack.c.b16 %v4374, %v4373
    %4379 = vmatprep.subr.bf16.mxu0 0
    %4380 = vmatpush1.bf16.msra.mxu0 %v3794
    %4381 = vmatprep.subr.bf16.mxu0 0
    %4382 = vmatpush1.bf16.msra.mxu0 %v3769
    %4383 = vmatprep.subr.bf16.mxu0 0
    %4384 = vmatpush1.bf16.msra.mxu0 %v3744
    %4385 = vmatprep.subr.bf16.mxu0 0
    %4386 = vmatpush1.bf16.msra.mxu0 %v3719
    %4387 = vmatprep.subr.bf16.mxu0 0
    %4388 = vmatpush1.bf16.msra.mxu0 %v3694
    %4389 = vmatprep.subr.bf16.mxu0 0
    %4390 = vmatpush1.bf16.msra.mxu0 %v3669
    %4391 = vmatprep.subr.bf16.mxu0 0
    %4392 = vmatpush1.bf16.msra.mxu0 %v3644
    %4393 = vmatprep.subr.bf16.mxu0 0
    %4394 = vmatpush1.bf16.msra.mxu0 %v3619
    %4395 = vmatprep.subr.bf16.mxu0 0
    %4396 = vmatpush2.bf16.msra.mxu0 0
    %4397 = vmatprep.subr.bf16.mxu0 0
    %4398 = vmatpush2.bf16.msra.mxu0 0
    %4399 = vmatprep.subr.bf16.mxu0 0
    %4400 = vmatpush2.bf16.msra.mxu0 0
    %4401 = vmatprep.subr.bf16.mxu0 0
    %4402 = vmatpush2.bf16.msra.mxu0 0
    %4403 = vmatprep.subr.bf16.mxu0 0
    %4404 = vmatpush2.bf16.msra.mxu0 0
    %4405 = vmatprep.subr.bf16.mxu0 0
    %4406 = vmatpush2.bf16.msra.mxu0 0
    %4407 = vmatprep.subr.bf16.mxu0 0
    %4408 = vmatpush2.bf16.msra.mxu0 0
    %4409 = vmatprep.subr.bf16.mxu0 0
    %4410 = vmatpush2.bf16.msra.mxu0 0
    %4411 = vmatprep.mubr.bf16.mxu0 0
    %4412 = vmatmul.mubr.bf16.gmra.mxu0 %v4375
    %v4413 = vpop.f32.mrf.mxu0
    %v4414 = vadd.f32 0.0, %v4413
    %v4415 = vpop.f32.mrf.mxu0
    %v4416 = vpop.f32.mrf.mxu0
    %v4417 = vadd.f32 0.0, %v4416
    %v4418 = vpop.f32.mrf.mxu0
    %4419 = vmatprep.mubr.bf16.mxu0 0
    %4420 = vmatmul.mubr.bf16.gmra.mxu0 %v4376
    %v4421 = vpop.f32.mrf.mxu0
    %v4422 = vadd.f32 0.0, %v4421
    %v4423 = vpop.f32.mrf.mxu0
    %v4424 = vpop.f32.mrf.mxu0
    %v4425 = vadd.f32 0.0, %v4424
    %v4426 = vpop.f32.mrf.mxu0
    %4427 = vdwg.mxu0
    %v4428 = vadd.f32 %v4358, %v4414
    %v4429 = vadd.f32 %v4359, %v4417
    %v4430 = vadd.f32 %v4360, %v4422
    %v4431 = vadd.f32 %v4361, %v4425
    %s4432 = scalar_lea.vmem %s4, 144
    %v4433 = vld [vmem:[%s4432] sm:$0xf]
    %v4434 = vld [vmem:[%s4432 + $0x4] sm:$0xf]
    %v4435 = vld [vmem:[%s4432 + $0x8] sm:$0xf]
    %v4436 = vld [vmem:[%s4432 + $0xc] sm:$0xf]
    %v4441 = vunpack.c.l.b16 %v4433
    %v4442 = vunpack.c.l.b16 %v4434
    %v4443 = vunpack.c.l.b16 %v4435
    %v4444 = vunpack.c.l.b16 %v4436
    %v4445 = vpack.c.b16 %v4442, %v4441
    %v4446 = vpack.c.b16 %v4444, %v4443
    %4449 = vmatprep.subr.bf16.mxu0 0
    %4450 = vmatpush1.bf16.msra.mxu0 %v3795
    %4451 = vmatprep.subr.bf16.mxu0 0
    %4452 = vmatpush1.bf16.msra.mxu0 %v3770
    %4453 = vmatprep.subr.bf16.mxu0 0
    %4454 = vmatpush1.bf16.msra.mxu0 %v3745
    %4455 = vmatprep.subr.bf16.mxu0 0
    %4456 = vmatpush1.bf16.msra.mxu0 %v3720
    %4457 = vmatprep.subr.bf16.mxu0 0
    %4458 = vmatpush1.bf16.msra.mxu0 %v3695
    %4459 = vmatprep.subr.bf16.mxu0 0
    %4460 = vmatpush1.bf16.msra.mxu0 %v3670
    %4461 = vmatprep.subr.bf16.mxu0 0
    %4462 = vmatpush1.bf16.msra.mxu0 %v3645
    %4463 = vmatprep.subr.bf16.mxu0 0
    %4464 = vmatpush1.bf16.msra.mxu0 %v3620
    %4465 = vmatprep.subr.bf16.mxu0 0
    %4466 = vmatpush2.bf16.msra.mxu0 0
    %4467 = vmatprep.subr.bf16.mxu0 0
    %4468 = vmatpush2.bf16.msra.mxu0 0
    %4469 = vmatprep.subr.bf16.mxu0 0
    %4470 = vmatpush2.bf16.msra.mxu0 0
    %4471 = vmatprep.subr.bf16.mxu0 0
    %4472 = vmatpush2.bf16.msra.mxu0 0
    %4473 = vmatprep.subr.bf16.mxu0 0
    %4474 = vmatpush2.bf16.msra.mxu0 0
    %4475 = vmatprep.subr.bf16.mxu0 0
    %4476 = vmatpush2.bf16.msra.mxu0 0
    %4477 = vmatprep.subr.bf16.mxu0 0
    %4478 = vmatpush2.bf16.msra.mxu0 0
    %4479 = vmatprep.subr.bf16.mxu0 0
    %4480 = vmatpush2.bf16.msra.mxu0 0
    %4481 = vmatprep.mubr.bf16.mxu0 0
    %4482 = vmatmul.mubr.bf16.gmra.mxu0 %v4445
    %v4483 = vpop.f32.mrf.mxu0
    %v4484 = vadd.f32 0.0, %v4483
    %v4485 = vpop.f32.mrf.mxu0
    %v4486 = vpop.f32.mrf.mxu0
    %v4487 = vadd.f32 0.0, %v4486
    %v4488 = vpop.f32.mrf.mxu0
    %4489 = vmatprep.mubr.bf16.mxu0 0
    %4490 = vmatmul.mubr.bf16.gmra.mxu0 %v4446
    %v4491 = vpop.f32.mrf.mxu0
    %v4492 = vadd.f32 0.0, %v4491
    %v4493 = vpop.f32.mrf.mxu0
    %v4494 = vpop.f32.mrf.mxu0
    %v4495 = vadd.f32 0.0, %v4494
    %v4496 = vpop.f32.mrf.mxu0
    %4497 = vdwg.mxu0
    %v4498 = vadd.f32 %v4428, %v4484
    %v4499 = vadd.f32 %v4429, %v4487
    %v4500 = vadd.f32 %v4430, %v4492
    %v4501 = vadd.f32 %v4431, %v4495
    %s4502 = scalar_lea.vmem %s4, 160
    %v4503 = vld [vmem:[%s4502] sm:$0xf]
    %v4504 = vld [vmem:[%s4502 + $0x4] sm:$0xf]
    %v4505 = vld [vmem:[%s4502 + $0x8] sm:$0xf]
    %v4506 = vld [vmem:[%s4502 + $0xc] sm:$0xf]
    %v4511 = vunpack.c.l.b16 %v4503
    %v4512 = vunpack.c.l.b16 %v4504
    %v4513 = vunpack.c.l.b16 %v4505
    %v4514 = vunpack.c.l.b16 %v4506
    %v4515 = vpack.c.b16 %v4512, %v4511
    %v4516 = vpack.c.b16 %v4514, %v4513
    %4519 = vmatprep.subr.bf16.mxu0 0
    %4520 = vmatpush1.bf16.msra.mxu0 %v3796
    %4521 = vmatprep.subr.bf16.mxu0 0
    %4522 = vmatpush1.bf16.msra.mxu0 %v3771
    %4523 = vmatprep.subr.bf16.mxu0 0
    %4524 = vmatpush1.bf16.msra.mxu0 %v3746
    %4525 = vmatprep.subr.bf16.mxu0 0
    %4526 = vmatpush1.bf16.msra.mxu0 %v3721
    %4527 = vmatprep.subr.bf16.mxu0 0
    %4528 = vmatpush1.bf16.msra.mxu0 %v3696
    %4529 = vmatprep.subr.bf16.mxu0 0
    %4530 = vmatpush1.bf16.msra.mxu0 %v3671
    %4531 = vmatprep.subr.bf16.mxu0 0
    %4532 = vmatpush1.bf16.msra.mxu0 %v3646
    %4533 = vmatprep.subr.bf16.mxu0 0
    %4534 = vmatpush1.bf16.msra.mxu0 %v3621
    %4535 = vmatprep.subr.bf16.mxu0 0
    %4536 = vmatpush2.bf16.msra.mxu0 0
    %4537 = vmatprep.subr.bf16.mxu0 0
    %4538 = vmatpush2.bf16.msra.mxu0 0
    %4539 = vmatprep.subr.bf16.mxu0 0
    %4540 = vmatpush2.bf16.msra.mxu0 0
    %4541 = vmatprep.subr.bf16.mxu0 0
    %4542 = vmatpush2.bf16.msra.mxu0 0
    %4543 = vmatprep.subr.bf16.mxu0 0
    %4544 = vmatpush2.bf16.msra.mxu0 0
    %4545 = vmatprep.subr.bf16.mxu0 0
    %4546 = vmatpush2.bf16.msra.mxu0 0
    %4547 = vmatprep.subr.bf16.mxu0 0
    %4548 = vmatpush2.bf16.msra.mxu0 0
    %4549 = vmatprep.subr.bf16.mxu0 0
    %4550 = vmatpush2.bf16.msra.mxu0 0
    %4551 = vmatprep.mubr.bf16.mxu0 0
    %4552 = vmatmul.mubr.bf16.gmra.mxu0 %v4515
    %v4553 = vpop.f32.mrf.mxu0
    %v4554 = vadd.f32 0.0, %v4553
    %v4555 = vpop.f32.mrf.mxu0
    %v4556 = vpop.f32.mrf.mxu0
    %v4557 = vadd.f32 0.0, %v4556
    %v4558 = vpop.f32.mrf.mxu0
    %4559 = vmatprep.mubr.bf16.mxu0 0
    %4560 = vmatmul.mubr.bf16.gmra.mxu0 %v4516
    %v4561 = vpop.f32.mrf.mxu0
    %v4562 = vadd.f32 0.0, %v4561
    %v4563 = vpop.f32.mrf.mxu0
    %v4564 = vpop.f32.mrf.mxu0
    %v4565 = vadd.f32 0.0, %v4564
    %v4566 = vpop.f32.mrf.mxu0
    %4567 = vdwg.mxu0
    %v4568 = vadd.f32 %v4498, %v4554
    %v4569 = vadd.f32 %v4499, %v4557
    %v4570 = vadd.f32 %v4500, %v4562
    %v4571 = vadd.f32 %v4501, %v4565
    %s4572 = scalar_lea.vmem %s4, 176
    %v4573 = vld [vmem:[%s4572] sm:$0xf]
    %v4574 = vld [vmem:[%s4572 + $0x4] sm:$0xf]
    %v4575 = vld [vmem:[%s4572 + $0x8] sm:$0xf]
    %v4576 = vld [vmem:[%s4572 + $0xc] sm:$0xf]
    %v4581 = vunpack.c.l.b16 %v4573
    %v4582 = vunpack.c.l.b16 %v4574
    %v4583 = vunpack.c.l.b16 %v4575
    %v4584 = vunpack.c.l.b16 %v4576
    %v4585 = vpack.c.b16 %v4582, %v4581
    %v4586 = vpack.c.b16 %v4584, %v4583
    %4589 = vmatprep.subr.bf16.mxu0 0
    %4590 = vmatpush1.bf16.msra.mxu0 %v3797
    %4591 = vmatprep.subr.bf16.mxu0 0
    %4592 = vmatpush1.bf16.msra.mxu0 %v3772
    %4593 = vmatprep.subr.bf16.mxu0 0
    %4594 = vmatpush1.bf16.msra.mxu0 %v3747
    %4595 = vmatprep.subr.bf16.mxu0 0
    %4596 = vmatpush1.bf16.msra.mxu0 %v3722
    %4597 = vmatprep.subr.bf16.mxu0 0
    %4598 = vmatpush1.bf16.msra.mxu0 %v3697
    %4599 = vmatprep.subr.bf16.mxu0 0
    %4600 = vmatpush1.bf16.msra.mxu0 %v3672
    %4601 = vmatprep.subr.bf16.mxu0 0
    %4602 = vmatpush1.bf16.msra.mxu0 %v3647
    %4603 = vmatprep.subr.bf16.mxu0 0
    %4604 = vmatpush1.bf16.msra.mxu0 %v3622
    %4605 = vmatprep.subr.bf16.mxu0 0
    %4606 = vmatpush2.bf16.msra.mxu0 0
    %4607 = vmatprep.subr.bf16.mxu0 0
    %4608 = vmatpush2.bf16.msra.mxu0 0
    %4609 = vmatprep.subr.bf16.mxu0 0
    %4610 = vmatpush2.bf16.msra.mxu0 0
    %4611 = vmatprep.subr.bf16.mxu0 0
    %4612 = vmatpush2.bf16.msra.mxu0 0
    %4613 = vmatprep.subr.bf16.mxu0 0
    %4614 = vmatpush2.bf16.msra.mxu0 0
    %4615 = vmatprep.subr.bf16.mxu0 0
    %4616 = vmatpush2.bf16.msra.mxu0 0
    %4617 = vmatprep.subr.bf16.mxu0 0
    %4618 = vmatpush2.bf16.msra.mxu0 0
    %4619 = vmatprep.subr.bf16.mxu0 0
    %4620 = vmatpush2.bf16.msra.mxu0 0
    %4621 = vmatprep.mubr.bf16.mxu0 0
    %4622 = vmatmul.mubr.bf16.gmra.mxu0 %v4585
    %v4623 = vpop.f32.mrf.mxu0
    %v4624 = vadd.f32 0.0, %v4623
    %v4625 = vpop.f32.mrf.mxu0
    %v4626 = vpop.f32.mrf.mxu0
    %v4627 = vadd.f32 0.0, %v4626
    %v4628 = vpop.f32.mrf.mxu0
    %4629 = vmatprep.mubr.bf16.mxu0 0
    %4630 = vmatmul.mubr.bf16.gmra.mxu0 %v4586
    %v4631 = vpop.f32.mrf.mxu0
    %v4632 = vadd.f32 0.0, %v4631
    %v4633 = vpop.f32.mrf.mxu0
    %v4634 = vpop.f32.mrf.mxu0
    %v4635 = vadd.f32 0.0, %v4634
    %v4636 = vpop.f32.mrf.mxu0
    %4637 = vdwg.mxu0
    %v4638 = vadd.f32 %v4568, %v4624
    %v4639 = vadd.f32 %v4569, %v4627
    %v4640 = vadd.f32 %v4570, %v4632
    %v4641 = vadd.f32 %v4571, %v4635
    %s4642 = scalar_lea.vmem %s4, 192
    %v4643 = vld [vmem:[%s4642] sm:$0xf]
    %v4644 = vld [vmem:[%s4642 + $0x4] sm:$0xf]
    %v4645 = vld [vmem:[%s4642 + $0x8] sm:$0xf]
    %v4646 = vld [vmem:[%s4642 + $0xc] sm:$0xf]
    %v4651 = vunpack.c.l.b16 %v4643
    %v4652 = vunpack.c.l.b16 %v4644
    %v4653 = vunpack.c.l.b16 %v4645
    %v4654 = vunpack.c.l.b16 %v4646
    %v4655 = vpack.c.b16 %v4652, %v4651
    %v4656 = vpack.c.b16 %v4654, %v4653
    %4659 = vmatprep.subr.bf16.mxu0 0
    %4660 = vmatpush1.bf16.msra.mxu0 %v3798
    %4661 = vmatprep.subr.bf16.mxu0 0
    %4662 = vmatpush1.bf16.msra.mxu0 %v3773
    %4663 = vmatprep.subr.bf16.mxu0 0
    %4664 = vmatpush1.bf16.msra.mxu0 %v3748
    %4665 = vmatprep.subr.bf16.mxu0 0
    %4666 = vmatpush1.bf16.msra.mxu0 %v3723
    %4667 = vmatprep.subr.bf16.mxu0 0
    %4668 = vmatpush1.bf16.msra.mxu0 %v3698
    %4669 = vmatprep.subr.bf16.mxu0 0
    %4670 = vmatpush1.bf16.msra.mxu0 %v3673
    %4671 = vmatprep.subr.bf16.mxu0 0
    %4672 = vmatpush1.bf16.msra.mxu0 %v3648
    %4673 = vmatprep.subr.bf16.mxu0 0
    %4674 = vmatpush1.bf16.msra.mxu0 %v3623
    %4675 = vmatprep.subr.bf16.mxu0 0
    %4676 = vmatpush2.bf16.msra.mxu0 0
    %4677 = vmatprep.subr.bf16.mxu0 0
    %4678 = vmatpush2.bf16.msra.mxu0 0
    %4679 = vmatprep.subr.bf16.mxu0 0
    %4680 = vmatpush2.bf16.msra.mxu0 0
    %4681 = vmatprep.subr.bf16.mxu0 0
    %4682 = vmatpush2.bf16.msra.mxu0 0
    %4683 = vmatprep.subr.bf16.mxu0 0
    %4684 = vmatpush2.bf16.msra.mxu0 0
    %4685 = vmatprep.subr.bf16.mxu0 0
    %4686 = vmatpush2.bf16.msra.mxu0 0
    %4687 = vmatprep.subr.bf16.mxu0 0
    %4688 = vmatpush2.bf16.msra.mxu0 0
    %4689 = vmatprep.subr.bf16.mxu0 0
    %4690 = vmatpush2.bf16.msra.mxu0 0
    %4691 = vmatprep.mubr.bf16.mxu0 0
    %4692 = vmatmul.mubr.bf16.gmra.mxu0 %v4655
    %v4693 = vpop.f32.mrf.mxu0
    %v4694 = vadd.f32 0.0, %v4693
    %v4695 = vpop.f32.mrf.mxu0
    %v4696 = vpop.f32.mrf.mxu0
    %v4697 = vadd.f32 0.0, %v4696
    %v4698 = vpop.f32.mrf.mxu0
    %4699 = vmatprep.mubr.bf16.mxu0 0
    %4700 = vmatmul.mubr.bf16.gmra.mxu0 %v4656
    %v4701 = vpop.f32.mrf.mxu0
    %v4702 = vadd.f32 0.0, %v4701
    %v4703 = vpop.f32.mrf.mxu0
    %v4704 = vpop.f32.mrf.mxu0
    %v4705 = vadd.f32 0.0, %v4704
    %v4706 = vpop.f32.mrf.mxu0
    %4707 = vdwg.mxu0
    %v4708 = vadd.f32 %v4638, %v4694
    %v4709 = vadd.f32 %v4639, %v4697
    %v4710 = vadd.f32 %v4640, %v4702
    %v4711 = vadd.f32 %v4641, %v4705
    %s4712 = scalar_lea.vmem %s4, 208
    %v4713 = vld [vmem:[%s4712] sm:$0xf]
    %v4714 = vld [vmem:[%s4712 + $0x4] sm:$0xf]
    %v4715 = vld [vmem:[%s4712 + $0x8] sm:$0xf]
    %v4716 = vld [vmem:[%s4712 + $0xc] sm:$0xf]
    %v4721 = vunpack.c.l.b16 %v4713
    %v4722 = vunpack.c.l.b16 %v4714
    %v4723 = vunpack.c.l.b16 %v4715
    %v4724 = vunpack.c.l.b16 %v4716
    %v4725 = vpack.c.b16 %v4722, %v4721
    %v4726 = vpack.c.b16 %v4724, %v4723
    %4729 = vmatprep.subr.bf16.mxu0 0
    %4730 = vmatpush1.bf16.msra.mxu0 %v3799
    %4731 = vmatprep.subr.bf16.mxu0 0
    %4732 = vmatpush1.bf16.msra.mxu0 %v3774
    %4733 = vmatprep.subr.bf16.mxu0 0
    %4734 = vmatpush1.bf16.msra.mxu0 %v3749
    %4735 = vmatprep.subr.bf16.mxu0 0
    %4736 = vmatpush1.bf16.msra.mxu0 %v3724
    %4737 = vmatprep.subr.bf16.mxu0 0
    %4738 = vmatpush1.bf16.msra.mxu0 %v3699
    %4739 = vmatprep.subr.bf16.mxu0 0
    %4740 = vmatpush1.bf16.msra.mxu0 %v3674
    %4741 = vmatprep.subr.bf16.mxu0 0
    %4742 = vmatpush1.bf16.msra.mxu0 %v3649
    %4743 = vmatprep.subr.bf16.mxu0 0
    %4744 = vmatpush1.bf16.msra.mxu0 %v3624
    %4745 = vmatprep.subr.bf16.mxu0 0
    %4746 = vmatpush2.bf16.msra.mxu0 0
    %4747 = vmatprep.subr.bf16.mxu0 0
    %4748 = vmatpush2.bf16.msra.mxu0 0
    %4749 = vmatprep.subr.bf16.mxu0 0
    %4750 = vmatpush2.bf16.msra.mxu0 0
    %4751 = vmatprep.subr.bf16.mxu0 0
    %4752 = vmatpush2.bf16.msra.mxu0 0
    %4753 = vmatprep.subr.bf16.mxu0 0
    %4754 = vmatpush2.bf16.msra.mxu0 0
    %4755 = vmatprep.subr.bf16.mxu0 0
    %4756 = vmatpush2.bf16.msra.mxu0 0
    %4757 = vmatprep.subr.bf16.mxu0 0
    %4758 = vmatpush2.bf16.msra.mxu0 0
    %4759 = vmatprep.subr.bf16.mxu0 0
    %4760 = vmatpush2.bf16.msra.mxu0 0
    %4761 = vmatprep.mubr.bf16.mxu0 0
    %4762 = vmatmul.mubr.bf16.gmra.mxu0 %v4725
    %v4763 = vpop.f32.mrf.mxu0
    %v4764 = vadd.f32 0.0, %v4763
    %v4765 = vpop.f32.mrf.mxu0
    %v4766 = vpop.f32.mrf.mxu0
    %v4767 = vadd.f32 0.0, %v4766
    %v4768 = vpop.f32.mrf.mxu0
    %4769 = vmatprep.mubr.bf16.mxu0 0
    %4770 = vmatmul.mubr.bf16.gmra.mxu0 %v4726
    %v4771 = vpop.f32.mrf.mxu0
    %v4772 = vadd.f32 0.0, %v4771
    %v4773 = vpop.f32.mrf.mxu0
    %v4774 = vpop.f32.mrf.mxu0
    %v4775 = vadd.f32 0.0, %v4774
    %v4776 = vpop.f32.mrf.mxu0
    %4777 = vdwg.mxu0
    %v4778 = vadd.f32 %v4708, %v4764
    %v4779 = vadd.f32 %v4709, %v4767
    %v4780 = vadd.f32 %v4710, %v4772
    %v4781 = vadd.f32 %v4711, %v4775
    %s4782 = scalar_lea.vmem %s4, 224
    %v4783 = vld [vmem:[%s4782] sm:$0xf]
    %v4784 = vld [vmem:[%s4782 + $0x4] sm:$0xf]
    %v4785 = vld [vmem:[%s4782 + $0x8] sm:$0xf]
    %v4786 = vld [vmem:[%s4782 + $0xc] sm:$0xf]
    %v4791 = vunpack.c.l.b16 %v4783
    %v4792 = vunpack.c.l.b16 %v4784
    %v4793 = vunpack.c.l.b16 %v4785
    %v4794 = vunpack.c.l.b16 %v4786
    %v4795 = vpack.c.b16 %v4792, %v4791
    %v4796 = vpack.c.b16 %v4794, %v4793
    %4799 = vmatprep.subr.bf16.mxu0 0
    %4800 = vmatpush1.bf16.msra.mxu0 %v3800
    %4801 = vmatprep.subr.bf16.mxu0 0
    %4802 = vmatpush1.bf16.msra.mxu0 %v3775
    %4803 = vmatprep.subr.bf16.mxu0 0
    %4804 = vmatpush1.bf16.msra.mxu0 %v3750
    %4805 = vmatprep.subr.bf16.mxu0 0
    %4806 = vmatpush1.bf16.msra.mxu0 %v3725
    %4807 = vmatprep.subr.bf16.mxu0 0
    %4808 = vmatpush1.bf16.msra.mxu0 %v3700
    %4809 = vmatprep.subr.bf16.mxu0 0
    %4810 = vmatpush1.bf16.msra.mxu0 %v3675
    %4811 = vmatprep.subr.bf16.mxu0 0
    %4812 = vmatpush1.bf16.msra.mxu0 %v3650
    %4813 = vmatprep.subr.bf16.mxu0 0
    %4814 = vmatpush1.bf16.msra.mxu0 %v3625
    %4815 = vmatprep.subr.bf16.mxu0 0
    %4816 = vmatpush2.bf16.msra.mxu0 0
    %4817 = vmatprep.subr.bf16.mxu0 0
    %4818 = vmatpush2.bf16.msra.mxu0 0
    %4819 = vmatprep.subr.bf16.mxu0 0
    %4820 = vmatpush2.bf16.msra.mxu0 0
    %4821 = vmatprep.subr.bf16.mxu0 0
    %4822 = vmatpush2.bf16.msra.mxu0 0
    %4823 = vmatprep.subr.bf16.mxu0 0
    %4824 = vmatpush2.bf16.msra.mxu0 0
    %4825 = vmatprep.subr.bf16.mxu0 0
    %4826 = vmatpush2.bf16.msra.mxu0 0
    %4827 = vmatprep.subr.bf16.mxu0 0
    %4828 = vmatpush2.bf16.msra.mxu0 0
    %4829 = vmatprep.subr.bf16.mxu0 0
    %4830 = vmatpush2.bf16.msra.mxu0 0
    %4831 = vmatprep.mubr.bf16.mxu0 0
    %4832 = vmatmul.mubr.bf16.gmra.mxu0 %v4795
    %v4833 = vpop.f32.mrf.mxu0
    %v4834 = vadd.f32 0.0, %v4833
    %v4835 = vpop.f32.mrf.mxu0
    %v4836 = vpop.f32.mrf.mxu0
    %v4837 = vadd.f32 0.0, %v4836
    %v4838 = vpop.f32.mrf.mxu0
    %4839 = vmatprep.mubr.bf16.mxu0 0
    %4840 = vmatmul.mubr.bf16.gmra.mxu0 %v4796
    %v4841 = vpop.f32.mrf.mxu0
    %v4842 = vadd.f32 0.0, %v4841
    %v4843 = vpop.f32.mrf.mxu0
    %v4844 = vpop.f32.mrf.mxu0
    %v4845 = vadd.f32 0.0, %v4844
    %v4846 = vpop.f32.mrf.mxu0
    %4847 = vdwg.mxu0
    %v4848 = vadd.f32 %v4778, %v4834
    %v4849 = vadd.f32 %v4779, %v4837
    %v4850 = vadd.f32 %v4780, %v4842
    %v4851 = vadd.f32 %v4781, %v4845
    %s4852 = scalar_lea.vmem %s4, 240
    %v4853 = vld [vmem:[%s4852] sm:$0xf]
    %v4854 = vld [vmem:[%s4852 + $0x4] sm:$0xf]
    %v4855 = vld [vmem:[%s4852 + $0x8] sm:$0xf]
    %v4856 = vld [vmem:[%s4852 + $0xc] sm:$0xf]
    %v4861 = vunpack.c.l.b16 %v4853
    %v4862 = vunpack.c.l.b16 %v4854
    %v4863 = vunpack.c.l.b16 %v4855
    %v4864 = vunpack.c.l.b16 %v4856
    %v4865 = vpack.c.b16 %v4862, %v4861
    %v4866 = vpack.c.b16 %v4864, %v4863
    %4869 = vmatprep.subr.bf16.mxu0 0
    %4870 = vmatpush1.bf16.msra.mxu0 %v3801
    %4871 = vmatprep.subr.bf16.mxu0 0
    %4872 = vmatpush1.bf16.msra.mxu0 %v3776
    %4873 = vmatprep.subr.bf16.mxu0 0
    %4874 = vmatpush1.bf16.msra.mxu0 %v3751
    %4875 = vmatprep.subr.bf16.mxu0 0
    %4876 = vmatpush1.bf16.msra.mxu0 %v3726
    %4877 = vmatprep.subr.bf16.mxu0 0
    %4878 = vmatpush1.bf16.msra.mxu0 %v3701
    %4879 = vmatprep.subr.bf16.mxu0 0
    %4880 = vmatpush1.bf16.msra.mxu0 %v3676
    %4881 = vmatprep.subr.bf16.mxu0 0
    %4882 = vmatpush1.bf16.msra.mxu0 %v3651
    %4883 = vmatprep.subr.bf16.mxu0 0
    %4884 = vmatpush1.bf16.msra.mxu0 %v3626
    %4885 = vmatprep.subr.bf16.mxu0 0
    %4886 = vmatpush2.bf16.msra.mxu0 0
    %4887 = vmatprep.subr.bf16.mxu0 0
    %4888 = vmatpush2.bf16.msra.mxu0 0
    %4889 = vmatprep.subr.bf16.mxu0 0
    %4890 = vmatpush2.bf16.msra.mxu0 0
    %4891 = vmatprep.subr.bf16.mxu0 0
    %4892 = vmatpush2.bf16.msra.mxu0 0
    %4893 = vmatprep.subr.bf16.mxu0 0
    %4894 = vmatpush2.bf16.msra.mxu0 0
    %4895 = vmatprep.subr.bf16.mxu0 0
    %4896 = vmatpush2.bf16.msra.mxu0 0
    %4897 = vmatprep.subr.bf16.mxu0 0
    %4898 = vmatpush2.bf16.msra.mxu0 0
    %4899 = vmatprep.subr.bf16.mxu0 0
    %4900 = vmatpush2.bf16.msra.mxu0 0
    %4901 = vmatprep.mubr.bf16.mxu0 0
    %4902 = vmatmul.mubr.bf16.gmra.mxu0 %v4865
    %v4903 = vpop.f32.mrf.mxu0
    %v4904 = vadd.f32 0.0, %v4903
    %v4905 = vpop.f32.mrf.mxu0
    %v4906 = vpop.f32.mrf.mxu0
    %v4907 = vadd.f32 0.0, %v4906
    %v4908 = vpop.f32.mrf.mxu0
    %4909 = vmatprep.mubr.bf16.mxu0 0
    %4910 = vmatmul.mubr.bf16.gmra.mxu0 %v4866
    %v4911 = vpop.f32.mrf.mxu0
    %v4912 = vadd.f32 0.0, %v4911
    %v4913 = vpop.f32.mrf.mxu0
    %v4914 = vpop.f32.mrf.mxu0
    %v4915 = vadd.f32 0.0, %v4914
    %v4916 = vpop.f32.mrf.mxu0
    %4917 = vdwg.mxu0
    %v4918 = vadd.f32 %v4848, %v4904
    %v4919 = vadd.f32 %v4849, %v4907
    %v4920 = vadd.f32 %v4850, %v4912
    %v4921 = vadd.f32 %v4851, %v4915
    %s4922 = scalar_lea.vmem %s4, 256
    %v4923 = vld [vmem:[%s4922] sm:$0xf]
    %v4924 = vld [vmem:[%s4922 + $0x4] sm:$0xf]
    %v4925 = vld [vmem:[%s4922 + $0x8] sm:$0xf]
    %v4926 = vld [vmem:[%s4922 + $0xc] sm:$0xf]
    %v4931 = vunpack.c.l.b16 %v4923
    %v4932 = vunpack.c.l.b16 %v4924
    %v4933 = vunpack.c.l.b16 %v4925
    %v4934 = vunpack.c.l.b16 %v4926
    %v4935 = vpack.c.b16 %v4932, %v4931
    %v4936 = vpack.c.b16 %v4934, %v4933
    %4939 = vmatprep.subr.bf16.mxu0 0
    %4940 = vmatpush1.bf16.msra.mxu0 %v3802
    %4941 = vmatprep.subr.bf16.mxu0 0
    %4942 = vmatpush1.bf16.msra.mxu0 %v3777
    %4943 = vmatprep.subr.bf16.mxu0 0
    %4944 = vmatpush1.bf16.msra.mxu0 %v3752
    %4945 = vmatprep.subr.bf16.mxu0 0
    %4946 = vmatpush1.bf16.msra.mxu0 %v3727
    %4947 = vmatprep.subr.bf16.mxu0 0
    %4948 = vmatpush1.bf16.msra.mxu0 %v3702
    %4949 = vmatprep.subr.bf16.mxu0 0
    %4950 = vmatpush1.bf16.msra.mxu0 %v3677
    %4951 = vmatprep.subr.bf16.mxu0 0
    %4952 = vmatpush1.bf16.msra.mxu0 %v3652
    %4953 = vmatprep.subr.bf16.mxu0 0
    %4954 = vmatpush1.bf16.msra.mxu0 %v3627
    %4955 = vmatprep.subr.bf16.mxu0 0
    %4956 = vmatpush2.bf16.msra.mxu0 0
    %4957 = vmatprep.subr.bf16.mxu0 0
    %4958 = vmatpush2.bf16.msra.mxu0 0
    %4959 = vmatprep.subr.bf16.mxu0 0
    %4960 = vmatpush2.bf16.msra.mxu0 0
    %4961 = vmatprep.subr.bf16.mxu0 0
    %4962 = vmatpush2.bf16.msra.mxu0 0
    %4963 = vmatprep.subr.bf16.mxu0 0
    %4964 = vmatpush2.bf16.msra.mxu0 0
    %4965 = vmatprep.subr.bf16.mxu0 0
    %4966 = vmatpush2.bf16.msra.mxu0 0
    %4967 = vmatprep.subr.bf16.mxu0 0
    %4968 = vmatpush2.bf16.msra.mxu0 0
    %4969 = vmatprep.subr.bf16.mxu0 0
    %4970 = vmatpush2.bf16.msra.mxu0 0
    %4971 = vmatprep.mubr.bf16.mxu0 0
    %4972 = vmatmul.mubr.bf16.gmra.mxu0 %v4935
    %v4973 = vpop.f32.mrf.mxu0
    %v4974 = vadd.f32 0.0, %v4973
    %v4975 = vpop.f32.mrf.mxu0
    %v4976 = vpop.f32.mrf.mxu0
    %v4977 = vadd.f32 0.0, %v4976
    %v4978 = vpop.f32.mrf.mxu0
    %4979 = vmatprep.mubr.bf16.mxu0 0
    %4980 = vmatmul.mubr.bf16.gmra.mxu0 %v4936
    %v4981 = vpop.f32.mrf.mxu0
    %v4982 = vadd.f32 0.0, %v4981
    %v4983 = vpop.f32.mrf.mxu0
    %v4984 = vpop.f32.mrf.mxu0
    %v4985 = vadd.f32 0.0, %v4984
    %v4986 = vpop.f32.mrf.mxu0
    %4987 = vdwg.mxu0
    %v4988 = vadd.f32 %v4918, %v4974
    %v4989 = vadd.f32 %v4919, %v4977
    %v4990 = vadd.f32 %v4920, %v4982
    %v4991 = vadd.f32 %v4921, %v4985
    %s4992 = scalar_lea.vmem %s4, 272
    %v4993 = vld [vmem:[%s4992] sm:$0xf]
    %v4994 = vld [vmem:[%s4992 + $0x4] sm:$0xf]
    %v4995 = vld [vmem:[%s4992 + $0x8] sm:$0xf]
    %v4996 = vld [vmem:[%s4992 + $0xc] sm:$0xf]
    %v5001 = vunpack.c.l.b16 %v4993
    %v5002 = vunpack.c.l.b16 %v4994
    %v5003 = vunpack.c.l.b16 %v4995
    %v5004 = vunpack.c.l.b16 %v4996
    %v5005 = vpack.c.b16 %v5002, %v5001
    %v5006 = vpack.c.b16 %v5004, %v5003
    %5009 = vmatprep.subr.bf16.mxu0 0
    %5010 = vmatpush1.bf16.msra.mxu0 %v3803
    %5011 = vmatprep.subr.bf16.mxu0 0
    %5012 = vmatpush1.bf16.msra.mxu0 %v3778
    %5013 = vmatprep.subr.bf16.mxu0 0
    %5014 = vmatpush1.bf16.msra.mxu0 %v3753
    %5015 = vmatprep.subr.bf16.mxu0 0
    %5016 = vmatpush1.bf16.msra.mxu0 %v3728
    %5017 = vmatprep.subr.bf16.mxu0 0
    %5018 = vmatpush1.bf16.msra.mxu0 %v3703
    %5019 = vmatprep.subr.bf16.mxu0 0
    %5020 = vmatpush1.bf16.msra.mxu0 %v3678
    %5021 = vmatprep.subr.bf16.mxu0 0
    %5022 = vmatpush1.bf16.msra.mxu0 %v3653
    %5023 = vmatprep.subr.bf16.mxu0 0
    %5024 = vmatpush1.bf16.msra.mxu0 %v3628
    %5025 = vmatprep.subr.bf16.mxu0 0
    %5026 = vmatpush2.bf16.msra.mxu0 0
    %5027 = vmatprep.subr.bf16.mxu0 0
    %5028 = vmatpush2.bf16.msra.mxu0 0
    %5029 = vmatprep.subr.bf16.mxu0 0
    %5030 = vmatpush2.bf16.msra.mxu0 0
    %5031 = vmatprep.subr.bf16.mxu0 0
    %5032 = vmatpush2.bf16.msra.mxu0 0
    %5033 = vmatprep.subr.bf16.mxu0 0
    %5034 = vmatpush2.bf16.msra.mxu0 0
    %5035 = vmatprep.subr.bf16.mxu0 0
    %5036 = vmatpush2.bf16.msra.mxu0 0
    %5037 = vmatprep.subr.bf16.mxu0 0
    %5038 = vmatpush2.bf16.msra.mxu0 0
    %5039 = vmatprep.subr.bf16.mxu0 0
    %5040 = vmatpush2.bf16.msra.mxu0 0
    %5041 = vmatprep.mubr.bf16.mxu0 0
    %5042 = vmatmul.mubr.bf16.gmra.mxu0 %v5005
    %v5043 = vpop.f32.mrf.mxu0
    %v5044 = vadd.f32 0.0, %v5043
    %v5045 = vpop.f32.mrf.mxu0
    %v5046 = vpop.f32.mrf.mxu0
    %v5047 = vadd.f32 0.0, %v5046
    %v5048 = vpop.f32.mrf.mxu0
    %5049 = vmatprep.mubr.bf16.mxu0 0
    %5050 = vmatmul.mubr.bf16.gmra.mxu0 %v5006
    %v5051 = vpop.f32.mrf.mxu0
    %v5052 = vadd.f32 0.0, %v5051
    %v5053 = vpop.f32.mrf.mxu0
    %v5054 = vpop.f32.mrf.mxu0
    %v5055 = vadd.f32 0.0, %v5054
    %v5056 = vpop.f32.mrf.mxu0
    %5057 = vdwg.mxu0
    %v5058 = vadd.f32 %v4988, %v5044
    %v5059 = vadd.f32 %v4989, %v5047
    %v5060 = vadd.f32 %v4990, %v5052
    %v5061 = vadd.f32 %v4991, %v5055
    %s5062 = scalar_lea.vmem %s4, 288
    %v5063 = vld [vmem:[%s5062] sm:$0xf]
    %v5064 = vld [vmem:[%s5062 + $0x4] sm:$0xf]
    %v5065 = vld [vmem:[%s5062 + $0x8] sm:$0xf]
    %v5066 = vld [vmem:[%s5062 + $0xc] sm:$0xf]
    %v5071 = vunpack.c.l.b16 %v5063
    %v5072 = vunpack.c.l.b16 %v5064
    %v5073 = vunpack.c.l.b16 %v5065
    %v5074 = vunpack.c.l.b16 %v5066
    %v5075 = vpack.c.b16 %v5072, %v5071
    %v5076 = vpack.c.b16 %v5074, %v5073
    %5079 = vmatprep.subr.bf16.mxu0 0
    %5080 = vmatpush1.bf16.msra.mxu0 %v3804
    %5081 = vmatprep.subr.bf16.mxu0 0
    %5082 = vmatpush1.bf16.msra.mxu0 %v3779
    %5083 = vmatprep.subr.bf16.mxu0 0
    %5084 = vmatpush1.bf16.msra.mxu0 %v3754
    %5085 = vmatprep.subr.bf16.mxu0 0
    %5086 = vmatpush1.bf16.msra.mxu0 %v3729
    %5087 = vmatprep.subr.bf16.mxu0 0
    %5088 = vmatpush1.bf16.msra.mxu0 %v3704
    %5089 = vmatprep.subr.bf16.mxu0 0
    %5090 = vmatpush1.bf16.msra.mxu0 %v3679
    %5091 = vmatprep.subr.bf16.mxu0 0
    %5092 = vmatpush1.bf16.msra.mxu0 %v3654
    %5093 = vmatprep.subr.bf16.mxu0 0
    %5094 = vmatpush1.bf16.msra.mxu0 %v3629
    %5095 = vmatprep.subr.bf16.mxu0 0
    %5096 = vmatpush2.bf16.msra.mxu0 0
    %5097 = vmatprep.subr.bf16.mxu0 0
    %5098 = vmatpush2.bf16.msra.mxu0 0
    %5099 = vmatprep.subr.bf16.mxu0 0
    %5100 = vmatpush2.bf16.msra.mxu0 0
    %5101 = vmatprep.subr.bf16.mxu0 0
    %5102 = vmatpush2.bf16.msra.mxu0 0
    %5103 = vmatprep.subr.bf16.mxu0 0
    %5104 = vmatpush2.bf16.msra.mxu0 0
    %5105 = vmatprep.subr.bf16.mxu0 0
    %5106 = vmatpush2.bf16.msra.mxu0 0
    %5107 = vmatprep.subr.bf16.mxu0 0
    %5108 = vmatpush2.bf16.msra.mxu0 0
    %5109 = vmatprep.subr.bf16.mxu0 0
    %5110 = vmatpush2.bf16.msra.mxu0 0
    %5111 = vmatprep.mubr.bf16.mxu0 0
    %5112 = vmatmul.mubr.bf16.gmra.mxu0 %v5075
    %v5113 = vpop.f32.mrf.mxu0
    %v5114 = vadd.f32 0.0, %v5113
    %v5115 = vpop.f32.mrf.mxu0
    %v5116 = vpop.f32.mrf.mxu0
    %v5117 = vadd.f32 0.0, %v5116
    %v5118 = vpop.f32.mrf.mxu0
    %5119 = vmatprep.mubr.bf16.mxu0 0
    %5120 = vmatmul.mubr.bf16.gmra.mxu0 %v5076
    %v5121 = vpop.f32.mrf.mxu0
    %v5122 = vadd.f32 0.0, %v5121
    %v5123 = vpop.f32.mrf.mxu0
    %v5124 = vpop.f32.mrf.mxu0
    %v5125 = vadd.f32 0.0, %v5124
    %v5126 = vpop.f32.mrf.mxu0
    %5127 = vdwg.mxu0
    %v5128 = vadd.f32 %v5058, %v5114
    %v5129 = vadd.f32 %v5059, %v5117
    %v5130 = vadd.f32 %v5060, %v5122
    %v5131 = vadd.f32 %v5061, %v5125
    %s5132 = scalar_lea.vmem %s4, 304
    %v5133 = vld [vmem:[%s5132] sm:$0xf]
    %v5134 = vld [vmem:[%s5132 + $0x4] sm:$0xf]
    %v5135 = vld [vmem:[%s5132 + $0x8] sm:$0xf]
    %v5136 = vld [vmem:[%s5132 + $0xc] sm:$0xf]
    %v5141 = vunpack.c.l.b16 %v5133
    %v5142 = vunpack.c.l.b16 %v5134
    %v5143 = vunpack.c.l.b16 %v5135
    %v5144 = vunpack.c.l.b16 %v5136
    %v5145 = vpack.c.b16 %v5142, %v5141
    %v5146 = vpack.c.b16 %v5144, %v5143
    %5149 = vmatprep.subr.bf16.mxu0 0
    %5150 = vmatpush1.bf16.msra.mxu0 %v3805
    %5151 = vmatprep.subr.bf16.mxu0 0
    %5152 = vmatpush1.bf16.msra.mxu0 %v3780
    %5153 = vmatprep.subr.bf16.mxu0 0
    %5154 = vmatpush1.bf16.msra.mxu0 %v3755
    %5155 = vmatprep.subr.bf16.mxu0 0
    %5156 = vmatpush1.bf16.msra.mxu0 %v3730
    %5157 = vmatprep.subr.bf16.mxu0 0
    %5158 = vmatpush1.bf16.msra.mxu0 %v3705
    %5159 = vmatprep.subr.bf16.mxu0 0
    %5160 = vmatpush1.bf16.msra.mxu0 %v3680
    %5161 = vmatprep.subr.bf16.mxu0 0
    %5162 = vmatpush1.bf16.msra.mxu0 %v3655
    %5163 = vmatprep.subr.bf16.mxu0 0
    %5164 = vmatpush1.bf16.msra.mxu0 %v3630
    %5165 = vmatprep.subr.bf16.mxu0 0
    %5166 = vmatpush2.bf16.msra.mxu0 0
    %5167 = vmatprep.subr.bf16.mxu0 0
    %5168 = vmatpush2.bf16.msra.mxu0 0
    %5169 = vmatprep.subr.bf16.mxu0 0
    %5170 = vmatpush2.bf16.msra.mxu0 0
    %5171 = vmatprep.subr.bf16.mxu0 0
    %5172 = vmatpush2.bf16.msra.mxu0 0
    %5173 = vmatprep.subr.bf16.mxu0 0
    %5174 = vmatpush2.bf16.msra.mxu0 0
    %5175 = vmatprep.subr.bf16.mxu0 0
    %5176 = vmatpush2.bf16.msra.mxu0 0
    %5177 = vmatprep.subr.bf16.mxu0 0
    %5178 = vmatpush2.bf16.msra.mxu0 0
    %5179 = vmatprep.subr.bf16.mxu0 0
    %5180 = vmatpush2.bf16.msra.mxu0 0
    %5181 = vmatprep.mubr.bf16.mxu0 0
    %5182 = vmatmul.mubr.bf16.gmra.mxu0 %v5145
    %v5183 = vpop.f32.mrf.mxu0
    %v5184 = vadd.f32 0.0, %v5183
    %v5185 = vpop.f32.mrf.mxu0
    %v5186 = vpop.f32.mrf.mxu0
    %v5187 = vadd.f32 0.0, %v5186
    %v5188 = vpop.f32.mrf.mxu0
    %5189 = vmatprep.mubr.bf16.mxu0 0
    %5190 = vmatmul.mubr.bf16.gmra.mxu0 %v5146
    %v5191 = vpop.f32.mrf.mxu0
    %v5192 = vadd.f32 0.0, %v5191
    %v5193 = vpop.f32.mrf.mxu0
    %v5194 = vpop.f32.mrf.mxu0
    %v5195 = vadd.f32 0.0, %v5194
    %v5196 = vpop.f32.mrf.mxu0
    %5197 = vdwg.mxu0
    %v5198 = vadd.f32 %v5128, %v5184
    %v5199 = vadd.f32 %v5129, %v5187
    %v5200 = vadd.f32 %v5130, %v5192
    %v5201 = vadd.f32 %v5131, %v5195
    %s5202 = scalar_lea.vmem %s4, 320
    %v5203 = vld [vmem:[%s5202] sm:$0xf]
    %v5204 = vld [vmem:[%s5202 + $0x4] sm:$0xf]
    %v5205 = vld [vmem:[%s5202 + $0x8] sm:$0xf]
    %v5206 = vld [vmem:[%s5202 + $0xc] sm:$0xf]
    %v5211 = vunpack.c.l.b16 %v5203
    %v5212 = vunpack.c.l.b16 %v5204
    %v5213 = vunpack.c.l.b16 %v5205
    %v5214 = vunpack.c.l.b16 %v5206
    %v5215 = vpack.c.b16 %v5212, %v5211
    %v5216 = vpack.c.b16 %v5214, %v5213
    %5219 = vmatprep.subr.bf16.mxu0 0
    %5220 = vmatpush1.bf16.msra.mxu0 %v3806
    %5221 = vmatprep.subr.bf16.mxu0 0
    %5222 = vmatpush1.bf16.msra.mxu0 %v3781
    %5223 = vmatprep.subr.bf16.mxu0 0
    %5224 = vmatpush1.bf16.msra.mxu0 %v3756
    %5225 = vmatprep.subr.bf16.mxu0 0
    %5226 = vmatpush1.bf16.msra.mxu0 %v3731
    %5227 = vmatprep.subr.bf16.mxu0 0
    %5228 = vmatpush1.bf16.msra.mxu0 %v3706
    %5229 = vmatprep.subr.bf16.mxu0 0
    %5230 = vmatpush1.bf16.msra.mxu0 %v3681
    %5231 = vmatprep.subr.bf16.mxu0 0
    %5232 = vmatpush1.bf16.msra.mxu0 %v3656
    %5233 = vmatprep.subr.bf16.mxu0 0
    %5234 = vmatpush1.bf16.msra.mxu0 %v3631
    %5235 = vmatprep.subr.bf16.mxu0 0
    %5236 = vmatpush2.bf16.msra.mxu0 0
    %5237 = vmatprep.subr.bf16.mxu0 0
    %5238 = vmatpush2.bf16.msra.mxu0 0
    %5239 = vmatprep.subr.bf16.mxu0 0
    %5240 = vmatpush2.bf16.msra.mxu0 0
    %5241 = vmatprep.subr.bf16.mxu0 0
    %5242 = vmatpush2.bf16.msra.mxu0 0
    %5243 = vmatprep.subr.bf16.mxu0 0
    %5244 = vmatpush2.bf16.msra.mxu0 0
    %5245 = vmatprep.subr.bf16.mxu0 0
    %5246 = vmatpush2.bf16.msra.mxu0 0
    %5247 = vmatprep.subr.bf16.mxu0 0
    %5248 = vmatpush2.bf16.msra.mxu0 0
    %5249 = vmatprep.subr.bf16.mxu0 0
    %5250 = vmatpush2.bf16.msra.mxu0 0
    %5251 = vmatprep.mubr.bf16.mxu0 0
    %5252 = vmatmul.mubr.bf16.gmra.mxu0 %v5215
    %v5253 = vpop.f32.mrf.mxu0
    %v5254 = vadd.f32 0.0, %v5253
    %v5255 = vpop.f32.mrf.mxu0
    %v5256 = vpop.f32.mrf.mxu0
    %v5257 = vadd.f32 0.0, %v5256
    %v5258 = vpop.f32.mrf.mxu0
    %5259 = vmatprep.mubr.bf16.mxu0 0
    %5260 = vmatmul.mubr.bf16.gmra.mxu0 %v5216
    %v5261 = vpop.f32.mrf.mxu0
    %v5262 = vadd.f32 0.0, %v5261
    %v5263 = vpop.f32.mrf.mxu0
    %v5264 = vpop.f32.mrf.mxu0
    %v5265 = vadd.f32 0.0, %v5264
    %v5266 = vpop.f32.mrf.mxu0
    %5267 = vdwg.mxu0
    %v5268 = vadd.f32 %v5198, %v5254
    %v5269 = vadd.f32 %v5199, %v5257
    %v5270 = vadd.f32 %v5200, %v5262
    %v5271 = vadd.f32 %v5201, %v5265
    %s5272 = scalar_lea.vmem %s4, 336
    %v5273 = vld [vmem:[%s5272] sm:$0xf]
    %v5274 = vld [vmem:[%s5272 + $0x4] sm:$0xf]
    %v5275 = vld [vmem:[%s5272 + $0x8] sm:$0xf]
    %v5276 = vld [vmem:[%s5272 + $0xc] sm:$0xf]
    %v5281 = vunpack.c.l.b16 %v5273
    %v5282 = vunpack.c.l.b16 %v5274
    %v5283 = vunpack.c.l.b16 %v5275
    %v5284 = vunpack.c.l.b16 %v5276
    %v5285 = vpack.c.b16 %v5282, %v5281
    %v5286 = vpack.c.b16 %v5284, %v5283
    %5289 = vmatprep.subr.bf16.mxu0 0
    %5290 = vmatpush1.bf16.msra.mxu0 %v3807
    %5291 = vmatprep.subr.bf16.mxu0 0
    %5292 = vmatpush1.bf16.msra.mxu0 %v3782
    %5293 = vmatprep.subr.bf16.mxu0 0
    %5294 = vmatpush1.bf16.msra.mxu0 %v3757
    %5295 = vmatprep.subr.bf16.mxu0 0
    %5296 = vmatpush1.bf16.msra.mxu0 %v3732
    %5297 = vmatprep.subr.bf16.mxu0 0
    %5298 = vmatpush1.bf16.msra.mxu0 %v3707
    %5299 = vmatprep.subr.bf16.mxu0 0
    %5300 = vmatpush1.bf16.msra.mxu0 %v3682
    %5301 = vmatprep.subr.bf16.mxu0 0
    %5302 = vmatpush1.bf16.msra.mxu0 %v3657
    %5303 = vmatprep.subr.bf16.mxu0 0
    %5304 = vmatpush1.bf16.msra.mxu0 %v3632
    %5305 = vmatprep.subr.bf16.mxu0 0
    %5306 = vmatpush2.bf16.msra.mxu0 0
    %5307 = vmatprep.subr.bf16.mxu0 0
    %5308 = vmatpush2.bf16.msra.mxu0 0
    %5309 = vmatprep.subr.bf16.mxu0 0
    %5310 = vmatpush2.bf16.msra.mxu0 0
    %5311 = vmatprep.subr.bf16.mxu0 0
    %5312 = vmatpush2.bf16.msra.mxu0 0
    %5313 = vmatprep.subr.bf16.mxu0 0
    %5314 = vmatpush2.bf16.msra.mxu0 0
    %5315 = vmatprep.subr.bf16.mxu0 0
    %5316 = vmatpush2.bf16.msra.mxu0 0
    %5317 = vmatprep.subr.bf16.mxu0 0
    %5318 = vmatpush2.bf16.msra.mxu0 0
    %5319 = vmatprep.subr.bf16.mxu0 0
    %5320 = vmatpush2.bf16.msra.mxu0 0
    %5321 = vmatprep.mubr.bf16.mxu0 0
    %5322 = vmatmul.mubr.bf16.gmra.mxu0 %v5285
    %v5323 = vpop.f32.mrf.mxu0
    %v5324 = vadd.f32 0.0, %v5323
    %v5325 = vpop.f32.mrf.mxu0
    %v5326 = vpop.f32.mrf.mxu0
    %v5327 = vadd.f32 0.0, %v5326
    %v5328 = vpop.f32.mrf.mxu0
    %5329 = vmatprep.mubr.bf16.mxu0 0
    %5330 = vmatmul.mubr.bf16.gmra.mxu0 %v5286
    %v5331 = vpop.f32.mrf.mxu0
    %v5332 = vadd.f32 0.0, %v5331
    %v5333 = vpop.f32.mrf.mxu0
    %v5334 = vpop.f32.mrf.mxu0
    %v5335 = vadd.f32 0.0, %v5334
    %v5336 = vpop.f32.mrf.mxu0
    %5337 = vdwg.mxu0
    %v5338 = vadd.f32 %v5268, %v5324
    %v5339 = vadd.f32 %v5269, %v5327
    %v5340 = vadd.f32 %v5270, %v5332
    %v5341 = vadd.f32 %v5271, %v5335
    %s5342 = scalar_lea.vmem %s4, 352
    %v5343 = vld [vmem:[%s5342] sm:$0xf]
    %v5344 = vld [vmem:[%s5342 + $0x4] sm:$0xf]
    %v5345 = vld [vmem:[%s5342 + $0x8] sm:$0xf]
    %v5346 = vld [vmem:[%s5342 + $0xc] sm:$0xf]
    %v5351 = vunpack.c.l.b16 %v5343
    %v5352 = vunpack.c.l.b16 %v5344
    %v5353 = vunpack.c.l.b16 %v5345
    %v5354 = vunpack.c.l.b16 %v5346
    %v5355 = vpack.c.b16 %v5352, %v5351
    %v5356 = vpack.c.b16 %v5354, %v5353
    %5359 = vmatprep.subr.bf16.mxu0 0
    %5360 = vmatpush1.bf16.msra.mxu0 %v3808
    %5361 = vmatprep.subr.bf16.mxu0 0
    %5362 = vmatpush1.bf16.msra.mxu0 %v3783
    %5363 = vmatprep.subr.bf16.mxu0 0
    %5364 = vmatpush1.bf16.msra.mxu0 %v3758
    %5365 = vmatprep.subr.bf16.mxu0 0
    %5366 = vmatpush1.bf16.msra.mxu0 %v3733
    %5367 = vmatprep.subr.bf16.mxu0 0
    %5368 = vmatpush1.bf16.msra.mxu0 %v3708
    %5369 = vmatprep.subr.bf16.mxu0 0
    %5370 = vmatpush1.bf16.msra.mxu0 %v3683
    %5371 = vmatprep.subr.bf16.mxu0 0
    %5372 = vmatpush1.bf16.msra.mxu0 %v3658
    %5373 = vmatprep.subr.bf16.mxu0 0
    %5374 = vmatpush1.bf16.msra.mxu0 %v3633
    %5375 = vmatprep.subr.bf16.mxu0 0
    %5376 = vmatpush2.bf16.msra.mxu0 0
    %5377 = vmatprep.subr.bf16.mxu0 0
    %5378 = vmatpush2.bf16.msra.mxu0 0
    %5379 = vmatprep.subr.bf16.mxu0 0
    %5380 = vmatpush2.bf16.msra.mxu0 0
    %5381 = vmatprep.subr.bf16.mxu0 0
    %5382 = vmatpush2.bf16.msra.mxu0 0
    %5383 = vmatprep.subr.bf16.mxu0 0
    %5384 = vmatpush2.bf16.msra.mxu0 0
    %5385 = vmatprep.subr.bf16.mxu0 0
    %5386 = vmatpush2.bf16.msra.mxu0 0
    %5387 = vmatprep.subr.bf16.mxu0 0
    %5388 = vmatpush2.bf16.msra.mxu0 0
    %5389 = vmatprep.subr.bf16.mxu0 0
    %5390 = vmatpush2.bf16.msra.mxu0 0
    %5391 = vmatprep.mubr.bf16.mxu0 0
    %5392 = vmatmul.mubr.bf16.gmra.mxu0 %v5355
    %v5393 = vpop.f32.mrf.mxu0
    %v5394 = vadd.f32 0.0, %v5393
    %v5395 = vpop.f32.mrf.mxu0
    %v5396 = vpop.f32.mrf.mxu0
    %v5397 = vadd.f32 0.0, %v5396
    %v5398 = vpop.f32.mrf.mxu0
    %5399 = vmatprep.mubr.bf16.mxu0 0
    %5400 = vmatmul.mubr.bf16.gmra.mxu0 %v5356
    %v5401 = vpop.f32.mrf.mxu0
    %v5402 = vadd.f32 0.0, %v5401
    %v5403 = vpop.f32.mrf.mxu0
    %v5404 = vpop.f32.mrf.mxu0
    %v5405 = vadd.f32 0.0, %v5404
    %v5406 = vpop.f32.mrf.mxu0
    %5407 = vdwg.mxu0
    %v5408 = vadd.f32 %v5338, %v5394
    %v5409 = vadd.f32 %v5339, %v5397
    %v5410 = vadd.f32 %v5340, %v5402
    %v5411 = vadd.f32 %v5341, %v5405
    %s5412 = scalar_lea.vmem %s4, 368
    %v5413 = vld [vmem:[%s5412] sm:$0xf]
    %v5414 = vld [vmem:[%s5412 + $0x4] sm:$0xf]
    %v5415 = vld [vmem:[%s5412 + $0x8] sm:$0xf]
    %v5416 = vld [vmem:[%s5412 + $0xc] sm:$0xf]
    %v5421 = vunpack.c.l.b16 %v5413
    %v5422 = vunpack.c.l.b16 %v5414
    %v5423 = vunpack.c.l.b16 %v5415
    %v5424 = vunpack.c.l.b16 %v5416
    %v5425 = vpack.c.b16 %v5422, %v5421
    %v5426 = vpack.c.b16 %v5424, %v5423
    %5429 = vmatprep.subr.bf16.mxu0 0
    %5430 = vmatpush1.bf16.msra.mxu0 %v3809
    %5431 = vmatprep.subr.bf16.mxu0 0
    %5432 = vmatpush1.bf16.msra.mxu0 %v3784
    %5433 = vmatprep.subr.bf16.mxu0 0
    %5434 = vmatpush1.bf16.msra.mxu0 %v3759
    %5435 = vmatprep.subr.bf16.mxu0 0
    %5436 = vmatpush1.bf16.msra.mxu0 %v3734
    %5437 = vmatprep.subr.bf16.mxu0 0
    %5438 = vmatpush1.bf16.msra.mxu0 %v3709
    %5439 = vmatprep.subr.bf16.mxu0 0
    %5440 = vmatpush1.bf16.msra.mxu0 %v3684
    %5441 = vmatprep.subr.bf16.mxu0 0
    %5442 = vmatpush1.bf16.msra.mxu0 %v3659
    %5443 = vmatprep.subr.bf16.mxu0 0
    %5444 = vmatpush1.bf16.msra.mxu0 %v3634
    %5445 = vmatprep.subr.bf16.mxu0 0
    %5446 = vmatpush2.bf16.msra.mxu0 0
    %5447 = vmatprep.subr.bf16.mxu0 0
    %5448 = vmatpush2.bf16.msra.mxu0 0
    %5449 = vmatprep.subr.bf16.mxu0 0
    %5450 = vmatpush2.bf16.msra.mxu0 0
    %5451 = vmatprep.subr.bf16.mxu0 0
    %5452 = vmatpush2.bf16.msra.mxu0 0
    %5453 = vmatprep.subr.bf16.mxu0 0
    %5454 = vmatpush2.bf16.msra.mxu0 0
    %5455 = vmatprep.subr.bf16.mxu0 0
    %5456 = vmatpush2.bf16.msra.mxu0 0
    %5457 = vmatprep.subr.bf16.mxu0 0
    %5458 = vmatpush2.bf16.msra.mxu0 0
    %5459 = vmatprep.subr.bf16.mxu0 0
    %5460 = vmatpush2.bf16.msra.mxu0 0
    %5461 = vmatprep.mubr.bf16.mxu0 0
    %5462 = vmatmul.mubr.bf16.gmra.mxu0 %v5425
    %v5463 = vpop.f32.mrf.mxu0
    %v5464 = vadd.f32 0.0, %v5463
    %v5465 = vpop.f32.mrf.mxu0
    %v5466 = vpop.f32.mrf.mxu0
    %v5467 = vadd.f32 0.0, %v5466
    %v5468 = vpop.f32.mrf.mxu0
    %5469 = vmatprep.mubr.bf16.mxu0 0
    %5470 = vmatmul.mubr.bf16.gmra.mxu0 %v5426
    %v5471 = vpop.f32.mrf.mxu0
    %v5472 = vadd.f32 0.0, %v5471
    %v5473 = vpop.f32.mrf.mxu0
    %v5474 = vpop.f32.mrf.mxu0
    %v5475 = vadd.f32 0.0, %v5474
    %v5476 = vpop.f32.mrf.mxu0
    %5477 = vdwg.mxu0
    %v5478 = vadd.f32 %v5408, %v5464
    %v5479 = vadd.f32 %v5409, %v5467
    %v5480 = vadd.f32 %v5410, %v5472
    %v5481 = vadd.f32 %v5411, %v5475
    %s5482 = scalar_lea.vmem %s4, 384
    %v5483 = vld [vmem:[%s5482] sm:$0xf]
    %v5484 = vld [vmem:[%s5482 + $0x4] sm:$0xf]
    %v5485 = vld [vmem:[%s5482 + $0x8] sm:$0xf]
    %v5486 = vld [vmem:[%s5482 + $0xc] sm:$0xf]
    %v5491 = vunpack.c.l.b16 %v5483
    %v5492 = vunpack.c.l.b16 %v5484
    %v5493 = vunpack.c.l.b16 %v5485
    %v5494 = vunpack.c.l.b16 %v5486
    %v5495 = vpack.c.b16 %v5492, %v5491
    %v5496 = vpack.c.b16 %v5494, %v5493
    %5499 = vmatprep.subr.bf16.mxu0 0
    %5500 = vmatpush1.bf16.msra.mxu0 %v3810
    %5501 = vmatprep.subr.bf16.mxu0 0
    %5502 = vmatpush1.bf16.msra.mxu0 %v3785
    %5503 = vmatprep.subr.bf16.mxu0 0
    %5504 = vmatpush1.bf16.msra.mxu0 %v3760
    %5505 = vmatprep.subr.bf16.mxu0 0
    %5506 = vmatpush1.bf16.msra.mxu0 %v3735
    %5507 = vmatprep.subr.bf16.mxu0 0
    %5508 = vmatpush1.bf16.msra.mxu0 %v3710
    %5509 = vmatprep.subr.bf16.mxu0 0
    %5510 = vmatpush1.bf16.msra.mxu0 %v3685
    %5511 = vmatprep.subr.bf16.mxu0 0
    %5512 = vmatpush1.bf16.msra.mxu0 %v3660
    %5513 = vmatprep.subr.bf16.mxu0 0
    %5514 = vmatpush1.bf16.msra.mxu0 %v3635
    %5515 = vmatprep.subr.bf16.mxu0 0
    %5516 = vmatpush2.bf16.msra.mxu0 0
    %5517 = vmatprep.subr.bf16.mxu0 0
    %5518 = vmatpush2.bf16.msra.mxu0 0
    %5519 = vmatprep.subr.bf16.mxu0 0
    %5520 = vmatpush2.bf16.msra.mxu0 0
    %5521 = vmatprep.subr.bf16.mxu0 0
    %5522 = vmatpush2.bf16.msra.mxu0 0
    %5523 = vmatprep.subr.bf16.mxu0 0
    %5524 = vmatpush2.bf16.msra.mxu0 0
    %5525 = vmatprep.subr.bf16.mxu0 0
    %5526 = vmatpush2.bf16.msra.mxu0 0
    %5527 = vmatprep.subr.bf16.mxu0 0
    %5528 = vmatpush2.bf16.msra.mxu0 0
    %5529 = vmatprep.subr.bf16.mxu0 0
    %5530 = vmatpush2.bf16.msra.mxu0 0
    %5531 = vmatprep.mubr.bf16.mxu0 0
    %5532 = vmatmul.mubr.bf16.gmra.mxu0 %v5495
    %v5533 = vpop.f32.mrf.mxu0
    %v5534 = vadd.f32 0.0, %v5533
    %v5535 = vpop.f32.mrf.mxu0
    %v5536 = vpop.f32.mrf.mxu0
    %v5537 = vadd.f32 0.0, %v5536
    %v5538 = vpop.f32.mrf.mxu0
    %5539 = vmatprep.mubr.bf16.mxu0 0
    %5540 = vmatmul.mubr.bf16.gmra.mxu0 %v5496
    %v5541 = vpop.f32.mrf.mxu0
    %v5542 = vadd.f32 0.0, %v5541
    %v5543 = vpop.f32.mrf.mxu0
    %v5544 = vpop.f32.mrf.mxu0
    %v5545 = vadd.f32 0.0, %v5544
    %v5546 = vpop.f32.mrf.mxu0
    %5547 = vdwg.mxu0
    %v5548 = vadd.f32 %v5478, %v5534
    %v5549 = vadd.f32 %v5479, %v5537
    %v5550 = vadd.f32 %v5480, %v5542
    %v5551 = vadd.f32 %v5481, %v5545
    %v5552 = vadd.f32 %v5548, %v5549
    %v5553 = vadd.f32 %v5552, %v5550
    %v5554 = vadd.f32 %v5553, %v5551
    %v5555 = vrot.slane %v5554, 4
    %v5556 = vadd.f32 %v5554, %v5555
    %v5557 = vrot.slane %v5556, 2
    %v5558 = vadd.f32 %v5556, %v5557
    %v5559 = vrot.slane %v5558, 1
    %v5560 = vadd.f32 %v5558, %v5559
    %v5561 = vmul.f32 %v5548, %v5548
    %v5562 = vmul.f32 %v5549, %v5549
    %v5563 = vmul.f32 %v5550, %v5550
    %v5564 = vmul.f32 %v5551, %v5551
    %v5565 = vadd.f32 %v5561, %v5562
    %v5566 = vadd.f32 %v5565, %v5563
    %v5567 = vadd.f32 %v5566, %v5564
    %v5568 = vrot.slane %v5567, 4
    %v5569 = vadd.f32 %v5567, %v5568
    %v5570 = vrot.slane %v5569, 2
    %v5571 = vadd.f32 %v5569, %v5570
    %v5572 = vrot.slane %v5571, 1
    %v5573 = vadd.f32 %v5571, %v5572
    %v5574 = vmul.f32 %v5560, 0.03125
    %v5575 = vmul.f32 %v5573, 0.03125
    %v5576 = vmul.f32 %v5574, %v5574
    %v5577 = vsub.f32 %v5575, %v5576
    %v5578 = vld [vmem:[%s5] sm:$0x1]
    %v5579 = vadd.f32 %v5577, 1e-05
    %v5580 = vrsqrt.pop %v5579
    %v5581 = vmul.f32 %v5578, %v5580
    %v5582 = vld [vmem:[%s6] sm:$0x1]
    %v5583 = vmul.f32 %v5574, %v5581
    %v5584 = vsub.f32 %v5582, %v5583
    %v5586 = vlaneseq
    %v5587 = vshrl.u32 %v5586, 7
    %v5588 = vsub.s32 0, %v5587
    %v5589 = vrot.slane %v5581, %v5588
    %v5591 = vmul.f32 %v5548, %v5589
    %v5592 = vmul.f32 %v5549, %v5589
    %v5593 = vmul.f32 %v5550, %v5589
    %v5594 = vmul.f32 %v5551, %v5589
    %v5596 = vlaneseq
    %v5597 = vshrl.u32 %v5596, 7
    %v5598 = vsub.s32 0, %v5597
    %v5599 = vrot.slane %v5584, %v5598
    %v5601 = vadd.f32 %v5591, %v5599
    %v5602 = vadd.f32 %v5592, %v5599
    %v5603 = vadd.f32 %v5593, %v5599
    %v5604 = vadd.f32 %v5594, %v5599
    %v5605 = vmax.f32 %v5601, 0.0
    %v5606 = vmax.f32 %v5602, 0.0
    %v5607 = vmax.f32 %v5603, 0.0
    %v5608 = vmax.f32 %v5604, 0.0
    %v5609 = vpack.c.bf16 %v5606, %v5605
    %v5610 = vpack.c.bf16 %v5608, %v5607
    %s5611 = smul.u32 4, 16
    %s5612 = smul.u32 %s5611, 50
    %s5613 = sshll.u32 %s5612, 4
    %5614 = dma.done %s286, %s5613
    %v5615 = vld [vmem:[#allocation3] sm:$0xff]
    %v5616 = vld [vmem:[#allocation3 + $0x8] sm:$0xff]
    %v5617 = vld [vmem:[#allocation3 + $0x10] sm:$0xff]
    %v5618 = vld [vmem:[#allocation3 + $0x18] sm:$0xff]
    %v5619 = vld [vmem:[#allocation3 + $0x20] sm:$0xff]
    %v5620 = vld [vmem:[#allocation3 + $0x28] sm:$0xff]
    %v5621 = vld [vmem:[#allocation3 + $0x30] sm:$0xff]
    %v5622 = vld [vmem:[#allocation3 + $0x38] sm:$0xff]
    %v5623 = vld [vmem:[#allocation3 + $0x40] sm:$0xff]
    %v5624 = vld [vmem:[#allocation3 + $0x48] sm:$0xff]
    %v5625 = vld [vmem:[#allocation3 + $0x50] sm:$0xff]
    %v5626 = vld [vmem:[#allocation3 + $0x58] sm:$0xff]
    %v5627 = vld [vmem:[#allocation3 + $0x60] sm:$0xff]
    %v5628 = vld [vmem:[#allocation3 + $0x68] sm:$0xff]
    %v5629 = vld [vmem:[#allocation3 + $0x70] sm:$0xff]
    %v5630 = vld [vmem:[#allocation3 + $0x78] sm:$0xff]
    %v5631 = vld [vmem:[#allocation3 + $0x80] sm:$0xff]
    %v5632 = vld [vmem:[#allocation3 + $0x88] sm:$0xff]
    %v5633 = vld [vmem:[#allocation3 + $0x90] sm:$0xff]
    %v5634 = vld [vmem:[#allocation3 + $0x98] sm:$0xff]
    %v5635 = vld [vmem:[#allocation3 + $0xa0] sm:$0xff]
    %v5636 = vld [vmem:[#allocation3 + $0xa8] sm:$0xff]
    %v5637 = vld [vmem:[#allocation3 + $0xb0] sm:$0xff]
    %v5638 = vld [vmem:[#allocation3 + $0xb8] sm:$0xff]
    %v5639 = vld [vmem:[#allocation3 + $0xc0] sm:$0xff]
    %v5640 = vld [vmem:[#allocation3 + $0xc8] sm:$0xff]
    %v5641 = vld [vmem:[#allocation3 + $0xd0] sm:$0xff]
    %v5642 = vld [vmem:[#allocation3 + $0xd8] sm:$0xff]
    %v5643 = vld [vmem:[#allocation3 + $0xe0] sm:$0xff]
    %v5644 = vld [vmem:[#allocation3 + $0xe8] sm:$0xff]
    %v5645 = vld [vmem:[#allocation3 + $0xf0] sm:$0xff]
    %v5646 = vld [vmem:[#allocation3 + $0xf8] sm:$0xff]
    %v5647 = vld [vmem:[#allocation3 + $0x100] sm:$0xff]
    %v5648 = vld [vmem:[#allocation3 + $0x108] sm:$0xff]
    %v5649 = vld [vmem:[#allocation3 + $0x110] sm:$0xff]
    %v5650 = vld [vmem:[#allocation3 + $0x118] sm:$0xff]
    %v5651 = vld [vmem:[#allocation3 + $0x120] sm:$0xff]
    %v5652 = vld [vmem:[#allocation3 + $0x128] sm:$0xff]
    %v5653 = vld [vmem:[#allocation3 + $0x130] sm:$0xff]
    %v5654 = vld [vmem:[#allocation3 + $0x138] sm:$0xff]
    %v5655 = vld [vmem:[#allocation3 + $0x140] sm:$0xff]
    %v5656 = vld [vmem:[#allocation3 + $0x148] sm:$0xff]
    %v5657 = vld [vmem:[#allocation3 + $0x150] sm:$0xff]
    %v5658 = vld [vmem:[#allocation3 + $0x158] sm:$0xff]
    %v5659 = vld [vmem:[#allocation3 + $0x160] sm:$0xff]
    %v5660 = vld [vmem:[#allocation3 + $0x168] sm:$0xff]
    %v5661 = vld [vmem:[#allocation3 + $0x170] sm:$0xff]
    %v5662 = vld [vmem:[#allocation3 + $0x178] sm:$0xff]
    %v5663 = vld [vmem:[#allocation3 + $0x180] sm:$0xff]
    %v5664 = vld [vmem:[#allocation3 + $0x188] sm:$0xff]
    %v5665 = vld [vmem:[#allocation3 + $0x190] sm:$0xff]
    %v5666 = vld [vmem:[#allocation3 + $0x198] sm:$0xff]
    %v5667 = vld [vmem:[#allocation3 + $0x1a0] sm:$0xff]
    %v5668 = vld [vmem:[#allocation3 + $0x1a8] sm:$0xff]
    %v5669 = vld [vmem:[#allocation3 + $0x1b0] sm:$0xff]
    %v5670 = vld [vmem:[#allocation3 + $0x1b8] sm:$0xff]
    %v5671 = vld [vmem:[#allocation3 + $0x1c0] sm:$0xff]
    %v5672 = vld [vmem:[#allocation3 + $0x1c8] sm:$0xff]
    %v5673 = vld [vmem:[#allocation3 + $0x1d0] sm:$0xff]
    %v5674 = vld [vmem:[#allocation3 + $0x1d8] sm:$0xff]
    %v5675 = vld [vmem:[#allocation3 + $0x1e0] sm:$0xff]
    %v5676 = vld [vmem:[#allocation3 + $0x1e8] sm:$0xff]
    %v5677 = vld [vmem:[#allocation3 + $0x1f0] sm:$0xff]
    %v5678 = vld [vmem:[#allocation3 + $0x1f8] sm:$0xff]
    %v5679 = vld [vmem:[#allocation3 + $0x200] sm:$0xff]
    %v5680 = vld [vmem:[#allocation3 + $0x208] sm:$0xff]
    %v5681 = vld [vmem:[#allocation3 + $0x210] sm:$0xff]
    %v5682 = vld [vmem:[#allocation3 + $0x218] sm:$0xff]
    %v5683 = vld [vmem:[#allocation3 + $0x220] sm:$0xff]
    %v5684 = vld [vmem:[#allocation3 + $0x228] sm:$0xff]
    %v5685 = vld [vmem:[#allocation3 + $0x230] sm:$0xff]
    %v5686 = vld [vmem:[#allocation3 + $0x238] sm:$0xff]
    %v5687 = vld [vmem:[#allocation3 + $0x240] sm:$0xff]
    %v5688 = vld [vmem:[#allocation3 + $0x248] sm:$0xff]
    %v5689 = vld [vmem:[#allocation3 + $0x250] sm:$0xff]
    %v5690 = vld [vmem:[#allocation3 + $0x258] sm:$0xff]
    %v5691 = vld [vmem:[#allocation3 + $0x260] sm:$0xff]
    %v5692 = vld [vmem:[#allocation3 + $0x268] sm:$0xff]
    %v5693 = vld [vmem:[#allocation3 + $0x270] sm:$0xff]
    %v5694 = vld [vmem:[#allocation3 + $0x278] sm:$0xff]
    %v5695 = vld [vmem:[#allocation3 + $0x280] sm:$0xff]
    %v5696 = vld [vmem:[#allocation3 + $0x288] sm:$0xff]
    %v5697 = vld [vmem:[#allocation3 + $0x290] sm:$0xff]
    %v5698 = vld [vmem:[#allocation3 + $0x298] sm:$0xff]
    %v5699 = vld [vmem:[#allocation3 + $0x2a0] sm:$0xff]
    %v5700 = vld [vmem:[#allocation3 + $0x2a8] sm:$0xff]
    %v5701 = vld [vmem:[#allocation3 + $0x2b0] sm:$0xff]
    %v5702 = vld [vmem:[#allocation3 + $0x2b8] sm:$0xff]
    %v5703 = vld [vmem:[#allocation3 + $0x2c0] sm:$0xff]
    %v5704 = vld [vmem:[#allocation3 + $0x2c8] sm:$0xff]
    %v5705 = vld [vmem:[#allocation3 + $0x2d0] sm:$0xff]
    %v5706 = vld [vmem:[#allocation3 + $0x2d8] sm:$0xff]
    %v5707 = vld [vmem:[#allocation3 + $0x2e0] sm:$0xff]
    %v5708 = vld [vmem:[#allocation3 + $0x2e8] sm:$0xff]
    %v5709 = vld [vmem:[#allocation3 + $0x2f0] sm:$0xff]
    %v5710 = vld [vmem:[#allocation3 + $0x2f8] sm:$0xff]
    %v5711 = vld [vmem:[#allocation3 + $0x300] sm:$0xff]
    %v5712 = vld [vmem:[#allocation3 + $0x308] sm:$0xff]
    %v5713 = vld [vmem:[#allocation3 + $0x310] sm:$0xff]
    %v5714 = vld [vmem:[#allocation3 + $0x318] sm:$0xff]
    %v5715 = vld [vmem:[#allocation3 + $0x320] sm:$0xff]
    %v5716 = vld [vmem:[#allocation3 + $0x328] sm:$0xff]
    %v5717 = vld [vmem:[#allocation3 + $0x330] sm:$0xff]
    %v5718 = vld [vmem:[#allocation3 + $0x338] sm:$0xff]
    %v5719 = vld [vmem:[#allocation3 + $0x340] sm:$0xff]
    %v5720 = vld [vmem:[#allocation3 + $0x348] sm:$0xff]
    %v5721 = vld [vmem:[#allocation3 + $0x350] sm:$0xff]
    %v5722 = vld [vmem:[#allocation3 + $0x358] sm:$0xff]
    %v5723 = vld [vmem:[#allocation3 + $0x360] sm:$0xff]
    %v5724 = vld [vmem:[#allocation3 + $0x368] sm:$0xff]
    %v5725 = vld [vmem:[#allocation3 + $0x370] sm:$0xff]
    %v5726 = vld [vmem:[#allocation3 + $0x378] sm:$0xff]
    %v5727 = vld [vmem:[#allocation3 + $0x380] sm:$0xff]
    %v5728 = vld [vmem:[#allocation3 + $0x388] sm:$0xff]
    %v5729 = vld [vmem:[#allocation3 + $0x390] sm:$0xff]
    %v5730 = vld [vmem:[#allocation3 + $0x398] sm:$0xff]
    %v5731 = vld [vmem:[#allocation3 + $0x3a0] sm:$0xff]
    %v5732 = vld [vmem:[#allocation3 + $0x3a8] sm:$0xff]
    %v5733 = vld [vmem:[#allocation3 + $0x3b0] sm:$0xff]
    %v5734 = vld [vmem:[#allocation3 + $0x3b8] sm:$0xff]
    %v5735 = vld [vmem:[#allocation3 + $0x3c0] sm:$0xff]
    %v5736 = vld [vmem:[#allocation3 + $0x3c8] sm:$0xff]
    %v5737 = vld [vmem:[#allocation3 + $0x3d0] sm:$0xff]
    %v5738 = vld [vmem:[#allocation3 + $0x3d8] sm:$0xff]
    %v5739 = vld [vmem:[#allocation3 + $0x3e0] sm:$0xff]
    %v5740 = vld [vmem:[#allocation3 + $0x3e8] sm:$0xff]
    %v5741 = vld [vmem:[#allocation3 + $0x3f0] sm:$0xff]
    %v5742 = vld [vmem:[#allocation3 + $0x3f8] sm:$0xff]
    %v5743 = vld [vmem:[#allocation3 + $0x400] sm:$0xff]
    %v5744 = vld [vmem:[#allocation3 + $0x408] sm:$0xff]
    %v5745 = vld [vmem:[#allocation3 + $0x410] sm:$0xff]
    %v5746 = vld [vmem:[#allocation3 + $0x418] sm:$0xff]
    %v5747 = vld [vmem:[#allocation3 + $0x420] sm:$0xff]
    %v5748 = vld [vmem:[#allocation3 + $0x428] sm:$0xff]
    %v5749 = vld [vmem:[#allocation3 + $0x430] sm:$0xff]
    %v5750 = vld [vmem:[#allocation3 + $0x438] sm:$0xff]
    %v5751 = vld [vmem:[#allocation3 + $0x440] sm:$0xff]
    %v5752 = vld [vmem:[#allocation3 + $0x448] sm:$0xff]
    %v5753 = vld [vmem:[#allocation3 + $0x450] sm:$0xff]
    %v5754 = vld [vmem:[#allocation3 + $0x458] sm:$0xff]
    %v5755 = vld [vmem:[#allocation3 + $0x460] sm:$0xff]
    %v5756 = vld [vmem:[#allocation3 + $0x468] sm:$0xff]
    %v5757 = vld [vmem:[#allocation3 + $0x470] sm:$0xff]
    %v5758 = vld [vmem:[#allocation3 + $0x478] sm:$0xff]
    %v5759 = vld [vmem:[#allocation3 + $0x480] sm:$0xff]
    %v5760 = vld [vmem:[#allocation3 + $0x488] sm:$0xff]
    %v5761 = vld [vmem:[#allocation3 + $0x490] sm:$0xff]
    %v5762 = vld [vmem:[#allocation3 + $0x498] sm:$0xff]
    %v5763 = vld [vmem:[#allocation3 + $0x4a0] sm:$0xff]
    %v5764 = vld [vmem:[#allocation3 + $0x4a8] sm:$0xff]
    %v5765 = vld [vmem:[#allocation3 + $0x4b0] sm:$0xff]
    %v5766 = vld [vmem:[#allocation3 + $0x4b8] sm:$0xff]
    %v5767 = vld [vmem:[#allocation3 + $0x4c0] sm:$0xff]
    %v5768 = vld [vmem:[#allocation3 + $0x4c8] sm:$0xff]
    %v5769 = vld [vmem:[#allocation3 + $0x4d0] sm:$0xff]
    %v5770 = vld [vmem:[#allocation3 + $0x4d8] sm:$0xff]
    %v5771 = vld [vmem:[#allocation3 + $0x4e0] sm:$0xff]
    %v5772 = vld [vmem:[#allocation3 + $0x4e8] sm:$0xff]
    %v5773 = vld [vmem:[#allocation3 + $0x4f0] sm:$0xff]
    %v5774 = vld [vmem:[#allocation3 + $0x4f8] sm:$0xff]
    %v5775 = vld [vmem:[#allocation3 + $0x500] sm:$0xff]
    %v5776 = vld [vmem:[#allocation3 + $0x508] sm:$0xff]
    %v5777 = vld [vmem:[#allocation3 + $0x510] sm:$0xff]
    %v5778 = vld [vmem:[#allocation3 + $0x518] sm:$0xff]
    %v5779 = vld [vmem:[#allocation3 + $0x520] sm:$0xff]
    %v5780 = vld [vmem:[#allocation3 + $0x528] sm:$0xff]
    %v5781 = vld [vmem:[#allocation3 + $0x530] sm:$0xff]
    %v5782 = vld [vmem:[#allocation3 + $0x538] sm:$0xff]
    %v5783 = vld [vmem:[#allocation3 + $0x540] sm:$0xff]
    %v5784 = vld [vmem:[#allocation3 + $0x548] sm:$0xff]
    %v5785 = vld [vmem:[#allocation3 + $0x550] sm:$0xff]
    %v5786 = vld [vmem:[#allocation3 + $0x558] sm:$0xff]
    %v5787 = vld [vmem:[#allocation3 + $0x560] sm:$0xff]
    %v5788 = vld [vmem:[#allocation3 + $0x568] sm:$0xff]
    %v5789 = vld [vmem:[#allocation3 + $0x570] sm:$0xff]
    %v5790 = vld [vmem:[#allocation3 + $0x578] sm:$0xff]
    %v5791 = vld [vmem:[#allocation3 + $0x580] sm:$0xff]
    %v5792 = vld [vmem:[#allocation3 + $0x588] sm:$0xff]
    %v5793 = vld [vmem:[#allocation3 + $0x590] sm:$0xff]
    %v5794 = vld [vmem:[#allocation3 + $0x598] sm:$0xff]
    %v5795 = vld [vmem:[#allocation3 + $0x5a0] sm:$0xff]
    %v5796 = vld [vmem:[#allocation3 + $0x5a8] sm:$0xff]
    %v5797 = vld [vmem:[#allocation3 + $0x5b0] sm:$0xff]
    %v5798 = vld [vmem:[#allocation3 + $0x5b8] sm:$0xff]
    %v5799 = vld [vmem:[#allocation3 + $0x5c0] sm:$0xff]
    %v5800 = vld [vmem:[#allocation3 + $0x5c8] sm:$0xff]
    %v5801 = vld [vmem:[#allocation3 + $0x5d0] sm:$0xff]
    %v5802 = vld [vmem:[#allocation3 + $0x5d8] sm:$0xff]
    %v5803 = vld [vmem:[#allocation3 + $0x5e0] sm:$0xff]
    %v5804 = vld [vmem:[#allocation3 + $0x5e8] sm:$0xff]
    %v5805 = vld [vmem:[#allocation3 + $0x5f0] sm:$0xff]
    %v5806 = vld [vmem:[#allocation3 + $0x5f8] sm:$0xff]
    %v5807 = vld [vmem:[#allocation3 + $0x600] sm:$0xff]
    %v5808 = vld [vmem:[#allocation3 + $0x608] sm:$0xff]
    %v5809 = vld [vmem:[#allocation3 + $0x610] sm:$0xff]
    %v5810 = vld [vmem:[#allocation3 + $0x618] sm:$0xff]
    %v5811 = vld [vmem:[#allocation3 + $0x620] sm:$0xff]
    %v5812 = vld [vmem:[#allocation3 + $0x628] sm:$0xff]
    %v5813 = vld [vmem:[#allocation3 + $0x630] sm:$0xff]
    %v5814 = vld [vmem:[#allocation3 + $0x638] sm:$0xff]
    %v5815 = vld [vmem:[#allocation3 + $0x640] sm:$0xff]
    %v5816 = vld [vmem:[#allocation3 + $0x648] sm:$0xff]
    %v5817 = vld [vmem:[#allocation3 + $0x650] sm:$0xff]
    %v5818 = vld [vmem:[#allocation3 + $0x658] sm:$0xff]
    %v5819 = vld [vmem:[#allocation3 + $0x660] sm:$0xff]
    %v5820 = vld [vmem:[#allocation3 + $0x668] sm:$0xff]
    %v5821 = vld [vmem:[#allocation3 + $0x670] sm:$0xff]
    %v5822 = vld [vmem:[#allocation3 + $0x678] sm:$0xff]
    %v5823 = vld [vmem:[#allocation3 + $0x680] sm:$0xff]
    %v5824 = vld [vmem:[#allocation3 + $0x688] sm:$0xff]
    %v5825 = vld [vmem:[#allocation3 + $0x690] sm:$0xff]
    %v5826 = vld [vmem:[#allocation3 + $0x698] sm:$0xff]
    %v5827 = vld [vmem:[#allocation3 + $0x6a0] sm:$0xff]
    %v5828 = vld [vmem:[#allocation3 + $0x6a8] sm:$0xff]
    %v5829 = vld [vmem:[#allocation3 + $0x6b0] sm:$0xff]
    %v5830 = vld [vmem:[#allocation3 + $0x6b8] sm:$0xff]
    %v5831 = vld [vmem:[#allocation3 + $0x6c0] sm:$0xff]
    %v5832 = vld [vmem:[#allocation3 + $0x6c8] sm:$0xff]
    %v5833 = vld [vmem:[#allocation3 + $0x6d0] sm:$0xff]
    %v5834 = vld [vmem:[#allocation3 + $0x6d8] sm:$0xff]
    %v5835 = vld [vmem:[#allocation3 + $0x6e0] sm:$0xff]
    %v5836 = vld [vmem:[#allocation3 + $0x6e8] sm:$0xff]
    %v5837 = vld [vmem:[#allocation3 + $0x6f0] sm:$0xff]
    %v5838 = vld [vmem:[#allocation3 + $0x6f8] sm:$0xff]
    %v5839 = vld [vmem:[#allocation3 + $0x700] sm:$0xff]
    %v5840 = vld [vmem:[#allocation3 + $0x708] sm:$0xff]
    %v5841 = vld [vmem:[#allocation3 + $0x710] sm:$0xff]
    %v5842 = vld [vmem:[#allocation3 + $0x718] sm:$0xff]
    %v5843 = vld [vmem:[#allocation3 + $0x720] sm:$0xff]
    %v5844 = vld [vmem:[#allocation3 + $0x728] sm:$0xff]
    %v5845 = vld [vmem:[#allocation3 + $0x730] sm:$0xff]
    %v5846 = vld [vmem:[#allocation3 + $0x738] sm:$0xff]
    %v5847 = vld [vmem:[#allocation3 + $0x740] sm:$0xff]
    %v5848 = vld [vmem:[#allocation3 + $0x748] sm:$0xff]
    %v5849 = vld [vmem:[#allocation3 + $0x750] sm:$0xff]
    %v5850 = vld [vmem:[#allocation3 + $0x758] sm:$0xff]
    %v5851 = vld [vmem:[#allocation3 + $0x760] sm:$0xff]
    %v5852 = vld [vmem:[#allocation3 + $0x768] sm:$0xff]
    %v5853 = vld [vmem:[#allocation3 + $0x770] sm:$0xff]
    %v5854 = vld [vmem:[#allocation3 + $0x778] sm:$0xff]
    %v5855 = vld [vmem:[#allocation3 + $0x780] sm:$0xff]
    %v5856 = vld [vmem:[#allocation3 + $0x788] sm:$0xff]
    %v5857 = vld [vmem:[#allocation3 + $0x790] sm:$0xff]
    %v5858 = vld [vmem:[#allocation3 + $0x798] sm:$0xff]
    %v5859 = vld [vmem:[#allocation3 + $0x7a0] sm:$0xff]
    %v5860 = vld [vmem:[#allocation3 + $0x7a8] sm:$0xff]
    %v5861 = vld [vmem:[#allocation3 + $0x7b0] sm:$0xff]
    %v5862 = vld [vmem:[#allocation3 + $0x7b8] sm:$0xff]
    %v5863 = vld [vmem:[#allocation3 + $0x7c0] sm:$0xff]
    %v5864 = vld [vmem:[#allocation3 + $0x7c8] sm:$0xff]
    %v5865 = vld [vmem:[#allocation3 + $0x7d0] sm:$0xff]
    %v5866 = vld [vmem:[#allocation3 + $0x7d8] sm:$0xff]
    %v5867 = vld [vmem:[#allocation3 + $0x7e0] sm:$0xff]
    %v5868 = vld [vmem:[#allocation3 + $0x7e8] sm:$0xff]
    %v5869 = vld [vmem:[#allocation3 + $0x7f0] sm:$0xff]
    %v5870 = vld [vmem:[#allocation3 + $0x7f8] sm:$0xff]
    %v5871 = vld [vmem:[#allocation3 + $0x800] sm:$0xff]
    %v5872 = vld [vmem:[#allocation3 + $0x808] sm:$0xff]
    %v5873 = vld [vmem:[#allocation3 + $0x810] sm:$0xff]
    %v5874 = vld [vmem:[#allocation3 + $0x818] sm:$0xff]
    %v5875 = vld [vmem:[#allocation3 + $0x820] sm:$0xff]
    %v5876 = vld [vmem:[#allocation3 + $0x828] sm:$0xff]
    %v5877 = vld [vmem:[#allocation3 + $0x830] sm:$0xff]
    %v5878 = vld [vmem:[#allocation3 + $0x838] sm:$0xff]
    %v5879 = vld [vmem:[#allocation3 + $0x840] sm:$0xff]
    %v5880 = vld [vmem:[#allocation3 + $0x848] sm:$0xff]
    %v5881 = vld [vmem:[#allocation3 + $0x850] sm:$0xff]
    %v5882 = vld [vmem:[#allocation3 + $0x858] sm:$0xff]
    %v5883 = vld [vmem:[#allocation3 + $0x860] sm:$0xff]
    %v5884 = vld [vmem:[#allocation3 + $0x868] sm:$0xff]
    %v5885 = vld [vmem:[#allocation3 + $0x870] sm:$0xff]
    %v5886 = vld [vmem:[#allocation3 + $0x878] sm:$0xff]
    %v5887 = vld [vmem:[#allocation3 + $0x880] sm:$0xff]
    %v5888 = vld [vmem:[#allocation3 + $0x888] sm:$0xff]
    %v5889 = vld [vmem:[#allocation3 + $0x890] sm:$0xff]
    %v5890 = vld [vmem:[#allocation3 + $0x898] sm:$0xff]
    %v5891 = vld [vmem:[#allocation3 + $0x8a0] sm:$0xff]
    %v5892 = vld [vmem:[#allocation3 + $0x8a8] sm:$0xff]
    %v5893 = vld [vmem:[#allocation3 + $0x8b0] sm:$0xff]
    %v5894 = vld [vmem:[#allocation3 + $0x8b8] sm:$0xff]
    %v5895 = vld [vmem:[#allocation3 + $0x8c0] sm:$0xff]
    %v5896 = vld [vmem:[#allocation3 + $0x8c8] sm:$0xff]
    %v5897 = vld [vmem:[#allocation3 + $0x8d0] sm:$0xff]
    %v5898 = vld [vmem:[#allocation3 + $0x8d8] sm:$0xff]
    %v5899 = vld [vmem:[#allocation3 + $0x8e0] sm:$0xff]
    %v5900 = vld [vmem:[#allocation3 + $0x8e8] sm:$0xff]
    %v5901 = vld [vmem:[#allocation3 + $0x8f0] sm:$0xff]
    %v5902 = vld [vmem:[#allocation3 + $0x8f8] sm:$0xff]
    %v5903 = vld [vmem:[#allocation3 + $0x900] sm:$0xff]
    %v5904 = vld [vmem:[#allocation3 + $0x908] sm:$0xff]
    %v5905 = vld [vmem:[#allocation3 + $0x910] sm:$0xff]
    %v5906 = vld [vmem:[#allocation3 + $0x918] sm:$0xff]
    %v5907 = vld [vmem:[#allocation3 + $0x920] sm:$0xff]
    %v5908 = vld [vmem:[#allocation3 + $0x928] sm:$0xff]
    %v5909 = vld [vmem:[#allocation3 + $0x930] sm:$0xff]
    %v5910 = vld [vmem:[#allocation3 + $0x938] sm:$0xff]
    %v5911 = vld [vmem:[#allocation3 + $0x940] sm:$0xff]
    %v5912 = vld [vmem:[#allocation3 + $0x948] sm:$0xff]
    %v5913 = vld [vmem:[#allocation3 + $0x950] sm:$0xff]
    %v5914 = vld [vmem:[#allocation3 + $0x958] sm:$0xff]
    %v5915 = vld [vmem:[#allocation3 + $0x960] sm:$0xff]
    %v5916 = vld [vmem:[#allocation3 + $0x968] sm:$0xff]
    %v5917 = vld [vmem:[#allocation3 + $0x970] sm:$0xff]
    %v5918 = vld [vmem:[#allocation3 + $0x978] sm:$0xff]
    %v5919 = vld [vmem:[#allocation3 + $0x980] sm:$0xff]
    %v5920 = vld [vmem:[#allocation3 + $0x988] sm:$0xff]
    %v5921 = vld [vmem:[#allocation3 + $0x990] sm:$0xff]
    %v5922 = vld [vmem:[#allocation3 + $0x998] sm:$0xff]
    %v5923 = vld [vmem:[#allocation3 + $0x9a0] sm:$0xff]
    %v5924 = vld [vmem:[#allocation3 + $0x9a8] sm:$0xff]
    %v5925 = vld [vmem:[#allocation3 + $0x9b0] sm:$0xff]
    %v5926 = vld [vmem:[#allocation3 + $0x9b8] sm:$0xff]
    %v5927 = vld [vmem:[#allocation3 + $0x9c0] sm:$0xff]
    %v5928 = vld [vmem:[#allocation3 + $0x9c8] sm:$0xff]
    %v5929 = vld [vmem:[#allocation3 + $0x9d0] sm:$0xff]
    %v5930 = vld [vmem:[#allocation3 + $0x9d8] sm:$0xff]
    %v5931 = vld [vmem:[#allocation3 + $0x9e0] sm:$0xff]
    %v5932 = vld [vmem:[#allocation3 + $0x9e8] sm:$0xff]
    %v5933 = vld [vmem:[#allocation3 + $0x9f0] sm:$0xff]
    %v5934 = vld [vmem:[#allocation3 + $0x9f8] sm:$0xff]
    %v5935 = vld [vmem:[#allocation3 + $0xa00] sm:$0xff]
    %v5936 = vld [vmem:[#allocation3 + $0xa08] sm:$0xff]
    %v5937 = vld [vmem:[#allocation3 + $0xa10] sm:$0xff]
    %v5938 = vld [vmem:[#allocation3 + $0xa18] sm:$0xff]
    %v5939 = vld [vmem:[#allocation3 + $0xa20] sm:$0xff]
    %v5940 = vld [vmem:[#allocation3 + $0xa28] sm:$0xff]
    %v5941 = vld [vmem:[#allocation3 + $0xa30] sm:$0xff]
    %v5942 = vld [vmem:[#allocation3 + $0xa38] sm:$0xff]
    %v5943 = vld [vmem:[#allocation3 + $0xa40] sm:$0xff]
    %v5944 = vld [vmem:[#allocation3 + $0xa48] sm:$0xff]
    %v5945 = vld [vmem:[#allocation3 + $0xa50] sm:$0xff]
    %v5946 = vld [vmem:[#allocation3 + $0xa58] sm:$0xff]
    %v5947 = vld [vmem:[#allocation3 + $0xa60] sm:$0xff]
    %v5948 = vld [vmem:[#allocation3 + $0xa68] sm:$0xff]
    %v5949 = vld [vmem:[#allocation3 + $0xa70] sm:$0xff]
    %v5950 = vld [vmem:[#allocation3 + $0xa78] sm:$0xff]
    %v5951 = vld [vmem:[#allocation3 + $0xa80] sm:$0xff]
    %v5952 = vld [vmem:[#allocation3 + $0xa88] sm:$0xff]
    %v5953 = vld [vmem:[#allocation3 + $0xa90] sm:$0xff]
    %v5954 = vld [vmem:[#allocation3 + $0xa98] sm:$0xff]
    %v5955 = vld [vmem:[#allocation3 + $0xaa0] sm:$0xff]
    %v5956 = vld [vmem:[#allocation3 + $0xaa8] sm:$0xff]
    %v5957 = vld [vmem:[#allocation3 + $0xab0] sm:$0xff]
    %v5958 = vld [vmem:[#allocation3 + $0xab8] sm:$0xff]
    %v5959 = vld [vmem:[#allocation3 + $0xac0] sm:$0xff]
    %v5960 = vld [vmem:[#allocation3 + $0xac8] sm:$0xff]
    %v5961 = vld [vmem:[#allocation3 + $0xad0] sm:$0xff]
    %v5962 = vld [vmem:[#allocation3 + $0xad8] sm:$0xff]
    %v5963 = vld [vmem:[#allocation3 + $0xae0] sm:$0xff]
    %v5964 = vld [vmem:[#allocation3 + $0xae8] sm:$0xff]
    %v5965 = vld [vmem:[#allocation3 + $0xaf0] sm:$0xff]
    %v5966 = vld [vmem:[#allocation3 + $0xaf8] sm:$0xff]
    %v5967 = vld [vmem:[#allocation3 + $0xb00] sm:$0xff]
    %v5968 = vld [vmem:[#allocation3 + $0xb08] sm:$0xff]
    %v5969 = vld [vmem:[#allocation3 + $0xb10] sm:$0xff]
    %v5970 = vld [vmem:[#allocation3 + $0xb18] sm:$0xff]
    %v5971 = vld [vmem:[#allocation3 + $0xb20] sm:$0xff]
    %v5972 = vld [vmem:[#allocation3 + $0xb28] sm:$0xff]
    %v5973 = vld [vmem:[#allocation3 + $0xb30] sm:$0xff]
    %v5974 = vld [vmem:[#allocation3 + $0xb38] sm:$0xff]
    %v5975 = vld [vmem:[#allocation3 + $0xb40] sm:$0xff]
    %v5976 = vld [vmem:[#allocation3 + $0xb48] sm:$0xff]
    %v5977 = vld [vmem:[#allocation3 + $0xb50] sm:$0xff]
    %v5978 = vld [vmem:[#allocation3 + $0xb58] sm:$0xff]
    %v5979 = vld [vmem:[#allocation3 + $0xb60] sm:$0xff]
    %v5980 = vld [vmem:[#allocation3 + $0xb68] sm:$0xff]
    %v5981 = vld [vmem:[#allocation3 + $0xb70] sm:$0xff]
    %v5982 = vld [vmem:[#allocation3 + $0xb78] sm:$0xff]
    %v5983 = vld [vmem:[#allocation3 + $0xb80] sm:$0xff]
    %v5984 = vld [vmem:[#allocation3 + $0xb88] sm:$0xff]
    %v5985 = vld [vmem:[#allocation3 + $0xb90] sm:$0xff]
    %v5986 = vld [vmem:[#allocation3 + $0xb98] sm:$0xff]
    %v5987 = vld [vmem:[#allocation3 + $0xba0] sm:$0xff]
    %v5988 = vld [vmem:[#allocation3 + $0xba8] sm:$0xff]
    %v5989 = vld [vmem:[#allocation3 + $0xbb0] sm:$0xff]
    %v5990 = vld [vmem:[#allocation3 + $0xbb8] sm:$0xff]
    %v5991 = vld [vmem:[#allocation3 + $0xbc0] sm:$0xff]
    %v5992 = vld [vmem:[#allocation3 + $0xbc8] sm:$0xff]
    %v5993 = vld [vmem:[#allocation3 + $0xbd0] sm:$0xff]
    %v5994 = vld [vmem:[#allocation3 + $0xbd8] sm:$0xff]
    %v5995 = vld [vmem:[#allocation3 + $0xbe0] sm:$0xff]
    %v5996 = vld [vmem:[#allocation3 + $0xbe8] sm:$0xff]
    %v5997 = vld [vmem:[#allocation3 + $0xbf0] sm:$0xff]
    %v5998 = vld [vmem:[#allocation3 + $0xbf8] sm:$0xff]
    %v5999 = vld [vmem:[#allocation3 + $0xc00] sm:$0xff]
    %v6000 = vld [vmem:[#allocation3 + $0xc08] sm:$0xff]
    %v6001 = vld [vmem:[#allocation3 + $0xc10] sm:$0xff]
    %v6002 = vld [vmem:[#allocation3 + $0xc18] sm:$0xff]
    %v6003 = vld [vmem:[#allocation3 + $0xc20] sm:$0xff]
    %v6004 = vld [vmem:[#allocation3 + $0xc28] sm:$0xff]
    %v6005 = vld [vmem:[#allocation3 + $0xc30] sm:$0xff]
    %v6006 = vld [vmem:[#allocation3 + $0xc38] sm:$0xff]
    %v6007 = vld [vmem:[#allocation3 + $0xc40] sm:$0xff]
    %v6008 = vld [vmem:[#allocation3 + $0xc48] sm:$0xff]
    %v6009 = vld [vmem:[#allocation3 + $0xc50] sm:$0xff]
    %v6010 = vld [vmem:[#allocation3 + $0xc58] sm:$0xff]
    %v6011 = vld [vmem:[#allocation3 + $0xc60] sm:$0xff]
    %v6012 = vld [vmem:[#allocation3 + $0xc68] sm:$0xff]
    %v6013 = vld [vmem:[#allocation3 + $0xc70] sm:$0xff]
    %v6014 = vld [vmem:[#allocation3 + $0xc78] sm:$0xff]
    %v6415 = vunpack.c.l.b16 %v5615
    %v6416 = vunpack.c.h.b16 %v5615
    %v6417 = vunpack.c.l.b16 %v5616
    %v6418 = vunpack.c.h.b16 %v5616
    %v6419 = vunpack.c.l.b16 %v5617
    %v6420 = vunpack.c.h.b16 %v5617
    %v6421 = vunpack.c.l.b16 %v5618
    %v6422 = vunpack.c.h.b16 %v5618
    %v6423 = vunpack.c.l.b16 %v5619
    %v6424 = vunpack.c.h.b16 %v5619
    %v6425 = vunpack.c.l.b16 %v5620
    %v6426 = vunpack.c.h.b16 %v5620
    %v6427 = vunpack.c.l.b16 %v5621
    %v6428 = vunpack.c.h.b16 %v5621
    %v6429 = vunpack.c.l.b16 %v5622
    %v6430 = vunpack.c.h.b16 %v5622
    %v6431 = vunpack.c.l.b16 %v5623
    %v6432 = vunpack.c.h.b16 %v5623
    %v6433 = vunpack.c.l.b16 %v5624
    %v6434 = vunpack.c.h.b16 %v5624
    %v6435 = vunpack.c.l.b16 %v5625
    %v6436 = vunpack.c.h.b16 %v5625
    %v6437 = vunpack.c.l.b16 %v5626
    %v6438 = vunpack.c.h.b16 %v5626
    %v6439 = vunpack.c.l.b16 %v5627
    %v6440 = vunpack.c.h.b16 %v5627
    %v6441 = vunpack.c.l.b16 %v5628
    %v6442 = vunpack.c.h.b16 %v5628
    %v6443 = vunpack.c.l.b16 %v5629
    %v6444 = vunpack.c.h.b16 %v5629
    %v6445 = vunpack.c.l.b16 %v5630
    %v6446 = vunpack.c.h.b16 %v5630
    %v6447 = vunpack.c.l.b16 %v5631
    %v6448 = vunpack.c.h.b16 %v5631
    %v6449 = vunpack.c.l.b16 %v5632
    %v6450 = vunpack.c.h.b16 %v5632
    %v6451 = vunpack.c.l.b16 %v5633
    %v6452 = vunpack.c.h.b16 %v5633
    %v6453 = vunpack.c.l.b16 %v5634
    %v6454 = vunpack.c.h.b16 %v5634
    %v6455 = vunpack.c.l.b16 %v5635
    %v6456 = vunpack.c.h.b16 %v5635
    %v6457 = vunpack.c.l.b16 %v5636
    %v6458 = vunpack.c.h.b16 %v5636
    %v6459 = vunpack.c.l.b16 %v5637
    %v6460 = vunpack.c.h.b16 %v5637
    %v6461 = vunpack.c.l.b16 %v5638
    %v6462 = vunpack.c.h.b16 %v5638
    %v6463 = vunpack.c.l.b16 %v5639
    %v6464 = vunpack.c.h.b16 %v5639
    %v6465 = vunpack.c.l.b16 %v5640
    %v6466 = vunpack.c.h.b16 %v5640
    %v6467 = vunpack.c.l.b16 %v5641
    %v6468 = vunpack.c.h.b16 %v5641
    %v6469 = vunpack.c.l.b16 %v5642
    %v6470 = vunpack.c.h.b16 %v5642
    %v6471 = vunpack.c.l.b16 %v5643
    %v6472 = vunpack.c.h.b16 %v5643
    %v6473 = vunpack.c.l.b16 %v5644
    %v6474 = vunpack.c.h.b16 %v5644
    %v6475 = vunpack.c.l.b16 %v5645
    %v6476 = vunpack.c.h.b16 %v5645
    %v6477 = vunpack.c.l.b16 %v5646
    %v6478 = vunpack.c.h.b16 %v5646
    %v6479 = vunpack.c.l.b16 %v5647
    %v6480 = vunpack.c.h.b16 %v5647
    %v6481 = vunpack.c.l.b16 %v5648
    %v6482 = vunpack.c.h.b16 %v5648
    %v6483 = vunpack.c.l.b16 %v5649
    %v6484 = vunpack.c.h.b16 %v5649
    %v6485 = vunpack.c.l.b16 %v5650
    %v6486 = vunpack.c.h.b16 %v5650
    %v6487 = vunpack.c.l.b16 %v5651
    %v6488 = vunpack.c.h.b16 %v5651
    %v6489 = vunpack.c.l.b16 %v5652
    %v6490 = vunpack.c.h.b16 %v5652
    %v6491 = vunpack.c.l.b16 %v5653
    %v6492 = vunpack.c.h.b16 %v5653
    %v6493 = vunpack.c.l.b16 %v5654
    %v6494 = vunpack.c.h.b16 %v5654
    %v6495 = vunpack.c.l.b16 %v5655
    %v6496 = vunpack.c.h.b16 %v5655
    %v6497 = vunpack.c.l.b16 %v5656
    %v6498 = vunpack.c.h.b16 %v5656
    %v6499 = vunpack.c.l.b16 %v5657
    %v6500 = vunpack.c.h.b16 %v5657
    %v6501 = vunpack.c.l.b16 %v5658
    %v6502 = vunpack.c.h.b16 %v5658
    %v6503 = vunpack.c.l.b16 %v5659
    %v6504 = vunpack.c.h.b16 %v5659
    %v6505 = vunpack.c.l.b16 %v5660
    %v6506 = vunpack.c.h.b16 %v5660
    %v6507 = vunpack.c.l.b16 %v5661
    %v6508 = vunpack.c.h.b16 %v5661
    %v6509 = vunpack.c.l.b16 %v5662
    %v6510 = vunpack.c.h.b16 %v5662
    %v6511 = vunpack.c.l.b16 %v5663
    %v6512 = vunpack.c.h.b16 %v5663
    %v6513 = vunpack.c.l.b16 %v5664
    %v6514 = vunpack.c.h.b16 %v5664
    %v6515 = vunpack.c.l.b16 %v5665
    %v6516 = vunpack.c.h.b16 %v5665
    %v6517 = vunpack.c.l.b16 %v5666
    %v6518 = vunpack.c.h.b16 %v5666
    %v6519 = vunpack.c.l.b16 %v5667
    %v6520 = vunpack.c.h.b16 %v5667
    %v6521 = vunpack.c.l.b16 %v5668
    %v6522 = vunpack.c.h.b16 %v5668
    %v6523 = vunpack.c.l.b16 %v5669
    %v6524 = vunpack.c.h.b16 %v5669
    %v6525 = vunpack.c.l.b16 %v5670
    %v6526 = vunpack.c.h.b16 %v5670
    %v6527 = vunpack.c.l.b16 %v5671
    %v6528 = vunpack.c.h.b16 %v5671
    %v6529 = vunpack.c.l.b16 %v5672
    %v6530 = vunpack.c.h.b16 %v5672
    %v6531 = vunpack.c.l.b16 %v5673
    %v6532 = vunpack.c.h.b16 %v5673
    %v6533 = vunpack.c.l.b16 %v5674
    %v6534 = vunpack.c.h.b16 %v5674
    %v6535 = vunpack.c.l.b16 %v5675
    %v6536 = vunpack.c.h.b16 %v5675
    %v6537 = vunpack.c.l.b16 %v5676
    %v6538 = vunpack.c.h.b16 %v5676
    %v6539 = vunpack.c.l.b16 %v5677
    %v6540 = vunpack.c.h.b16 %v5677
    %v6541 = vunpack.c.l.b16 %v5678
    %v6542 = vunpack.c.h.b16 %v5678
    %v6543 = vunpack.c.l.b16 %v5679
    %v6544 = vunpack.c.h.b16 %v5679
    %v6545 = vunpack.c.l.b16 %v5680
    %v6546 = vunpack.c.h.b16 %v5680
    %v6547 = vunpack.c.l.b16 %v5681
    %v6548 = vunpack.c.h.b16 %v5681
    %v6549 = vunpack.c.l.b16 %v5682
    %v6550 = vunpack.c.h.b16 %v5682
    %v6551 = vunpack.c.l.b16 %v5683
    %v6552 = vunpack.c.h.b16 %v5683
    %v6553 = vunpack.c.l.b16 %v5684
    %v6554 = vunpack.c.h.b16 %v5684
    %v6555 = vunpack.c.l.b16 %v5685
    %v6556 = vunpack.c.h.b16 %v5685
    %v6557 = vunpack.c.l.b16 %v5686
    %v6558 = vunpack.c.h.b16 %v5686
    %v6559 = vunpack.c.l.b16 %v5687
    %v6560 = vunpack.c.h.b16 %v5687
    %v6561 = vunpack.c.l.b16 %v5688
    %v6562 = vunpack.c.h.b16 %v5688
    %v6563 = vunpack.c.l.b16 %v5689
    %v6564 = vunpack.c.h.b16 %v5689
    %v6565 = vunpack.c.l.b16 %v5690
    %v6566 = vunpack.c.h.b16 %v5690
    %v6567 = vunpack.c.l.b16 %v5691
    %v6568 = vunpack.c.h.b16 %v5691
    %v6569 = vunpack.c.l.b16 %v5692
    %v6570 = vunpack.c.h.b16 %v5692
    %v6571 = vunpack.c.l.b16 %v5693
    %v6572 = vunpack.c.h.b16 %v5693
    %v6573 = vunpack.c.l.b16 %v5694
    %v6574 = vunpack.c.h.b16 %v5694
    %v6575 = vunpack.c.l.b16 %v5695
    %v6576 = vunpack.c.h.b16 %v5695
    %v6577 = vunpack.c.l.b16 %v5696
    %v6578 = vunpack.c.h.b16 %v5696
    %v6579 = vunpack.c.l.b16 %v5697
    %v6580 = vunpack.c.h.b16 %v5697
    %v6581 = vunpack.c.l.b16 %v5698
    %v6582 = vunpack.c.h.b16 %v5698
    %v6583 = vunpack.c.l.b16 %v5699
    %v6584 = vunpack.c.h.b16 %v5699
    %v6585 = vunpack.c.l.b16 %v5700
    %v6586 = vunpack.c.h.b16 %v5700
    %v6587 = vunpack.c.l.b16 %v5701
    %v6588 = vunpack.c.h.b16 %v5701
    %v6589 = vunpack.c.l.b16 %v5702
    %v6590 = vunpack.c.h.b16 %v5702
    %v6591 = vunpack.c.l.b16 %v5703
    %v6592 = vunpack.c.h.b16 %v5703
    %v6593 = vunpack.c.l.b16 %v5704
    %v6594 = vunpack.c.h.b16 %v5704
    %v6595 = vunpack.c.l.b16 %v5705
    %v6596 = vunpack.c.h.b16 %v5705
    %v6597 = vunpack.c.l.b16 %v5706
    %v6598 = vunpack.c.h.b16 %v5706
    %v6599 = vunpack.c.l.b16 %v5707
    %v6600 = vunpack.c.h.b16 %v5707
    %v6601 = vunpack.c.l.b16 %v5708
    %v6602 = vunpack.c.h.b16 %v5708
    %v6603 = vunpack.c.l.b16 %v5709
    %v6604 = vunpack.c.h.b16 %v5709
    %v6605 = vunpack.c.l.b16 %v5710
    %v6606 = vunpack.c.h.b16 %v5710
    %v6607 = vunpack.c.l.b16 %v5711
    %v6608 = vunpack.c.h.b16 %v5711
    %v6609 = vunpack.c.l.b16 %v5712
    %v6610 = vunpack.c.h.b16 %v5712
    %v6611 = vunpack.c.l.b16 %v5713
    %v6612 = vunpack.c.h.b16 %v5713
    %v6613 = vunpack.c.l.b16 %v5714
    %v6614 = vunpack.c.h.b16 %v5714
    %v6615 = vunpack.c.l.b16 %v5715
    %v6616 = vunpack.c.h.b16 %v5715
    %v6617 = vunpack.c.l.b16 %v5716
    %v6618 = vunpack.c.h.b16 %v5716
    %v6619 = vunpack.c.l.b16 %v5717
    %v6620 = vunpack.c.h.b16 %v5717
    %v6621 = vunpack.c.l.b16 %v5718
    %v6622 = vunpack.c.h.b16 %v5718
    %v6623 = vunpack.c.l.b16 %v5719
    %v6624 = vunpack.c.h.b16 %v5719
    %v6625 = vunpack.c.l.b16 %v5720
    %v6626 = vunpack.c.h.b16 %v5720
    %v6627 = vunpack.c.l.b16 %v5721
    %v6628 = vunpack.c.h.b16 %v5721
    %v6629 = vunpack.c.l.b16 %v5722
    %v6630 = vunpack.c.h.b16 %v5722
    %v6631 = vunpack.c.l.b16 %v5723
    %v6632 = vunpack.c.h.b16 %v5723
    %v6633 = vunpack.c.l.b16 %v5724
    %v6634 = vunpack.c.h.b16 %v5724
    %v6635 = vunpack.c.l.b16 %v5725
    %v6636 = vunpack.c.h.b16 %v5725
    %v6637 = vunpack.c.l.b16 %v5726
    %v6638 = vunpack.c.h.b16 %v5726
    %v6639 = vunpack.c.l.b16 %v5727
    %v6640 = vunpack.c.h.b16 %v5727
    %v6641 = vunpack.c.l.b16 %v5728
    %v6642 = vunpack.c.h.b16 %v5728
    %v6643 = vunpack.c.l.b16 %v5729
    %v6644 = vunpack.c.h.b16 %v5729
    %v6645 = vunpack.c.l.b16 %v5730
    %v6646 = vunpack.c.h.b16 %v5730
    %v6647 = vunpack.c.l.b16 %v5731
    %v6648 = vunpack.c.h.b16 %v5731
    %v6649 = vunpack.c.l.b16 %v5732
    %v6650 = vunpack.c.h.b16 %v5732
    %v6651 = vunpack.c.l.b16 %v5733
    %v6652 = vunpack.c.h.b16 %v5733
    %v6653 = vunpack.c.l.b16 %v5734
    %v6654 = vunpack.c.h.b16 %v5734
    %v6655 = vunpack.c.l.b16 %v5735
    %v6656 = vunpack.c.h.b16 %v5735
    %v6657 = vunpack.c.l.b16 %v5736
    %v6658 = vunpack.c.h.b16 %v5736
    %v6659 = vunpack.c.l.b16 %v5737
    %v6660 = vunpack.c.h.b16 %v5737
    %v6661 = vunpack.c.l.b16 %v5738
    %v6662 = vunpack.c.h.b16 %v5738
    %v6663 = vunpack.c.l.b16 %v5739
    %v6664 = vunpack.c.h.b16 %v5739
    %v6665 = vunpack.c.l.b16 %v5740
    %v6666 = vunpack.c.h.b16 %v5740
    %v6667 = vunpack.c.l.b16 %v5741
    %v6668 = vunpack.c.h.b16 %v5741
    %v6669 = vunpack.c.l.b16 %v5742
    %v6670 = vunpack.c.h.b16 %v5742
    %v6671 = vunpack.c.l.b16 %v5743
    %v6672 = vunpack.c.h.b16 %v5743
    %v6673 = vunpack.c.l.b16 %v5744
    %v6674 = vunpack.c.h.b16 %v5744
    %v6675 = vunpack.c.l.b16 %v5745
    %v6676 = vunpack.c.h.b16 %v5745
    %v6677 = vunpack.c.l.b16 %v5746
    %v6678 = vunpack.c.h.b16 %v5746
    %v6679 = vunpack.c.l.b16 %v5747
    %v6680 = vunpack.c.h.b16 %v5747
    %v6681 = vunpack.c.l.b16 %v5748
    %v6682 = vunpack.c.h.b16 %v5748
    %v6683 = vunpack.c.l.b16 %v5749
    %v6684 = vunpack.c.h.b16 %v5749
    %v6685 = vunpack.c.l.b16 %v5750
    %v6686 = vunpack.c.h.b16 %v5750
    %v6687 = vunpack.c.l.b16 %v5751
    %v6688 = vunpack.c.h.b16 %v5751
    %v6689 = vunpack.c.l.b16 %v5752
    %v6690 = vunpack.c.h.b16 %v5752
    %v6691 = vunpack.c.l.b16 %v5753
    %v6692 = vunpack.c.h.b16 %v5753
    %v6693 = vunpack.c.l.b16 %v5754
    %v6694 = vunpack.c.h.b16 %v5754
    %v6695 = vunpack.c.l.b16 %v5755
    %v6696 = vunpack.c.h.b16 %v5755
    %v6697 = vunpack.c.l.b16 %v5756
    %v6698 = vunpack.c.h.b16 %v5756
    %v6699 = vunpack.c.l.b16 %v5757
    %v6700 = vunpack.c.h.b16 %v5757
    %v6701 = vunpack.c.l.b16 %v5758
    %v6702 = vunpack.c.h.b16 %v5758
    %v6703 = vunpack.c.l.b16 %v5759
    %v6704 = vunpack.c.h.b16 %v5759
    %v6705 = vunpack.c.l.b16 %v5760
    %v6706 = vunpack.c.h.b16 %v5760
    %v6707 = vunpack.c.l.b16 %v5761
    %v6708 = vunpack.c.h.b16 %v5761
    %v6709 = vunpack.c.l.b16 %v5762
    %v6710 = vunpack.c.h.b16 %v5762
    %v6711 = vunpack.c.l.b16 %v5763
    %v6712 = vunpack.c.h.b16 %v5763
    %v6713 = vunpack.c.l.b16 %v5764
    %v6714 = vunpack.c.h.b16 %v5764
    %v6715 = vunpack.c.l.b16 %v5765
    %v6716 = vunpack.c.h.b16 %v5765
    %v6717 = vunpack.c.l.b16 %v5766
    %v6718 = vunpack.c.h.b16 %v5766
    %v6719 = vunpack.c.l.b16 %v5767
    %v6720 = vunpack.c.h.b16 %v5767
    %v6721 = vunpack.c.l.b16 %v5768
    %v6722 = vunpack.c.h.b16 %v5768
    %v6723 = vunpack.c.l.b16 %v5769
    %v6724 = vunpack.c.h.b16 %v5769
    %v6725 = vunpack.c.l.b16 %v5770
    %v6726 = vunpack.c.h.b16 %v5770
    %v6727 = vunpack.c.l.b16 %v5771
    %v6728 = vunpack.c.h.b16 %v5771
    %v6729 = vunpack.c.l.b16 %v5772
    %v6730 = vunpack.c.h.b16 %v5772
    %v6731 = vunpack.c.l.b16 %v5773
    %v6732 = vunpack.c.h.b16 %v5773
    %v6733 = vunpack.c.l.b16 %v5774
    %v6734 = vunpack.c.h.b16 %v5774
    %v6735 = vunpack.c.l.b16 %v5775
    %v6736 = vunpack.c.h.b16 %v5775
    %v6737 = vunpack.c.l.b16 %v5776
    %v6738 = vunpack.c.h.b16 %v5776
    %v6739 = vunpack.c.l.b16 %v5777
    %v6740 = vunpack.c.h.b16 %v5777
    %v6741 = vunpack.c.l.b16 %v5778
    %v6742 = vunpack.c.h.b16 %v5778
    %v6743 = vunpack.c.l.b16 %v5779
    %v6744 = vunpack.c.h.b16 %v5779
    %v6745 = vunpack.c.l.b16 %v5780
    %v6746 = vunpack.c.h.b16 %v5780
    %v6747 = vunpack.c.l.b16 %v5781
    %v6748 = vunpack.c.h.b16 %v5781
    %v6749 = vunpack.c.l.b16 %v5782
    %v6750 = vunpack.c.h.b16 %v5782
    %v6751 = vunpack.c.l.b16 %v5783
    %v6752 = vunpack.c.h.b16 %v5783
    %v6753 = vunpack.c.l.b16 %v5784
    %v6754 = vunpack.c.h.b16 %v5784
    %v6755 = vunpack.c.l.b16 %v5785
    %v6756 = vunpack.c.h.b16 %v5785
    %v6757 = vunpack.c.l.b16 %v5786
    %v6758 = vunpack.c.h.b16 %v5786
    %v6759 = vunpack.c.l.b16 %v5787
    %v6760 = vunpack.c.h.b16 %v5787
    %v6761 = vunpack.c.l.b16 %v5788
    %v6762 = vunpack.c.h.b16 %v5788
    %v6763 = vunpack.c.l.b16 %v5789
    %v6764 = vunpack.c.h.b16 %v5789
    %v6765 = vunpack.c.l.b16 %v5790
    %v6766 = vunpack.c.h.b16 %v5790
    %v6767 = vunpack.c.l.b16 %v5791
    %v6768 = vunpack.c.h.b16 %v5791
    %v6769 = vunpack.c.l.b16 %v5792
    %v6770 = vunpack.c.h.b16 %v5792
    %v6771 = vunpack.c.l.b16 %v5793
    %v6772 = vunpack.c.h.b16 %v5793
    %v6773 = vunpack.c.l.b16 %v5794
    %v6774 = vunpack.c.h.b16 %v5794
    %v6775 = vunpack.c.l.b16 %v5795
    %v6776 = vunpack.c.h.b16 %v5795
    %v6777 = vunpack.c.l.b16 %v5796
    %v6778 = vunpack.c.h.b16 %v5796
    %v6779 = vunpack.c.l.b16 %v5797
    %v6780 = vunpack.c.h.b16 %v5797
    %v6781 = vunpack.c.l.b16 %v5798
    %v6782 = vunpack.c.h.b16 %v5798
    %v6783 = vunpack.c.l.b16 %v5799
    %v6784 = vunpack.c.h.b16 %v5799
    %v6785 = vunpack.c.l.b16 %v5800
    %v6786 = vunpack.c.h.b16 %v5800
    %v6787 = vunpack.c.l.b16 %v5801
    %v6788 = vunpack.c.h.b16 %v5801
    %v6789 = vunpack.c.l.b16 %v5802
    %v6790 = vunpack.c.h.b16 %v5802
    %v6791 = vunpack.c.l.b16 %v5803
    %v6792 = vunpack.c.h.b16 %v5803
    %v6793 = vunpack.c.l.b16 %v5804
    %v6794 = vunpack.c.h.b16 %v5804
    %v6795 = vunpack.c.l.b16 %v5805
    %v6796 = vunpack.c.h.b16 %v5805
    %v6797 = vunpack.c.l.b16 %v5806
    %v6798 = vunpack.c.h.b16 %v5806
    %v6799 = vunpack.c.l.b16 %v5807
    %v6800 = vunpack.c.h.b16 %v5807
    %v6801 = vunpack.c.l.b16 %v5808
    %v6802 = vunpack.c.h.b16 %v5808
    %v6803 = vunpack.c.l.b16 %v5809
    %v6804 = vunpack.c.h.b16 %v5809
    %v6805 = vunpack.c.l.b16 %v5810
    %v6806 = vunpack.c.h.b16 %v5810
    %v6807 = vunpack.c.l.b16 %v5811
    %v6808 = vunpack.c.h.b16 %v5811
    %v6809 = vunpack.c.l.b16 %v5812
    %v6810 = vunpack.c.h.b16 %v5812
    %v6811 = vunpack.c.l.b16 %v5813
    %v6812 = vunpack.c.h.b16 %v5813
    %v6813 = vunpack.c.l.b16 %v5814
    %v6814 = vunpack.c.h.b16 %v5814
    %v6815 = vunpack.c.l.b16 %v5815
    %v6816 = vunpack.c.h.b16 %v5815
    %v6817 = vunpack.c.l.b16 %v5816
    %v6818 = vunpack.c.h.b16 %v5816
    %v6819 = vunpack.c.l.b16 %v5817
    %v6820 = vunpack.c.h.b16 %v5817
    %v6821 = vunpack.c.l.b16 %v5818
    %v6822 = vunpack.c.h.b16 %v5818
    %v6823 = vunpack.c.l.b16 %v5819
    %v6824 = vunpack.c.h.b16 %v5819
    %v6825 = vunpack.c.l.b16 %v5820
    %v6826 = vunpack.c.h.b16 %v5820
    %v6827 = vunpack.c.l.b16 %v5821
    %v6828 = vunpack.c.h.b16 %v5821
    %v6829 = vunpack.c.l.b16 %v5822
    %v6830 = vunpack.c.h.b16 %v5822
    %v6831 = vunpack.c.l.b16 %v5823
    %v6832 = vunpack.c.h.b16 %v5823
    %v6833 = vunpack.c.l.b16 %v5824
    %v6834 = vunpack.c.h.b16 %v5824
    %v6835 = vunpack.c.l.b16 %v5825
    %v6836 = vunpack.c.h.b16 %v5825
    %v6837 = vunpack.c.l.b16 %v5826
    %v6838 = vunpack.c.h.b16 %v5826
    %v6839 = vunpack.c.l.b16 %v5827
    %v6840 = vunpack.c.h.b16 %v5827
    %v6841 = vunpack.c.l.b16 %v5828
    %v6842 = vunpack.c.h.b16 %v5828
    %v6843 = vunpack.c.l.b16 %v5829
    %v6844 = vunpack.c.h.b16 %v5829
    %v6845 = vunpack.c.l.b16 %v5830
    %v6846 = vunpack.c.h.b16 %v5830
    %v6847 = vunpack.c.l.b16 %v5831
    %v6848 = vunpack.c.h.b16 %v5831
    %v6849 = vunpack.c.l.b16 %v5832
    %v6850 = vunpack.c.h.b16 %v5832
    %v6851 = vunpack.c.l.b16 %v5833
    %v6852 = vunpack.c.h.b16 %v5833
    %v6853 = vunpack.c.l.b16 %v5834
    %v6854 = vunpack.c.h.b16 %v5834
    %v6855 = vunpack.c.l.b16 %v5835
    %v6856 = vunpack.c.h.b16 %v5835
    %v6857 = vunpack.c.l.b16 %v5836
    %v6858 = vunpack.c.h.b16 %v5836
    %v6859 = vunpack.c.l.b16 %v5837
    %v6860 = vunpack.c.h.b16 %v5837
    %v6861 = vunpack.c.l.b16 %v5838
    %v6862 = vunpack.c.h.b16 %v5838
    %v6863 = vunpack.c.l.b16 %v5839
    %v6864 = vunpack.c.h.b16 %v5839
    %v6865 = vunpack.c.l.b16 %v5840
    %v6866 = vunpack.c.h.b16 %v5840
    %v6867 = vunpack.c.l.b16 %v5841
    %v6868 = vunpack.c.h.b16 %v5841
    %v6869 = vunpack.c.l.b16 %v5842
    %v6870 = vunpack.c.h.b16 %v5842
    %v6871 = vunpack.c.l.b16 %v5843
    %v6872 = vunpack.c.h.b16 %v5843
    %v6873 = vunpack.c.l.b16 %v5844
    %v6874 = vunpack.c.h.b16 %v5844
    %v6875 = vunpack.c.l.b16 %v5845
    %v6876 = vunpack.c.h.b16 %v5845
    %v6877 = vunpack.c.l.b16 %v5846
    %v6878 = vunpack.c.h.b16 %v5846
    %v6879 = vunpack.c.l.b16 %v5847
    %v6880 = vunpack.c.h.b16 %v5847
    %v6881 = vunpack.c.l.b16 %v5848
    %v6882 = vunpack.c.h.b16 %v5848
    %v6883 = vunpack.c.l.b16 %v5849
    %v6884 = vunpack.c.h.b16 %v5849
    %v6885 = vunpack.c.l.b16 %v5850
    %v6886 = vunpack.c.h.b16 %v5850
    %v6887 = vunpack.c.l.b16 %v5851
    %v6888 = vunpack.c.h.b16 %v5851
    %v6889 = vunpack.c.l.b16 %v5852
    %v6890 = vunpack.c.h.b16 %v5852
    %v6891 = vunpack.c.l.b16 %v5853
    %v6892 = vunpack.c.h.b16 %v5853
    %v6893 = vunpack.c.l.b16 %v5854
    %v6894 = vunpack.c.h.b16 %v5854
    %v6895 = vunpack.c.l.b16 %v5855
    %v6896 = vunpack.c.h.b16 %v5855
    %v6897 = vunpack.c.l.b16 %v5856
    %v6898 = vunpack.c.h.b16 %v5856
    %v6899 = vunpack.c.l.b16 %v5857
    %v6900 = vunpack.c.h.b16 %v5857
    %v6901 = vunpack.c.l.b16 %v5858
    %v6902 = vunpack.c.h.b16 %v5858
    %v6903 = vunpack.c.l.b16 %v5859
    %v6904 = vunpack.c.h.b16 %v5859
    %v6905 = vunpack.c.l.b16 %v5860
    %v6906 = vunpack.c.h.b16 %v5860
    %v6907 = vunpack.c.l.b16 %v5861
    %v6908 = vunpack.c.h.b16 %v5861
    %v6909 = vunpack.c.l.b16 %v5862
    %v6910 = vunpack.c.h.b16 %v5862
    %v6911 = vunpack.c.l.b16 %v5863
    %v6912 = vunpack.c.h.b16 %v5863
    %v6913 = vunpack.c.l.b16 %v5864
    %v6914 = vunpack.c.h.b16 %v5864
    %v6915 = vunpack.c.l.b16 %v5865
    %v6916 = vunpack.c.h.b16 %v5865
    %v6917 = vunpack.c.l.b16 %v5866
    %v6918 = vunpack.c.h.b16 %v5866
    %v6919 = vunpack.c.l.b16 %v5867
    %v6920 = vunpack.c.h.b16 %v5867
    %v6921 = vunpack.c.l.b16 %v5868
    %v6922 = vunpack.c.h.b16 %v5868
    %v6923 = vunpack.c.l.b16 %v5869
    %v6924 = vunpack.c.h.b16 %v5869
    %v6925 = vunpack.c.l.b16 %v5870
    %v6926 = vunpack.c.h.b16 %v5870
    %v6927 = vunpack.c.l.b16 %v5871
    %v6928 = vunpack.c.h.b16 %v5871
    %v6929 = vunpack.c.l.b16 %v5872
    %v6930 = vunpack.c.h.b16 %v5872
    %v6931 = vunpack.c.l.b16 %v5873
    %v6932 = vunpack.c.h.b16 %v5873
    %v6933 = vunpack.c.l.b16 %v5874
    %v6934 = vunpack.c.h.b16 %v5874
    %v6935 = vunpack.c.l.b16 %v5875
    %v6936 = vunpack.c.h.b16 %v5875
    %v6937 = vunpack.c.l.b16 %v5876
    %v6938 = vunpack.c.h.b16 %v5876
    %v6939 = vunpack.c.l.b16 %v5877
    %v6940 = vunpack.c.h.b16 %v5877
    %v6941 = vunpack.c.l.b16 %v5878
    %v6942 = vunpack.c.h.b16 %v5878
    %v6943 = vunpack.c.l.b16 %v5879
    %v6944 = vunpack.c.h.b16 %v5879
    %v6945 = vunpack.c.l.b16 %v5880
    %v6946 = vunpack.c.h.b16 %v5880
    %v6947 = vunpack.c.l.b16 %v5881
    %v6948 = vunpack.c.h.b16 %v5881
    %v6949 = vunpack.c.l.b16 %v5882
    %v6950 = vunpack.c.h.b16 %v5882
    %v6951 = vunpack.c.l.b16 %v5883
    %v6952 = vunpack.c.h.b16 %v5883
    %v6953 = vunpack.c.l.b16 %v5884
    %v6954 = vunpack.c.h.b16 %v5884
    %v6955 = vunpack.c.l.b16 %v5885
    %v6956 = vunpack.c.h.b16 %v5885
    %v6957 = vunpack.c.l.b16 %v5886
    %v6958 = vunpack.c.h.b16 %v5886
    %v6959 = vunpack.c.l.b16 %v5887
    %v6960 = vunpack.c.h.b16 %v5887
    %v6961 = vunpack.c.l.b16 %v5888
    %v6962 = vunpack.c.h.b16 %v5888
    %v6963 = vunpack.c.l.b16 %v5889
    %v6964 = vunpack.c.h.b16 %v5889
    %v6965 = vunpack.c.l.b16 %v5890
    %v6966 = vunpack.c.h.b16 %v5890
    %v6967 = vunpack.c.l.b16 %v5891
    %v6968 = vunpack.c.h.b16 %v5891
    %v6969 = vunpack.c.l.b16 %v5892
    %v6970 = vunpack.c.h.b16 %v5892
    %v6971 = vunpack.c.l.b16 %v5893
    %v6972 = vunpack.c.h.b16 %v5893
    %v6973 = vunpack.c.l.b16 %v5894
    %v6974 = vunpack.c.h.b16 %v5894
    %v6975 = vunpack.c.l.b16 %v5895
    %v6976 = vunpack.c.h.b16 %v5895
    %v6977 = vunpack.c.l.b16 %v5896
    %v6978 = vunpack.c.h.b16 %v5896
    %v6979 = vunpack.c.l.b16 %v5897
    %v6980 = vunpack.c.h.b16 %v5897
    %v6981 = vunpack.c.l.b16 %v5898
    %v6982 = vunpack.c.h.b16 %v5898
    %v6983 = vunpack.c.l.b16 %v5899
    %v6984 = vunpack.c.h.b16 %v5899
    %v6985 = vunpack.c.l.b16 %v5900
    %v6986 = vunpack.c.h.b16 %v5900
    %v6987 = vunpack.c.l.b16 %v5901
    %v6988 = vunpack.c.h.b16 %v5901
    %v6989 = vunpack.c.l.b16 %v5902
    %v6990 = vunpack.c.h.b16 %v5902
    %v6991 = vunpack.c.l.b16 %v5903
    %v6992 = vunpack.c.h.b16 %v5903
    %v6993 = vunpack.c.l.b16 %v5904
    %v6994 = vunpack.c.h.b16 %v5904
    %v6995 = vunpack.c.l.b16 %v5905
    %v6996 = vunpack.c.h.b16 %v5905
    %v6997 = vunpack.c.l.b16 %v5906
    %v6998 = vunpack.c.h.b16 %v5906
    %v6999 = vunpack.c.l.b16 %v5907
    %v7000 = vunpack.c.h.b16 %v5907
    %v7001 = vunpack.c.l.b16 %v5908
    %v7002 = vunpack.c.h.b16 %v5908
    %v7003 = vunpack.c.l.b16 %v5909
    %v7004 = vunpack.c.h.b16 %v5909
    %v7005 = vunpack.c.l.b16 %v5910
    %v7006 = vunpack.c.h.b16 %v5910
    %v7007 = vunpack.c.l.b16 %v5911
    %v7008 = vunpack.c.h.b16 %v5911
    %v7009 = vunpack.c.l.b16 %v5912
    %v7010 = vunpack.c.h.b16 %v5912
    %v7011 = vunpack.c.l.b16 %v5913
    %v7012 = vunpack.c.h.b16 %v5913
    %v7013 = vunpack.c.l.b16 %v5914
    %v7014 = vunpack.c.h.b16 %v5914
    %v7015 = vunpack.c.l.b16 %v5915
    %v7016 = vunpack.c.h.b16 %v5915
    %v7017 = vunpack.c.l.b16 %v5916
    %v7018 = vunpack.c.h.b16 %v5916
    %v7019 = vunpack.c.l.b16 %v5917
    %v7020 = vunpack.c.h.b16 %v5917
    %v7021 = vunpack.c.l.b16 %v5918
    %v7022 = vunpack.c.h.b16 %v5918
    %v7023 = vunpack.c.l.b16 %v5919
    %v7024 = vunpack.c.h.b16 %v5919
    %v7025 = vunpack.c.l.b16 %v5920
    %v7026 = vunpack.c.h.b16 %v5920
    %v7027 = vunpack.c.l.b16 %v5921
    %v7028 = vunpack.c.h.b16 %v5921
    %v7029 = vunpack.c.l.b16 %v5922
    %v7030 = vunpack.c.h.b16 %v5922
    %v7031 = vunpack.c.l.b16 %v5923
    %v7032 = vunpack.c.h.b16 %v5923
    %v7033 = vunpack.c.l.b16 %v5924
    %v7034 = vunpack.c.h.b16 %v5924
    %v7035 = vunpack.c.l.b16 %v5925
    %v7036 = vunpack.c.h.b16 %v5925
    %v7037 = vunpack.c.l.b16 %v5926
    %v7038 = vunpack.c.h.b16 %v5926
    %v7039 = vunpack.c.l.b16 %v5927
    %v7040 = vunpack.c.h.b16 %v5927
    %v7041 = vunpack.c.l.b16 %v5928
    %v7042 = vunpack.c.h.b16 %v5928
    %v7043 = vunpack.c.l.b16 %v5929
    %v7044 = vunpack.c.h.b16 %v5929
    %v7045 = vunpack.c.l.b16 %v5930
    %v7046 = vunpack.c.h.b16 %v5930
    %v7047 = vunpack.c.l.b16 %v5931
    %v7048 = vunpack.c.h.b16 %v5931
    %v7049 = vunpack.c.l.b16 %v5932
    %v7050 = vunpack.c.h.b16 %v5932
    %v7051 = vunpack.c.l.b16 %v5933
    %v7052 = vunpack.c.h.b16 %v5933
    %v7053 = vunpack.c.l.b16 %v5934
    %v7054 = vunpack.c.h.b16 %v5934
    %v7055 = vunpack.c.l.b16 %v5935
    %v7056 = vunpack.c.h.b16 %v5935
    %v7057 = vunpack.c.l.b16 %v5936
    %v7058 = vunpack.c.h.b16 %v5936
    %v7059 = vunpack.c.l.b16 %v5937
    %v7060 = vunpack.c.h.b16 %v5937
    %v7061 = vunpack.c.l.b16 %v5938
    %v7062 = vunpack.c.h.b16 %v5938
    %v7063 = vunpack.c.l.b16 %v5939
    %v7064 = vunpack.c.h.b16 %v5939
    %v7065 = vunpack.c.l.b16 %v5940
    %v7066 = vunpack.c.h.b16 %v5940
    %v7067 = vunpack.c.l.b16 %v5941
    %v7068 = vunpack.c.h.b16 %v5941
    %v7069 = vunpack.c.l.b16 %v5942
    %v7070 = vunpack.c.h.b16 %v5942
    %v7071 = vunpack.c.l.b16 %v5943
    %v7072 = vunpack.c.h.b16 %v5943
    %v7073 = vunpack.c.l.b16 %v5944
    %v7074 = vunpack.c.h.b16 %v5944
    %v7075 = vunpack.c.l.b16 %v5945
    %v7076 = vunpack.c.h.b16 %v5945
    %v7077 = vunpack.c.l.b16 %v5946
    %v7078 = vunpack.c.h.b16 %v5946
    %v7079 = vunpack.c.l.b16 %v5947
    %v7080 = vunpack.c.h.b16 %v5947
    %v7081 = vunpack.c.l.b16 %v5948
    %v7082 = vunpack.c.h.b16 %v5948
    %v7083 = vunpack.c.l.b16 %v5949
    %v7084 = vunpack.c.h.b16 %v5949
    %v7085 = vunpack.c.l.b16 %v5950
    %v7086 = vunpack.c.h.b16 %v5950
    %v7087 = vunpack.c.l.b16 %v5951
    %v7088 = vunpack.c.h.b16 %v5951
    %v7089 = vunpack.c.l.b16 %v5952
    %v7090 = vunpack.c.h.b16 %v5952
    %v7091 = vunpack.c.l.b16 %v5953
    %v7092 = vunpack.c.h.b16 %v5953
    %v7093 = vunpack.c.l.b16 %v5954
    %v7094 = vunpack.c.h.b16 %v5954
    %v7095 = vunpack.c.l.b16 %v5955
    %v7096 = vunpack.c.h.b16 %v5955
    %v7097 = vunpack.c.l.b16 %v5956
    %v7098 = vunpack.c.h.b16 %v5956
    %v7099 = vunpack.c.l.b16 %v5957
    %v7100 = vunpack.c.h.b16 %v5957
    %v7101 = vunpack.c.l.b16 %v5958
    %v7102 = vunpack.c.h.b16 %v5958
    %v7103 = vunpack.c.l.b16 %v5959
    %v7104 = vunpack.c.h.b16 %v5959
    %v7105 = vunpack.c.l.b16 %v5960
    %v7106 = vunpack.c.h.b16 %v5960
    %v7107 = vunpack.c.l.b16 %v5961
    %v7108 = vunpack.c.h.b16 %v5961
    %v7109 = vunpack.c.l.b16 %v5962
    %v7110 = vunpack.c.h.b16 %v5962
    %v7111 = vunpack.c.l.b16 %v5963
    %v7112 = vunpack.c.h.b16 %v5963
    %v7113 = vunpack.c.l.b16 %v5964
    %v7114 = vunpack.c.h.b16 %v5964
    %v7115 = vunpack.c.l.b16 %v5965
    %v7116 = vunpack.c.h.b16 %v5965
    %v7117 = vunpack.c.l.b16 %v5966
    %v7118 = vunpack.c.h.b16 %v5966
    %v7119 = vunpack.c.l.b16 %v5967
    %v7120 = vunpack.c.h.b16 %v5967
    %v7121 = vunpack.c.l.b16 %v5968
    %v7122 = vunpack.c.h.b16 %v5968
    %v7123 = vunpack.c.l.b16 %v5969
    %v7124 = vunpack.c.h.b16 %v5969
    %v7125 = vunpack.c.l.b16 %v5970
    %v7126 = vunpack.c.h.b16 %v5970
    %v7127 = vunpack.c.l.b16 %v5971
    %v7128 = vunpack.c.h.b16 %v5971
    %v7129 = vunpack.c.l.b16 %v5972
    %v7130 = vunpack.c.h.b16 %v5972
    %v7131 = vunpack.c.l.b16 %v5973
    %v7132 = vunpack.c.h.b16 %v5973
    %v7133 = vunpack.c.l.b16 %v5974
    %v7134 = vunpack.c.h.b16 %v5974
    %v7135 = vunpack.c.l.b16 %v5975
    %v7136 = vunpack.c.h.b16 %v5975
    %v7137 = vunpack.c.l.b16 %v5976
    %v7138 = vunpack.c.h.b16 %v5976
    %v7139 = vunpack.c.l.b16 %v5977
    %v7140 = vunpack.c.h.b16 %v5977
    %v7141 = vunpack.c.l.b16 %v5978
    %v7142 = vunpack.c.h.b16 %v5978
    %v7143 = vunpack.c.l.b16 %v5979
    %v7144 = vunpack.c.h.b16 %v5979
    %v7145 = vunpack.c.l.b16 %v5980
    %v7146 = vunpack.c.h.b16 %v5980
    %v7147 = vunpack.c.l.b16 %v5981
    %v7148 = vunpack.c.h.b16 %v5981
    %v7149 = vunpack.c.l.b16 %v5982
    %v7150 = vunpack.c.h.b16 %v5982
    %v7151 = vunpack.c.l.b16 %v5983
    %v7152 = vunpack.c.h.b16 %v5983
    %v7153 = vunpack.c.l.b16 %v5984
    %v7154 = vunpack.c.h.b16 %v5984
    %v7155 = vunpack.c.l.b16 %v5985
    %v7156 = vunpack.c.h.b16 %v5985
    %v7157 = vunpack.c.l.b16 %v5986
    %v7158 = vunpack.c.h.b16 %v5986
    %v7159 = vunpack.c.l.b16 %v5987
    %v7160 = vunpack.c.h.b16 %v5987
    %v7161 = vunpack.c.l.b16 %v5988
    %v7162 = vunpack.c.h.b16 %v5988
    %v7163 = vunpack.c.l.b16 %v5989
    %v7164 = vunpack.c.h.b16 %v5989
    %v7165 = vunpack.c.l.b16 %v5990
    %v7166 = vunpack.c.h.b16 %v5990
    %v7167 = vunpack.c.l.b16 %v5991
    %v7168 = vunpack.c.h.b16 %v5991
    %v7169 = vunpack.c.l.b16 %v5992
    %v7170 = vunpack.c.h.b16 %v5992
    %v7171 = vunpack.c.l.b16 %v5993
    %v7172 = vunpack.c.h.b16 %v5993
    %v7173 = vunpack.c.l.b16 %v5994
    %v7174 = vunpack.c.h.b16 %v5994
    %v7175 = vunpack.c.l.b16 %v5995
    %v7176 = vunpack.c.h.b16 %v5995
    %v7177 = vunpack.c.l.b16 %v5996
    %v7178 = vunpack.c.h.b16 %v5996
    %v7179 = vunpack.c.l.b16 %v5997
    %v7180 = vunpack.c.h.b16 %v5997
    %v7181 = vunpack.c.l.b16 %v5998
    %v7182 = vunpack.c.h.b16 %v5998
    %v7183 = vunpack.c.l.b16 %v5999
    %v7184 = vunpack.c.h.b16 %v5999
    %v7185 = vunpack.c.l.b16 %v6000
    %v7186 = vunpack.c.h.b16 %v6000
    %v7187 = vunpack.c.l.b16 %v6001
    %v7188 = vunpack.c.h.b16 %v6001
    %v7189 = vunpack.c.l.b16 %v6002
    %v7190 = vunpack.c.h.b16 %v6002
    %v7191 = vunpack.c.l.b16 %v6003
    %v7192 = vunpack.c.h.b16 %v6003
    %v7193 = vunpack.c.l.b16 %v6004
    %v7194 = vunpack.c.h.b16 %v6004
    %v7195 = vunpack.c.l.b16 %v6005
    %v7196 = vunpack.c.h.b16 %v6005
    %v7197 = vunpack.c.l.b16 %v6006
    %v7198 = vunpack.c.h.b16 %v6006
    %v7199 = vunpack.c.l.b16 %v6007
    %v7200 = vunpack.c.h.b16 %v6007
    %v7201 = vunpack.c.l.b16 %v6008
    %v7202 = vunpack.c.h.b16 %v6008
    %v7203 = vunpack.c.l.b16 %v6009
    %v7204 = vunpack.c.h.b16 %v6009
    %v7205 = vunpack.c.l.b16 %v6010
    %v7206 = vunpack.c.h.b16 %v6010
    %v7207 = vunpack.c.l.b16 %v6011
    %v7208 = vunpack.c.h.b16 %v6011
    %v7209 = vunpack.c.l.b16 %v6012
    %v7210 = vunpack.c.h.b16 %v6012
    %v7211 = vunpack.c.l.b16 %v6013
    %v7212 = vunpack.c.h.b16 %v6013
    %v7213 = vunpack.c.l.b16 %v6014
    %v7214 = vunpack.c.h.b16 %v6014
    %v7215 = vpack.c.b16 %v6465, %v6415
    %v7216 = vpack.c.b16 %v6466, %v6416
    %v7217 = vpack.c.b16 %v6467, %v6417
    %v7218 = vpack.c.b16 %v6468, %v6418
    %v7219 = vpack.c.b16 %v6469, %v6419
    %v7220 = vpack.c.b16 %v6470, %v6420
    %v7221 = vpack.c.b16 %v6471, %v6421
    %v7222 = vpack.c.b16 %v6472, %v6422
    %v7223 = vpack.c.b16 %v6473, %v6423
    %v7224 = vpack.c.b16 %v6474, %v6424
    %v7225 = vpack.c.b16 %v6475, %v6425
    %v7226 = vpack.c.b16 %v6476, %v6426
    %v7227 = vpack.c.b16 %v6477, %v6427
    %v7228 = vpack.c.b16 %v6478, %v6428
    %v7229 = vpack.c.b16 %v6479, %v6429
    %v7230 = vpack.c.b16 %v6480, %v6430
    %v7231 = vpack.c.b16 %v6481, %v6431
    %v7232 = vpack.c.b16 %v6482, %v6432
    %v7233 = vpack.c.b16 %v6483, %v6433
    %v7234 = vpack.c.b16 %v6484, %v6434
    %v7235 = vpack.c.b16 %v6485, %v6435
    %v7236 = vpack.c.b16 %v6486, %v6436
    %v7237 = vpack.c.b16 %v6487, %v6437
    %v7238 = vpack.c.b16 %v6488, %v6438
    %v7239 = vpack.c.b16 %v6489, %v6439
    %v7240 = vpack.c.b16 %v6490, %v6440
    %v7241 = vpack.c.b16 %v6491, %v6441
    %v7242 = vpack.c.b16 %v6492, %v6442
    %v7243 = vpack.c.b16 %v6493, %v6443
    %v7244 = vpack.c.b16 %v6494, %v6444
    %v7245 = vpack.c.b16 %v6495, %v6445
    %v7246 = vpack.c.b16 %v6496, %v6446
    %v7247 = vpack.c.b16 %v6497, %v6447
    %v7248 = vpack.c.b16 %v6498, %v6448
    %v7249 = vpack.c.b16 %v6499, %v6449
    %v7250 = vpack.c.b16 %v6500, %v6450
    %v7251 = vpack.c.b16 %v6501, %v6451
    %v7252 = vpack.c.b16 %v6502, %v6452
    %v7253 = vpack.c.b16 %v6503, %v6453
    %v7254 = vpack.c.b16 %v6504, %v6454
    %v7255 = vpack.c.b16 %v6505, %v6455
    %v7256 = vpack.c.b16 %v6506, %v6456
    %v7257 = vpack.c.b16 %v6507, %v6457
    %v7258 = vpack.c.b16 %v6508, %v6458
    %v7259 = vpack.c.b16 %v6509, %v6459
    %v7260 = vpack.c.b16 %v6510, %v6460
    %v7261 = vpack.c.b16 %v6511, %v6461
    %v7262 = vpack.c.b16 %v6512, %v6462
    %v7263 = vpack.c.b16 %v6513, %v6463
    %v7264 = vpack.c.b16 %v6514, %v6464
    %v7265 = vpack.c.b16 %v6565, %v6515
    %v7266 = vpack.c.b16 %v6566, %v6516
    %v7267 = vpack.c.b16 %v6567, %v6517
    %v7268 = vpack.c.b16 %v6568, %v6518
    %v7269 = vpack.c.b16 %v6569, %v6519
    %v7270 = vpack.c.b16 %v6570, %v6520
    %v7271 = vpack.c.b16 %v6571, %v6521
    %v7272 = vpack.c.b16 %v6572, %v6522
    %v7273 = vpack.c.b16 %v6573, %v6523
    %v7274 = vpack.c.b16 %v6574, %v6524
    %v7275 = vpack.c.b16 %v6575, %v6525
    %v7276 = vpack.c.b16 %v6576, %v6526
    %v7277 = vpack.c.b16 %v6577, %v6527
    %v7278 = vpack.c.b16 %v6578, %v6528
    %v7279 = vpack.c.b16 %v6579, %v6529
    %v7280 = vpack.c.b16 %v6580, %v6530
    %v7281 = vpack.c.b16 %v6581, %v6531
    %v7282 = vpack.c.b16 %v6582, %v6532
    %v7283 = vpack.c.b16 %v6583, %v6533
    %v7284 = vpack.c.b16 %v6584, %v6534
    %v7285 = vpack.c.b16 %v6585, %v6535
    %v7286 = vpack.c.b16 %v6586, %v6536
    %v7287 = vpack.c.b16 %v6587, %v6537
    %v7288 = vpack.c.b16 %v6588, %v6538
    %v7289 = vpack.c.b16 %v6589, %v6539
    %v7290 = vpack.c.b16 %v6590, %v6540
    %v7291 = vpack.c.b16 %v6591, %v6541
    %v7292 = vpack.c.b16 %v6592, %v6542
    %v7293 = vpack.c.b16 %v6593, %v6543
    %v7294 = vpack.c.b16 %v6594, %v6544
    %v7295 = vpack.c.b16 %v6595, %v6545
    %v7296 = vpack.c.b16 %v6596, %v6546
    %v7297 = vpack.c.b16 %v6597, %v6547
    %v7298 = vpack.c.b16 %v6598, %v6548
    %v7299 = vpack.c.b16 %v6599, %v6549
    %v7300 = vpack.c.b16 %v6600, %v6550
    %v7301 = vpack.c.b16 %v6601, %v6551
    %v7302 = vpack.c.b16 %v6602, %v6552
    %v7303 = vpack.c.b16 %v6603, %v6553
    %v7304 = vpack.c.b16 %v6604, %v6554
    %v7305 = vpack.c.b16 %v6605, %v6555
    %v7306 = vpack.c.b16 %v6606, %v6556
    %v7307 = vpack.c.b16 %v6607, %v6557
    %v7308 = vpack.c.b16 %v6608, %v6558
    %v7309 = vpack.c.b16 %v6609, %v6559
    %v7310 = vpack.c.b16 %v6610, %v6560
    %v7311 = vpack.c.b16 %v6611, %v6561
    %v7312 = vpack.c.b16 %v6612, %v6562
    %v7313 = vpack.c.b16 %v6613, %v6563
    %v7314 = vpack.c.b16 %v6614, %v6564
    %v7315 = vpack.c.b16 %v6665, %v6615
    %v7316 = vpack.c.b16 %v6666, %v6616
    %v7317 = vpack.c.b16 %v6667, %v6617
    %v7318 = vpack.c.b16 %v6668, %v6618
    %v7319 = vpack.c.b16 %v6669, %v6619
    %v7320 = vpack.c.b16 %v6670, %v6620
    %v7321 = vpack.c.b16 %v6671, %v6621
    %v7322 = vpack.c.b16 %v6672, %v6622
    %v7323 = vpack.c.b16 %v6673, %v6623
    %v7324 = vpack.c.b16 %v6674, %v6624
    %v7325 = vpack.c.b16 %v6675, %v6625
    %v7326 = vpack.c.b16 %v6676, %v6626
    %v7327 = vpack.c.b16 %v6677, %v6627
    %v7328 = vpack.c.b16 %v6678, %v6628
    %v7329 = vpack.c.b16 %v6679, %v6629
    %v7330 = vpack.c.b16 %v6680, %v6630
    %v7331 = vpack.c.b16 %v6681, %v6631
    %v7332 = vpack.c.b16 %v6682, %v6632
    %v7333 = vpack.c.b16 %v6683, %v6633
    %v7334 = vpack.c.b16 %v6684, %v6634
    %v7335 = vpack.c.b16 %v6685, %v6635
    %v7336 = vpack.c.b16 %v6686, %v6636
    %v7337 = vpack.c.b16 %v6687, %v6637
    %v7338 = vpack.c.b16 %v6688, %v6638
    %v7339 = vpack.c.b16 %v6689, %v6639
    %v7340 = vpack.c.b16 %v6690, %v6640
    %v7341 = vpack.c.b16 %v6691, %v6641
    %v7342 = vpack.c.b16 %v6692, %v6642
    %v7343 = vpack.c.b16 %v6693, %v6643
    %v7344 = vpack.c.b16 %v6694, %v6644
    %v7345 = vpack.c.b16 %v6695, %v6645
    %v7346 = vpack.c.b16 %v6696, %v6646
    %v7347 = vpack.c.b16 %v6697, %v6647
    %v7348 = vpack.c.b16 %v6698, %v6648
    %v7349 = vpack.c.b16 %v6699, %v6649
    %v7350 = vpack.c.b16 %v6700, %v6650
    %v7351 = vpack.c.b16 %v6701, %v6651
    %v7352 = vpack.c.b16 %v6702, %v6652
    %v7353 = vpack.c.b16 %v6703, %v6653
    %v7354 = vpack.c.b16 %v6704, %v6654
    %v7355 = vpack.c.b16 %v6705, %v6655
    %v7356 = vpack.c.b16 %v6706, %v6656
    %v7357 = vpack.c.b16 %v6707, %v6657
    %v7358 = vpack.c.b16 %v6708, %v6658
    %v7359 = vpack.c.b16 %v6709, %v6659
    %v7360 = vpack.c.b16 %v6710, %v6660
    %v7361 = vpack.c.b16 %v6711, %v6661
    %v7362 = vpack.c.b16 %v6712, %v6662
    %v7363 = vpack.c.b16 %v6713, %v6663
    %v7364 = vpack.c.b16 %v6714, %v6664
    %v7365 = vpack.c.b16 %v6765, %v6715
    %v7366 = vpack.c.b16 %v6766, %v6716
    %v7367 = vpack.c.b16 %v6767, %v6717
    %v7368 = vpack.c.b16 %v6768, %v6718
    %v7369 = vpack.c.b16 %v6769, %v6719
    %v7370 = vpack.c.b16 %v6770, %v6720
    %v7371 = vpack.c.b16 %v6771, %v6721
    %v7372 = vpack.c.b16 %v6772, %v6722
    %v7373 = vpack.c.b16 %v6773, %v6723
    %v7374 = vpack.c.b16 %v6774, %v6724
    %v7375 = vpack.c.b16 %v6775, %v6725
    %v7376 = vpack.c.b16 %v6776, %v6726
    %v7377 = vpack.c.b16 %v6777, %v6727
    %v7378 = vpack.c.b16 %v6778, %v6728
    %v7379 = vpack.c.b16 %v6779, %v6729
    %v7380 = vpack.c.b16 %v6780, %v6730
    %v7381 = vpack.c.b16 %v6781, %v6731
    %v7382 = vpack.c.b16 %v6782, %v6732
    %v7383 = vpack.c.b16 %v6783, %v6733
    %v7384 = vpack.c.b16 %v6784, %v6734
    %v7385 = vpack.c.b16 %v6785, %v6735
    %v7386 = vpack.c.b16 %v6786, %v6736
    %v7387 = vpack.c.b16 %v6787, %v6737
    %v7388 = vpack.c.b16 %v6788, %v6738
    %v7389 = vpack.c.b16 %v6789, %v6739
    %v7390 = vpack.c.b16 %v6790, %v6740
    %v7391 = vpack.c.b16 %v6791, %v6741
    %v7392 = vpack.c.b16 %v6792, %v6742
    %v7393 = vpack.c.b16 %v6793, %v6743
    %v7394 = vpack.c.b16 %v6794, %v6744
    %v7395 = vpack.c.b16 %v6795, %v6745
    %v7396 = vpack.c.b16 %v6796, %v6746
    %v7397 = vpack.c.b16 %v6797, %v6747
    %v7398 = vpack.c.b16 %v6798, %v6748
    %v7399 = vpack.c.b16 %v6799, %v6749
    %v7400 = vpack.c.b16 %v6800, %v6750
    %v7401 = vpack.c.b16 %v6801, %v6751
    %v7402 = vpack.c.b16 %v6802, %v6752
    %v7403 = vpack.c.b16 %v6803, %v6753
    %v7404 = vpack.c.b16 %v6804, %v6754
    %v7405 = vpack.c.b16 %v6805, %v6755
    %v7406 = vpack.c.b16 %v6806, %v6756
    %v7407 = vpack.c.b16 %v6807, %v6757
    %v7408 = vpack.c.b16 %v6808, %v6758
    %v7409 = vpack.c.b16 %v6809, %v6759
    %v7410 = vpack.c.b16 %v6810, %v6760
    %v7411 = vpack.c.b16 %v6811, %v6761
    %v7412 = vpack.c.b16 %v6812, %v6762
    %v7413 = vpack.c.b16 %v6813, %v6763
    %v7414 = vpack.c.b16 %v6814, %v6764
    %v7415 = vpack.c.b16 %v6865, %v6815
    %v7416 = vpack.c.b16 %v6866, %v6816
    %v7417 = vpack.c.b16 %v6867, %v6817
    %v7418 = vpack.c.b16 %v6868, %v6818
    %v7419 = vpack.c.b16 %v6869, %v6819
    %v7420 = vpack.c.b16 %v6870, %v6820
    %v7421 = vpack.c.b16 %v6871, %v6821
    %v7422 = vpack.c.b16 %v6872, %v6822
    %v7423 = vpack.c.b16 %v6873, %v6823
    %v7424 = vpack.c.b16 %v6874, %v6824
    %v7425 = vpack.c.b16 %v6875, %v6825
    %v7426 = vpack.c.b16 %v6876, %v6826
    %v7427 = vpack.c.b16 %v6877, %v6827
    %v7428 = vpack.c.b16 %v6878, %v6828
    %v7429 = vpack.c.b16 %v6879, %v6829
    %v7430 = vpack.c.b16 %v6880, %v6830
    %v7431 = vpack.c.b16 %v6881, %v6831
    %v7432 = vpack.c.b16 %v6882, %v6832
    %v7433 = vpack.c.b16 %v6883, %v6833
    %v7434 = vpack.c.b16 %v6884, %v6834
    %v7435 = vpack.c.b16 %v6885, %v6835
    %v7436 = vpack.c.b16 %v6886, %v6836
    %v7437 = vpack.c.b16 %v6887, %v6837
    %v7438 = vpack.c.b16 %v6888, %v6838
    %v7439 = vpack.c.b16 %v6889, %v6839
    %v7440 = vpack.c.b16 %v6890, %v6840
    %v7441 = vpack.c.b16 %v6891, %v6841
    %v7442 = vpack.c.b16 %v6892, %v6842
    %v7443 = vpack.c.b16 %v6893, %v6843
    %v7444 = vpack.c.b16 %v6894, %v6844
    %v7445 = vpack.c.b16 %v6895, %v6845
    %v7446 = vpack.c.b16 %v6896, %v6846
    %v7447 = vpack.c.b16 %v6897, %v6847
    %v7448 = vpack.c.b16 %v6898, %v6848
    %v7449 = vpack.c.b16 %v6899, %v6849
    %v7450 = vpack.c.b16 %v6900, %v6850
    %v7451 = vpack.c.b16 %v6901, %v6851
    %v7452 = vpack.c.b16 %v6902, %v6852
    %v7453 = vpack.c.b16 %v6903, %v6853
    %v7454 = vpack.c.b16 %v6904, %v6854
    %v7455 = vpack.c.b16 %v6905, %v6855
    %v7456 = vpack.c.b16 %v6906, %v6856
    %v7457 = vpack.c.b16 %v6907, %v6857
    %v7458 = vpack.c.b16 %v6908, %v6858
    %v7459 = vpack.c.b16 %v6909, %v6859
    %v7460 = vpack.c.b16 %v6910, %v6860
    %v7461 = vpack.c.b16 %v6911, %v6861
    %v7462 = vpack.c.b16 %v6912, %v6862
    %v7463 = vpack.c.b16 %v6913, %v6863
    %v7464 = vpack.c.b16 %v6914, %v6864
    %v7465 = vpack.c.b16 %v6965, %v6915
    %v7466 = vpack.c.b16 %v6966, %v6916
    %v7467 = vpack.c.b16 %v6967, %v6917
    %v7468 = vpack.c.b16 %v6968, %v6918
    %v7469 = vpack.c.b16 %v6969, %v6919
    %v7470 = vpack.c.b16 %v6970, %v6920
    %v7471 = vpack.c.b16 %v6971, %v6921
    %v7472 = vpack.c.b16 %v6972, %v6922
    %v7473 = vpack.c.b16 %v6973, %v6923
    %v7474 = vpack.c.b16 %v6974, %v6924
    %v7475 = vpack.c.b16 %v6975, %v6925
    %v7476 = vpack.c.b16 %v6976, %v6926
    %v7477 = vpack.c.b16 %v6977, %v6927
    %v7478 = vpack.c.b16 %v6978, %v6928
    %v7479 = vpack.c.b16 %v6979, %v6929
    %v7480 = vpack.c.b16 %v6980, %v6930
    %v7481 = vpack.c.b16 %v6981, %v6931
    %v7482 = vpack.c.b16 %v6982, %v6932
    %v7483 = vpack.c.b16 %v6983, %v6933
    %v7484 = vpack.c.b16 %v6984, %v6934
    %v7485 = vpack.c.b16 %v6985, %v6935
    %v7486 = vpack.c.b16 %v6986, %v6936
    %v7487 = vpack.c.b16 %v6987, %v6937
    %v7488 = vpack.c.b16 %v6988, %v6938
    %v7489 = vpack.c.b16 %v6989, %v6939
    %v7490 = vpack.c.b16 %v6990, %v6940
    %v7491 = vpack.c.b16 %v6991, %v6941
    %v7492 = vpack.c.b16 %v6992, %v6942
    %v7493 = vpack.c.b16 %v6993, %v6943
    %v7494 = vpack.c.b16 %v6994, %v6944
    %v7495 = vpack.c.b16 %v6995, %v6945
    %v7496 = vpack.c.b16 %v6996, %v6946
    %v7497 = vpack.c.b16 %v6997, %v6947
    %v7498 = vpack.c.b16 %v6998, %v6948
    %v7499 = vpack.c.b16 %v6999, %v6949
    %v7500 = vpack.c.b16 %v7000, %v6950
    %v7501 = vpack.c.b16 %v7001, %v6951
    %v7502 = vpack.c.b16 %v7002, %v6952
    %v7503 = vpack.c.b16 %v7003, %v6953
    %v7504 = vpack.c.b16 %v7004, %v6954
    %v7505 = vpack.c.b16 %v7005, %v6955
    %v7506 = vpack.c.b16 %v7006, %v6956
    %v7507 = vpack.c.b16 %v7007, %v6957
    %v7508 = vpack.c.b16 %v7008, %v6958
    %v7509 = vpack.c.b16 %v7009, %v6959
    %v7510 = vpack.c.b16 %v7010, %v6960
    %v7511 = vpack.c.b16 %v7011, %v6961
    %v7512 = vpack.c.b16 %v7012, %v6962
    %v7513 = vpack.c.b16 %v7013, %v6963
    %v7514 = vpack.c.b16 %v7014, %v6964
    %v7515 = vpack.c.b16 %v7065, %v7015
    %v7516 = vpack.c.b16 %v7066, %v7016
    %v7517 = vpack.c.b16 %v7067, %v7017
    %v7518 = vpack.c.b16 %v7068, %v7018
    %v7519 = vpack.c.b16 %v7069, %v7019
    %v7520 = vpack.c.b16 %v7070, %v7020
    %v7521 = vpack.c.b16 %v7071, %v7021
    %v7522 = vpack.c.b16 %v7072, %v7022
    %v7523 = vpack.c.b16 %v7073, %v7023
    %v7524 = vpack.c.b16 %v7074, %v7024
    %v7525 = vpack.c.b16 %v7075, %v7025
    %v7526 = vpack.c.b16 %v7076, %v7026
    %v7527 = vpack.c.b16 %v7077, %v7027
    %v7528 = vpack.c.b16 %v7078, %v7028
    %v7529 = vpack.c.b16 %v7079, %v7029
    %v7530 = vpack.c.b16 %v7080, %v7030
    %v7531 = vpack.c.b16 %v7081, %v7031
    %v7532 = vpack.c.b16 %v7082, %v7032
    %v7533 = vpack.c.b16 %v7083, %v7033
    %v7534 = vpack.c.b16 %v7084, %v7034
    %v7535 = vpack.c.b16 %v7085, %v7035
    %v7536 = vpack.c.b16 %v7086, %v7036
    %v7537 = vpack.c.b16 %v7087, %v7037
    %v7538 = vpack.c.b16 %v7088, %v7038
    %v7539 = vpack.c.b16 %v7089, %v7039
    %v7540 = vpack.c.b16 %v7090, %v7040
    %v7541 = vpack.c.b16 %v7091, %v7041
    %v7542 = vpack.c.b16 %v7092, %v7042
    %v7543 = vpack.c.b16 %v7093, %v7043
    %v7544 = vpack.c.b16 %v7094, %v7044
    %v7545 = vpack.c.b16 %v7095, %v7045
    %v7546 = vpack.c.b16 %v7096, %v7046
    %v7547 = vpack.c.b16 %v7097, %v7047
    %v7548 = vpack.c.b16 %v7098, %v7048
    %v7549 = vpack.c.b16 %v7099, %v7049
    %v7550 = vpack.c.b16 %v7100, %v7050
    %v7551 = vpack.c.b16 %v7101, %v7051
    %v7552 = vpack.c.b16 %v7102, %v7052
    %v7553 = vpack.c.b16 %v7103, %v7053
    %v7554 = vpack.c.b16 %v7104, %v7054
    %v7555 = vpack.c.b16 %v7105, %v7055
    %v7556 = vpack.c.b16 %v7106, %v7056
    %v7557 = vpack.c.b16 %v7107, %v7057
    %v7558 = vpack.c.b16 %v7108, %v7058
    %v7559 = vpack.c.b16 %v7109, %v7059
    %v7560 = vpack.c.b16 %v7110, %v7060
    %v7561 = vpack.c.b16 %v7111, %v7061
    %v7562 = vpack.c.b16 %v7112, %v7062
    %v7563 = vpack.c.b16 %v7113, %v7063
    %v7564 = vpack.c.b16 %v7114, %v7064
    %v7565 = vpack.c.b16 %v7165, %v7115
    %v7566 = vpack.c.b16 %v7166, %v7116
    %v7567 = vpack.c.b16 %v7167, %v7117
    %v7568 = vpack.c.b16 %v7168, %v7118
    %v7569 = vpack.c.b16 %v7169, %v7119
    %v7570 = vpack.c.b16 %v7170, %v7120
    %v7571 = vpack.c.b16 %v7171, %v7121
    %v7572 = vpack.c.b16 %v7172, %v7122
    %v7573 = vpack.c.b16 %v7173, %v7123
    %v7574 = vpack.c.b16 %v7174, %v7124
    %v7575 = vpack.c.b16 %v7175, %v7125
    %v7576 = vpack.c.b16 %v7176, %v7126
    %v7577 = vpack.c.b16 %v7177, %v7127
    %v7578 = vpack.c.b16 %v7178, %v7128
    %v7579 = vpack.c.b16 %v7179, %v7129
    %v7580 = vpack.c.b16 %v7180, %v7130
    %v7581 = vpack.c.b16 %v7181, %v7131
    %v7582 = vpack.c.b16 %v7182, %v7132
    %v7583 = vpack.c.b16 %v7183, %v7133
    %v7584 = vpack.c.b16 %v7184, %v7134
    %v7585 = vpack.c.b16 %v7185, %v7135
    %v7586 = vpack.c.b16 %v7186, %v7136
    %v7587 = vpack.c.b16 %v7187, %v7137
    %v7588 = vpack.c.b16 %v7188, %v7138
    %v7589 = vpack.c.b16 %v7189, %v7139
    %v7590 = vpack.c.b16 %v7190, %v7140
    %v7591 = vpack.c.b16 %v7191, %v7141
    %v7592 = vpack.c.b16 %v7192, %v7142
    %v7593 = vpack.c.b16 %v7193, %v7143
    %v7594 = vpack.c.b16 %v7194, %v7144
    %v7595 = vpack.c.b16 %v7195, %v7145
    %v7596 = vpack.c.b16 %v7196, %v7146
    %v7597 = vpack.c.b16 %v7197, %v7147
    %v7598 = vpack.c.b16 %v7198, %v7148
    %v7599 = vpack.c.b16 %v7199, %v7149
    %v7600 = vpack.c.b16 %v7200, %v7150
    %v7601 = vpack.c.b16 %v7201, %v7151
    %v7602 = vpack.c.b16 %v7202, %v7152
    %v7603 = vpack.c.b16 %v7203, %v7153
    %v7604 = vpack.c.b16 %v7204, %v7154
    %v7605 = vpack.c.b16 %v7205, %v7155
    %v7606 = vpack.c.b16 %v7206, %v7156
    %v7607 = vpack.c.b16 %v7207, %v7157
    %v7608 = vpack.c.b16 %v7208, %v7158
    %v7609 = vpack.c.b16 %v7209, %v7159
    %v7610 = vpack.c.b16 %v7210, %v7160
    %v7611 = vpack.c.b16 %v7211, %v7161
    %v7612 = vpack.c.b16 %v7212, %v7162
    %v7613 = vpack.c.b16 %v7213, %v7163
    %v7614 = vpack.c.b16 %v7214, %v7164
    %8015 = vmatprep.subr.bf16.mxu0 %v7566
    %8016 = vmatpush1.bf16.msra.mxu0 %v7565
    %8017 = vmatprep.subr.bf16.mxu0 %v7516
    %8018 = vmatpush1.bf16.msra.mxu0 %v7515
    %8019 = vmatprep.subr.bf16.mxu0 %v7466
    %8020 = vmatpush1.bf16.msra.mxu0 %v7465
    %8021 = vmatprep.subr.bf16.mxu0 %v7416
    %8022 = vmatpush1.bf16.msra.mxu0 %v7415
    %8023 = vmatprep.subr.bf16.mxu0 %v7366
    %8024 = vmatpush1.bf16.msra.mxu0 %v7365
    %8025 = vmatprep.subr.bf16.mxu0 %v7316
    %8026 = vmatpush1.bf16.msra.mxu0 %v7315
    %8027 = vmatprep.subr.bf16.mxu0 %v7266
    %8028 = vmatpush1.bf16.msra.mxu0 %v7265
    %8029 = vmatprep.subr.bf16.mxu0 %v7216
    %8030 = vmatpush1.bf16.msra.mxu0 %v7215
    %8031 = vmatprep.subr.bf16.mxu0 0
    %8032 = vmatpush2.bf16.msra.mxu0 0
    %8033 = vmatprep.subr.bf16.mxu0 0
    %8034 = vmatpush2.bf16.msra.mxu0 0
    %8035 = vmatprep.subr.bf16.mxu0 0
    %8036 = vmatpush2.bf16.msra.mxu0 0
    %8037 = vmatprep.subr.bf16.mxu0 0
    %8038 = vmatpush2.bf16.msra.mxu0 0
    %8039 = vmatprep.subr.bf16.mxu0 0
    %8040 = vmatpush2.bf16.msra.mxu0 0
    %8041 = vmatprep.subr.bf16.mxu0 0
    %8042 = vmatpush2.bf16.msra.mxu0 0
    %8043 = vmatprep.subr.bf16.mxu0 0
    %8044 = vmatpush2.bf16.msra.mxu0 0
    %8045 = vmatprep.subr.bf16.mxu0 0
    %8046 = vmatpush2.bf16.msra.mxu0 0
    %8047 = vmatprep.mubr.bf16.mxu0 0
    %8048 = vmatmul.mubr.bf16.gmra.mxu0 %v5609
    %v8049 = vpop.f32.mrf.mxu0
    %v8050 = vadd.f32 0.0, %v8049
    %v8051 = vpop.f32.mrf.mxu0
    %v8052 = vadd.f32 0.0, %v8051
    %v8053 = vpop.f32.mrf.mxu0
    %v8054 = vadd.f32 0.0, %v8053
    %v8055 = vpop.f32.mrf.mxu0
    %v8056 = vadd.f32 0.0, %v8055
    %8057 = vmatprep.mubr.bf16.mxu0 0
    %8058 = vmatmul.mubr.bf16.gmra.mxu0 %v5610
    %v8059 = vpop.f32.mrf.mxu0
    %v8060 = vadd.f32 0.0, %v8059
    %v8061 = vpop.f32.mrf.mxu0
    %v8062 = vadd.f32 0.0, %v8061
    %v8063 = vpop.f32.mrf.mxu0
    %v8064 = vadd.f32 0.0, %v8063
    %v8065 = vpop.f32.mrf.mxu0
    %v8066 = vadd.f32 0.0, %v8065
    %8067 = vdwg.mxu0
    %8068 = vmatprep.subr.bf16.mxu0 %v7568
    %8069 = vmatpush1.bf16.msra.mxu0 %v7567
    %8070 = vmatprep.subr.bf16.mxu0 %v7518
    %8071 = vmatpush1.bf16.msra.mxu0 %v7517
    %8072 = vmatprep.subr.bf16.mxu0 %v7468
    %8073 = vmatpush1.bf16.msra.mxu0 %v7467
    %8074 = vmatprep.subr.bf16.mxu0 %v7418
    %8075 = vmatpush1.bf16.msra.mxu0 %v7417
    %8076 = vmatprep.subr.bf16.mxu0 %v7368
    %8077 = vmatpush1.bf16.msra.mxu0 %v7367
    %8078 = vmatprep.subr.bf16.mxu0 %v7318
    %8079 = vmatpush1.bf16.msra.mxu0 %v7317
    %8080 = vmatprep.subr.bf16.mxu0 %v7268
    %8081 = vmatpush1.bf16.msra.mxu0 %v7267
    %8082 = vmatprep.subr.bf16.mxu0 %v7218
    %8083 = vmatpush1.bf16.msra.mxu0 %v7217
    %8084 = vmatprep.subr.bf16.mxu0 0
    %8085 = vmatpush2.bf16.msra.mxu0 0
    %8086 = vmatprep.subr.bf16.mxu0 0
    %8087 = vmatpush2.bf16.msra.mxu0 0
    %8088 = vmatprep.subr.bf16.mxu0 0
    %8089 = vmatpush2.bf16.msra.mxu0 0
    %8090 = vmatprep.subr.bf16.mxu0 0
    %8091 = vmatpush2.bf16.msra.mxu0 0
    %8092 = vmatprep.subr.bf16.mxu0 0
    %8093 = vmatpush2.bf16.msra.mxu0 0
    %8094 = vmatprep.subr.bf16.mxu0 0
    %8095 = vmatpush2.bf16.msra.mxu0 0
    %8096 = vmatprep.subr.bf16.mxu0 0
    %8097 = vmatpush2.bf16.msra.mxu0 0
    %8098 = vmatprep.subr.bf16.mxu0 0
    %8099 = vmatpush2.bf16.msra.mxu0 0
    %8100 = vmatprep.mubr.bf16.mxu0 0
    %8101 = vmatmul.mubr.bf16.gmra.mxu0 %v5609
    %v8102 = vpop.f32.mrf.mxu0
    %v8103 = vadd.f32 0.0, %v8102
    %v8104 = vpop.f32.mrf.mxu0
    %v8105 = vadd.f32 0.0, %v8104
    %v8106 = vpop.f32.mrf.mxu0
    %v8107 = vadd.f32 0.0, %v8106
    %v8108 = vpop.f32.mrf.mxu0
    %v8109 = vadd.f32 0.0, %v8108
    %8110 = vmatprep.mubr.bf16.mxu0 0
    %8111 = vmatmul.mubr.bf16.gmra.mxu0 %v5610
    %v8112 = vpop.f32.mrf.mxu0
    %v8113 = vadd.f32 0.0, %v8112
    %v8114 = vpop.f32.mrf.mxu0
    %v8115 = vadd.f32 0.0, %v8114
    %v8116 = vpop.f32.mrf.mxu0
    %v8117 = vadd.f32 0.0, %v8116
    %v8118 = vpop.f32.mrf.mxu0
    %v8119 = vadd.f32 0.0, %v8118
    %8120 = vdwg.mxu0
    %8121 = vmatprep.subr.bf16.mxu0 %v7570
    %8122 = vmatpush1.bf16.msra.mxu0 %v7569
    %8123 = vmatprep.subr.bf16.mxu0 %v7520
    %8124 = vmatpush1.bf16.msra.mxu0 %v7519
    %8125 = vmatprep.subr.bf16.mxu0 %v7470
    %8126 = vmatpush1.bf16.msra.mxu0 %v7469
    %8127 = vmatprep.subr.bf16.mxu0 %v7420
    %8128 = vmatpush1.bf16.msra.mxu0 %v7419
    %8129 = vmatprep.subr.bf16.mxu0 %v7370
    %8130 = vmatpush1.bf16.msra.mxu0 %v7369
    %8131 = vmatprep.subr.bf16.mxu0 %v7320
    %8132 = vmatpush1.bf16.msra.mxu0 %v7319
    %8133 = vmatprep.subr.bf16.mxu0 %v7270
    %8134 = vmatpush1.bf16.msra.mxu0 %v7269
    %8135 = vmatprep.subr.bf16.mxu0 %v7220
    %8136 = vmatpush1.bf16.msra.mxu0 %v7219
    %8137 = vmatprep.subr.bf16.mxu0 0
    %8138 = vmatpush2.bf16.msra.mxu0 0
    %8139 = vmatprep.subr.bf16.mxu0 0
    %8140 = vmatpush2.bf16.msra.mxu0 0
    %8141 = vmatprep.subr.bf16.mxu0 0
    %8142 = vmatpush2.bf16.msra.mxu0 0
    %8143 = vmatprep.subr.bf16.mxu0 0
    %8144 = vmatpush2.bf16.msra.mxu0 0
    %8145 = vmatprep.subr.bf16.mxu0 0
    %8146 = vmatpush2.bf16.msra.mxu0 0
    %8147 = vmatprep.subr.bf16.mxu0 0
    %8148 = vmatpush2.bf16.msra.mxu0 0
    %8149 = vmatprep.subr.bf16.mxu0 0
    %8150 = vmatpush2.bf16.msra.mxu0 0
    %8151 = vmatprep.subr.bf16.mxu0 0
    %8152 = vmatpush2.bf16.msra.mxu0 0
    %8153 = vmatprep.mubr.bf16.mxu0 0
    %8154 = vmatmul.mubr.bf16.gmra.mxu0 %v5609
    %v8155 = vpop.f32.mrf.mxu0
    %v8156 = vadd.f32 0.0, %v8155
    %v8157 = vpop.f32.mrf.mxu0
    %v8158 = vadd.f32 0.0, %v8157
    %v8159 = vpop.f32.mrf.mxu0
    %v8160 = vadd.f32 0.0, %v8159
    %v8161 = vpop.f32.mrf.mxu0
    %v8162 = vadd.f32 0.0, %v8161
    %8163 = vmatprep.mubr.bf16.mxu0 0
    %8164 = vmatmul.mubr.bf16.gmra.mxu0 %v5610
    %v8165 = vpop.f32.mrf.mxu0
    %v8166 = vadd.f32 0.0, %v8165
    %v8167 = vpop.f32.mrf.mxu0
    %v8168 = vadd.f32 0.0, %v8167
    %v8169 = vpop.f32.mrf.mxu0
    %v8170 = vadd.f32 0.0, %v8169
    %v8171 = vpop.f32.mrf.mxu0
    %v8172 = vadd.f32 0.0, %v8171
    %8173 = vdwg.mxu0
    %8174 = vmatprep.subr.bf16.mxu0 %v7572
    %8175 = vmatpush1.bf16.msra.mxu0 %v7571
    %8176 = vmatprep.subr.bf16.mxu0 %v7522
    %8177 = vmatpush1.bf16.msra.mxu0 %v7521
    %8178 = vmatprep.subr.bf16.mxu0 %v7472
    %8179 = vmatpush1.bf16.msra.mxu0 %v7471
    %8180 = vmatprep.subr.bf16.mxu0 %v7422
    %8181 = vmatpush1.bf16.msra.mxu0 %v7421
    %8182 = vmatprep.subr.bf16.mxu0 %v7372
    %8183 = vmatpush1.bf16.msra.mxu0 %v7371
    %8184 = vmatprep.subr.bf16.mxu0 %v7322
    %8185 = vmatpush1.bf16.msra.mxu0 %v7321
    %8186 = vmatprep.subr.bf16.mxu0 %v7272
    %8187 = vmatpush1.bf16.msra.mxu0 %v7271
    %8188 = vmatprep.subr.bf16.mxu0 %v7222
    %8189 = vmatpush1.bf16.msra.mxu0 %v7221
    %8190 = vmatprep.subr.bf16.mxu0 0
    %8191 = vmatpush2.bf16.msra.mxu0 0
    %8192 = vmatprep.subr.bf16.mxu0 0
    %8193 = vmatpush2.bf16.msra.mxu0 0
    %8194 = vmatprep.subr.bf16.mxu0 0
    %8195 = vmatpush2.bf16.msra.mxu0 0
    %8196 = vmatprep.subr.bf16.mxu0 0
    %8197 = vmatpush2.bf16.msra.mxu0 0
    %8198 = vmatprep.subr.bf16.mxu0 0
    %8199 = vmatpush2.bf16.msra.mxu0 0
    %8200 = vmatprep.subr.bf16.mxu0 0
    %8201 = vmatpush2.bf16.msra.mxu0 0
    %8202 = vmatprep.subr.bf16.mxu0 0
    %8203 = vmatpush2.bf16.msra.mxu0 0
    %8204 = vmatprep.subr.bf16.mxu0 0
    %8205 = vmatpush2.bf16.msra.mxu0 0
    %8206 = vmatprep.mubr.bf16.mxu0 0
    %8207 = vmatmul.mubr.bf16.gmra.mxu0 %v5609
    %v8208 = vpop.f32.mrf.mxu0
    %v8209 = vadd.f32 0.0, %v8208
    %v8210 = vpop.f32.mrf.mxu0
    %v8211 = vadd.f32 0.0, %v8210
    %v8212 = vpop.f32.mrf.mxu0
    %v8213 = vadd.f32 0.0, %v8212
    %v8214 = vpop.f32.mrf.mxu0
    %v8215 = vadd.f32 0.0, %v8214
    %8216 = vmatprep.mubr.bf16.mxu0 0
    %8217 = vmatmul.mubr.bf16.gmra.mxu0 %v5610
    %v8218 = vpop.f32.mrf.mxu0
    %v8219 = vadd.f32 0.0, %v8218
    %v8220 = vpop.f32.mrf.mxu0
    %v8221 = vadd.f32 0.0, %v8220
    %v8222 = vpop.f32.mrf.mxu0
    %v8223 = vadd.f32 0.0, %v8222
    %v8224 = vpop.f32.mrf.mxu0
    %v8225 = vadd.f32 0.0, %v8224
    %8226 = vdwg.mxu0
    %8227 = vmatprep.subr.bf16.mxu0 %v7574
    %8228 = vmatpush1.bf16.msra.mxu0 %v7573
    %8229 = vmatprep.subr.bf16.mxu0 %v7524
    %8230 = vmatpush1.bf16.msra.mxu0 %v7523
    %8231 = vmatprep.subr.bf16.mxu0 %v7474
    %8232 = vmatpush1.bf16.msra.mxu0 %v7473
    %8233 = vmatprep.subr.bf16.mxu0 %v7424
    %8234 = vmatpush1.bf16.msra.mxu0 %v7423
    %8235 = vmatprep.subr.bf16.mxu0 %v7374
    %8236 = vmatpush1.bf16.msra.mxu0 %v7373
    %8237 = vmatprep.subr.bf16.mxu0 %v7324
    %8238 = vmatpush1.bf16.msra.mxu0 %v7323
    %8239 = vmatprep.subr.bf16.mxu0 %v7274
    %8240 = vmatpush1.bf16.msra.mxu0 %v7273
    %8241 = vmatprep.subr.bf16.mxu0 %v7224
    %8242 = vmatpush1.bf16.msra.mxu0 %v7223
    %8243 = vmatprep.subr.bf16.mxu0 0
    %8244 = vmatpush2.bf16.msra.mxu0 0
    %8245 = vmatprep.subr.bf16.mxu0 0
    %8246 = vmatpush2.bf16.msra.mxu0 0
    %8247 = vmatprep.subr.bf16.mxu0 0
    %8248 = vmatpush2.bf16.msra.mxu0 0
    %8249 = vmatprep.subr.bf16.mxu0 0
    %8250 = vmatpush2.bf16.msra.mxu0 0
    %8251 = vmatprep.subr.bf16.mxu0 0
    %8252 = vmatpush2.bf16.msra.mxu0 0
    %8253 = vmatprep.subr.bf16.mxu0 0
    %8254 = vmatpush2.bf16.msra.mxu0 0
    %8255 = vmatprep.subr.bf16.mxu0 0
    %8256 = vmatpush2.bf16.msra.mxu0 0
    %8257 = vmatprep.subr.bf16.mxu0 0
    %8258 = vmatpush2.bf16.msra.mxu0 0
    %8259 = vmatprep.mubr.bf16.mxu0 0
    %8260 = vmatmul.mubr.bf16.gmra.mxu0 %v5609
    %v8261 = vpop.f32.mrf.mxu0
    %v8262 = vadd.f32 0.0, %v8261
    %v8263 = vpop.f32.mrf.mxu0
    %v8264 = vadd.f32 0.0, %v8263
    %v8265 = vpop.f32.mrf.mxu0
    %v8266 = vadd.f32 0.0, %v8265
    %v8267 = vpop.f32.mrf.mxu0
    %v8268 = vadd.f32 0.0, %v8267
    %8269 = vmatprep.mubr.bf16.mxu0 0
    %8270 = vmatmul.mubr.bf16.gmra.mxu0 %v5610
    %v8271 = vpop.f32.mrf.mxu0
    %v8272 = vadd.f32 0.0, %v8271
    %v8273 = vpop.f32.mrf.mxu0
    %v8274 = vadd.f32 0.0, %v8273
    %v8275 = vpop.f32.mrf.mxu0
    %v8276 = vadd.f32 0.0, %v8275
    %v8277 = vpop.f32.mrf.mxu0
    %v8278 = vadd.f32 0.0, %v8277
    %8279 = vdwg.mxu0
    %8280 = vmatprep.subr.bf16.mxu0 %v7576
    %8281 = vmatpush1.bf16.msra.mxu0 %v7575
    %8282 = vmatprep.subr.bf16.mxu0 %v7526
    %8283 = vmatpush1.bf16.msra.mxu0 %v7525
    %8284 = vmatprep.subr.bf16.mxu0 %v7476
    %8285 = vmatpush1.bf16.msra.mxu0 %v7475
    %8286 = vmatprep.subr.bf16.mxu0 %v7426
    %8287 = vmatpush1.bf16.msra.mxu0 %v7425
    %8288 = vmatprep.subr.bf16.mxu0 %v7376
    %8289 = vmatpush1.bf16.msra.mxu0 %v7375
    %8290 = vmatprep.subr.bf16.mxu0 %v7326
    %8291 = vmatpush1.bf16.msra.mxu0 %v7325
    %8292 = vmatprep.subr.bf16.mxu0 %v7276
    %8293 = vmatpush1.bf16.msra.mxu0 %v7275
    %8294 = vmatprep.subr.bf16.mxu0 %v7226
    %8295 = vmatpush1.bf16.msra.mxu0 %v7225
    %8296 = vmatprep.subr.bf16.mxu0 0
    %8297 = vmatpush2.bf16.msra.mxu0 0
    %8298 = vmatprep.subr.bf16.mxu0 0
    %8299 = vmatpush2.bf16.msra.mxu0 0
    %8300 = vmatprep.subr.bf16.mxu0 0
    %8301 = vmatpush2.bf16.msra.mxu0 0
    %8302 = vmatprep.subr.bf16.mxu0 0
    %8303 = vmatpush2.bf16.msra.mxu0 0
    %8304 = vmatprep.subr.bf16.mxu0 0
    %8305 = vmatpush2.bf16.msra.mxu0 0
    %8306 = vmatprep.subr.bf16.mxu0 0
    %8307 = vmatpush2.bf16.msra.mxu0 0
    %8308 = vmatprep.subr.bf16.mxu0 0
    %8309 = vmatpush2.bf16.msra.mxu0 0
    %8310 = vmatprep.subr.bf16.mxu0 0
    %8311 = vmatpush2.bf16.msra.mxu0 0
    %8312 = vmatprep.mubr.bf16.mxu0 0
    %8313 = vmatmul.mubr.bf16.gmra.mxu0 %v5609
    %v8314 = vpop.f32.mrf.mxu0
    %v8315 = vadd.f32 0.0, %v8314
    %v8316 = vpop.f32.mrf.mxu0
    %v8317 = vadd.f32 0.0, %v8316
    %v8318 = vpop.f32.mrf.mxu0
    %v8319 = vadd.f32 0.0, %v8318
    %v8320 = vpop.f32.mrf.mxu0
    %v8321 = vadd.f32 0.0, %v8320
    %8322 = vmatprep.mubr.bf16.mxu0 0
    %8323 = vmatmul.mubr.bf16.gmra.mxu0 %v5610
    %v8324 = vpop.f32.mrf.mxu0
    %v8325 = vadd.f32 0.0, %v8324
    %v8326 = vpop.f32.mrf.mxu0
    %v8327 = vadd.f32 0.0, %v8326
    %v8328 = vpop.f32.mrf.mxu0
    %v8329 = vadd.f32 0.0, %v8328
    %v8330 = vpop.f32.mrf.mxu0
    %v8331 = vadd.f32 0.0, %v8330
    %8332 = vdwg.mxu0
    %8333 = vmatprep.subr.bf16.mxu0 %v7578
    %8334 = vmatpush1.bf16.msra.mxu0 %v7577
    %8335 = vmatprep.subr.bf16.mxu0 %v7528
    %8336 = vmatpush1.bf16.msra.mxu0 %v7527
    %8337 = vmatprep.subr.bf16.mxu0 %v7478
    %8338 = vmatpush1.bf16.msra.mxu0 %v7477
    %8339 = vmatprep.subr.bf16.mxu0 %v7428
    %8340 = vmatpush1.bf16.msra.mxu0 %v7427
    %8341 = vmatprep.subr.bf16.mxu0 %v7378
    %8342 = vmatpush1.bf16.msra.mxu0 %v7377
    %8343 = vmatprep.subr.bf16.mxu0 %v7328
    %8344 = vmatpush1.bf16.msra.mxu0 %v7327
    %8345 = vmatprep.subr.bf16.mxu0 %v7278
    %8346 = vmatpush1.bf16.msra.mxu0 %v7277
    %8347 = vmatprep.subr.bf16.mxu0 %v7228
    %8348 = vmatpush1.bf16.msra.mxu0 %v7227
    %8349 = vmatprep.subr.bf16.mxu0 0
    %8350 = vmatpush2.bf16.msra.mxu0 0
    %8351 = vmatprep.subr.bf16.mxu0 0
    %8352 = vmatpush2.bf16.msra.mxu0 0
    %8353 = vmatprep.subr.bf16.mxu0 0
    %8354 = vmatpush2.bf16.msra.mxu0 0
    %8355 = vmatprep.subr.bf16.mxu0 0
    %8356 = vmatpush2.bf16.msra.mxu0 0
    %8357 = vmatprep.subr.bf16.mxu0 0
    %8358 = vmatpush2.bf16.msra.mxu0 0
    %8359 = vmatprep.subr.bf16.mxu0 0
    %8360 = vmatpush2.bf16.msra.mxu0 0
    %8361 = vmatprep.subr.bf16.mxu0 0
    %8362 = vmatpush2.bf16.msra.mxu0 0
    %8363 = vmatprep.subr.bf16.mxu0 0
    %8364 = vmatpush2.bf16.msra.mxu0 0
    %8365 = vmatprep.mubr.bf16.mxu0 0
    %8366 = vmatmul.mubr.bf16.gmra.mxu0 %v5609
    %v8367 = vpop.f32.mrf.mxu0
    %v8368 = vadd.f32 0.0, %v8367
    %v8369 = vpop.f32.mrf.mxu0
    %v8370 = vadd.f32 0.0, %v8369
    %v8371 = vpop.f32.mrf.mxu0
    %v8372 = vadd.f32 0.0, %v8371
    %v8373 = vpop.f32.mrf.mxu0
    %v8374 = vadd.f32 0.0, %v8373
    %8375 = vmatprep.mubr.bf16.mxu0 0
    %8376 = vmatmul.mubr.bf16.gmra.mxu0 %v5610
    %v8377 = vpop.f32.mrf.mxu0
    %v8378 = vadd.f32 0.0, %v8377
    %v8379 = vpop.f32.mrf.mxu0
    %v8380 = vadd.f32 0.0, %v8379
    %v8381 = vpop.f32.mrf.mxu0
    %v8382 = vadd.f32 0.0, %v8381
    %v8383 = vpop.f32.mrf.mxu0
    %v8384 = vadd.f32 0.0, %v8383
    %8385 = vdwg.mxu0
    %8386 = vmatprep.subr.bf16.mxu0 %v7580
    %8387 = vmatpush1.bf16.msra.mxu0 %v7579
    %8388 = vmatprep.subr.bf16.mxu0 %v7530
    %8389 = vmatpush1.bf16.msra.mxu0 %v7529
    %8390 = vmatprep.subr.bf16.mxu0 %v7480
    %8391 = vmatpush1.bf16.msra.mxu0 %v7479
    %8392 = vmatprep.subr.bf16.mxu0 %v7430
    %8393 = vmatpush1.bf16.msra.mxu0 %v7429
    %8394 = vmatprep.subr.bf16.mxu0 %v7380
    %8395 = vmatpush1.bf16.msra.mxu0 %v7379
    %8396 = vmatprep.subr.bf16.mxu0 %v7330
    %8397 = vmatpush1.bf16.msra.mxu0 %v7329
    %8398 = vmatprep.subr.bf16.mxu0 %v7280
    %8399 = vmatpush1.bf16.msra.mxu0 %v7279
    %8400 = vmatprep.subr.bf16.mxu0 %v7230
    %8401 = vmatpush1.bf16.msra.mxu0 %v7229
    %8402 = vmatprep.subr.bf16.mxu0 0
    %8403 = vmatpush2.bf16.msra.mxu0 0
    %8404 = vmatprep.subr.bf16.mxu0 0
    %8405 = vmatpush2.bf16.msra.mxu0 0
    %8406 = vmatprep.subr.bf16.mxu0 0
    %8407 = vmatpush2.bf16.msra.mxu0 0
    %8408 = vmatprep.subr.bf16.mxu0 0
    %8409 = vmatpush2.bf16.msra.mxu0 0
    %8410 = vmatprep.subr.bf16.mxu0 0
    %8411 = vmatpush2.bf16.msra.mxu0 0
    %8412 = vmatprep.subr.bf16.mxu0 0
    %8413 = vmatpush2.bf16.msra.mxu0 0
    %8414 = vmatprep.subr.bf16.mxu0 0
    %8415 = vmatpush2.bf16.msra.mxu0 0
    %8416 = vmatprep.subr.bf16.mxu0 0
    %8417 = vmatpush2.bf16.msra.mxu0 0
    %8418 = vmatprep.mubr.bf16.mxu0 0
    %8419 = vmatmul.mubr.bf16.gmra.mxu0 %v5609
    %v8420 = vpop.f32.mrf.mxu0
    %v8421 = vadd.f32 0.0, %v8420
    %v8422 = vpop.f32.mrf.mxu0
    %v8423 = vadd.f32 0.0, %v8422
    %v8424 = vpop.f32.mrf.mxu0
    %v8425 = vadd.f32 0.0, %v8424
    %v8426 = vpop.f32.mrf.mxu0
    %v8427 = vadd.f32 0.0, %v8426
    %8428 = vmatprep.mubr.bf16.mxu0 0
    %8429 = vmatmul.mubr.bf16.gmra.mxu0 %v5610
    %v8430 = vpop.f32.mrf.mxu0
    %v8431 = vadd.f32 0.0, %v8430
    %v8432 = vpop.f32.mrf.mxu0
    %v8433 = vadd.f32 0.0, %v8432
    %v8434 = vpop.f32.mrf.mxu0
    %v8435 = vadd.f32 0.0, %v8434
    %v8436 = vpop.f32.mrf.mxu0
    %v8437 = vadd.f32 0.0, %v8436
    %8438 = vdwg.mxu0
    %8439 = vmatprep.subr.bf16.mxu0 %v7582
    %8440 = vmatpush1.bf16.msra.mxu0 %v7581
    %8441 = vmatprep.subr.bf16.mxu0 %v7532
    %8442 = vmatpush1.bf16.msra.mxu0 %v7531
    %8443 = vmatprep.subr.bf16.mxu0 %v7482
    %8444 = vmatpush1.bf16.msra.mxu0 %v7481
    %8445 = vmatprep.subr.bf16.mxu0 %v7432
    %8446 = vmatpush1.bf16.msra.mxu0 %v7431
    %8447 = vmatprep.subr.bf16.mxu0 %v7382
    %8448 = vmatpush1.bf16.msra.mxu0 %v7381
    %8449 = vmatprep.subr.bf16.mxu0 %v7332
    %8450 = vmatpush1.bf16.msra.mxu0 %v7331
    %8451 = vmatprep.subr.bf16.mxu0 %v7282
    %8452 = vmatpush1.bf16.msra.mxu0 %v7281
    %8453 = vmatprep.subr.bf16.mxu0 %v7232
    %8454 = vmatpush1.bf16.msra.mxu0 %v7231
    %8455 = vmatprep.subr.bf16.mxu0 0
    %8456 = vmatpush2.bf16.msra.mxu0 0
    %8457 = vmatprep.subr.bf16.mxu0 0
    %8458 = vmatpush2.bf16.msra.mxu0 0
    %8459 = vmatprep.subr.bf16.mxu0 0
    %8460 = vmatpush2.bf16.msra.mxu0 0
    %8461 = vmatprep.subr.bf16.mxu0 0
    %8462 = vmatpush2.bf16.msra.mxu0 0
    %8463 = vmatprep.subr.bf16.mxu0 0
    %8464 = vmatpush2.bf16.msra.mxu0 0
    %8465 = vmatprep.subr.bf16.mxu0 0
    %8466 = vmatpush2.bf16.msra.mxu0 0
    %8467 = vmatprep.subr.bf16.mxu0 0
    %8468 = vmatpush2.bf16.msra.mxu0 0
    %8469 = vmatprep.subr.bf16.mxu0 0
    %8470 = vmatpush2.bf16.msra.mxu0 0
    %8471 = vmatprep.mubr.bf16.mxu0 0
    %8472 = vmatmul.mubr.bf16.gmra.mxu0 %v5609
    %v8473 = vpop.f32.mrf.mxu0
    %v8474 = vadd.f32 0.0, %v8473
    %v8475 = vpop.f32.mrf.mxu0
    %v8476 = vadd.f32 0.0, %v8475
    %v8477 = vpop.f32.mrf.mxu0
    %v8478 = vadd.f32 0.0, %v8477
    %v8479 = vpop.f32.mrf.mxu0
    %v8480 = vadd.f32 0.0, %v8479
    %8481 = vmatprep.mubr.bf16.mxu0 0
    %8482 = vmatmul.mubr.bf16.gmra.mxu0 %v5610
    %v8483 = vpop.f32.mrf.mxu0
    %v8484 = vadd.f32 0.0, %v8483
    %v8485 = vpop.f32.mrf.mxu0
    %v8486 = vadd.f32 0.0, %v8485
    %v8487 = vpop.f32.mrf.mxu0
    %v8488 = vadd.f32 0.0, %v8487
    %v8489 = vpop.f32.mrf.mxu0
    %v8490 = vadd.f32 0.0, %v8489
    %8491 = vdwg.mxu0
    %8492 = vmatprep.subr.bf16.mxu0 %v7584
    %8493 = vmatpush1.bf16.msra.mxu0 %v7583
    %8494 = vmatprep.subr.bf16.mxu0 %v7534
    %8495 = vmatpush1.bf16.msra.mxu0 %v7533
    %8496 = vmatprep.subr.bf16.mxu0 %v7484
    %8497 = vmatpush1.bf16.msra.mxu0 %v7483
    %8498 = vmatprep.subr.bf16.mxu0 %v7434
    %8499 = vmatpush1.bf16.msra.mxu0 %v7433
    %8500 = vmatprep.subr.bf16.mxu0 %v7384
    %8501 = vmatpush1.bf16.msra.mxu0 %v7383
    %8502 = vmatprep.subr.bf16.mxu0 %v7334
    %8503 = vmatpush1.bf16.msra.mxu0 %v7333
    %8504 = vmatprep.subr.bf16.mxu0 %v7284
    %8505 = vmatpush1.bf16.msra.mxu0 %v7283
    %8506 = vmatprep.subr.bf16.mxu0 %v7234
    %8507 = vmatpush1.bf16.msra.mxu0 %v7233
    %8508 = vmatprep.subr.bf16.mxu0 0
    %8509 = vmatpush2.bf16.msra.mxu0 0
    %8510 = vmatprep.subr.bf16.mxu0 0
    %8511 = vmatpush2.bf16.msra.mxu0 0
    %8512 = vmatprep.subr.bf16.mxu0 0
    %8513 = vmatpush2.bf16.msra.mxu0 0
    %8514 = vmatprep.subr.bf16.mxu0 0
    %8515 = vmatpush2.bf16.msra.mxu0 0
    %8516 = vmatprep.subr.bf16.mxu0 0
    %8517 = vmatpush2.bf16.msra.mxu0 0
    %8518 = vmatprep.subr.bf16.mxu0 0
    %8519 = vmatpush2.bf16.msra.mxu0 0
    %8520 = vmatprep.subr.bf16.mxu0 0
    %8521 = vmatpush2.bf16.msra.mxu0 0
    %8522 = vmatprep.subr.bf16.mxu0 0
    %8523 = vmatpush2.bf16.msra.mxu0 0
    %8524 = vmatprep.mubr.bf16.mxu0 0
    %8525 = vmatmul.mubr.bf16.gmra.mxu0 %v5609
    %v8526 = vpop.f32.mrf.mxu0
    %v8527 = vadd.f32 0.0, %v8526
    %v8528 = vpop.f32.mrf.mxu0
    %v8529 = vadd.f32 0.0, %v8528
    %v8530 = vpop.f32.mrf.mxu0
    %v8531 = vadd.f32 0.0, %v8530
    %v8532 = vpop.f32.mrf.mxu0
    %v8533 = vadd.f32 0.0, %v8532
    %8534 = vmatprep.mubr.bf16.mxu0 0
    %8535 = vmatmul.mubr.bf16.gmra.mxu0 %v5610
    %v8536 = vpop.f32.mrf.mxu0
    %v8537 = vadd.f32 0.0, %v8536
    %v8538 = vpop.f32.mrf.mxu0
    %v8539 = vadd.f32 0.0, %v8538
    %v8540 = vpop.f32.mrf.mxu0
    %v8541 = vadd.f32 0.0, %v8540
    %v8542 = vpop.f32.mrf.mxu0
    %v8543 = vadd.f32 0.0, %v8542
    %8544 = vdwg.mxu0
    %8545 = vmatprep.subr.bf16.mxu0 %v7586
    %8546 = vmatpush1.bf16.msra.mxu0 %v7585
    %8547 = vmatprep.subr.bf16.mxu0 %v7536
    %8548 = vmatpush1.bf16.msra.mxu0 %v7535
    %8549 = vmatprep.subr.bf16.mxu0 %v7486
    %8550 = vmatpush1.bf16.msra.mxu0 %v7485
    %8551 = vmatprep.subr.bf16.mxu0 %v7436
    %8552 = vmatpush1.bf16.msra.mxu0 %v7435
    %8553 = vmatprep.subr.bf16.mxu0 %v7386
    %8554 = vmatpush1.bf16.msra.mxu0 %v7385
    %8555 = vmatprep.subr.bf16.mxu0 %v7336
    %8556 = vmatpush1.bf16.msra.mxu0 %v7335
    %8557 = vmatprep.subr.bf16.mxu0 %v7286
    %8558 = vmatpush1.bf16.msra.mxu0 %v7285
    %8559 = vmatprep.subr.bf16.mxu0 %v7236
    %8560 = vmatpush1.bf16.msra.mxu0 %v7235
    %8561 = vmatprep.subr.bf16.mxu0 0
    %8562 = vmatpush2.bf16.msra.mxu0 0
    %8563 = vmatprep.subr.bf16.mxu0 0
    %8564 = vmatpush2.bf16.msra.mxu0 0
    %8565 = vmatprep.subr.bf16.mxu0 0
    %8566 = vmatpush2.bf16.msra.mxu0 0
    %8567 = vmatprep.subr.bf16.mxu0 0
    %8568 = vmatpush2.bf16.msra.mxu0 0
    %8569 = vmatprep.subr.bf16.mxu0 0
    %8570 = vmatpush2.bf16.msra.mxu0 0
    %8571 = vmatprep.subr.bf16.mxu0 0
    %8572 = vmatpush2.bf16.msra.mxu0 0
    %8573 = vmatprep.subr.bf16.mxu0 0
    %8574 = vmatpush2.bf16.msra.mxu0 0
    %8575 = vmatprep.subr.bf16.mxu0 0
    %8576 = vmatpush2.bf16.msra.mxu0 0
    %8577 = vmatprep.mubr.bf16.mxu0 0
    %8578 = vmatmul.mubr.bf16.gmra.mxu0 %v5609
    %v8579 = vpop.f32.mrf.mxu0
    %v8580 = vadd.f32 0.0, %v8579
    %v8581 = vpop.f32.mrf.mxu0
    %v8582 = vadd.f32 0.0, %v8581
    %v8583 = vpop.f32.mrf.mxu0
    %v8584 = vadd.f32 0.0, %v8583
    %v8585 = vpop.f32.mrf.mxu0
    %v8586 = vadd.f32 0.0, %v8585
    %8587 = vmatprep.mubr.bf16.mxu0 0
    %8588 = vmatmul.mubr.bf16.gmra.mxu0 %v5610
    %v8589 = vpop.f32.mrf.mxu0
    %v8590 = vadd.f32 0.0, %v8589
    %v8591 = vpop.f32.mrf.mxu0
    %v8592 = vadd.f32 0.0, %v8591
    %v8593 = vpop.f32.mrf.mxu0
    %v8594 = vadd.f32 0.0, %v8593
    %v8595 = vpop.f32.mrf.mxu0
    %v8596 = vadd.f32 0.0, %v8595
    %8597 = vdwg.mxu0
    %8598 = vmatprep.subr.bf16.mxu0 %v7588
    %8599 = vmatpush1.bf16.msra.mxu0 %v7587
    %8600 = vmatprep.subr.bf16.mxu0 %v7538
    %8601 = vmatpush1.bf16.msra.mxu0 %v7537
    %8602 = vmatprep.subr.bf16.mxu0 %v7488
    %8603 = vmatpush1.bf16.msra.mxu0 %v7487
    %8604 = vmatprep.subr.bf16.mxu0 %v7438
    %8605 = vmatpush1.bf16.msra.mxu0 %v7437
    %8606 = vmatprep.subr.bf16.mxu0 %v7388
    %8607 = vmatpush1.bf16.msra.mxu0 %v7387
    %8608 = vmatprep.subr.bf16.mxu0 %v7338
    %8609 = vmatpush1.bf16.msra.mxu0 %v7337
    %8610 = vmatprep.subr.bf16.mxu0 %v7288
    %8611 = vmatpush1.bf16.msra.mxu0 %v7287
    %8612 = vmatprep.subr.bf16.mxu0 %v7238
    %8613 = vmatpush1.bf16.msra.mxu0 %v7237
    %8614 = vmatprep.subr.bf16.mxu0 0
    %8615 = vmatpush2.bf16.msra.mxu0 0
    %8616 = vmatprep.subr.bf16.mxu0 0
    %8617 = vmatpush2.bf16.msra.mxu0 0
    %8618 = vmatprep.subr.bf16.mxu0 0
    %8619 = vmatpush2.bf16.msra.mxu0 0
    %8620 = vmatprep.subr.bf16.mxu0 0
    %8621 = vmatpush2.bf16.msra.mxu0 0
    %8622 = vmatprep.subr.bf16.mxu0 0
    %8623 = vmatpush2.bf16.msra.mxu0 0
    %8624 = vmatprep.subr.bf16.mxu0 0
    %8625 = vmatpush2.bf16.msra.mxu0 0
    %8626 = vmatprep.subr.bf16.mxu0 0
    %8627 = vmatpush2.bf16.msra.mxu0 0
    %8628 = vmatprep.subr.bf16.mxu0 0
    %8629 = vmatpush2.bf16.msra.mxu0 0
    %8630 = vmatprep.mubr.bf16.mxu0 0
    %8631 = vmatmul.mubr.bf16.gmra.mxu0 %v5609
    %v8632 = vpop.f32.mrf.mxu0
    %v8633 = vadd.f32 0.0, %v8632
    %v8634 = vpop.f32.mrf.mxu0
    %v8635 = vadd.f32 0.0, %v8634
    %v8636 = vpop.f32.mrf.mxu0
    %v8637 = vadd.f32 0.0, %v8636
    %v8638 = vpop.f32.mrf.mxu0
    %v8639 = vadd.f32 0.0, %v8638
    %8640 = vmatprep.mubr.bf16.mxu0 0
    %8641 = vmatmul.mubr.bf16.gmra.mxu0 %v5610
    %v8642 = vpop.f32.mrf.mxu0
    %v8643 = vadd.f32 0.0, %v8642
    %v8644 = vpop.f32.mrf.mxu0
    %v8645 = vadd.f32 0.0, %v8644
    %v8646 = vpop.f32.mrf.mxu0
    %v8647 = vadd.f32 0.0, %v8646
    %v8648 = vpop.f32.mrf.mxu0
    %v8649 = vadd.f32 0.0, %v8648
    %8650 = vdwg.mxu0
    %8651 = vmatprep.subr.bf16.mxu0 %v7590
    %8652 = vmatpush1.bf16.msra.mxu0 %v7589
    %8653 = vmatprep.subr.bf16.mxu0 %v7540
    %8654 = vmatpush1.bf16.msra.mxu0 %v7539
    %8655 = vmatprep.subr.bf16.mxu0 %v7490
    %8656 = vmatpush1.bf16.msra.mxu0 %v7489
    %8657 = vmatprep.subr.bf16.mxu0 %v7440
    %8658 = vmatpush1.bf16.msra.mxu0 %v7439
    %8659 = vmatprep.subr.bf16.mxu0 %v7390
    %8660 = vmatpush1.bf16.msra.mxu0 %v7389
    %8661 = vmatprep.subr.bf16.mxu0 %v7340
    %8662 = vmatpush1.bf16.msra.mxu0 %v7339
    %8663 = vmatprep.subr.bf16.mxu0 %v7290
    %8664 = vmatpush1.bf16.msra.mxu0 %v7289
    %8665 = vmatprep.subr.bf16.mxu0 %v7240
    %8666 = vmatpush1.bf16.msra.mxu0 %v7239
    %8667 = vmatprep.subr.bf16.mxu0 0
    %8668 = vmatpush2.bf16.msra.mxu0 0
    %8669 = vmatprep.subr.bf16.mxu0 0
    %8670 = vmatpush2.bf16.msra.mxu0 0
    %8671 = vmatprep.subr.bf16.mxu0 0
    %8672 = vmatpush2.bf16.msra.mxu0 0
    %8673 = vmatprep.subr.bf16.mxu0 0
    %8674 = vmatpush2.bf16.msra.mxu0 0
    %8675 = vmatprep.subr.bf16.mxu0 0
    %8676 = vmatpush2.bf16.msra.mxu0 0
    %8677 = vmatprep.subr.bf16.mxu0 0
    %8678 = vmatpush2.bf16.msra.mxu0 0
    %8679 = vmatprep.subr.bf16.mxu0 0
    %8680 = vmatpush2.bf16.msra.mxu0 0
    %8681 = vmatprep.subr.bf16.mxu0 0
    %8682 = vmatpush2.bf16.msra.mxu0 0
    %8683 = vmatprep.mubr.bf16.mxu0 0
    %8684 = vmatmul.mubr.bf16.gmra.mxu0 %v5609
    %v8685 = vpop.f32.mrf.mxu0
    %v8686 = vadd.f32 0.0, %v8685
    %v8687 = vpop.f32.mrf.mxu0
    %v8688 = vadd.f32 0.0, %v8687
    %v8689 = vpop.f32.mrf.mxu0
    %v8690 = vadd.f32 0.0, %v8689
    %v8691 = vpop.f32.mrf.mxu0
    %v8692 = vadd.f32 0.0, %v8691
    %8693 = vmatprep.mubr.bf16.mxu0 0
    %8694 = vmatmul.mubr.bf16.gmra.mxu0 %v5610
    %v8695 = vpop.f32.mrf.mxu0
    %v8696 = vadd.f32 0.0, %v8695
    %v8697 = vpop.f32.mrf.mxu0
    %v8698 = vadd.f32 0.0, %v8697
    %v8699 = vpop.f32.mrf.mxu0
    %v8700 = vadd.f32 0.0, %v8699
    %v8701 = vpop.f32.mrf.mxu0
    %v8702 = vadd.f32 0.0, %v8701
    %8703 = vdwg.mxu0
    %8704 = vmatprep.subr.bf16.mxu0 %v7592
    %8705 = vmatpush1.bf16.msra.mxu0 %v7591
    %8706 = vmatprep.subr.bf16.mxu0 %v7542
    %8707 = vmatpush1.bf16.msra.mxu0 %v7541
    %8708 = vmatprep.subr.bf16.mxu0 %v7492
    %8709 = vmatpush1.bf16.msra.mxu0 %v7491
    %8710 = vmatprep.subr.bf16.mxu0 %v7442
    %8711 = vmatpush1.bf16.msra.mxu0 %v7441
    %8712 = vmatprep.subr.bf16.mxu0 %v7392
    %8713 = vmatpush1.bf16.msra.mxu0 %v7391
    %8714 = vmatprep.subr.bf16.mxu0 %v7342
    %8715 = vmatpush1.bf16.msra.mxu0 %v7341
    %8716 = vmatprep.subr.bf16.mxu0 %v7292
    %8717 = vmatpush1.bf16.msra.mxu0 %v7291
    %8718 = vmatprep.subr.bf16.mxu0 %v7242
    %8719 = vmatpush1.bf16.msra.mxu0 %v7241
    %8720 = vmatprep.subr.bf16.mxu0 0
    %8721 = vmatpush2.bf16.msra.mxu0 0
    %8722 = vmatprep.subr.bf16.mxu0 0
    %8723 = vmatpush2.bf16.msra.mxu0 0
    %8724 = vmatprep.subr.bf16.mxu0 0
    %8725 = vmatpush2.bf16.msra.mxu0 0
    %8726 = vmatprep.subr.bf16.mxu0 0
    %8727 = vmatpush2.bf16.msra.mxu0 0
    %8728 = vmatprep.subr.bf16.mxu0 0
    %8729 = vmatpush2.bf16.msra.mxu0 0
    %8730 = vmatprep.subr.bf16.mxu0 0
    %8731 = vmatpush2.bf16.msra.mxu0 0
    %8732 = vmatprep.subr.bf16.mxu0 0
    %8733 = vmatpush2.bf16.msra.mxu0 0
    %8734 = vmatprep.subr.bf16.mxu0 0
    %8735 = vmatpush2.bf16.msra.mxu0 0
    %8736 = vmatprep.mubr.bf16.mxu0 0
    %8737 = vmatmul.mubr.bf16.gmra.mxu0 %v5609
    %v8738 = vpop.f32.mrf.mxu0
    %v8739 = vadd.f32 0.0, %v8738
    %v8740 = vpop.f32.mrf.mxu0
    %v8741 = vadd.f32 0.0, %v8740
    %v8742 = vpop.f32.mrf.mxu0
    %v8743 = vadd.f32 0.0, %v8742
    %v8744 = vpop.f32.mrf.mxu0
    %v8745 = vadd.f32 0.0, %v8744
    %8746 = vmatprep.mubr.bf16.mxu0 0
    %8747 = vmatmul.mubr.bf16.gmra.mxu0 %v5610
    %v8748 = vpop.f32.mrf.mxu0
    %v8749 = vadd.f32 0.0, %v8748
    %v8750 = vpop.f32.mrf.mxu0
    %v8751 = vadd.f32 0.0, %v8750
    %v8752 = vpop.f32.mrf.mxu0
    %v8753 = vadd.f32 0.0, %v8752
    %v8754 = vpop.f32.mrf.mxu0
    %v8755 = vadd.f32 0.0, %v8754
    %8756 = vdwg.mxu0
    %8757 = vmatprep.subr.bf16.mxu0 %v7594
    %8758 = vmatpush1.bf16.msra.mxu0 %v7593
    %8759 = vmatprep.subr.bf16.mxu0 %v7544
    %8760 = vmatpush1.bf16.msra.mxu0 %v7543
    %8761 = vmatprep.subr.bf16.mxu0 %v7494
    %8762 = vmatpush1.bf16.msra.mxu0 %v7493
    %8763 = vmatprep.subr.bf16.mxu0 %v7444
    %8764 = vmatpush1.bf16.msra.mxu0 %v7443
    %8765 = vmatprep.subr.bf16.mxu0 %v7394
    %8766 = vmatpush1.bf16.msra.mxu0 %v7393
    %8767 = vmatprep.subr.bf16.mxu0 %v7344
    %8768 = vmatpush1.bf16.msra.mxu0 %v7343
    %8769 = vmatprep.subr.bf16.mxu0 %v7294
    %8770 = vmatpush1.bf16.msra.mxu0 %v7293
    %8771 = vmatprep.subr.bf16.mxu0 %v7244
    %8772 = vmatpush1.bf16.msra.mxu0 %v7243
    %8773 = vmatprep.subr.bf16.mxu0 0
    %8774 = vmatpush2.bf16.msra.mxu0 0
    %8775 = vmatprep.subr.bf16.mxu0 0
    %8776 = vmatpush2.bf16.msra.mxu0 0
    %8777 = vmatprep.subr.bf16.mxu0 0
    %8778 = vmatpush2.bf16.msra.mxu0 0
    %8779 = vmatprep.subr.bf16.mxu0 0
    %8780 = vmatpush2.bf16.msra.mxu0 0
    %8781 = vmatprep.subr.bf16.mxu0 0
    %8782 = vmatpush2.bf16.msra.mxu0 0
    %8783 = vmatprep.subr.bf16.mxu0 0
    %8784 = vmatpush2.bf16.msra.mxu0 0
    %8785 = vmatprep.subr.bf16.mxu0 0
    %8786 = vmatpush2.bf16.msra.mxu0 0
    %8787 = vmatprep.subr.bf16.mxu0 0
    %8788 = vmatpush2.bf16.msra.mxu0 0
    %8789 = vmatprep.mubr.bf16.mxu0 0
    %8790 = vmatmul.mubr.bf16.gmra.mxu0 %v5609
    %v8791 = vpop.f32.mrf.mxu0
    %v8792 = vadd.f32 0.0, %v8791
    %v8793 = vpop.f32.mrf.mxu0
    %v8794 = vadd.f32 0.0, %v8793
    %v8795 = vpop.f32.mrf.mxu0
    %v8796 = vadd.f32 0.0, %v8795
    %v8797 = vpop.f32.mrf.mxu0
    %v8798 = vadd.f32 0.0, %v8797
    %8799 = vmatprep.mubr.bf16.mxu0 0
    %8800 = vmatmul.mubr.bf16.gmra.mxu0 %v5610
    %v8801 = vpop.f32.mrf.mxu0
    %v8802 = vadd.f32 0.0, %v8801
    %v8803 = vpop.f32.mrf.mxu0
    %v8804 = vadd.f32 0.0, %v8803
    %v8805 = vpop.f32.mrf.mxu0
    %v8806 = vadd.f32 0.0, %v8805
    %v8807 = vpop.f32.mrf.mxu0
    %v8808 = vadd.f32 0.0, %v8807
    %8809 = vdwg.mxu0
    %8810 = vmatprep.subr.bf16.mxu0 %v7596
    %8811 = vmatpush1.bf16.msra.mxu0 %v7595
    %8812 = vmatprep.subr.bf16.mxu0 %v7546
    %8813 = vmatpush1.bf16.msra.mxu0 %v7545
    %8814 = vmatprep.subr.bf16.mxu0 %v7496
    %8815 = vmatpush1.bf16.msra.mxu0 %v7495
    %8816 = vmatprep.subr.bf16.mxu0 %v7446
    %8817 = vmatpush1.bf16.msra.mxu0 %v7445
    %8818 = vmatprep.subr.bf16.mxu0 %v7396
    %8819 = vmatpush1.bf16.msra.mxu0 %v7395
    %8820 = vmatprep.subr.bf16.mxu0 %v7346
    %8821 = vmatpush1.bf16.msra.mxu0 %v7345
    %8822 = vmatprep.subr.bf16.mxu0 %v7296
    %8823 = vmatpush1.bf16.msra.mxu0 %v7295
    %8824 = vmatprep.subr.bf16.mxu0 %v7246
    %8825 = vmatpush1.bf16.msra.mxu0 %v7245
    %8826 = vmatprep.subr.bf16.mxu0 0
    %8827 = vmatpush2.bf16.msra.mxu0 0
    %8828 = vmatprep.subr.bf16.mxu0 0
    %8829 = vmatpush2.bf16.msra.mxu0 0
    %8830 = vmatprep.subr.bf16.mxu0 0
    %8831 = vmatpush2.bf16.msra.mxu0 0
    %8832 = vmatprep.subr.bf16.mxu0 0
    %8833 = vmatpush2.bf16.msra.mxu0 0
    %8834 = vmatprep.subr.bf16.mxu0 0
    %8835 = vmatpush2.bf16.msra.mxu0 0
    %8836 = vmatprep.subr.bf16.mxu0 0
    %8837 = vmatpush2.bf16.msra.mxu0 0
    %8838 = vmatprep.subr.bf16.mxu0 0
    %8839 = vmatpush2.bf16.msra.mxu0 0
    %8840 = vmatprep.subr.bf16.mxu0 0
    %8841 = vmatpush2.bf16.msra.mxu0 0
    %8842 = vmatprep.mubr.bf16.mxu0 0
    %8843 = vmatmul.mubr.bf16.gmra.mxu0 %v5609
    %v8844 = vpop.f32.mrf.mxu0
    %v8845 = vadd.f32 0.0, %v8844
    %v8846 = vpop.f32.mrf.mxu0
    %v8847 = vadd.f32 0.0, %v8846
    %v8848 = vpop.f32.mrf.mxu0
    %v8849 = vadd.f32 0.0, %v8848
    %v8850 = vpop.f32.mrf.mxu0
    %v8851 = vadd.f32 0.0, %v8850
    %8852 = vmatprep.mubr.bf16.mxu0 0
    %8853 = vmatmul.mubr.bf16.gmra.mxu0 %v5610
    %v8854 = vpop.f32.mrf.mxu0
    %v8855 = vadd.f32 0.0, %v8854
    %v8856 = vpop.f32.mrf.mxu0
    %v8857 = vadd.f32 0.0, %v8856
    %v8858 = vpop.f32.mrf.mxu0
    %v8859 = vadd.f32 0.0, %v8858
    %v8860 = vpop.f32.mrf.mxu0
    %v8861 = vadd.f32 0.0, %v8860
    %8862 = vdwg.mxu0
    %8863 = vmatprep.subr.bf16.mxu0 %v7598
    %8864 = vmatpush1.bf16.msra.mxu0 %v7597
    %8865 = vmatprep.subr.bf16.mxu0 %v7548
    %8866 = vmatpush1.bf16.msra.mxu0 %v7547
    %8867 = vmatprep.subr.bf16.mxu0 %v7498
    %8868 = vmatpush1.bf16.msra.mxu0 %v7497
    %8869 = vmatprep.subr.bf16.mxu0 %v7448
    %8870 = vmatpush1.bf16.msra.mxu0 %v7447
    %8871 = vmatprep.subr.bf16.mxu0 %v7398
    %8872 = vmatpush1.bf16.msra.mxu0 %v7397
    %8873 = vmatprep.subr.bf16.mxu0 %v7348
    %8874 = vmatpush1.bf16.msra.mxu0 %v7347
    %8875 = vmatprep.subr.bf16.mxu0 %v7298
    %8876 = vmatpush1.bf16.msra.mxu0 %v7297
    %8877 = vmatprep.subr.bf16.mxu0 %v7248
    %8878 = vmatpush1.bf16.msra.mxu0 %v7247
    %8879 = vmatprep.subr.bf16.mxu0 0
    %8880 = vmatpush2.bf16.msra.mxu0 0
    %8881 = vmatprep.subr.bf16.mxu0 0
    %8882 = vmatpush2.bf16.msra.mxu0 0
    %8883 = vmatprep.subr.bf16.mxu0 0
    %8884 = vmatpush2.bf16.msra.mxu0 0
    %8885 = vmatprep.subr.bf16.mxu0 0
    %8886 = vmatpush2.bf16.msra.mxu0 0
    %8887 = vmatprep.subr.bf16.mxu0 0
    %8888 = vmatpush2.bf16.msra.mxu0 0
    %8889 = vmatprep.subr.bf16.mxu0 0
    %8890 = vmatpush2.bf16.msra.mxu0 0
    %8891 = vmatprep.subr.bf16.mxu0 0
    %8892 = vmatpush2.bf16.msra.mxu0 0
    %8893 = vmatprep.subr.bf16.mxu0 0
    %8894 = vmatpush2.bf16.msra.mxu0 0
    %8895 = vmatprep.mubr.bf16.mxu0 0
    %8896 = vmatmul.mubr.bf16.gmra.mxu0 %v5609
    %v8897 = vpop.f32.mrf.mxu0
    %v8898 = vadd.f32 0.0, %v8897
    %v8899 = vpop.f32.mrf.mxu0
    %v8900 = vadd.f32 0.0, %v8899
    %v8901 = vpop.f32.mrf.mxu0
    %v8902 = vadd.f32 0.0, %v8901
    %v8903 = vpop.f32.mrf.mxu0
    %v8904 = vadd.f32 0.0, %v8903
    %8905 = vmatprep.mubr.bf16.mxu0 0
    %8906 = vmatmul.mubr.bf16.gmra.mxu0 %v5610
    %v8907 = vpop.f32.mrf.mxu0
    %v8908 = vadd.f32 0.0, %v8907
    %v8909 = vpop.f32.mrf.mxu0
    %v8910 = vadd.f32 0.0, %v8909
    %v8911 = vpop.f32.mrf.mxu0
    %v8912 = vadd.f32 0.0, %v8911
    %v8913 = vpop.f32.mrf.mxu0
    %v8914 = vadd.f32 0.0, %v8913
    %8915 = vdwg.mxu0
    %8916 = vmatprep.subr.bf16.mxu0 %v7600
    %8917 = vmatpush1.bf16.msra.mxu0 %v7599
    %8918 = vmatprep.subr.bf16.mxu0 %v7550
    %8919 = vmatpush1.bf16.msra.mxu0 %v7549
    %8920 = vmatprep.subr.bf16.mxu0 %v7500
    %8921 = vmatpush1.bf16.msra.mxu0 %v7499
    %8922 = vmatprep.subr.bf16.mxu0 %v7450
    %8923 = vmatpush1.bf16.msra.mxu0 %v7449
    %8924 = vmatprep.subr.bf16.mxu0 %v7400
    %8925 = vmatpush1.bf16.msra.mxu0 %v7399
    %8926 = vmatprep.subr.bf16.mxu0 %v7350
    %8927 = vmatpush1.bf16.msra.mxu0 %v7349
    %8928 = vmatprep.subr.bf16.mxu0 %v7300
    %8929 = vmatpush1.bf16.msra.mxu0 %v7299
    %8930 = vmatprep.subr.bf16.mxu0 %v7250
    %8931 = vmatpush1.bf16.msra.mxu0 %v7249
    %8932 = vmatprep.subr.bf16.mxu0 0
    %8933 = vmatpush2.bf16.msra.mxu0 0
    %8934 = vmatprep.subr.bf16.mxu0 0
    %8935 = vmatpush2.bf16.msra.mxu0 0
    %8936 = vmatprep.subr.bf16.mxu0 0
    %8937 = vmatpush2.bf16.msra.mxu0 0
    %8938 = vmatprep.subr.bf16.mxu0 0
    %8939 = vmatpush2.bf16.msra.mxu0 0
    %8940 = vmatprep.subr.bf16.mxu0 0
    %8941 = vmatpush2.bf16.msra.mxu0 0
    %8942 = vmatprep.subr.bf16.mxu0 0
    %8943 = vmatpush2.bf16.msra.mxu0 0
    %8944 = vmatprep.subr.bf16.mxu0 0
    %8945 = vmatpush2.bf16.msra.mxu0 0
    %8946 = vmatprep.subr.bf16.mxu0 0
    %8947 = vmatpush2.bf16.msra.mxu0 0
    %8948 = vmatprep.mubr.bf16.mxu0 0
    %8949 = vmatmul.mubr.bf16.gmra.mxu0 %v5609
    %v8950 = vpop.f32.mrf.mxu0
    %v8951 = vadd.f32 0.0, %v8950
    %v8952 = vpop.f32.mrf.mxu0
    %v8953 = vadd.f32 0.0, %v8952
    %v8954 = vpop.f32.mrf.mxu0
    %v8955 = vadd.f32 0.0, %v8954
    %v8956 = vpop.f32.mrf.mxu0
    %v8957 = vadd.f32 0.0, %v8956
    %8958 = vmatprep.mubr.bf16.mxu0 0
    %8959 = vmatmul.mubr.bf16.gmra.mxu0 %v5610
    %v8960 = vpop.f32.mrf.mxu0
    %v8961 = vadd.f32 0.0, %v8960
    %v8962 = vpop.f32.mrf.mxu0
    %v8963 = vadd.f32 0.0, %v8962
    %v8964 = vpop.f32.mrf.mxu0
    %v8965 = vadd.f32 0.0, %v8964
    %v8966 = vpop.f32.mrf.mxu0
    %v8967 = vadd.f32 0.0, %v8966
    %8968 = vdwg.mxu0
    %8969 = vmatprep.subr.bf16.mxu0 %v7602
    %8970 = vmatpush1.bf16.msra.mxu0 %v7601
    %8971 = vmatprep.subr.bf16.mxu0 %v7552
    %8972 = vmatpush1.bf16.msra.mxu0 %v7551
    %8973 = vmatprep.subr.bf16.mxu0 %v7502
    %8974 = vmatpush1.bf16.msra.mxu0 %v7501
    %8975 = vmatprep.subr.bf16.mxu0 %v7452
    %8976 = vmatpush1.bf16.msra.mxu0 %v7451
    %8977 = vmatprep.subr.bf16.mxu0 %v7402
    %8978 = vmatpush1.bf16.msra.mxu0 %v7401
    %8979 = vmatprep.subr.bf16.mxu0 %v7352
    %8980 = vmatpush1.bf16.msra.mxu0 %v7351
    %8981 = vmatprep.subr.bf16.mxu0 %v7302
    %8982 = vmatpush1.bf16.msra.mxu0 %v7301
    %8983 = vmatprep.subr.bf16.mxu0 %v7252
    %8984 = vmatpush1.bf16.msra.mxu0 %v7251
    %8985 = vmatprep.subr.bf16.mxu0 0
    %8986 = vmatpush2.bf16.msra.mxu0 0
    %8987 = vmatprep.subr.bf16.mxu0 0
    %8988 = vmatpush2.bf16.msra.mxu0 0
    %8989 = vmatprep.subr.bf16.mxu0 0
    %8990 = vmatpush2.bf16.msra.mxu0 0
    %8991 = vmatprep.subr.bf16.mxu0 0
    %8992 = vmatpush2.bf16.msra.mxu0 0
    %8993 = vmatprep.subr.bf16.mxu0 0
    %8994 = vmatpush2.bf16.msra.mxu0 0
    %8995 = vmatprep.subr.bf16.mxu0 0
    %8996 = vmatpush2.bf16.msra.mxu0 0
    %8997 = vmatprep.subr.bf16.mxu0 0
    %8998 = vmatpush2.bf16.msra.mxu0 0
    %8999 = vmatprep.subr.bf16.mxu0 0
    %9000 = vmatpush2.bf16.msra.mxu0 0
    %9001 = vmatprep.mubr.bf16.mxu0 0
    %9002 = vmatmul.mubr.bf16.gmra.mxu0 %v5609
    %v9003 = vpop.f32.mrf.mxu0
    %v9004 = vadd.f32 0.0, %v9003
    %v9005 = vpop.f32.mrf.mxu0
    %v9006 = vadd.f32 0.0, %v9005
    %v9007 = vpop.f32.mrf.mxu0
    %v9008 = vadd.f32 0.0, %v9007
    %v9009 = vpop.f32.mrf.mxu0
    %v9010 = vadd.f32 0.0, %v9009
    %9011 = vmatprep.mubr.bf16.mxu0 0
    %9012 = vmatmul.mubr.bf16.gmra.mxu0 %v5610
    %v9013 = vpop.f32.mrf.mxu0
    %v9014 = vadd.f32 0.0, %v9013
    %v9015 = vpop.f32.mrf.mxu0
    %v9016 = vadd.f32 0.0, %v9015
    %v9017 = vpop.f32.mrf.mxu0
    %v9018 = vadd.f32 0.0, %v9017
    %v9019 = vpop.f32.mrf.mxu0
    %v9020 = vadd.f32 0.0, %v9019
    %9021 = vdwg.mxu0
    %9022 = vmatprep.subr.bf16.mxu0 %v7604
    %9023 = vmatpush1.bf16.msra.mxu0 %v7603
    %9024 = vmatprep.subr.bf16.mxu0 %v7554
    %9025 = vmatpush1.bf16.msra.mxu0 %v7553
    %9026 = vmatprep.subr.bf16.mxu0 %v7504
    %9027 = vmatpush1.bf16.msra.mxu0 %v7503
    %9028 = vmatprep.subr.bf16.mxu0 %v7454
    %9029 = vmatpush1.bf16.msra.mxu0 %v7453
    %9030 = vmatprep.subr.bf16.mxu0 %v7404
    %9031 = vmatpush1.bf16.msra.mxu0 %v7403
    %9032 = vmatprep.subr.bf16.mxu0 %v7354
    %9033 = vmatpush1.bf16.msra.mxu0 %v7353
    %9034 = vmatprep.subr.bf16.mxu0 %v7304
    %9035 = vmatpush1.bf16.msra.mxu0 %v7303
    %9036 = vmatprep.subr.bf16.mxu0 %v7254
    %9037 = vmatpush1.bf16.msra.mxu0 %v7253
    %9038 = vmatprep.subr.bf16.mxu0 0
    %9039 = vmatpush2.bf16.msra.mxu0 0
    %9040 = vmatprep.subr.bf16.mxu0 0
    %9041 = vmatpush2.bf16.msra.mxu0 0
    %9042 = vmatprep.subr.bf16.mxu0 0
    %9043 = vmatpush2.bf16.msra.mxu0 0
    %9044 = vmatprep.subr.bf16.mxu0 0
    %9045 = vmatpush2.bf16.msra.mxu0 0
    %9046 = vmatprep.subr.bf16.mxu0 0
    %9047 = vmatpush2.bf16.msra.mxu0 0
    %9048 = vmatprep.subr.bf16.mxu0 0
    %9049 = vmatpush2.bf16.msra.mxu0 0
    %9050 = vmatprep.subr.bf16.mxu0 0
    %9051 = vmatpush2.bf16.msra.mxu0 0
    %9052 = vmatprep.subr.bf16.mxu0 0
    %9053 = vmatpush2.bf16.msra.mxu0 0
    %9054 = vmatprep.mubr.bf16.mxu0 0
    %9055 = vmatmul.mubr.bf16.gmra.mxu0 %v5609
    %v9056 = vpop.f32.mrf.mxu0
    %v9057 = vadd.f32 0.0, %v9056
    %v9058 = vpop.f32.mrf.mxu0
    %v9059 = vadd.f32 0.0, %v9058
    %v9060 = vpop.f32.mrf.mxu0
    %v9061 = vadd.f32 0.0, %v9060
    %v9062 = vpop.f32.mrf.mxu0
    %v9063 = vadd.f32 0.0, %v9062
    %9064 = vmatprep.mubr.bf16.mxu0 0
    %9065 = vmatmul.mubr.bf16.gmra.mxu0 %v5610
    %v9066 = vpop.f32.mrf.mxu0
    %v9067 = vadd.f32 0.0, %v9066
    %v9068 = vpop.f32.mrf.mxu0
    %v9069 = vadd.f32 0.0, %v9068
    %v9070 = vpop.f32.mrf.mxu0
    %v9071 = vadd.f32 0.0, %v9070
    %v9072 = vpop.f32.mrf.mxu0
    %v9073 = vadd.f32 0.0, %v9072
    %9074 = vdwg.mxu0
    %9075 = vmatprep.subr.bf16.mxu0 %v7606
    %9076 = vmatpush1.bf16.msra.mxu0 %v7605
    %9077 = vmatprep.subr.bf16.mxu0 %v7556
    %9078 = vmatpush1.bf16.msra.mxu0 %v7555
    %9079 = vmatprep.subr.bf16.mxu0 %v7506
    %9080 = vmatpush1.bf16.msra.mxu0 %v7505
    %9081 = vmatprep.subr.bf16.mxu0 %v7456
    %9082 = vmatpush1.bf16.msra.mxu0 %v7455
    %9083 = vmatprep.subr.bf16.mxu0 %v7406
    %9084 = vmatpush1.bf16.msra.mxu0 %v7405
    %9085 = vmatprep.subr.bf16.mxu0 %v7356
    %9086 = vmatpush1.bf16.msra.mxu0 %v7355
    %9087 = vmatprep.subr.bf16.mxu0 %v7306
    %9088 = vmatpush1.bf16.msra.mxu0 %v7305
    %9089 = vmatprep.subr.bf16.mxu0 %v7256
    %9090 = vmatpush1.bf16.msra.mxu0 %v7255
    %9091 = vmatprep.subr.bf16.mxu0 0
    %9092 = vmatpush2.bf16.msra.mxu0 0
    %9093 = vmatprep.subr.bf16.mxu0 0
    %9094 = vmatpush2.bf16.msra.mxu0 0
    %9095 = vmatprep.subr.bf16.mxu0 0
    %9096 = vmatpush2.bf16.msra.mxu0 0
    %9097 = vmatprep.subr.bf16.mxu0 0
    %9098 = vmatpush2.bf16.msra.mxu0 0
    %9099 = vmatprep.subr.bf16.mxu0 0
    %9100 = vmatpush2.bf16.msra.mxu0 0
    %9101 = vmatprep.subr.bf16.mxu0 0
    %9102 = vmatpush2.bf16.msra.mxu0 0
    %9103 = vmatprep.subr.bf16.mxu0 0
    %9104 = vmatpush2.bf16.msra.mxu0 0
    %9105 = vmatprep.subr.bf16.mxu0 0
    %9106 = vmatpush2.bf16.msra.mxu0 0
    %9107 = vmatprep.mubr.bf16.mxu0 0
    %9108 = vmatmul.mubr.bf16.gmra.mxu0 %v5609
    %v9109 = vpop.f32.mrf.mxu0
    %v9110 = vadd.f32 0.0, %v9109
    %v9111 = vpop.f32.mrf.mxu0
    %v9112 = vadd.f32 0.0, %v9111
    %v9113 = vpop.f32.mrf.mxu0
    %v9114 = vadd.f32 0.0, %v9113
    %v9115 = vpop.f32.mrf.mxu0
    %v9116 = vadd.f32 0.0, %v9115
    %9117 = vmatprep.mubr.bf16.mxu0 0
    %9118 = vmatmul.mubr.bf16.gmra.mxu0 %v5610
    %v9119 = vpop.f32.mrf.mxu0
    %v9120 = vadd.f32 0.0, %v9119
    %v9121 = vpop.f32.mrf.mxu0
    %v9122 = vadd.f32 0.0, %v9121
    %v9123 = vpop.f32.mrf.mxu0
    %v9124 = vadd.f32 0.0, %v9123
    %v9125 = vpop.f32.mrf.mxu0
    %v9126 = vadd.f32 0.0, %v9125
    %9127 = vdwg.mxu0
    %9128 = vmatprep.subr.bf16.mxu0 %v7608
    %9129 = vmatpush1.bf16.msra.mxu0 %v7607
    %9130 = vmatprep.subr.bf16.mxu0 %v7558
    %9131 = vmatpush1.bf16.msra.mxu0 %v7557
    %9132 = vmatprep.subr.bf16.mxu0 %v7508
    %9133 = vmatpush1.bf16.msra.mxu0 %v7507
    %9134 = vmatprep.subr.bf16.mxu0 %v7458
    %9135 = vmatpush1.bf16.msra.mxu0 %v7457
    %9136 = vmatprep.subr.bf16.mxu0 %v7408
    %9137 = vmatpush1.bf16.msra.mxu0 %v7407
    %9138 = vmatprep.subr.bf16.mxu0 %v7358
    %9139 = vmatpush1.bf16.msra.mxu0 %v7357
    %9140 = vmatprep.subr.bf16.mxu0 %v7308
    %9141 = vmatpush1.bf16.msra.mxu0 %v7307
    %9142 = vmatprep.subr.bf16.mxu0 %v7258
    %9143 = vmatpush1.bf16.msra.mxu0 %v7257
    %9144 = vmatprep.subr.bf16.mxu0 0
    %9145 = vmatpush2.bf16.msra.mxu0 0
    %9146 = vmatprep.subr.bf16.mxu0 0
    %9147 = vmatpush2.bf16.msra.mxu0 0
    %9148 = vmatprep.subr.bf16.mxu0 0
    %9149 = vmatpush2.bf16.msra.mxu0 0
    %9150 = vmatprep.subr.bf16.mxu0 0
    %9151 = vmatpush2.bf16.msra.mxu0 0
    %9152 = vmatprep.subr.bf16.mxu0 0
    %9153 = vmatpush2.bf16.msra.mxu0 0
    %9154 = vmatprep.subr.bf16.mxu0 0
    %9155 = vmatpush2.bf16.msra.mxu0 0
    %9156 = vmatprep.subr.bf16.mxu0 0
    %9157 = vmatpush2.bf16.msra.mxu0 0
    %9158 = vmatprep.subr.bf16.mxu0 0
    %9159 = vmatpush2.bf16.msra.mxu0 0
    %9160 = vmatprep.mubr.bf16.mxu0 0
    %9161 = vmatmul.mubr.bf16.gmra.mxu0 %v5609
    %v9162 = vpop.f32.mrf.mxu0
    %v9163 = vadd.f32 0.0, %v9162
    %v9164 = vpop.f32.mrf.mxu0
    %v9165 = vadd.f32 0.0, %v9164
    %v9166 = vpop.f32.mrf.mxu0
    %v9167 = vadd.f32 0.0, %v9166
    %v9168 = vpop.f32.mrf.mxu0
    %v9169 = vadd.f32 0.0, %v9168
    %9170 = vmatprep.mubr.bf16.mxu0 0
    %9171 = vmatmul.mubr.bf16.gmra.mxu0 %v5610
    %v9172 = vpop.f32.mrf.mxu0
    %v9173 = vadd.f32 0.0, %v9172
    %v9174 = vpop.f32.mrf.mxu0
    %v9175 = vadd.f32 0.0, %v9174
    %v9176 = vpop.f32.mrf.mxu0
    %v9177 = vadd.f32 0.0, %v9176
    %v9178 = vpop.f32.mrf.mxu0
    %v9179 = vadd.f32 0.0, %v9178
    %9180 = vdwg.mxu0
    %9181 = vmatprep.subr.bf16.mxu0 %v7610
    %9182 = vmatpush1.bf16.msra.mxu0 %v7609
    %9183 = vmatprep.subr.bf16.mxu0 %v7560
    %9184 = vmatpush1.bf16.msra.mxu0 %v7559
    %9185 = vmatprep.subr.bf16.mxu0 %v7510
    %9186 = vmatpush1.bf16.msra.mxu0 %v7509
    %9187 = vmatprep.subr.bf16.mxu0 %v7460
    %9188 = vmatpush1.bf16.msra.mxu0 %v7459
    %9189 = vmatprep.subr.bf16.mxu0 %v7410
    %9190 = vmatpush1.bf16.msra.mxu0 %v7409
    %9191 = vmatprep.subr.bf16.mxu0 %v7360
    %9192 = vmatpush1.bf16.msra.mxu0 %v7359
    %9193 = vmatprep.subr.bf16.mxu0 %v7310
    %9194 = vmatpush1.bf16.msra.mxu0 %v7309
    %9195 = vmatprep.subr.bf16.mxu0 %v7260
    %9196 = vmatpush1.bf16.msra.mxu0 %v7259
    %9197 = vmatprep.subr.bf16.mxu0 0
    %9198 = vmatpush2.bf16.msra.mxu0 0
    %9199 = vmatprep.subr.bf16.mxu0 0
    %9200 = vmatpush2.bf16.msra.mxu0 0
    %9201 = vmatprep.subr.bf16.mxu0 0
    %9202 = vmatpush2.bf16.msra.mxu0 0
    %9203 = vmatprep.subr.bf16.mxu0 0
    %9204 = vmatpush2.bf16.msra.mxu0 0
    %9205 = vmatprep.subr.bf16.mxu0 0
    %9206 = vmatpush2.bf16.msra.mxu0 0
    %9207 = vmatprep.subr.bf16.mxu0 0
    %9208 = vmatpush2.bf16.msra.mxu0 0
    %9209 = vmatprep.subr.bf16.mxu0 0
    %9210 = vmatpush2.bf16.msra.mxu0 0
    %9211 = vmatprep.subr.bf16.mxu0 0
    %9212 = vmatpush2.bf16.msra.mxu0 0
    %9213 = vmatprep.mubr.bf16.mxu0 0
    %9214 = vmatmul.mubr.bf16.gmra.mxu0 %v5609
    %v9215 = vpop.f32.mrf.mxu0
    %v9216 = vadd.f32 0.0, %v9215
    %v9217 = vpop.f32.mrf.mxu0
    %v9218 = vadd.f32 0.0, %v9217
    %v9219 = vpop.f32.mrf.mxu0
    %v9220 = vadd.f32 0.0, %v9219
    %v9221 = vpop.f32.mrf.mxu0
    %v9222 = vadd.f32 0.0, %v9221
    %9223 = vmatprep.mubr.bf16.mxu0 0
    %9224 = vmatmul.mubr.bf16.gmra.mxu0 %v5610
    %v9225 = vpop.f32.mrf.mxu0
    %v9226 = vadd.f32 0.0, %v9225
    %v9227 = vpop.f32.mrf.mxu0
    %v9228 = vadd.f32 0.0, %v9227
    %v9229 = vpop.f32.mrf.mxu0
    %v9230 = vadd.f32 0.0, %v9229
    %v9231 = vpop.f32.mrf.mxu0
    %v9232 = vadd.f32 0.0, %v9231
    %9233 = vdwg.mxu0
    %9234 = vmatprep.subr.bf16.mxu0 %v7612
    %9235 = vmatpush1.bf16.msra.mxu0 %v7611
    %9236 = vmatprep.subr.bf16.mxu0 %v7562
    %9237 = vmatpush1.bf16.msra.mxu0 %v7561
    %9238 = vmatprep.subr.bf16.mxu0 %v7512
    %9239 = vmatpush1.bf16.msra.mxu0 %v7511
    %9240 = vmatprep.subr.bf16.mxu0 %v7462
    %9241 = vmatpush1.bf16.msra.mxu0 %v7461
    %9242 = vmatprep.subr.bf16.mxu0 %v7412
    %9243 = vmatpush1.bf16.msra.mxu0 %v7411
    %9244 = vmatprep.subr.bf16.mxu0 %v7362
    %9245 = vmatpush1.bf16.msra.mxu0 %v7361
    %9246 = vmatprep.subr.bf16.mxu0 %v7312
    %9247 = vmatpush1.bf16.msra.mxu0 %v7311
    %9248 = vmatprep.subr.bf16.mxu0 %v7262
    %9249 = vmatpush1.bf16.msra.mxu0 %v7261
    %9250 = vmatprep.subr.bf16.mxu0 0
    %9251 = vmatpush2.bf16.msra.mxu0 0
    %9252 = vmatprep.subr.bf16.mxu0 0
    %9253 = vmatpush2.bf16.msra.mxu0 0
    %9254 = vmatprep.subr.bf16.mxu0 0
    %9255 = vmatpush2.bf16.msra.mxu0 0
    %9256 = vmatprep.subr.bf16.mxu0 0
    %9257 = vmatpush2.bf16.msra.mxu0 0
    %9258 = vmatprep.subr.bf16.mxu0 0
    %9259 = vmatpush2.bf16.msra.mxu0 0
    %9260 = vmatprep.subr.bf16.mxu0 0
    %9261 = vmatpush2.bf16.msra.mxu0 0
    %9262 = vmatprep.subr.bf16.mxu0 0
    %9263 = vmatpush2.bf16.msra.mxu0 0
    %9264 = vmatprep.subr.bf16.mxu0 0
    %9265 = vmatpush2.bf16.msra.mxu0 0
    %9266 = vmatprep.mubr.bf16.mxu0 0
    %9267 = vmatmul.mubr.bf16.gmra.mxu0 %v5609
    %v9268 = vpop.f32.mrf.mxu0
    %v9269 = vadd.f32 0.0, %v9268
    %v9270 = vpop.f32.mrf.mxu0
    %v9271 = vadd.f32 0.0, %v9270
    %v9272 = vpop.f32.mrf.mxu0
    %v9273 = vadd.f32 0.0, %v9272
    %v9274 = vpop.f32.mrf.mxu0
    %v9275 = vadd.f32 0.0, %v9274
    %9276 = vmatprep.mubr.bf16.mxu0 0
    %9277 = vmatmul.mubr.bf16.gmra.mxu0 %v5610
    %v9278 = vpop.f32.mrf.mxu0
    %v9279 = vadd.f32 0.0, %v9278
    %v9280 = vpop.f32.mrf.mxu0
    %v9281 = vadd.f32 0.0, %v9280
    %v9282 = vpop.f32.mrf.mxu0
    %v9283 = vadd.f32 0.0, %v9282
    %v9284 = vpop.f32.mrf.mxu0
    %v9285 = vadd.f32 0.0, %v9284
    %9286 = vdwg.mxu0
    %9287 = vmatprep.subr.bf16.mxu0 %v7614
    %9288 = vmatpush1.bf16.msra.mxu0 %v7613
    %9289 = vmatprep.subr.bf16.mxu0 %v7564
    %9290 = vmatpush1.bf16.msra.mxu0 %v7563
    %9291 = vmatprep.subr.bf16.mxu0 %v7514
    %9292 = vmatpush1.bf16.msra.mxu0 %v7513
    %9293 = vmatprep.subr.bf16.mxu0 %v7464
    %9294 = vmatpush1.bf16.msra.mxu0 %v7463
    %9295 = vmatprep.subr.bf16.mxu0 %v7414
    %9296 = vmatpush1.bf16.msra.mxu0 %v7413
    %9297 = vmatprep.subr.bf16.mxu0 %v7364
    %9298 = vmatpush1.bf16.msra.mxu0 %v7363
    %9299 = vmatprep.subr.bf16.mxu0 %v7314
    %9300 = vmatpush1.bf16.msra.mxu0 %v7313
    %9301 = vmatprep.subr.bf16.mxu0 %v7264
    %9302 = vmatpush1.bf16.msra.mxu0 %v7263
    %9303 = vmatprep.subr.bf16.mxu0 0
    %9304 = vmatpush2.bf16.msra.mxu0 0
    %9305 = vmatprep.subr.bf16.mxu0 0
    %9306 = vmatpush2.bf16.msra.mxu0 0
    %9307 = vmatprep.subr.bf16.mxu0 0
    %9308 = vmatpush2.bf16.msra.mxu0 0
    %9309 = vmatprep.subr.bf16.mxu0 0
    %9310 = vmatpush2.bf16.msra.mxu0 0
    %9311 = vmatprep.subr.bf16.mxu0 0
    %9312 = vmatpush2.bf16.msra.mxu0 0
    %9313 = vmatprep.subr.bf16.mxu0 0
    %9314 = vmatpush2.bf16.msra.mxu0 0
    %9315 = vmatprep.subr.bf16.mxu0 0
    %9316 = vmatpush2.bf16.msra.mxu0 0
    %9317 = vmatprep.subr.bf16.mxu0 0
    %9318 = vmatpush2.bf16.msra.mxu0 0
    %9319 = vmatprep.mubr.bf16.mxu0 0
    %9320 = vmatmul.mubr.bf16.gmra.mxu0 %v5609
    %v9321 = vpop.f32.mrf.mxu0
    %v9322 = vadd.f32 0.0, %v9321
    %v9323 = vpop.f32.mrf.mxu0
    %v9324 = vadd.f32 0.0, %v9323
    %v9325 = vpop.f32.mrf.mxu0
    %v9326 = vadd.f32 0.0, %v9325
    %v9327 = vpop.f32.mrf.mxu0
    %v9328 = vadd.f32 0.0, %v9327
    %9329 = vmatprep.mubr.bf16.mxu0 0
    %9330 = vmatmul.mubr.bf16.gmra.mxu0 %v5610
    %v9331 = vpop.f32.mrf.mxu0
    %v9332 = vadd.f32 0.0, %v9331
    %v9333 = vpop.f32.mrf.mxu0
    %v9334 = vadd.f32 0.0, %v9333
    %v9335 = vpop.f32.mrf.mxu0
    %v9336 = vadd.f32 0.0, %v9335
    %v9337 = vpop.f32.mrf.mxu0
    %v9338 = vadd.f32 0.0, %v9337
    %9339 = vdwg.mxu0
    %v9340 = vpack.c.bf16 %v8054, %v8050
    %v9341 = vpack.c.bf16 %v8056, %v8052
    %v9342 = vpack.c.bf16 %v8107, %v8103
    %v9343 = vpack.c.bf16 %v8109, %v8105
    %v9344 = vpack.c.bf16 %v8160, %v8156
    %v9345 = vpack.c.bf16 %v8162, %v8158
    %v9346 = vpack.c.bf16 %v8213, %v8209
    %v9347 = vpack.c.bf16 %v8215, %v8211
    %v9348 = vpack.c.bf16 %v8266, %v8262
    %v9349 = vpack.c.bf16 %v8268, %v8264
    %v9350 = vpack.c.bf16 %v8319, %v8315
    %v9351 = vpack.c.bf16 %v8321, %v8317
    %v9352 = vpack.c.bf16 %v8372, %v8368
    %v9353 = vpack.c.bf16 %v8374, %v8370
    %v9354 = vpack.c.bf16 %v8425, %v8421
    %v9355 = vpack.c.bf16 %v8427, %v8423
    %v9356 = vpack.c.bf16 %v8478, %v8474
    %v9357 = vpack.c.bf16 %v8480, %v8476
    %v9358 = vpack.c.bf16 %v8531, %v8527
    %v9359 = vpack.c.bf16 %v8533, %v8529
    %v9360 = vpack.c.bf16 %v8584, %v8580
    %v9361 = vpack.c.bf16 %v8586, %v8582
    %v9362 = vpack.c.bf16 %v8637, %v8633
    %v9363 = vpack.c.bf16 %v8639, %v8635
    %v9364 = vpack.c.bf16 %v8690, %v8686
    %v9365 = vpack.c.bf16 %v8692, %v8688
    %v9366 = vpack.c.bf16 %v8743, %v8739
    %v9367 = vpack.c.bf16 %v8745, %v8741
    %v9368 = vpack.c.bf16 %v8796, %v8792
    %v9369 = vpack.c.bf16 %v8798, %v8794
    %v9370 = vpack.c.bf16 %v8849, %v8845
    %v9371 = vpack.c.bf16 %v8851, %v8847
    %v9372 = vpack.c.bf16 %v8902, %v8898
    %v9373 = vpack.c.bf16 %v8904, %v8900
    %v9374 = vpack.c.bf16 %v8955, %v8951
    %v9375 = vpack.c.bf16 %v8957, %v8953
    %v9376 = vpack.c.bf16 %v9008, %v9004
    %v9377 = vpack.c.bf16 %v9010, %v9006
    %v9378 = vpack.c.bf16 %v9061, %v9057
    %v9379 = vpack.c.bf16 %v9063, %v9059
    %v9380 = vpack.c.bf16 %v9114, %v9110
    %v9381 = vpack.c.bf16 %v9116, %v9112
    %v9382 = vpack.c.bf16 %v9167, %v9163
    %v9383 = vpack.c.bf16 %v9169, %v9165
    %v9384 = vpack.c.bf16 %v9220, %v9216
    %v9385 = vpack.c.bf16 %v9222, %v9218
    %v9386 = vpack.c.bf16 %v9273, %v9269
    %v9387 = vpack.c.bf16 %v9275, %v9271
    %v9388 = vpack.c.bf16 %v9326, %v9322
    %v9389 = vpack.c.bf16 %v9328, %v9324
    %v9390 = vpack.c.bf16 %v8064, %v8060
    %v9391 = vpack.c.bf16 %v8066, %v8062
    %v9392 = vpack.c.bf16 %v8117, %v8113
    %v9393 = vpack.c.bf16 %v8119, %v8115
    %v9394 = vpack.c.bf16 %v8170, %v8166
    %v9395 = vpack.c.bf16 %v8172, %v8168
    %v9396 = vpack.c.bf16 %v8223, %v8219
    %v9397 = vpack.c.bf16 %v8225, %v8221
    %v9398 = vpack.c.bf16 %v8276, %v8272
    %v9399 = vpack.c.bf16 %v8278, %v8274
    %v9400 = vpack.c.bf16 %v8329, %v8325
    %v9401 = vpack.c.bf16 %v8331, %v8327
    %v9402 = vpack.c.bf16 %v8382, %v8378
    %v9403 = vpack.c.bf16 %v8384, %v8380
    %v9404 = vpack.c.bf16 %v8435, %v8431
    %v9405 = vpack.c.bf16 %v8437, %v8433
    %v9406 = vpack.c.bf16 %v8488, %v8484
    %v9407 = vpack.c.bf16 %v8490, %v8486
    %v9408 = vpack.c.bf16 %v8541, %v8537
    %v9409 = vpack.c.bf16 %v8543, %v8539
    %v9410 = vpack.c.bf16 %v8594, %v8590
    %v9411 = vpack.c.bf16 %v8596, %v8592
    %v9412 = vpack.c.bf16 %v8647, %v8643
    %v9413 = vpack.c.bf16 %v8649, %v8645
    %v9414 = vpack.c.bf16 %v8700, %v8696
    %v9415 = vpack.c.bf16 %v8702, %v8698
    %v9416 = vpack.c.bf16 %v8753, %v8749
    %v9417 = vpack.c.bf16 %v8755, %v8751
    %v9418 = vpack.c.bf16 %v8806, %v8802
    %v9419 = vpack.c.bf16 %v8808, %v8804
    %v9420 = vpack.c.bf16 %v8859, %v8855
    %v9421 = vpack.c.bf16 %v8861, %v8857
    %v9422 = vpack.c.bf16 %v8912, %v8908
    %v9423 = vpack.c.bf16 %v8914, %v8910
    %v9424 = vpack.c.bf16 %v8965, %v8961
    %v9425 = vpack.c.bf16 %v8967, %v8963
    %v9426 = vpack.c.bf16 %v9018, %v9014
    %v9427 = vpack.c.bf16 %v9020, %v9016
    %v9428 = vpack.c.bf16 %v9071, %v9067
    %v9429 = vpack.c.bf16 %v9073, %v9069
    %v9430 = vpack.c.bf16 %v9124, %v9120
    %v9431 = vpack.c.bf16 %v9126, %v9122
    %v9432 = vpack.c.bf16 %v9177, %v9173
    %v9433 = vpack.c.bf16 %v9179, %v9175
    %v9434 = vpack.c.bf16 %v9230, %v9226
    %v9435 = vpack.c.bf16 %v9232, %v9228
    %v9436 = vpack.c.bf16 %v9283, %v9279
    %v9437 = vpack.c.bf16 %v9285, %v9281
    %v9438 = vpack.c.bf16 %v9336, %v9332
    %v9439 = vpack.c.bf16 %v9338, %v9334
    %v9440 = vld [vmem:[%s7] sm:$0xf]
    %s9441 = scalar_lea.vmem %s7, 4
    %v9442 = vld [vmem:[%s9441] sm:$0xf]
    %vm9443 = vcmask 261120
    %v9445 = vsel %vm9443, %v9442, 0
    %9447 = vmatprep.subr.bf16.mxu0 0
    %9448 = vmatpush1.bf16.msra.mxu0 0
    %9449 = vmatprep.subr.bf16.mxu0 0
    %9450 = vmatpush1.bf16.msra.mxu0 0
    %9451 = vmatprep.subr.bf16.mxu0 0
    %9452 = vmatpush1.bf16.msra.mxu0 0
    %9453 = vmatprep.subr.bf16.mxu0 0
    %9454 = vmatpush1.bf16.msra.mxu0 0
    %9455 = vmatprep.subr.bf16.mxu0 0
    %9456 = vmatpush1.bf16.msra.mxu0 0
    %9457 = vmatprep.subr.bf16.mxu0 0
    %9458 = vmatpush1.bf16.msra.mxu0 0
    %9459 = vmatprep.subr.bf16.mxu0 %v9393
    %9460 = vmatpush1.bf16.msra.mxu0 %v9392
    %9461 = vmatprep.subr.bf16.mxu0 %v9343
    %9462 = vmatpush1.bf16.msra.mxu0 %v9342
    %9463 = vmatprep.subr.bf16.mxu0 0
    %9464 = vmatpush2.bf16.msra.mxu0 0
    %9465 = vmatprep.subr.bf16.mxu0 0
    %9466 = vmatpush2.bf16.msra.mxu0 0
    %9467 = vmatprep.subr.bf16.mxu0 0
    %9468 = vmatpush2.bf16.msra.mxu0 0
    %9469 = vmatprep.subr.bf16.mxu0 0
    %9470 = vmatpush2.bf16.msra.mxu0 0
    %9471 = vmatprep.subr.bf16.mxu0 0
    %9472 = vmatpush2.bf16.msra.mxu0 0
    %9473 = vmatprep.subr.bf16.mxu0 0
    %9474 = vmatpush2.bf16.msra.mxu0 0
    %9475 = vmatprep.subr.bf16.mxu0 0
    %9476 = vmatpush2.bf16.msra.mxu0 0
    %9477 = vmatprep.subr.bf16.mxu0 0
    %9478 = vmatpush2.bf16.msra.mxu0 0
    %9479 = vmatprep.mubr.bf16.mxu0 0
    %9480 = vmatmul.mubr.bf16.gmra.mxu0 %v9445
    %v9481 = vpop.f32.mrf.mxu0
    %v9482 = vadd.f32 0.0, %v9481
    %v9483 = vpop.f32.mrf.mxu0
    %v9484 = vadd.f32 0.0, %v9483
    %v9485 = vpop.f32.mrf.mxu0
    %v9486 = vpop.f32.mrf.mxu0
    %9487 = vdwg.mxu0
    %v9489 = vsel %vm9443, %v9440, 0
    %9491 = vmatprep.subr.bf16.mxu0 0
    %9492 = vmatpush1.bf16.msra.mxu0 0
    %9493 = vmatprep.subr.bf16.mxu0 0
    %9494 = vmatpush1.bf16.msra.mxu0 0
    %9495 = vmatprep.subr.bf16.mxu0 0
    %9496 = vmatpush1.bf16.msra.mxu0 0
    %9497 = vmatprep.subr.bf16.mxu0 0
    %9498 = vmatpush1.bf16.msra.mxu0 0
    %9499 = vmatprep.subr.bf16.mxu0 0
    %9500 = vmatpush1.bf16.msra.mxu0 0
    %9501 = vmatprep.subr.bf16.mxu0 0
    %9502 = vmatpush1.bf16.msra.mxu0 0
    %9503 = vmatprep.subr.bf16.mxu0 %v9391
    %9504 = vmatpush1.bf16.msra.mxu0 %v9390
    %9505 = vmatprep.subr.bf16.mxu0 %v9341
    %9506 = vmatpush1.bf16.msra.mxu0 %v9340
    %9507 = vmatprep.subr.bf16.mxu0 0
    %9508 = vmatpush2.bf16.msra.mxu0 0
    %9509 = vmatprep.subr.bf16.mxu0 0
    %9510 = vmatpush2.bf16.msra.mxu0 0
    %9511 = vmatprep.subr.bf16.mxu0 0
    %9512 = vmatpush2.bf16.msra.mxu0 0
    %9513 = vmatprep.subr.bf16.mxu0 0
    %9514 = vmatpush2.bf16.msra.mxu0 0
    %9515 = vmatprep.subr.bf16.mxu0 0
    %9516 = vmatpush2.bf16.msra.mxu0 0
    %9517 = vmatprep.subr.bf16.mxu0 0
    %9518 = vmatpush2.bf16.msra.mxu0 0
    %9519 = vmatprep.subr.bf16.mxu0 0
    %9520 = vmatpush2.bf16.msra.mxu0 0
    %9521 = vmatprep.subr.bf16.mxu0 0
    %9522 = vmatpush2.bf16.msra.mxu0 0
    %9523 = vmatprep.mubr.bf16.mxu0 0
    %9524 = vmatmul.mubr.bf16.gmra.mxu0 %v9489
    %v9525 = vpop.f32.mrf.mxu0
    %v9526 = vadd.f32 %v9482, %v9525
    %v9527 = vpop.f32.mrf.mxu0
    %v9528 = vadd.f32 %v9484, %v9527
    %v9529 = vpop.f32.mrf.mxu0
    %v9530 = vpop.f32.mrf.mxu0
    %9531 = vdwg.mxu0
    %s9532 = scalar_lea.vmem %s7, 8
    %v9533 = vld [vmem:[%s9532] sm:$0xf]
    %v9535 = vsel %vm9443, %v9533, 0
    %9537 = vmatprep.subr.bf16.mxu0 0
    %9538 = vmatpush1.bf16.msra.mxu0 0
    %9539 = vmatprep.subr.bf16.mxu0 0
    %9540 = vmatpush1.bf16.msra.mxu0 0
    %9541 = vmatprep.subr.bf16.mxu0 0
    %9542 = vmatpush1.bf16.msra.mxu0 0
    %9543 = vmatprep.subr.bf16.mxu0 0
    %9544 = vmatpush1.bf16.msra.mxu0 0
    %9545 = vmatprep.subr.bf16.mxu0 0
    %9546 = vmatpush1.bf16.msra.mxu0 0
    %9547 = vmatprep.subr.bf16.mxu0 0
    %9548 = vmatpush1.bf16.msra.mxu0 0
    %9549 = vmatprep.subr.bf16.mxu0 %v9395
    %9550 = vmatpush1.bf16.msra.mxu0 %v9394
    %9551 = vmatprep.subr.bf16.mxu0 %v9345
    %9552 = vmatpush1.bf16.msra.mxu0 %v9344
    %9553 = vmatprep.subr.bf16.mxu0 0
    %9554 = vmatpush2.bf16.msra.mxu0 0
    %9555 = vmatprep.subr.bf16.mxu0 0
    %9556 = vmatpush2.bf16.msra.mxu0 0
    %9557 = vmatprep.subr.bf16.mxu0 0
    %9558 = vmatpush2.bf16.msra.mxu0 0
    %9559 = vmatprep.subr.bf16.mxu0 0
    %9560 = vmatpush2.bf16.msra.mxu0 0
    %9561 = vmatprep.subr.bf16.mxu0 0
    %9562 = vmatpush2.bf16.msra.mxu0 0
    %9563 = vmatprep.subr.bf16.mxu0 0
    %9564 = vmatpush2.bf16.msra.mxu0 0
    %9565 = vmatprep.subr.bf16.mxu0 0
    %9566 = vmatpush2.bf16.msra.mxu0 0
    %9567 = vmatprep.subr.bf16.mxu0 0
    %9568 = vmatpush2.bf16.msra.mxu0 0
    %9569 = vmatprep.mubr.bf16.mxu0 0
    %9570 = vmatmul.mubr.bf16.gmra.mxu0 %v9535
    %v9571 = vpop.f32.mrf.mxu0
    %v9572 = vadd.f32 0.0, %v9571
    %v9573 = vpop.f32.mrf.mxu0
    %v9574 = vadd.f32 0.0, %v9573
    %v9575 = vpop.f32.mrf.mxu0
    %v9576 = vpop.f32.mrf.mxu0
    %9577 = vdwg.mxu0
    %v9578 = vadd.f32 %v9526, %v9572
    %v9579 = vadd.f32 %v9528, %v9574
    %s9580 = scalar_lea.vmem %s7, 12
    %v9581 = vld [vmem:[%s9580] sm:$0xf]
    %v9583 = vsel %vm9443, %v9581, 0
    %9585 = vmatprep.subr.bf16.mxu0 0
    %9586 = vmatpush1.bf16.msra.mxu0 0
    %9587 = vmatprep.subr.bf16.mxu0 0
    %9588 = vmatpush1.bf16.msra.mxu0 0
    %9589 = vmatprep.subr.bf16.mxu0 0
    %9590 = vmatpush1.bf16.msra.mxu0 0
    %9591 = vmatprep.subr.bf16.mxu0 0
    %9592 = vmatpush1.bf16.msra.mxu0 0
    %9593 = vmatprep.subr.bf16.mxu0 0
    %9594 = vmatpush1.bf16.msra.mxu0 0
    %9595 = vmatprep.subr.bf16.mxu0 0
    %9596 = vmatpush1.bf16.msra.mxu0 0
    %9597 = vmatprep.subr.bf16.mxu0 %v9397
    %9598 = vmatpush1.bf16.msra.mxu0 %v9396
    %9599 = vmatprep.subr.bf16.mxu0 %v9347
    %9600 = vmatpush1.bf16.msra.mxu0 %v9346
    %9601 = vmatprep.subr.bf16.mxu0 0
    %9602 = vmatpush2.bf16.msra.mxu0 0
    %9603 = vmatprep.subr.bf16.mxu0 0
    %9604 = vmatpush2.bf16.msra.mxu0 0
    %9605 = vmatprep.subr.bf16.mxu0 0
    %9606 = vmatpush2.bf16.msra.mxu0 0
    %9607 = vmatprep.subr.bf16.mxu0 0
    %9608 = vmatpush2.bf16.msra.mxu0 0
    %9609 = vmatprep.subr.bf16.mxu0 0
    %9610 = vmatpush2.bf16.msra.mxu0 0
    %9611 = vmatprep.subr.bf16.mxu0 0
    %9612 = vmatpush2.bf16.msra.mxu0 0
    %9613 = vmatprep.subr.bf16.mxu0 0
    %9614 = vmatpush2.bf16.msra.mxu0 0
    %9615 = vmatprep.subr.bf16.mxu0 0
    %9616 = vmatpush2.bf16.msra.mxu0 0
    %9617 = vmatprep.mubr.bf16.mxu0 0
    %9618 = vmatmul.mubr.bf16.gmra.mxu0 %v9583
    %v9619 = vpop.f32.mrf.mxu0
    %v9620 = vadd.f32 0.0, %v9619
    %v9621 = vpop.f32.mrf.mxu0
    %v9622 = vadd.f32 0.0, %v9621
    %v9623 = vpop.f32.mrf.mxu0
    %v9624 = vpop.f32.mrf.mxu0
    %9625 = vdwg.mxu0
    %v9626 = vadd.f32 %v9578, %v9620
    %v9627 = vadd.f32 %v9579, %v9622
    %s9628 = scalar_lea.vmem %s7, 16
    %v9629 = vld [vmem:[%s9628] sm:$0xf]
    %v9631 = vsel %vm9443, %v9629, 0
    %9633 = vmatprep.subr.bf16.mxu0 0
    %9634 = vmatpush1.bf16.msra.mxu0 0
    %9635 = vmatprep.subr.bf16.mxu0 0
    %9636 = vmatpush1.bf16.msra.mxu0 0
    %9637 = vmatprep.subr.bf16.mxu0 0
    %9638 = vmatpush1.bf16.msra.mxu0 0
    %9639 = vmatprep.subr.bf16.mxu0 0
    %9640 = vmatpush1.bf16.msra.mxu0 0
    %9641 = vmatprep.subr.bf16.mxu0 0
    %9642 = vmatpush1.bf16.msra.mxu0 0
    %9643 = vmatprep.subr.bf16.mxu0 0
    %9644 = vmatpush1.bf16.msra.mxu0 0
    %9645 = vmatprep.subr.bf16.mxu0 %v9399
    %9646 = vmatpush1.bf16.msra.mxu0 %v9398
    %9647 = vmatprep.subr.bf16.mxu0 %v9349
    %9648 = vmatpush1.bf16.msra.mxu0 %v9348
    %9649 = vmatprep.subr.bf16.mxu0 0
    %9650 = vmatpush2.bf16.msra.mxu0 0
    %9651 = vmatprep.subr.bf16.mxu0 0
    %9652 = vmatpush2.bf16.msra.mxu0 0
    %9653 = vmatprep.subr.bf16.mxu0 0
    %9654 = vmatpush2.bf16.msra.mxu0 0
    %9655 = vmatprep.subr.bf16.mxu0 0
    %9656 = vmatpush2.bf16.msra.mxu0 0
    %9657 = vmatprep.subr.bf16.mxu0 0
    %9658 = vmatpush2.bf16.msra.mxu0 0
    %9659 = vmatprep.subr.bf16.mxu0 0
    %9660 = vmatpush2.bf16.msra.mxu0 0
    %9661 = vmatprep.subr.bf16.mxu0 0
    %9662 = vmatpush2.bf16.msra.mxu0 0
    %9663 = vmatprep.subr.bf16.mxu0 0
    %9664 = vmatpush2.bf16.msra.mxu0 0
    %9665 = vmatprep.mubr.bf16.mxu0 0
    %9666 = vmatmul.mubr.bf16.gmra.mxu0 %v9631
    %v9667 = vpop.f32.mrf.mxu0
    %v9668 = vadd.f32 0.0, %v9667
    %v9669 = vpop.f32.mrf.mxu0
    %v9670 = vadd.f32 0.0, %v9669
    %v9671 = vpop.f32.mrf.mxu0
    %v9672 = vpop.f32.mrf.mxu0
    %9673 = vdwg.mxu0
    %v9674 = vadd.f32 %v9626, %v9668
    %v9675 = vadd.f32 %v9627, %v9670
    %s9676 = scalar_lea.vmem %s7, 20
    %v9677 = vld [vmem:[%s9676] sm:$0xf]
    %v9679 = vsel %vm9443, %v9677, 0
    %9681 = vmatprep.subr.bf16.mxu0 0
    %9682 = vmatpush1.bf16.msra.mxu0 0
    %9683 = vmatprep.subr.bf16.mxu0 0
    %9684 = vmatpush1.bf16.msra.mxu0 0
    %9685 = vmatprep.subr.bf16.mxu0 0
    %9686 = vmatpush1.bf16.msra.mxu0 0
    %9687 = vmatprep.subr.bf16.mxu0 0
    %9688 = vmatpush1.bf16.msra.mxu0 0
    %9689 = vmatprep.subr.bf16.mxu0 0
    %9690 = vmatpush1.bf16.msra.mxu0 0
    %9691 = vmatprep.subr.bf16.mxu0 0
    %9692 = vmatpush1.bf16.msra.mxu0 0
    %9693 = vmatprep.subr.bf16.mxu0 %v9401
    %9694 = vmatpush1.bf16.msra.mxu0 %v9400
    %9695 = vmatprep.subr.bf16.mxu0 %v9351
    %9696 = vmatpush1.bf16.msra.mxu0 %v9350
    %9697 = vmatprep.subr.bf16.mxu0 0
    %9698 = vmatpush2.bf16.msra.mxu0 0
    %9699 = vmatprep.subr.bf16.mxu0 0
    %9700 = vmatpush2.bf16.msra.mxu0 0
    %9701 = vmatprep.subr.bf16.mxu0 0
    %9702 = vmatpush2.bf16.msra.mxu0 0
    %9703 = vmatprep.subr.bf16.mxu0 0
    %9704 = vmatpush2.bf16.msra.mxu0 0
    %9705 = vmatprep.subr.bf16.mxu0 0
    %9706 = vmatpush2.bf16.msra.mxu0 0
    %9707 = vmatprep.subr.bf16.mxu0 0
    %9708 = vmatpush2.bf16.msra.mxu0 0
    %9709 = vmatprep.subr.bf16.mxu0 0
    %9710 = vmatpush2.bf16.msra.mxu0 0
    %9711 = vmatprep.subr.bf16.mxu0 0
    %9712 = vmatpush2.bf16.msra.mxu0 0
    %9713 = vmatprep.mubr.bf16.mxu0 0
    %9714 = vmatmul.mubr.bf16.gmra.mxu0 %v9679
    %v9715 = vpop.f32.mrf.mxu0
    %v9716 = vadd.f32 0.0, %v9715
    %v9717 = vpop.f32.mrf.mxu0
    %v9718 = vadd.f32 0.0, %v9717
    %v9719 = vpop.f32.mrf.mxu0
    %v9720 = vpop.f32.mrf.mxu0
    %9721 = vdwg.mxu0
    %v9722 = vadd.f32 %v9674, %v9716
    %v9723 = vadd.f32 %v9675, %v9718
    %s9724 = scalar_lea.vmem %s7, 24
    %v9725 = vld [vmem:[%s9724] sm:$0xf]
    %v9727 = vsel %vm9443, %v9725, 0
    %9729 = vmatprep.subr.bf16.mxu0 0
    %9730 = vmatpush1.bf16.msra.mxu0 0
    %9731 = vmatprep.subr.bf16.mxu0 0
    %9732 = vmatpush1.bf16.msra.mxu0 0
    %9733 = vmatprep.subr.bf16.mxu0 0
    %9734 = vmatpush1.bf16.msra.mxu0 0
    %9735 = vmatprep.subr.bf16.mxu0 0
    %9736 = vmatpush1.bf16.msra.mxu0 0
    %9737 = vmatprep.subr.bf16.mxu0 0
    %9738 = vmatpush1.bf16.msra.mxu0 0
    %9739 = vmatprep.subr.bf16.mxu0 0
    %9740 = vmatpush1.bf16.msra.mxu0 0
    %9741 = vmatprep.subr.bf16.mxu0 %v9403
    %9742 = vmatpush1.bf16.msra.mxu0 %v9402
    %9743 = vmatprep.subr.bf16.mxu0 %v9353
    %9744 = vmatpush1.bf16.msra.mxu0 %v9352
    %9745 = vmatprep.subr.bf16.mxu0 0
    %9746 = vmatpush2.bf16.msra.mxu0 0
    %9747 = vmatprep.subr.bf16.mxu0 0
    %9748 = vmatpush2.bf16.msra.mxu0 0
    %9749 = vmatprep.subr.bf16.mxu0 0
    %9750 = vmatpush2.bf16.msra.mxu0 0
    %9751 = vmatprep.subr.bf16.mxu0 0
    %9752 = vmatpush2.bf16.msra.mxu0 0
    %9753 = vmatprep.subr.bf16.mxu0 0
    %9754 = vmatpush2.bf16.msra.mxu0 0
    %9755 = vmatprep.subr.bf16.mxu0 0
    %9756 = vmatpush2.bf16.msra.mxu0 0
    %9757 = vmatprep.subr.bf16.mxu0 0
    %9758 = vmatpush2.bf16.msra.mxu0 0
    %9759 = vmatprep.subr.bf16.mxu0 0
    %9760 = vmatpush2.bf16.msra.mxu0 0
    %9761 = vmatprep.mubr.bf16.mxu0 0
    %9762 = vmatmul.mubr.bf16.gmra.mxu0 %v9727
    %v9763 = vpop.f32.mrf.mxu0
    %v9764 = vadd.f32 0.0, %v9763
    %v9765 = vpop.f32.mrf.mxu0
    %v9766 = vadd.f32 0.0, %v9765
    %v9767 = vpop.f32.mrf.mxu0
    %v9768 = vpop.f32.mrf.mxu0
    %9769 = vdwg.mxu0
    %v9770 = vadd.f32 %v9722, %v9764
    %v9771 = vadd.f32 %v9723, %v9766
    %s9772 = scalar_lea.vmem %s7, 28
    %v9773 = vld [vmem:[%s9772] sm:$0xf]
    %v9775 = vsel %vm9443, %v9773, 0
    %9777 = vmatprep.subr.bf16.mxu0 0
    %9778 = vmatpush1.bf16.msra.mxu0 0
    %9779 = vmatprep.subr.bf16.mxu0 0
    %9780 = vmatpush1.bf16.msra.mxu0 0
    %9781 = vmatprep.subr.bf16.mxu0 0
    %9782 = vmatpush1.bf16.msra.mxu0 0
    %9783 = vmatprep.subr.bf16.mxu0 0
    %9784 = vmatpush1.bf16.msra.mxu0 0
    %9785 = vmatprep.subr.bf16.mxu0 0
    %9786 = vmatpush1.bf16.msra.mxu0 0
    %9787 = vmatprep.subr.bf16.mxu0 0
    %9788 = vmatpush1.bf16.msra.mxu0 0
    %9789 = vmatprep.subr.bf16.mxu0 %v9405
    %9790 = vmatpush1.bf16.msra.mxu0 %v9404
    %9791 = vmatprep.subr.bf16.mxu0 %v9355
    %9792 = vmatpush1.bf16.msra.mxu0 %v9354
    %9793 = vmatprep.subr.bf16.mxu0 0
    %9794 = vmatpush2.bf16.msra.mxu0 0
    %9795 = vmatprep.subr.bf16.mxu0 0
    %9796 = vmatpush2.bf16.msra.mxu0 0
    %9797 = vmatprep.subr.bf16.mxu0 0
    %9798 = vmatpush2.bf16.msra.mxu0 0
    %9799 = vmatprep.subr.bf16.mxu0 0
    %9800 = vmatpush2.bf16.msra.mxu0 0
    %9801 = vmatprep.subr.bf16.mxu0 0
    %9802 = vmatpush2.bf16.msra.mxu0 0
    %9803 = vmatprep.subr.bf16.mxu0 0
    %9804 = vmatpush2.bf16.msra.mxu0 0
    %9805 = vmatprep.subr.bf16.mxu0 0
    %9806 = vmatpush2.bf16.msra.mxu0 0
    %9807 = vmatprep.subr.bf16.mxu0 0
    %9808 = vmatpush2.bf16.msra.mxu0 0
    %9809 = vmatprep.mubr.bf16.mxu0 0
    %9810 = vmatmul.mubr.bf16.gmra.mxu0 %v9775
    %v9811 = vpop.f32.mrf.mxu0
    %v9812 = vadd.f32 0.0, %v9811
    %v9813 = vpop.f32.mrf.mxu0
    %v9814 = vadd.f32 0.0, %v9813
    %v9815 = vpop.f32.mrf.mxu0
    %v9816 = vpop.f32.mrf.mxu0
    %9817 = vdwg.mxu0
    %v9818 = vadd.f32 %v9770, %v9812
    %v9819 = vadd.f32 %v9771, %v9814
    %s9820 = scalar_lea.vmem %s7, 32
    %v9821 = vld [vmem:[%s9820] sm:$0xf]
    %v9823 = vsel %vm9443, %v9821, 0
    %9825 = vmatprep.subr.bf16.mxu0 0
    %9826 = vmatpush1.bf16.msra.mxu0 0
    %9827 = vmatprep.subr.bf16.mxu0 0
    %9828 = vmatpush1.bf16.msra.mxu0 0
    %9829 = vmatprep.subr.bf16.mxu0 0
    %9830 = vmatpush1.bf16.msra.mxu0 0
    %9831 = vmatprep.subr.bf16.mxu0 0
    %9832 = vmatpush1.bf16.msra.mxu0 0
    %9833 = vmatprep.subr.bf16.mxu0 0
    %9834 = vmatpush1.bf16.msra.mxu0 0
    %9835 = vmatprep.subr.bf16.mxu0 0
    %9836 = vmatpush1.bf16.msra.mxu0 0
    %9837 = vmatprep.subr.bf16.mxu0 %v9407
    %9838 = vmatpush1.bf16.msra.mxu0 %v9406
    %9839 = vmatprep.subr.bf16.mxu0 %v9357
    %9840 = vmatpush1.bf16.msra.mxu0 %v9356
    %9841 = vmatprep.subr.bf16.mxu0 0
    %9842 = vmatpush2.bf16.msra.mxu0 0
    %9843 = vmatprep.subr.bf16.mxu0 0
    %9844 = vmatpush2.bf16.msra.mxu0 0
    %9845 = vmatprep.subr.bf16.mxu0 0
    %9846 = vmatpush2.bf16.msra.mxu0 0
    %9847 = vmatprep.subr.bf16.mxu0 0
    %9848 = vmatpush2.bf16.msra.mxu0 0
    %9849 = vmatprep.subr.bf16.mxu0 0
    %9850 = vmatpush2.bf16.msra.mxu0 0
    %9851 = vmatprep.subr.bf16.mxu0 0
    %9852 = vmatpush2.bf16.msra.mxu0 0
    %9853 = vmatprep.subr.bf16.mxu0 0
    %9854 = vmatpush2.bf16.msra.mxu0 0
    %9855 = vmatprep.subr.bf16.mxu0 0
    %9856 = vmatpush2.bf16.msra.mxu0 0
    %9857 = vmatprep.mubr.bf16.mxu0 0
    %9858 = vmatmul.mubr.bf16.gmra.mxu0 %v9823
    %v9859 = vpop.f32.mrf.mxu0
    %v9860 = vadd.f32 0.0, %v9859
    %v9861 = vpop.f32.mrf.mxu0
    %v9862 = vadd.f32 0.0, %v9861
    %v9863 = vpop.f32.mrf.mxu0
    %v9864 = vpop.f32.mrf.mxu0
    %9865 = vdwg.mxu0
    %v9866 = vadd.f32 %v9818, %v9860
    %v9867 = vadd.f32 %v9819, %v9862
    %s9868 = scalar_lea.vmem %s7, 36
    %v9869 = vld [vmem:[%s9868] sm:$0xf]
    %v9871 = vsel %vm9443, %v9869, 0
    %9873 = vmatprep.subr.bf16.mxu0 0
    %9874 = vmatpush1.bf16.msra.mxu0 0
    %9875 = vmatprep.subr.bf16.mxu0 0
    %9876 = vmatpush1.bf16.msra.mxu0 0
    %9877 = vmatprep.subr.bf16.mxu0 0
    %9878 = vmatpush1.bf16.msra.mxu0 0
    %9879 = vmatprep.subr.bf16.mxu0 0
    %9880 = vmatpush1.bf16.msra.mxu0 0
    %9881 = vmatprep.subr.bf16.mxu0 0
    %9882 = vmatpush1.bf16.msra.mxu0 0
    %9883 = vmatprep.subr.bf16.mxu0 0
    %9884 = vmatpush1.bf16.msra.mxu0 0
    %9885 = vmatprep.subr.bf16.mxu0 %v9409
    %9886 = vmatpush1.bf16.msra.mxu0 %v9408
    %9887 = vmatprep.subr.bf16.mxu0 %v9359
    %9888 = vmatpush1.bf16.msra.mxu0 %v9358
    %9889 = vmatprep.subr.bf16.mxu0 0
    %9890 = vmatpush2.bf16.msra.mxu0 0
    %9891 = vmatprep.subr.bf16.mxu0 0
    %9892 = vmatpush2.bf16.msra.mxu0 0
    %9893 = vmatprep.subr.bf16.mxu0 0
    %9894 = vmatpush2.bf16.msra.mxu0 0
    %9895 = vmatprep.subr.bf16.mxu0 0
    %9896 = vmatpush2.bf16.msra.mxu0 0
    %9897 = vmatprep.subr.bf16.mxu0 0
    %9898 = vmatpush2.bf16.msra.mxu0 0
    %9899 = vmatprep.subr.bf16.mxu0 0
    %9900 = vmatpush2.bf16.msra.mxu0 0
    %9901 = vmatprep.subr.bf16.mxu0 0
    %9902 = vmatpush2.bf16.msra.mxu0 0
    %9903 = vmatprep.subr.bf16.mxu0 0
    %9904 = vmatpush2.bf16.msra.mxu0 0
    %9905 = vmatprep.mubr.bf16.mxu0 0
    %9906 = vmatmul.mubr.bf16.gmra.mxu0 %v9871
    %v9907 = vpop.f32.mrf.mxu0
    %v9908 = vadd.f32 0.0, %v9907
    %v9909 = vpop.f32.mrf.mxu0
    %v9910 = vadd.f32 0.0, %v9909
    %v9911 = vpop.f32.mrf.mxu0
    %v9912 = vpop.f32.mrf.mxu0
    %9913 = vdwg.mxu0
    %v9914 = vadd.f32 %v9866, %v9908
    %v9915 = vadd.f32 %v9867, %v9910
    %s9916 = scalar_lea.vmem %s7, 40
    %v9917 = vld [vmem:[%s9916] sm:$0xf]
    %v9919 = vsel %vm9443, %v9917, 0
    %9921 = vmatprep.subr.bf16.mxu0 0
    %9922 = vmatpush1.bf16.msra.mxu0 0
    %9923 = vmatprep.subr.bf16.mxu0 0
    %9924 = vmatpush1.bf16.msra.mxu0 0
    %9925 = vmatprep.subr.bf16.mxu0 0
    %9926 = vmatpush1.bf16.msra.mxu0 0
    %9927 = vmatprep.subr.bf16.mxu0 0
    %9928 = vmatpush1.bf16.msra.mxu0 0
    %9929 = vmatprep.subr.bf16.mxu0 0
    %9930 = vmatpush1.bf16.msra.mxu0 0
    %9931 = vmatprep.subr.bf16.mxu0 0
    %9932 = vmatpush1.bf16.msra.mxu0 0
    %9933 = vmatprep.subr.bf16.mxu0 %v9411
    %9934 = vmatpush1.bf16.msra.mxu0 %v9410
    %9935 = vmatprep.subr.bf16.mxu0 %v9361
    %9936 = vmatpush1.bf16.msra.mxu0 %v9360
    %9937 = vmatprep.subr.bf16.mxu0 0
    %9938 = vmatpush2.bf16.msra.mxu0 0
    %9939 = vmatprep.subr.bf16.mxu0 0
    %9940 = vmatpush2.bf16.msra.mxu0 0
    %9941 = vmatprep.subr.bf16.mxu0 0
    %9942 = vmatpush2.bf16.msra.mxu0 0
    %9943 = vmatprep.subr.bf16.mxu0 0
    %9944 = vmatpush2.bf16.msra.mxu0 0
    %9945 = vmatprep.subr.bf16.mxu0 0
    %9946 = vmatpush2.bf16.msra.mxu0 0
    %9947 = vmatprep.subr.bf16.mxu0 0
    %9948 = vmatpush2.bf16.msra.mxu0 0
    %9949 = vmatprep.subr.bf16.mxu0 0
    %9950 = vmatpush2.bf16.msra.mxu0 0
    %9951 = vmatprep.subr.bf16.mxu0 0
    %9952 = vmatpush2.bf16.msra.mxu0 0
    %9953 = vmatprep.mubr.bf16.mxu0 0
    %9954 = vmatmul.mubr.bf16.gmra.mxu0 %v9919
    %v9955 = vpop.f32.mrf.mxu0
    %v9956 = vadd.f32 0.0, %v9955
    %v9957 = vpop.f32.mrf.mxu0
    %v9958 = vadd.f32 0.0, %v9957
    %v9959 = vpop.f32.mrf.mxu0
    %v9960 = vpop.f32.mrf.mxu0
    %9961 = vdwg.mxu0
    %v9962 = vadd.f32 %v9914, %v9956
    %v9963 = vadd.f32 %v9915, %v9958
    %s9964 = scalar_lea.vmem %s7, 44
    %v9965 = vld [vmem:[%s9964] sm:$0xf]
    %v9967 = vsel %vm9443, %v9965, 0
    %9969 = vmatprep.subr.bf16.mxu0 0
    %9970 = vmatpush1.bf16.msra.mxu0 0
    %9971 = vmatprep.subr.bf16.mxu0 0
    %9972 = vmatpush1.bf16.msra.mxu0 0
    %9973 = vmatprep.subr.bf16.mxu0 0
    %9974 = vmatpush1.bf16.msra.mxu0 0
    %9975 = vmatprep.subr.bf16.mxu0 0
    %9976 = vmatpush1.bf16.msra.mxu0 0
    %9977 = vmatprep.subr.bf16.mxu0 0
    %9978 = vmatpush1.bf16.msra.mxu0 0
    %9979 = vmatprep.subr.bf16.mxu0 0
    %9980 = vmatpush1.bf16.msra.mxu0 0
    %9981 = vmatprep.subr.bf16.mxu0 %v9413
    %9982 = vmatpush1.bf16.msra.mxu0 %v9412
    %9983 = vmatprep.subr.bf16.mxu0 %v9363
    %9984 = vmatpush1.bf16.msra.mxu0 %v9362
    %9985 = vmatprep.subr.bf16.mxu0 0
    %9986 = vmatpush2.bf16.msra.mxu0 0
    %9987 = vmatprep.subr.bf16.mxu0 0
    %9988 = vmatpush2.bf16.msra.mxu0 0
    %9989 = vmatprep.subr.bf16.mxu0 0
    %9990 = vmatpush2.bf16.msra.mxu0 0
    %9991 = vmatprep.subr.bf16.mxu0 0
    %9992 = vmatpush2.bf16.msra.mxu0 0
    %9993 = vmatprep.subr.bf16.mxu0 0
    %9994 = vmatpush2.bf16.msra.mxu0 0
    %9995 = vmatprep.subr.bf16.mxu0 0
    %9996 = vmatpush2.bf16.msra.mxu0 0
    %9997 = vmatprep.subr.bf16.mxu0 0
    %9998 = vmatpush2.bf16.msra.mxu0 0
    %9999 = vmatprep.subr.bf16.mxu0 0
    %10000 = vmatpush2.bf16.msra.mxu0 0
    %10001 = vmatprep.mubr.bf16.mxu0 0
    %10002 = vmatmul.mubr.bf16.gmra.mxu0 %v9967
    %v10003 = vpop.f32.mrf.mxu0
    %v10004 = vadd.f32 0.0, %v10003
    %v10005 = vpop.f32.mrf.mxu0
    %v10006 = vadd.f32 0.0, %v10005
    %v10007 = vpop.f32.mrf.mxu0
    %v10008 = vpop.f32.mrf.mxu0
    %10009 = vdwg.mxu0
    %v10010 = vadd.f32 %v9962, %v10004
    %v10011 = vadd.f32 %v9963, %v10006
    %s10012 = scalar_lea.vmem %s7, 48
    %v10013 = vld [vmem:[%s10012] sm:$0xf]
    %v10015 = vsel %vm9443, %v10013, 0
    %10017 = vmatprep.subr.bf16.mxu0 0
    %10018 = vmatpush1.bf16.msra.mxu0 0
    %10019 = vmatprep.subr.bf16.mxu0 0
    %10020 = vmatpush1.bf16.msra.mxu0 0
    %10021 = vmatprep.subr.bf16.mxu0 0
    %10022 = vmatpush1.bf16.msra.mxu0 0
    %10023 = vmatprep.subr.bf16.mxu0 0
    %10024 = vmatpush1.bf16.msra.mxu0 0
    %10025 = vmatprep.subr.bf16.mxu0 0
    %10026 = vmatpush1.bf16.msra.mxu0 0
    %10027 = vmatprep.subr.bf16.mxu0 0
    %10028 = vmatpush1.bf16.msra.mxu0 0
    %10029 = vmatprep.subr.bf16.mxu0 %v9415
    %10030 = vmatpush1.bf16.msra.mxu0 %v9414
    %10031 = vmatprep.subr.bf16.mxu0 %v9365
    %10032 = vmatpush1.bf16.msra.mxu0 %v9364
    %10033 = vmatprep.subr.bf16.mxu0 0
    %10034 = vmatpush2.bf16.msra.mxu0 0
    %10035 = vmatprep.subr.bf16.mxu0 0
    %10036 = vmatpush2.bf16.msra.mxu0 0
    %10037 = vmatprep.subr.bf16.mxu0 0
    %10038 = vmatpush2.bf16.msra.mxu0 0
    %10039 = vmatprep.subr.bf16.mxu0 0
    %10040 = vmatpush2.bf16.msra.mxu0 0
    %10041 = vmatprep.subr.bf16.mxu0 0
    %10042 = vmatpush2.bf16.msra.mxu0 0
    %10043 = vmatprep.subr.bf16.mxu0 0
    %10044 = vmatpush2.bf16.msra.mxu0 0
    %10045 = vmatprep.subr.bf16.mxu0 0
    %10046 = vmatpush2.bf16.msra.mxu0 0
    %10047 = vmatprep.subr.bf16.mxu0 0
    %10048 = vmatpush2.bf16.msra.mxu0 0
    %10049 = vmatprep.mubr.bf16.mxu0 0
    %10050 = vmatmul.mubr.bf16.gmra.mxu0 %v10015
    %v10051 = vpop.f32.mrf.mxu0
    %v10052 = vadd.f32 0.0, %v10051
    %v10053 = vpop.f32.mrf.mxu0
    %v10054 = vadd.f32 0.0, %v10053
    %v10055 = vpop.f32.mrf.mxu0
    %v10056 = vpop.f32.mrf.mxu0
    %10057 = vdwg.mxu0
    %v10058 = vadd.f32 %v10010, %v10052
    %v10059 = vadd.f32 %v10011, %v10054
    %s10060 = scalar_lea.vmem %s7, 52
    %v10061 = vld [vmem:[%s10060] sm:$0xf]
    %v10063 = vsel %vm9443, %v10061, 0
    %10065 = vmatprep.subr.bf16.mxu0 0
    %10066 = vmatpush1.bf16.msra.mxu0 0
    %10067 = vmatprep.subr.bf16.mxu0 0
    %10068 = vmatpush1.bf16.msra.mxu0 0
    %10069 = vmatprep.subr.bf16.mxu0 0
    %10070 = vmatpush1.bf16.msra.mxu0 0
    %10071 = vmatprep.subr.bf16.mxu0 0
    %10072 = vmatpush1.bf16.msra.mxu0 0
    %10073 = vmatprep.subr.bf16.mxu0 0
    %10074 = vmatpush1.bf16.msra.mxu0 0
    %10075 = vmatprep.subr.bf16.mxu0 0
    %10076 = vmatpush1.bf16.msra.mxu0 0
    %10077 = vmatprep.subr.bf16.mxu0 %v9417
    %10078 = vmatpush1.bf16.msra.mxu0 %v9416
    %10079 = vmatprep.subr.bf16.mxu0 %v9367
    %10080 = vmatpush1.bf16.msra.mxu0 %v9366
    %10081 = vmatprep.subr.bf16.mxu0 0
    %10082 = vmatpush2.bf16.msra.mxu0 0
    %10083 = vmatprep.subr.bf16.mxu0 0
    %10084 = vmatpush2.bf16.msra.mxu0 0
    %10085 = vmatprep.subr.bf16.mxu0 0
    %10086 = vmatpush2.bf16.msra.mxu0 0
    %10087 = vmatprep.subr.bf16.mxu0 0
    %10088 = vmatpush2.bf16.msra.mxu0 0
    %10089 = vmatprep.subr.bf16.mxu0 0
    %10090 = vmatpush2.bf16.msra.mxu0 0
    %10091 = vmatprep.subr.bf16.mxu0 0
    %10092 = vmatpush2.bf16.msra.mxu0 0
    %10093 = vmatprep.subr.bf16.mxu0 0
    %10094 = vmatpush2.bf16.msra.mxu0 0
    %10095 = vmatprep.subr.bf16.mxu0 0
    %10096 = vmatpush2.bf16.msra.mxu0 0
    %10097 = vmatprep.mubr.bf16.mxu0 0
    %10098 = vmatmul.mubr.bf16.gmra.mxu0 %v10063
    %v10099 = vpop.f32.mrf.mxu0
    %v10100 = vadd.f32 0.0, %v10099
    %v10101 = vpop.f32.mrf.mxu0
    %v10102 = vadd.f32 0.0, %v10101
    %v10103 = vpop.f32.mrf.mxu0
    %v10104 = vpop.f32.mrf.mxu0
    %10105 = vdwg.mxu0
    %v10106 = vadd.f32 %v10058, %v10100
    %v10107 = vadd.f32 %v10059, %v10102
    %s10108 = scalar_lea.vmem %s7, 56
    %v10109 = vld [vmem:[%s10108] sm:$0xf]
    %v10111 = vsel %vm9443, %v10109, 0
    %10113 = vmatprep.subr.bf16.mxu0 0
    %10114 = vmatpush1.bf16.msra.mxu0 0
    %10115 = vmatprep.subr.bf16.mxu0 0
    %10116 = vmatpush1.bf16.msra.mxu0 0
    %10117 = vmatprep.subr.bf16.mxu0 0
    %10118 = vmatpush1.bf16.msra.mxu0 0
    %10119 = vmatprep.subr.bf16.mxu0 0
    %10120 = vmatpush1.bf16.msra.mxu0 0
    %10121 = vmatprep.subr.bf16.mxu0 0
    %10122 = vmatpush1.bf16.msra.mxu0 0
    %10123 = vmatprep.subr.bf16.mxu0 0
    %10124 = vmatpush1.bf16.msra.mxu0 0
    %10125 = vmatprep.subr.bf16.mxu0 %v9419
    %10126 = vmatpush1.bf16.msra.mxu0 %v9418
    %10127 = vmatprep.subr.bf16.mxu0 %v9369
    %10128 = vmatpush1.bf16.msra.mxu0 %v9368
    %10129 = vmatprep.subr.bf16.mxu0 0
    %10130 = vmatpush2.bf16.msra.mxu0 0
    %10131 = vmatprep.subr.bf16.mxu0 0
    %10132 = vmatpush2.bf16.msra.mxu0 0
    %10133 = vmatprep.subr.bf16.mxu0 0
    %10134 = vmatpush2.bf16.msra.mxu0 0
    %10135 = vmatprep.subr.bf16.mxu0 0
    %10136 = vmatpush2.bf16.msra.mxu0 0
    %10137 = vmatprep.subr.bf16.mxu0 0
    %10138 = vmatpush2.bf16.msra.mxu0 0
    %10139 = vmatprep.subr.bf16.mxu0 0
    %10140 = vmatpush2.bf16.msra.mxu0 0
    %10141 = vmatprep.subr.bf16.mxu0 0
    %10142 = vmatpush2.bf16.msra.mxu0 0
    %10143 = vmatprep.subr.bf16.mxu0 0
    %10144 = vmatpush2.bf16.msra.mxu0 0
    %10145 = vmatprep.mubr.bf16.mxu0 0
    %10146 = vmatmul.mubr.bf16.gmra.mxu0 %v10111
    %v10147 = vpop.f32.mrf.mxu0
    %v10148 = vadd.f32 0.0, %v10147
    %v10149 = vpop.f32.mrf.mxu0
    %v10150 = vadd.f32 0.0, %v10149
    %v10151 = vpop.f32.mrf.mxu0
    %v10152 = vpop.f32.mrf.mxu0
    %10153 = vdwg.mxu0
    %v10154 = vadd.f32 %v10106, %v10148
    %v10155 = vadd.f32 %v10107, %v10150
    %s10156 = scalar_lea.vmem %s7, 60
    %v10157 = vld [vmem:[%s10156] sm:$0xf]
    %v10159 = vsel %vm9443, %v10157, 0
    %10161 = vmatprep.subr.bf16.mxu0 0
    %10162 = vmatpush1.bf16.msra.mxu0 0
    %10163 = vmatprep.subr.bf16.mxu0 0
    %10164 = vmatpush1.bf16.msra.mxu0 0
    %10165 = vmatprep.subr.bf16.mxu0 0
    %10166 = vmatpush1.bf16.msra.mxu0 0
    %10167 = vmatprep.subr.bf16.mxu0 0
    %10168 = vmatpush1.bf16.msra.mxu0 0
    %10169 = vmatprep.subr.bf16.mxu0 0
    %10170 = vmatpush1.bf16.msra.mxu0 0
    %10171 = vmatprep.subr.bf16.mxu0 0
    %10172 = vmatpush1.bf16.msra.mxu0 0
    %10173 = vmatprep.subr.bf16.mxu0 %v9421
    %10174 = vmatpush1.bf16.msra.mxu0 %v9420
    %10175 = vmatprep.subr.bf16.mxu0 %v9371
    %10176 = vmatpush1.bf16.msra.mxu0 %v9370
    %10177 = vmatprep.subr.bf16.mxu0 0
    %10178 = vmatpush2.bf16.msra.mxu0 0
    %10179 = vmatprep.subr.bf16.mxu0 0
    %10180 = vmatpush2.bf16.msra.mxu0 0
    %10181 = vmatprep.subr.bf16.mxu0 0
    %10182 = vmatpush2.bf16.msra.mxu0 0
    %10183 = vmatprep.subr.bf16.mxu0 0
    %10184 = vmatpush2.bf16.msra.mxu0 0
    %10185 = vmatprep.subr.bf16.mxu0 0
    %10186 = vmatpush2.bf16.msra.mxu0 0
    %10187 = vmatprep.subr.bf16.mxu0 0
    %10188 = vmatpush2.bf16.msra.mxu0 0
    %10189 = vmatprep.subr.bf16.mxu0 0
    %10190 = vmatpush2.bf16.msra.mxu0 0
    %10191 = vmatprep.subr.bf16.mxu0 0
    %10192 = vmatpush2.bf16.msra.mxu0 0
    %10193 = vmatprep.mubr.bf16.mxu0 0
    %10194 = vmatmul.mubr.bf16.gmra.mxu0 %v10159
    %v10195 = vpop.f32.mrf.mxu0
    %v10196 = vadd.f32 0.0, %v10195
    %v10197 = vpop.f32.mrf.mxu0
    %v10198 = vadd.f32 0.0, %v10197
    %v10199 = vpop.f32.mrf.mxu0
    %v10200 = vpop.f32.mrf.mxu0
    %10201 = vdwg.mxu0
    %v10202 = vadd.f32 %v10154, %v10196
    %v10203 = vadd.f32 %v10155, %v10198
    %s10204 = scalar_lea.vmem %s7, 64
    %v10205 = vld [vmem:[%s10204] sm:$0xf]
    %v10207 = vsel %vm9443, %v10205, 0
    %10209 = vmatprep.subr.bf16.mxu0 0
    %10210 = vmatpush1.bf16.msra.mxu0 0
    %10211 = vmatprep.subr.bf16.mxu0 0
    %10212 = vmatpush1.bf16.msra.mxu0 0
    %10213 = vmatprep.subr.bf16.mxu0 0
    %10214 = vmatpush1.bf16.msra.mxu0 0
    %10215 = vmatprep.subr.bf16.mxu0 0
    %10216 = vmatpush1.bf16.msra.mxu0 0
    %10217 = vmatprep.subr.bf16.mxu0 0
    %10218 = vmatpush1.bf16.msra.mxu0 0
    %10219 = vmatprep.subr.bf16.mxu0 0
    %10220 = vmatpush1.bf16.msra.mxu0 0
    %10221 = vmatprep.subr.bf16.mxu0 %v9423
    %10222 = vmatpush1.bf16.msra.mxu0 %v9422
    %10223 = vmatprep.subr.bf16.mxu0 %v9373
    %10224 = vmatpush1.bf16.msra.mxu0 %v9372
    %10225 = vmatprep.subr.bf16.mxu0 0
    %10226 = vmatpush2.bf16.msra.mxu0 0
    %10227 = vmatprep.subr.bf16.mxu0 0
    %10228 = vmatpush2.bf16.msra.mxu0 0
    %10229 = vmatprep.subr.bf16.mxu0 0
    %10230 = vmatpush2.bf16.msra.mxu0 0
    %10231 = vmatprep.subr.bf16.mxu0 0
    %10232 = vmatpush2.bf16.msra.mxu0 0
    %10233 = vmatprep.subr.bf16.mxu0 0
    %10234 = vmatpush2.bf16.msra.mxu0 0
    %10235 = vmatprep.subr.bf16.mxu0 0
    %10236 = vmatpush2.bf16.msra.mxu0 0
    %10237 = vmatprep.subr.bf16.mxu0 0
    %10238 = vmatpush2.bf16.msra.mxu0 0
    %10239 = vmatprep.subr.bf16.mxu0 0
    %10240 = vmatpush2.bf16.msra.mxu0 0
    %10241 = vmatprep.mubr.bf16.mxu0 0
    %10242 = vmatmul.mubr.bf16.gmra.mxu0 %v10207
    %v10243 = vpop.f32.mrf.mxu0
    %v10244 = vadd.f32 0.0, %v10243
    %v10245 = vpop.f32.mrf.mxu0
    %v10246 = vadd.f32 0.0, %v10245
    %v10247 = vpop.f32.mrf.mxu0
    %v10248 = vpop.f32.mrf.mxu0
    %10249 = vdwg.mxu0
    %v10250 = vadd.f32 %v10202, %v10244
    %v10251 = vadd.f32 %v10203, %v10246
    %s10252 = scalar_lea.vmem %s7, 68
    %v10253 = vld [vmem:[%s10252] sm:$0xf]
    %v10255 = vsel %vm9443, %v10253, 0
    %10257 = vmatprep.subr.bf16.mxu0 0
    %10258 = vmatpush1.bf16.msra.mxu0 0
    %10259 = vmatprep.subr.bf16.mxu0 0
    %10260 = vmatpush1.bf16.msra.mxu0 0
    %10261 = vmatprep.subr.bf16.mxu0 0
    %10262 = vmatpush1.bf16.msra.mxu0 0
    %10263 = vmatprep.subr.bf16.mxu0 0
    %10264 = vmatpush1.bf16.msra.mxu0 0
    %10265 = vmatprep.subr.bf16.mxu0 0
    %10266 = vmatpush1.bf16.msra.mxu0 0
    %10267 = vmatprep.subr.bf16.mxu0 0
    %10268 = vmatpush1.bf16.msra.mxu0 0
    %10269 = vmatprep.subr.bf16.mxu0 %v9425
    %10270 = vmatpush1.bf16.msra.mxu0 %v9424
    %10271 = vmatprep.subr.bf16.mxu0 %v9375
    %10272 = vmatpush1.bf16.msra.mxu0 %v9374
    %10273 = vmatprep.subr.bf16.mxu0 0
    %10274 = vmatpush2.bf16.msra.mxu0 0
    %10275 = vmatprep.subr.bf16.mxu0 0
    %10276 = vmatpush2.bf16.msra.mxu0 0
    %10277 = vmatprep.subr.bf16.mxu0 0
    %10278 = vmatpush2.bf16.msra.mxu0 0
    %10279 = vmatprep.subr.bf16.mxu0 0
    %10280 = vmatpush2.bf16.msra.mxu0 0
    %10281 = vmatprep.subr.bf16.mxu0 0
    %10282 = vmatpush2.bf16.msra.mxu0 0
    %10283 = vmatprep.subr.bf16.mxu0 0
    %10284 = vmatpush2.bf16.msra.mxu0 0
    %10285 = vmatprep.subr.bf16.mxu0 0
    %10286 = vmatpush2.bf16.msra.mxu0 0
    %10287 = vmatprep.subr.bf16.mxu0 0
    %10288 = vmatpush2.bf16.msra.mxu0 0
    %10289 = vmatprep.mubr.bf16.mxu0 0
    %10290 = vmatmul.mubr.bf16.gmra.mxu0 %v10255
    %v10291 = vpop.f32.mrf.mxu0
    %v10292 = vadd.f32 0.0, %v10291
    %v10293 = vpop.f32.mrf.mxu0
    %v10294 = vadd.f32 0.0, %v10293
    %v10295 = vpop.f32.mrf.mxu0
    %v10296 = vpop.f32.mrf.mxu0
    %10297 = vdwg.mxu0
    %v10298 = vadd.f32 %v10250, %v10292
    %v10299 = vadd.f32 %v10251, %v10294
    %s10300 = scalar_lea.vmem %s7, 72
    %v10301 = vld [vmem:[%s10300] sm:$0xf]
    %v10303 = vsel %vm9443, %v10301, 0
    %10305 = vmatprep.subr.bf16.mxu0 0
    %10306 = vmatpush1.bf16.msra.mxu0 0
    %10307 = vmatprep.subr.bf16.mxu0 0
    %10308 = vmatpush1.bf16.msra.mxu0 0
    %10309 = vmatprep.subr.bf16.mxu0 0
    %10310 = vmatpush1.bf16.msra.mxu0 0
    %10311 = vmatprep.subr.bf16.mxu0 0
    %10312 = vmatpush1.bf16.msra.mxu0 0
    %10313 = vmatprep.subr.bf16.mxu0 0
    %10314 = vmatpush1.bf16.msra.mxu0 0
    %10315 = vmatprep.subr.bf16.mxu0 0
    %10316 = vmatpush1.bf16.msra.mxu0 0
    %10317 = vmatprep.subr.bf16.mxu0 %v9427
    %10318 = vmatpush1.bf16.msra.mxu0 %v9426
    %10319 = vmatprep.subr.bf16.mxu0 %v9377
    %10320 = vmatpush1.bf16.msra.mxu0 %v9376
    %10321 = vmatprep.subr.bf16.mxu0 0
    %10322 = vmatpush2.bf16.msra.mxu0 0
    %10323 = vmatprep.subr.bf16.mxu0 0
    %10324 = vmatpush2.bf16.msra.mxu0 0
    %10325 = vmatprep.subr.bf16.mxu0 0
    %10326 = vmatpush2.bf16.msra.mxu0 0
    %10327 = vmatprep.subr.bf16.mxu0 0
    %10328 = vmatpush2.bf16.msra.mxu0 0
    %10329 = vmatprep.subr.bf16.mxu0 0
    %10330 = vmatpush2.bf16.msra.mxu0 0
    %10331 = vmatprep.subr.bf16.mxu0 0
    %10332 = vmatpush2.bf16.msra.mxu0 0
    %10333 = vmatprep.subr.bf16.mxu0 0
    %10334 = vmatpush2.bf16.msra.mxu0 0
    %10335 = vmatprep.subr.bf16.mxu0 0
    %10336 = vmatpush2.bf16.msra.mxu0 0
    %10337 = vmatprep.mubr.bf16.mxu0 0
    %10338 = vmatmul.mubr.bf16.gmra.mxu0 %v10303
    %v10339 = vpop.f32.mrf.mxu0
    %v10340 = vadd.f32 0.0, %v10339
    %v10341 = vpop.f32.mrf.mxu0
    %v10342 = vadd.f32 0.0, %v10341
    %v10343 = vpop.f32.mrf.mxu0
    %v10344 = vpop.f32.mrf.mxu0
    %10345 = vdwg.mxu0
    %v10346 = vadd.f32 %v10298, %v10340
    %v10347 = vadd.f32 %v10299, %v10342
    %s10348 = scalar_lea.vmem %s7, 76
    %v10349 = vld [vmem:[%s10348] sm:$0xf]
    %v10351 = vsel %vm9443, %v10349, 0
    %10353 = vmatprep.subr.bf16.mxu0 0
    %10354 = vmatpush1.bf16.msra.mxu0 0
    %10355 = vmatprep.subr.bf16.mxu0 0
    %10356 = vmatpush1.bf16.msra.mxu0 0
    %10357 = vmatprep.subr.bf16.mxu0 0
    %10358 = vmatpush1.bf16.msra.mxu0 0
    %10359 = vmatprep.subr.bf16.mxu0 0
    %10360 = vmatpush1.bf16.msra.mxu0 0
    %10361 = vmatprep.subr.bf16.mxu0 0
    %10362 = vmatpush1.bf16.msra.mxu0 0
    %10363 = vmatprep.subr.bf16.mxu0 0
    %10364 = vmatpush1.bf16.msra.mxu0 0
    %10365 = vmatprep.subr.bf16.mxu0 %v9429
    %10366 = vmatpush1.bf16.msra.mxu0 %v9428
    %10367 = vmatprep.subr.bf16.mxu0 %v9379
    %10368 = vmatpush1.bf16.msra.mxu0 %v9378
    %10369 = vmatprep.subr.bf16.mxu0 0
    %10370 = vmatpush2.bf16.msra.mxu0 0
    %10371 = vmatprep.subr.bf16.mxu0 0
    %10372 = vmatpush2.bf16.msra.mxu0 0
    %10373 = vmatprep.subr.bf16.mxu0 0
    %10374 = vmatpush2.bf16.msra.mxu0 0
    %10375 = vmatprep.subr.bf16.mxu0 0
    %10376 = vmatpush2.bf16.msra.mxu0 0
    %10377 = vmatprep.subr.bf16.mxu0 0
    %10378 = vmatpush2.bf16.msra.mxu0 0
    %10379 = vmatprep.subr.bf16.mxu0 0
    %10380 = vmatpush2.bf16.msra.mxu0 0
    %10381 = vmatprep.subr.bf16.mxu0 0
    %10382 = vmatpush2.bf16.msra.mxu0 0
    %10383 = vmatprep.subr.bf16.mxu0 0
    %10384 = vmatpush2.bf16.msra.mxu0 0
    %10385 = vmatprep.mubr.bf16.mxu0 0
    %10386 = vmatmul.mubr.bf16.gmra.mxu0 %v10351
    %v10387 = vpop.f32.mrf.mxu0
    %v10388 = vadd.f32 0.0, %v10387
    %v10389 = vpop.f32.mrf.mxu0
    %v10390 = vadd.f32 0.0, %v10389
    %v10391 = vpop.f32.mrf.mxu0
    %v10392 = vpop.f32.mrf.mxu0
    %10393 = vdwg.mxu0
    %v10394 = vadd.f32 %v10346, %v10388
    %v10395 = vadd.f32 %v10347, %v10390
    %s10396 = scalar_lea.vmem %s7, 80
    %v10397 = vld [vmem:[%s10396] sm:$0xf]
    %v10399 = vsel %vm9443, %v10397, 0
    %10401 = vmatprep.subr.bf16.mxu0 0
    %10402 = vmatpush1.bf16.msra.mxu0 0
    %10403 = vmatprep.subr.bf16.mxu0 0
    %10404 = vmatpush1.bf16.msra.mxu0 0
    %10405 = vmatprep.subr.bf16.mxu0 0
    %10406 = vmatpush1.bf16.msra.mxu0 0
    %10407 = vmatprep.subr.bf16.mxu0 0
    %10408 = vmatpush1.bf16.msra.mxu0 0
    %10409 = vmatprep.subr.bf16.mxu0 0
    %10410 = vmatpush1.bf16.msra.mxu0 0
    %10411 = vmatprep.subr.bf16.mxu0 0
    %10412 = vmatpush1.bf16.msra.mxu0 0
    %10413 = vmatprep.subr.bf16.mxu0 %v9431
    %10414 = vmatpush1.bf16.msra.mxu0 %v9430
    %10415 = vmatprep.subr.bf16.mxu0 %v9381
    %10416 = vmatpush1.bf16.msra.mxu0 %v9380
    %10417 = vmatprep.subr.bf16.mxu0 0
    %10418 = vmatpush2.bf16.msra.mxu0 0
    %10419 = vmatprep.subr.bf16.mxu0 0
    %10420 = vmatpush2.bf16.msra.mxu0 0
    %10421 = vmatprep.subr.bf16.mxu0 0
    %10422 = vmatpush2.bf16.msra.mxu0 0
    %10423 = vmatprep.subr.bf16.mxu0 0
    %10424 = vmatpush2.bf16.msra.mxu0 0
    %10425 = vmatprep.subr.bf16.mxu0 0
    %10426 = vmatpush2.bf16.msra.mxu0 0
    %10427 = vmatprep.subr.bf16.mxu0 0
    %10428 = vmatpush2.bf16.msra.mxu0 0
    %10429 = vmatprep.subr.bf16.mxu0 0
    %10430 = vmatpush2.bf16.msra.mxu0 0
    %10431 = vmatprep.subr.bf16.mxu0 0
    %10432 = vmatpush2.bf16.msra.mxu0 0
    %10433 = vmatprep.mubr.bf16.mxu0 0
    %10434 = vmatmul.mubr.bf16.gmra.mxu0 %v10399
    %v10435 = vpop.f32.mrf.mxu0
    %v10436 = vadd.f32 0.0, %v10435
    %v10437 = vpop.f32.mrf.mxu0
    %v10438 = vadd.f32 0.0, %v10437
    %v10439 = vpop.f32.mrf.mxu0
    %v10440 = vpop.f32.mrf.mxu0
    %10441 = vdwg.mxu0
    %v10442 = vadd.f32 %v10394, %v10436
    %v10443 = vadd.f32 %v10395, %v10438
    %s10444 = scalar_lea.vmem %s7, 84
    %v10445 = vld [vmem:[%s10444] sm:$0xf]
    %v10447 = vsel %vm9443, %v10445, 0
    %10449 = vmatprep.subr.bf16.mxu0 0
    %10450 = vmatpush1.bf16.msra.mxu0 0
    %10451 = vmatprep.subr.bf16.mxu0 0
    %10452 = vmatpush1.bf16.msra.mxu0 0
    %10453 = vmatprep.subr.bf16.mxu0 0
    %10454 = vmatpush1.bf16.msra.mxu0 0
    %10455 = vmatprep.subr.bf16.mxu0 0
    %10456 = vmatpush1.bf16.msra.mxu0 0
    %10457 = vmatprep.subr.bf16.mxu0 0
    %10458 = vmatpush1.bf16.msra.mxu0 0
    %10459 = vmatprep.subr.bf16.mxu0 0
    %10460 = vmatpush1.bf16.msra.mxu0 0
    %10461 = vmatprep.subr.bf16.mxu0 %v9433
    %10462 = vmatpush1.bf16.msra.mxu0 %v9432
    %10463 = vmatprep.subr.bf16.mxu0 %v9383
    %10464 = vmatpush1.bf16.msra.mxu0 %v9382
    %10465 = vmatprep.subr.bf16.mxu0 0
    %10466 = vmatpush2.bf16.msra.mxu0 0
    %10467 = vmatprep.subr.bf16.mxu0 0
    %10468 = vmatpush2.bf16.msra.mxu0 0
    %10469 = vmatprep.subr.bf16.mxu0 0
    %10470 = vmatpush2.bf16.msra.mxu0 0
    %10471 = vmatprep.subr.bf16.mxu0 0
    %10472 = vmatpush2.bf16.msra.mxu0 0
    %10473 = vmatprep.subr.bf16.mxu0 0
    %10474 = vmatpush2.bf16.msra.mxu0 0
    %10475 = vmatprep.subr.bf16.mxu0 0
    %10476 = vmatpush2.bf16.msra.mxu0 0
    %10477 = vmatprep.subr.bf16.mxu0 0
    %10478 = vmatpush2.bf16.msra.mxu0 0
    %10479 = vmatprep.subr.bf16.mxu0 0
    %10480 = vmatpush2.bf16.msra.mxu0 0
    %10481 = vmatprep.mubr.bf16.mxu0 0
    %10482 = vmatmul.mubr.bf16.gmra.mxu0 %v10447
    %v10483 = vpop.f32.mrf.mxu0
    %v10484 = vadd.f32 0.0, %v10483
    %v10485 = vpop.f32.mrf.mxu0
    %v10486 = vadd.f32 0.0, %v10485
    %v10487 = vpop.f32.mrf.mxu0
    %v10488 = vpop.f32.mrf.mxu0
    %10489 = vdwg.mxu0
    %v10490 = vadd.f32 %v10442, %v10484
    %v10491 = vadd.f32 %v10443, %v10486
    %s10492 = scalar_lea.vmem %s7, 88
    %v10493 = vld [vmem:[%s10492] sm:$0xf]
    %v10495 = vsel %vm9443, %v10493, 0
    %10497 = vmatprep.subr.bf16.mxu0 0
    %10498 = vmatpush1.bf16.msra.mxu0 0
    %10499 = vmatprep.subr.bf16.mxu0 0
    %10500 = vmatpush1.bf16.msra.mxu0 0
    %10501 = vmatprep.subr.bf16.mxu0 0
    %10502 = vmatpush1.bf16.msra.mxu0 0
    %10503 = vmatprep.subr.bf16.mxu0 0
    %10504 = vmatpush1.bf16.msra.mxu0 0
    %10505 = vmatprep.subr.bf16.mxu0 0
    %10506 = vmatpush1.bf16.msra.mxu0 0
    %10507 = vmatprep.subr.bf16.mxu0 0
    %10508 = vmatpush1.bf16.msra.mxu0 0
    %10509 = vmatprep.subr.bf16.mxu0 %v9435
    %10510 = vmatpush1.bf16.msra.mxu0 %v9434
    %10511 = vmatprep.subr.bf16.mxu0 %v9385
    %10512 = vmatpush1.bf16.msra.mxu0 %v9384
    %10513 = vmatprep.subr.bf16.mxu0 0
    %10514 = vmatpush2.bf16.msra.mxu0 0
    %10515 = vmatprep.subr.bf16.mxu0 0
    %10516 = vmatpush2.bf16.msra.mxu0 0
    %10517 = vmatprep.subr.bf16.mxu0 0
    %10518 = vmatpush2.bf16.msra.mxu0 0
    %10519 = vmatprep.subr.bf16.mxu0 0
    %10520 = vmatpush2.bf16.msra.mxu0 0
    %10521 = vmatprep.subr.bf16.mxu0 0
    %10522 = vmatpush2.bf16.msra.mxu0 0
    %10523 = vmatprep.subr.bf16.mxu0 0
    %10524 = vmatpush2.bf16.msra.mxu0 0
    %10525 = vmatprep.subr.bf16.mxu0 0
    %10526 = vmatpush2.bf16.msra.mxu0 0
    %10527 = vmatprep.subr.bf16.mxu0 0
    %10528 = vmatpush2.bf16.msra.mxu0 0
    %10529 = vmatprep.mubr.bf16.mxu0 0
    %10530 = vmatmul.mubr.bf16.gmra.mxu0 %v10495
    %v10531 = vpop.f32.mrf.mxu0
    %v10532 = vadd.f32 0.0, %v10531
    %v10533 = vpop.f32.mrf.mxu0
    %v10534 = vadd.f32 0.0, %v10533
    %v10535 = vpop.f32.mrf.mxu0
    %v10536 = vpop.f32.mrf.mxu0
    %10537 = vdwg.mxu0
    %v10538 = vadd.f32 %v10490, %v10532
    %v10539 = vadd.f32 %v10491, %v10534
    %s10540 = scalar_lea.vmem %s7, 92
    %v10541 = vld [vmem:[%s10540] sm:$0xf]
    %v10543 = vsel %vm9443, %v10541, 0
    %10545 = vmatprep.subr.bf16.mxu0 0
    %10546 = vmatpush1.bf16.msra.mxu0 0
    %10547 = vmatprep.subr.bf16.mxu0 0
    %10548 = vmatpush1.bf16.msra.mxu0 0
    %10549 = vmatprep.subr.bf16.mxu0 0
    %10550 = vmatpush1.bf16.msra.mxu0 0
    %10551 = vmatprep.subr.bf16.mxu0 0
    %10552 = vmatpush1.bf16.msra.mxu0 0
    %10553 = vmatprep.subr.bf16.mxu0 0
    %10554 = vmatpush1.bf16.msra.mxu0 0
    %10555 = vmatprep.subr.bf16.mxu0 0
    %10556 = vmatpush1.bf16.msra.mxu0 0
    %10557 = vmatprep.subr.bf16.mxu0 %v9437
    %10558 = vmatpush1.bf16.msra.mxu0 %v9436
    %10559 = vmatprep.subr.bf16.mxu0 %v9387
    %10560 = vmatpush1.bf16.msra.mxu0 %v9386
    %10561 = vmatprep.subr.bf16.mxu0 0
    %10562 = vmatpush2.bf16.msra.mxu0 0
    %10563 = vmatprep.subr.bf16.mxu0 0
    %10564 = vmatpush2.bf16.msra.mxu0 0
    %10565 = vmatprep.subr.bf16.mxu0 0
    %10566 = vmatpush2.bf16.msra.mxu0 0
    %10567 = vmatprep.subr.bf16.mxu0 0
    %10568 = vmatpush2.bf16.msra.mxu0 0
    %10569 = vmatprep.subr.bf16.mxu0 0
    %10570 = vmatpush2.bf16.msra.mxu0 0
    %10571 = vmatprep.subr.bf16.mxu0 0
    %10572 = vmatpush2.bf16.msra.mxu0 0
    %10573 = vmatprep.subr.bf16.mxu0 0
    %10574 = vmatpush2.bf16.msra.mxu0 0
    %10575 = vmatprep.subr.bf16.mxu0 0
    %10576 = vmatpush2.bf16.msra.mxu0 0
    %10577 = vmatprep.mubr.bf16.mxu0 0
    %10578 = vmatmul.mubr.bf16.gmra.mxu0 %v10543
    %v10579 = vpop.f32.mrf.mxu0
    %v10580 = vadd.f32 0.0, %v10579
    %v10581 = vpop.f32.mrf.mxu0
    %v10582 = vadd.f32 0.0, %v10581
    %v10583 = vpop.f32.mrf.mxu0
    %v10584 = vpop.f32.mrf.mxu0
    %10585 = vdwg.mxu0
    %v10586 = vadd.f32 %v10538, %v10580
    %v10587 = vadd.f32 %v10539, %v10582
    %s10588 = scalar_lea.vmem %s7, 96
    %v10589 = vld [vmem:[%s10588] sm:$0xf]
    %v10591 = vsel %vm9443, %v10589, 0
    %10593 = vmatprep.subr.bf16.mxu0 0
    %10594 = vmatpush1.bf16.msra.mxu0 0
    %10595 = vmatprep.subr.bf16.mxu0 0
    %10596 = vmatpush1.bf16.msra.mxu0 0
    %10597 = vmatprep.subr.bf16.mxu0 0
    %10598 = vmatpush1.bf16.msra.mxu0 0
    %10599 = vmatprep.subr.bf16.mxu0 0
    %10600 = vmatpush1.bf16.msra.mxu0 0
    %10601 = vmatprep.subr.bf16.mxu0 0
    %10602 = vmatpush1.bf16.msra.mxu0 0
    %10603 = vmatprep.subr.bf16.mxu0 0
    %10604 = vmatpush1.bf16.msra.mxu0 0
    %10605 = vmatprep.subr.bf16.mxu0 %v9439
    %10606 = vmatpush1.bf16.msra.mxu0 %v9438
    %10607 = vmatprep.subr.bf16.mxu0 %v9389
    %10608 = vmatpush1.bf16.msra.mxu0 %v9388
    %10609 = vmatprep.subr.bf16.mxu0 0
    %10610 = vmatpush2.bf16.msra.mxu0 0
    %10611 = vmatprep.subr.bf16.mxu0 0
    %10612 = vmatpush2.bf16.msra.mxu0 0
    %10613 = vmatprep.subr.bf16.mxu0 0
    %10614 = vmatpush2.bf16.msra.mxu0 0
    %10615 = vmatprep.subr.bf16.mxu0 0
    %10616 = vmatpush2.bf16.msra.mxu0 0
    %10617 = vmatprep.subr.bf16.mxu0 0
    %10618 = vmatpush2.bf16.msra.mxu0 0
    %10619 = vmatprep.subr.bf16.mxu0 0
    %10620 = vmatpush2.bf16.msra.mxu0 0
    %10621 = vmatprep.subr.bf16.mxu0 0
    %10622 = vmatpush2.bf16.msra.mxu0 0
    %10623 = vmatprep.subr.bf16.mxu0 0
    %10624 = vmatpush2.bf16.msra.mxu0 0
    %10625 = vmatprep.mubr.bf16.mxu0 0
    %10626 = vmatmul.mubr.bf16.gmra.mxu0 %v10591
    %v10627 = vpop.f32.mrf.mxu0
    %v10628 = vadd.f32 0.0, %v10627
    %v10629 = vpop.f32.mrf.mxu0
    %v10630 = vadd.f32 0.0, %v10629
    %v10631 = vpop.f32.mrf.mxu0
    %v10632 = vpop.f32.mrf.mxu0
    %10633 = vdwg.mxu0
    %v10634 = vadd.f32 %v10586, %v10628
    %v10635 = vadd.f32 %v10587, %v10630
    %v10636 = vrot.slane %v10634, 4
    %v10637 = vadd.f32 %v10634, %v10636
    %v10638 = vrot.slane %v10637, 2
    %v10639 = vadd.f32 %v10637, %v10638
    %v10640 = vrot.slane %v10639, 1
    %v10641 = vadd.f32 %v10639, %v10640
    %v10642 = vrot.slane %v10635, 4
    %v10643 = vadd.f32 %v10635, %v10642
    %v10644 = vrot.slane %v10643, 2
    %v10645 = vadd.f32 %v10643, %v10644
    %v10646 = vrot.slane %v10645, 1
    %v10647 = vadd.f32 %v10645, %v10646
    %v10648 = vmul.f32 %v10634, %v10634
    %v10649 = vmul.f32 %v10635, %v10635
    %v10650 = vrot.slane %v10648, 4
    %v10651 = vadd.f32 %v10648, %v10650
    %v10652 = vrot.slane %v10651, 2
    %v10653 = vadd.f32 %v10651, %v10652
    %v10654 = vrot.slane %v10653, 1
    %v10655 = vadd.f32 %v10653, %v10654
    %v10656 = vrot.slane %v10649, 4
    %v10657 = vadd.f32 %v10649, %v10656
    %v10658 = vrot.slane %v10657, 2
    %v10659 = vadd.f32 %v10657, %v10658
    %v10660 = vrot.slane %v10659, 1
    %v10661 = vadd.f32 %v10659, %v10660
    %v10662 = vmul.f32 %v10641, 0.125
    %v10663 = vmul.f32 %v10647, 0.125
    %v10664 = vmul.f32 %v10655, 0.125
    %v10665 = vmul.f32 %v10661, 0.125
    %v10666 = vmul.f32 %v10662, %v10662
    %v10667 = vmul.f32 %v10663, %v10663
    %v10668 = vsub.f32 %v10664, %v10666
    %v10669 = vsub.f32 %v10665, %v10667
    %v10670 = vld [vmem:[%s8] sm:$0x3]
    %v10671 = vadd.f32 %v10668, 1e-05
    %v10672 = vadd.f32 %v10669, 1e-05
    %v10673 = vrsqrt.pop %v10671
    %v10674 = vrsqrt.pop %v10672
    %v10677 = vcombine.low %v10673, %v10674
    %v10679 = vunpack.c.l.s4 1966171168
    %v10680 = vunpack.c.0.s8 %v10679
    %v10681 = vlaneseq
    %v10682 = vshrl.u32 %v10681, 7
    %v10683 = vsub.s32 %v10680, %v10682
    %v10684 = vrot.slane %v10677, %v10683
    %v10686 = vunpack.c.l.s4 1966171168
    %v10687 = vunpack.c.0.s8 %v10686
    %v10688 = vlaneseq
    %v10689 = vshrl.u32 %v10688, 7
    %v10690 = vsub.s32 %v10687, %v10689
    %v10691 = vrot.slane %v10684, %v10690
    %v10693 = vmul.f32 %v10670, %v10691
    %v10694 = vld [vmem:[%s9] sm:$0x3]
    %v10696 = vlaneseq
    %v10697 = vshrl.u32 %v10696, 7
    %v10698 = vsub.s32 0, %v10697
    %v10699 = vrot.slane %v10693, %v10698
    %v10700 = vlaneseq
    %v10701 = vshrl.u32 %v10700, 7
    %v10702 = vsub.s32 1, %v10701
    %v10703 = vrot.slane %v10693, %v10702
    %v10706 = vmul.f32 %v10662, %v10699
    %v10707 = vmul.f32 %v10663, %v10703
    %v10710 = vcombine.low %v10706, %v10707
    %v10712 = vunpack.c.l.s4 1966171168
    %v10713 = vunpack.c.0.s8 %v10712
    %v10714 = vlaneseq
    %v10715 = vshrl.u32 %v10714, 7
    %v10716 = vsub.s32 %v10713, %v10715
    %v10717 = vrot.slane %v10710, %v10716
    %v10719 = vunpack.c.l.s4 1966171168
    %v10720 = vunpack.c.0.s8 %v10719
    %v10721 = vlaneseq
    %v10722 = vshrl.u32 %v10721, 7
    %v10723 = vsub.s32 %v10720, %v10722
    %v10724 = vrot.slane %v10717, %v10723
    %v10726 = vsub.f32 %v10694, %v10724
    %v10727 = vmul.f32 %v10634, %v10699
    %v10728 = vmul.f32 %v10635, %v10703
    %v10730 = vlaneseq
    %v10731 = vshrl.u32 %v10730, 7
    %v10732 = vsub.s32 0, %v10731
    %v10733 = vrot.slane %v10726, %v10732
    %v10734 = vlaneseq
    %v10735 = vshrl.u32 %v10734, 7
    %v10736 = vsub.s32 1, %v10735
    %v10737 = vrot.slane %v10726, %v10736
    %v10740 = vadd.f32 %v10727, %v10733
    %v10741 = vadd.f32 %v10728, %v10737
    %v10742 = vmax.f32 %v10740, 0.0
    %v10743 = vmax.f32 %v10741, 0.0
    %v10744 = vpack.c.bf16 %v10742, %v10742
    %v10745 = vpack.c.bf16 %v10743, %v10743
    %v10746 = vld [vmem:[%s11] sm:$0xf]
    %v10747 = vld [vmem:[%s11 + $0x4] sm:$0xf]
    %v10748 = vld [vmem:[%s11 + $0x8] sm:$0xf]
    %v10749 = vld [vmem:[%s11 + $0xc] sm:$0xf]
    %v10750 = vld [vmem:[%s11 + $0x10] sm:$0xf]
    %v10751 = vld [vmem:[%s11 + $0x14] sm:$0xf]
    %v10752 = vld [vmem:[%s11 + $0x18] sm:$0xf]
    %v10753 = vld [vmem:[%s11 + $0x1c] sm:$0xf]
    %v10754 = vld [vmem:[%s11 + $0x20] sm:$0xf]
    %v10755 = vld [vmem:[%s11 + $0x24] sm:$0xf]
    %v10756 = vld [vmem:[%s11 + $0x28] sm:$0xf]
    %v10757 = vld [vmem:[%s11 + $0x2c] sm:$0xf]
    %v10758 = vld [vmem:[%s11 + $0x30] sm:$0xf]
    %v10759 = vld [vmem:[%s11 + $0x34] sm:$0xf]
    %v10760 = vld [vmem:[%s11 + $0x38] sm:$0xf]
    %v10761 = vld [vmem:[%s11 + $0x3c] sm:$0xf]
    %v10762 = vld [vmem:[%s11 + $0x40] sm:$0xf]
    %v10763 = vld [vmem:[%s11 + $0x44] sm:$0xf]
    %v10764 = vld [vmem:[%s11 + $0x48] sm:$0xf]
    %v10765 = vld [vmem:[%s11 + $0x4c] sm:$0xf]
    %v10766 = vld [vmem:[%s11 + $0x50] sm:$0xf]
    %v10767 = vld [vmem:[%s11 + $0x54] sm:$0xf]
    %v10768 = vld [vmem:[%s11 + $0x58] sm:$0xf]
    %v10769 = vld [vmem:[%s11 + $0x5c] sm:$0xf]
    %v10770 = vld [vmem:[%s11 + $0x60] sm:$0xf]
    %v10771 = vld [vmem:[%s11 + $0x64] sm:$0xf]
    %v10772 = vld [vmem:[%s11 + $0x68] sm:$0xf]
    %v10773 = vld [vmem:[%s11 + $0x6c] sm:$0xf]
    %v10774 = vld [vmem:[%s11 + $0x70] sm:$0xf]
    %v10775 = vld [vmem:[%s11 + $0x74] sm:$0xf]
    %v10776 = vld [vmem:[%s11 + $0x78] sm:$0xf]
    %v10777 = vld [vmem:[%s11 + $0x7c] sm:$0xf]
    %v10810 = vunpack.c.l.b16 %v10746
    %v10811 = vunpack.c.l.b16 %v10747
    %v10812 = vunpack.c.l.b16 %v10748
    %v10813 = vunpack.c.l.b16 %v10749
    %v10814 = vunpack.c.l.b16 %v10750
    %v10815 = vunpack.c.l.b16 %v10751
    %v10816 = vunpack.c.l.b16 %v10752
    %v10817 = vunpack.c.l.b16 %v10753
    %v10818 = vunpack.c.l.b16 %v10754
    %v10819 = vunpack.c.l.b16 %v10755
    %v10820 = vunpack.c.l.b16 %v10756
    %v10821 = vunpack.c.l.b16 %v10757
    %v10822 = vunpack.c.l.b16 %v10758
    %v10823 = vunpack.c.l.b16 %v10759
    %v10824 = vunpack.c.l.b16 %v10760
    %v10825 = vunpack.c.l.b16 %v10761
    %v10826 = vunpack.c.l.b16 %v10762
    %v10827 = vunpack.c.l.b16 %v10763
    %v10828 = vunpack.c.l.b16 %v10764
    %v10829 = vunpack.c.l.b16 %v10765
    %v10830 = vunpack.c.l.b16 %v10766
    %v10831 = vunpack.c.l.b16 %v10767
    %v10832 = vunpack.c.l.b16 %v10768
    %v10833 = vunpack.c.l.b16 %v10769
    %v10834 = vunpack.c.l.b16 %v10770
    %v10835 = vunpack.c.l.b16 %v10771
    %v10836 = vunpack.c.l.b16 %v10772
    %v10837 = vunpack.c.l.b16 %v10773
    %v10838 = vunpack.c.l.b16 %v10774
    %v10839 = vunpack.c.l.b16 %v10775
    %v10840 = vunpack.c.l.b16 %v10776
    %v10841 = vunpack.c.l.b16 %v10777
    %v10842 = vpack.c.b16 %v10811, %v10810
    %v10843 = vpack.c.b16 %v10813, %v10812
    %v10844 = vpack.c.b16 %v10815, %v10814
    %v10845 = vpack.c.b16 %v10817, %v10816
    %v10846 = vpack.c.b16 %v10819, %v10818
    %v10847 = vpack.c.b16 %v10821, %v10820
    %v10848 = vpack.c.b16 %v10823, %v10822
    %v10849 = vpack.c.b16 %v10825, %v10824
    %v10850 = vpack.c.b16 %v10827, %v10826
    %v10851 = vpack.c.b16 %v10829, %v10828
    %v10852 = vpack.c.b16 %v10831, %v10830
    %v10853 = vpack.c.b16 %v10833, %v10832
    %v10854 = vpack.c.b16 %v10835, %v10834
    %v10855 = vpack.c.b16 %v10837, %v10836
    %v10856 = vpack.c.b16 %v10839, %v10838
    %v10857 = vpack.c.b16 %v10841, %v10840
    %10874 = vmatprep.subr.bf16.mxu0 0
    %10875 = vmatpush1.bf16.msra.mxu0 %v10849
    %10876 = vmatprep.subr.bf16.mxu0 0
    %10877 = vmatpush1.bf16.msra.mxu0 %v10848
    %10878 = vmatprep.subr.bf16.mxu0 0
    %10879 = vmatpush1.bf16.msra.mxu0 %v10847
    %10880 = vmatprep.subr.bf16.mxu0 0
    %10881 = vmatpush1.bf16.msra.mxu0 %v10846
    %10882 = vmatprep.subr.bf16.mxu0 0
    %10883 = vmatpush1.bf16.msra.mxu0 %v10845
    %10884 = vmatprep.subr.bf16.mxu0 0
    %10885 = vmatpush1.bf16.msra.mxu0 %v10844
    %10886 = vmatprep.subr.bf16.mxu0 0
    %10887 = vmatpush1.bf16.msra.mxu0 %v10843
    %10888 = vmatprep.subr.bf16.mxu0 0
    %10889 = vmatpush1.bf16.msra.mxu0 %v10842
    %10890 = vmatprep.subr.bf16.mxu0 0
    %10891 = vmatpush2.bf16.msra.mxu0 %v10857
    %10892 = vmatprep.subr.bf16.mxu0 0
    %10893 = vmatpush2.bf16.msra.mxu0 %v10856
    %10894 = vmatprep.subr.bf16.mxu0 0
    %10895 = vmatpush2.bf16.msra.mxu0 %v10855
    %10896 = vmatprep.subr.bf16.mxu0 0
    %10897 = vmatpush2.bf16.msra.mxu0 %v10854
    %10898 = vmatprep.subr.bf16.mxu0 0
    %10899 = vmatpush2.bf16.msra.mxu0 %v10853
    %10900 = vmatprep.subr.bf16.mxu0 0
    %10901 = vmatpush2.bf16.msra.mxu0 %v10852
    %10902 = vmatprep.subr.bf16.mxu0 0
    %10903 = vmatpush2.bf16.msra.mxu0 %v10851
    %10904 = vmatprep.subr.bf16.mxu0 0
    %10905 = vmatpush2.bf16.msra.mxu0 %v10850
    %10906 = vmatprep.mubr.bf16.mxu0 %v10745
    %10907 = vmatmul.mubr.bf16.gmra.mxu0 %v10744
    %v10908 = vpop.f32.mrf.mxu0
    %v10909 = vadd.f32 0.0, %v10908
    %v10910 = vpop.f32.mrf.mxu0
    %v10911 = vpop.f32.mrf.mxu0
    %v10912 = vpop.f32.mrf.mxu0
    %10913 = vdwg.mxu0
    %v10914 = vpack.c.bf16 %v10909, %v10909
    %v10915 = vld [vmem:[%s10] sm:$0x1]
    %s10916 = scalar_lea.vmem %s10, 1
    %v10917 = vld [vmem:[%s10916] sm:$0x1]
    %10919 = vrot.lane.b32.xlu0 %v10914, 120
    %v10920 = vpop.permute.xlu0 %10919
    %vm10921 = vcmask 64512
    %v10923 = vsel %vm10921, %v10917, 0
    %vm10925 = vcmask 1043456
    %v10927 = vsel %vm10925, %v10920, 0
    %10929 = vmatprep.subr.bf16.mxu0 0
    %10930 = vmatpush1.bf16.msra.mxu0 0
    %10931 = vmatprep.subr.bf16.mxu0 0
    %10932 = vmatpush1.bf16.msra.mxu0 0
    %10933 = vmatprep.subr.bf16.mxu0 0
    %10934 = vmatpush1.bf16.msra.mxu0 0
    %10935 = vmatprep.subr.bf16.mxu0 0
    %10936 = vmatpush1.bf16.msra.mxu0 0
    %10937 = vmatprep.subr.bf16.mxu0 0
    %10938 = vmatpush1.bf16.msra.mxu0 0
    %10939 = vmatprep.subr.bf16.mxu0 0
    %10940 = vmatpush1.bf16.msra.mxu0 0
    %10941 = vmatprep.subr.bf16.mxu0 0
    %10942 = vmatpush1.bf16.msra.mxu0 0
    %10943 = vmatprep.subr.bf16.mxu0 0
    %10944 = vmatpush1.bf16.msra.mxu0 %v10927
    %10945 = vmatprep.subr.bf16.mxu0 0
    %10946 = vmatpush2.bf16.msra.mxu0 0
    %10947 = vmatprep.subr.bf16.mxu0 0
    %10948 = vmatpush2.bf16.msra.mxu0 0
    %10949 = vmatprep.subr.bf16.mxu0 0
    %10950 = vmatpush2.bf16.msra.mxu0 0
    %10951 = vmatprep.subr.bf16.mxu0 0
    %10952 = vmatpush2.bf16.msra.mxu0 0
    %10953 = vmatprep.subr.bf16.mxu0 0
    %10954 = vmatpush2.bf16.msra.mxu0 0
    %10955 = vmatprep.subr.bf16.mxu0 0
    %10956 = vmatpush2.bf16.msra.mxu0 0
    %10957 = vmatprep.subr.bf16.mxu0 0
    %10958 = vmatpush2.bf16.msra.mxu0 0
    %10959 = vmatprep.subr.bf16.mxu0 0
    %10960 = vmatpush2.bf16.msra.mxu0 0
    %10961 = vmatprep.mubr.bf16.mxu0 0
    %10962 = vmatmul.mubr.bf16.gmra.mxu0 %v10923
    %v10963 = vpop.f32.mrf.mxu0
    %v10964 = vadd.f32 0.0, %v10963
    %v10965 = vpop.f32.mrf.mxu0
    %v10966 = vpop.f32.mrf.mxu0
    %v10967 = vpop.f32.mrf.mxu0
    %10968 = vdwg.mxu0
    %v10970 = vsel %vm10921, %v10915, 0
    %v10973 = vsel %vm10925, %v10914, 0
    %10975 = vmatprep.subr.bf16.mxu0 0
    %10976 = vmatpush1.bf16.msra.mxu0 0
    %10977 = vmatprep.subr.bf16.mxu0 0
    %10978 = vmatpush1.bf16.msra.mxu0 0
    %10979 = vmatprep.subr.bf16.mxu0 0
    %10980 = vmatpush1.bf16.msra.mxu0 0
    %10981 = vmatprep.subr.bf16.mxu0 0
    %10982 = vmatpush1.bf16.msra.mxu0 0
    %10983 = vmatprep.subr.bf16.mxu0 0
    %10984 = vmatpush1.bf16.msra.mxu0 0
    %10985 = vmatprep.subr.bf16.mxu0 0
    %10986 = vmatpush1.bf16.msra.mxu0 0
    %10987 = vmatprep.subr.bf16.mxu0 0
    %10988 = vmatpush1.bf16.msra.mxu0 0
    %10989 = vmatprep.subr.bf16.mxu0 0
    %10990 = vmatpush1.bf16.msra.mxu0 %v10973
    %10991 = vmatprep.subr.bf16.mxu0 0
    %10992 = vmatpush2.bf16.msra.mxu0 0
    %10993 = vmatprep.subr.bf16.mxu0 0
    %10994 = vmatpush2.bf16.msra.mxu0 0
    %10995 = vmatprep.subr.bf16.mxu0 0
    %10996 = vmatpush2.bf16.msra.mxu0 0
    %10997 = vmatprep.subr.bf16.mxu0 0
    %10998 = vmatpush2.bf16.msra.mxu0 0
    %10999 = vmatprep.subr.bf16.mxu0 0
    %11000 = vmatpush2.bf16.msra.mxu0 0
    %11001 = vmatprep.subr.bf16.mxu0 0
    %11002 = vmatpush2.bf16.msra.mxu0 0
    %11003 = vmatprep.subr.bf16.mxu0 0
    %11004 = vmatpush2.bf16.msra.mxu0 0
    %11005 = vmatprep.subr.bf16.mxu0 0
    %11006 = vmatpush2.bf16.msra.mxu0 0
    %11007 = vmatprep.mubr.bf16.mxu0 0
    %11008 = vmatmul.mubr.bf16.gmra.mxu0 %v10970
    %v11009 = vpop.f32.mrf.mxu0
    %v11010 = vadd.f32 %v10964, %v11009
    %v11011 = vpop.f32.mrf.mxu0
    %v11012 = vpop.f32.mrf.mxu0
    %v11013 = vpop.f32.mrf.mxu0
    %11014 = vdwg.mxu0
    %s11015 = scalar_lea.vmem %s10, 2
    %v11016 = vld [vmem:[%s11015] sm:$0x1]
    %11017 = vrot.lane.b32.xlu0 %v10914, 112
    %v11018 = vpop.permute.xlu0 %11017
    %v11020 = vsel %vm10921, %v11016, 0
    %v11023 = vsel %vm10925, %v11018, 0
    %11025 = vmatprep.subr.bf16.mxu0 0
    %11026 = vmatpush1.bf16.msra.mxu0 0
    %11027 = vmatprep.subr.bf16.mxu0 0
    %11028 = vmatpush1.bf16.msra.mxu0 0
    %11029 = vmatprep.subr.bf16.mxu0 0
    %11030 = vmatpush1.bf16.msra.mxu0 0
    %11031 = vmatprep.subr.bf16.mxu0 0
    %11032 = vmatpush1.bf16.msra.mxu0 0
    %11033 = vmatprep.subr.bf16.mxu0 0
    %11034 = vmatpush1.bf16.msra.mxu0 0
    %11035 = vmatprep.subr.bf16.mxu0 0
    %11036 = vmatpush1.bf16.msra.mxu0 0
    %11037 = vmatprep.subr.bf16.mxu0 0
    %11038 = vmatpush1.bf16.msra.mxu0 0
    %11039 = vmatprep.subr.bf16.mxu0 0
    %11040 = vmatpush1.bf16.msra.mxu0 %v11023
    %11041 = vmatprep.subr.bf16.mxu0 0
    %11042 = vmatpush2.bf16.msra.mxu0 0
    %11043 = vmatprep.subr.bf16.mxu0 0
    %11044 = vmatpush2.bf16.msra.mxu0 0
    %11045 = vmatprep.subr.bf16.mxu0 0
    %11046 = vmatpush2.bf16.msra.mxu0 0
    %11047 = vmatprep.subr.bf16.mxu0 0
    %11048 = vmatpush2.bf16.msra.mxu0 0
    %11049 = vmatprep.subr.bf16.mxu0 0
    %11050 = vmatpush2.bf16.msra.mxu0 0
    %11051 = vmatprep.subr.bf16.mxu0 0
    %11052 = vmatpush2.bf16.msra.mxu0 0
    %11053 = vmatprep.subr.bf16.mxu0 0
    %11054 = vmatpush2.bf16.msra.mxu0 0
    %11055 = vmatprep.subr.bf16.mxu0 0
    %11056 = vmatpush2.bf16.msra.mxu0 0
    %11057 = vmatprep.mubr.bf16.mxu0 0
    %11058 = vmatmul.mubr.bf16.gmra.mxu0 %v11020
    %v11059 = vpop.f32.mrf.mxu0
    %v11060 = vadd.f32 0.0, %v11059
    %v11061 = vpop.f32.mrf.mxu0
    %v11062 = vpop.f32.mrf.mxu0
    %v11063 = vpop.f32.mrf.mxu0
    %11064 = vdwg.mxu0
    %v11065 = vadd.f32 %v11010, %v11060
    %s11066 = scalar_lea.vmem %s10, 3
    %v11067 = vld [vmem:[%s11066] sm:$0x1]
    %11068 = vrot.lane.b32.xlu0 %v10914, 104
    %v11069 = vpop.permute.xlu0 %11068
    %v11071 = vsel %vm10921, %v11067, 0
    %v11074 = vsel %vm10925, %v11069, 0
    %11076 = vmatprep.subr.bf16.mxu0 0
    %11077 = vmatpush1.bf16.msra.mxu0 0
    %11078 = vmatprep.subr.bf16.mxu0 0
    %11079 = vmatpush1.bf16.msra.mxu0 0
    %11080 = vmatprep.subr.bf16.mxu0 0
    %11081 = vmatpush1.bf16.msra.mxu0 0
    %11082 = vmatprep.subr.bf16.mxu0 0
    %11083 = vmatpush1.bf16.msra.mxu0 0
    %11084 = vmatprep.subr.bf16.mxu0 0
    %11085 = vmatpush1.bf16.msra.mxu0 0
    %11086 = vmatprep.subr.bf16.mxu0 0
    %11087 = vmatpush1.bf16.msra.mxu0 0
    %11088 = vmatprep.subr.bf16.mxu0 0
    %11089 = vmatpush1.bf16.msra.mxu0 0
    %11090 = vmatprep.subr.bf16.mxu0 0
    %11091 = vmatpush1.bf16.msra.mxu0 %v11074
    %11092 = vmatprep.subr.bf16.mxu0 0
    %11093 = vmatpush2.bf16.msra.mxu0 0
    %11094 = vmatprep.subr.bf16.mxu0 0
    %11095 = vmatpush2.bf16.msra.mxu0 0
    %11096 = vmatprep.subr.bf16.mxu0 0
    %11097 = vmatpush2.bf16.msra.mxu0 0
    %11098 = vmatprep.subr.bf16.mxu0 0
    %11099 = vmatpush2.bf16.msra.mxu0 0
    %11100 = vmatprep.subr.bf16.mxu0 0
    %11101 = vmatpush2.bf16.msra.mxu0 0
    %11102 = vmatprep.subr.bf16.mxu0 0
    %11103 = vmatpush2.bf16.msra.mxu0 0
    %11104 = vmatprep.subr.bf16.mxu0 0
    %11105 = vmatpush2.bf16.msra.mxu0 0
    %11106 = vmatprep.subr.bf16.mxu0 0
    %11107 = vmatpush2.bf16.msra.mxu0 0
    %11108 = vmatprep.mubr.bf16.mxu0 0
    %11109 = vmatmul.mubr.bf16.gmra.mxu0 %v11071
    %v11110 = vpop.f32.mrf.mxu0
    %v11111 = vadd.f32 0.0, %v11110
    %v11112 = vpop.f32.mrf.mxu0
    %v11113 = vpop.f32.mrf.mxu0
    %v11114 = vpop.f32.mrf.mxu0
    %11115 = vdwg.mxu0
    %v11116 = vadd.f32 %v11065, %v11111
    %vm11117 = vcmask 58368
    %11118 = vst.msk [vmem:[#allocation5] sm:$0x3] %vm11117, %v11116
    // Predicated region
    $region118: #{encoder_forward.1} parent=1 // pred_check
      _
    $region119: #{encoder_forward.1} parent=1 // pred_check_branch
      %11120 = sbr.rel (0) target = $region121
    $region120: #{encoder_forward.1} parent=1 // pred_region
      %s11122 = ssub.s32 32, 32
      %11123 = vsyncadd [#allocation6], %s11122
      %s11125 = sshll.u32 [#allocation5], 4
      %s11126 = int_to_ptr.vmem [resolvable:$true] %s11125
      %11128 = dma.vmem_to_hbm [thread:$0]  %s11126, 32, %s14, [#allocation6]
    $region121: #{encoder_forward.1} parent=1 // pred_fallthru
      _
    // Predicated region
    $region122: #{encoder_forward.1} parent=1 // pred_check
      _
    $region123: #{encoder_forward.1} parent=1 // pred_check_branch
      %11130 = sbr.rel (0) target = $region125
    $region124: #{encoder_forward.1} parent=1 // pred_region
      %11131 = dma.done [#allocation6], 32
    $region125: #{encoder_forward.1} parent=1 // pred_fallthru
      _
    %11132 = vsyncpa [#allocation6], 1
  %11133 = vsyncmov [#allocation4]
  %s11134 = vpop.sfrf %11133
  %p11135 = scmp.eq.s32.totalorder %s11134, 0
  %p11136 = pneg %p11135
  %11138 = shalt.err (%p11136)
  %s11139 = scalar_lea.sflag [#allocation4], 1
  %11140 = vsyncmov %s11139
  %s11141 = vpop.sfrf %11140
  %p11142 = scmp.eq.s32.totalorder %s11141, 0
  %p11143 = pneg %p11142
  %11145 = shalt.err (%p11143)

</llo_original>
